<compile_context>
chip_gen: v5e
topology: v5e:2x2
jax: 0.10.0
libtpu: 0.0.40
codegen_flags: <defaults>
</compile_context>

<pallas_src>
import functools
import math

import jax
import jax.numpy as jnp
from jax.experimental import pallas as pl
from jax.experimental.pallas import tpu as pltpu


# ----------------------------------------------------------------------------
# Model dimensions (small, CoatNet-like).  CP = padded lane width.
# ----------------------------------------------------------------------------
CP = 128
C_STEM, C_EXP, C_TOK = 16, 64, 32
HEADS, D_HEAD, REL_HID, N_CLASSES = 2, 16, 32, 10
MLP_HID = 2 * C_TOK

_VMEM = pl.BlockSpec(memory_space=pltpu.MemorySpace.VMEM)


def _cparams(sem=None):
    return pltpu.CompilerParams(dimension_semantics=sem,
                                vmem_limit_bytes=32 * 1024 * 1024)


def _rep(shape):
    """Constant (grid-invariant) full-array block for a 1-D grid."""
    return pl.BlockSpec(shape, lambda i, _n=len(shape): (0,) * _n)


def _ln(x, g, b, true_c, eps=1e-5):
    """LayerNorm over the first `true_c` lanes of a zero-padded [*, CP] tensor.

    Two-pass (x - mu)^2 form (no catastrophic cancellation); padded lanes are
    masked so they contribute nothing and stay exactly zero in the output.
    """
    lanes = jax.lax.broadcasted_iota(jnp.int32, x.shape, x.ndim - 1)
    mask = lanes < true_c
    mu = jnp.sum(x, axis=-1, keepdims=True) / float(true_c)
    d = jnp.where(mask, x - mu, 0.0)
    var = jnp.sum(d * d, axis=-1, keepdims=True) / float(true_c)
    inv = jax.lax.rsqrt(var + eps)
    # padded gamma/beta are zero -> padded lanes of the output stay exactly 0.
    return d * inv * g + b


# ----------------------------------------------------------------------------
# K1: stem conv (im2col matmul + GELU) -> pre-norm -> expand 1x1 + GELU
# ----------------------------------------------------------------------------
def _stem_mbconv_pre_kernel(x_ref, sw_ref, sb_ref, g_ref, b_ref, ew_ref, eb_ref,
                            h_ref, he_ref):
    h = jnp.dot(x_ref[...], sw_ref[...],
                preferred_element_type=jnp.float32) + sb_ref[...]
    # TODO(synk): timm uses exact (erf) GELU; tanh approximation used here.
    h = jax.nn.gelu(h, approximate=True)
    h_ref[...] = h.astype(h_ref.dtype)
    # TODO(synk): timm uses BatchNorm (running stats); replaced with LayerNorm.
    hn = _ln(h, g_ref[...], b_ref[...], C_STEM)
    he = jnp.dot(hn.astype(jnp.bfloat16), ew_ref[...],
                 preferred_element_type=jnp.float32) + eb_ref[...]
    he_ref[...] = jax.nn.gelu(he, approximate=True).astype(he_ref.dtype)


def stem_mbconv_pre(p, x_im2col):
    M, K = x_im2col.shape
    mt = M // 2 if (M % 16 == 0) else M     # 2 "parallel" blocks -> both v7x TCs
    row = lambda i: (i, 0)
    return pl.pallas_call(
        _stem_mbconv_pre_kernel,
        grid=(M // mt,),
        in_specs=[pl.BlockSpec((mt, K), row),
                  _rep(p["stem_w"].shape), _rep(p["stem_b"].shape),
                  _rep(p["mb_norm_g"].shape), _rep(p["mb_norm_b"].shape),
                  _rep(p["mb_exp_w"].shape), _rep(p["mb_exp_b"].shape)],
        out_specs=(pl.BlockSpec((mt, CP), row), pl.BlockSpec((mt, CP), row)),
        out_shape=(jax.ShapeDtypeStruct((M, CP), jnp.bfloat16),
                   jax.ShapeDtypeStruct((M, CP), jnp.bfloat16)),
        compiler_params=_cparams(("parallel",)),
    )(x_im2col, p["stem_w"], p["stem_b"], p["mb_norm_g"], p["mb_norm_b"],
      p["mb_exp_w"], p["mb_exp_b"])


# ----------------------------------------------------------------------------
# K2: depthwise 3x3 stride-2 (+GELU) -> project 1x1 -> + shortcut 1x1 conv
#     Column phases are pre-split in the wrapper; in-kernel tap selection only
#     offsets the H axis (pure address arithmetic, no sublane relayout).
# ----------------------------------------------------------------------------
def _mbconv_dw_proj_kernel(re0_ref, re1_ref, re2_ref, ro0_ref, ro1_ref, ro2_ref,
                           dww_ref, dwb_ref, pw_ref, pb_ref, hs_ref,
                           scw_ref, scb_ref, z_ref):
    Ht = ro0_ref.shape[1]
    re0, re1, re2 = re0_ref[0], re1_ref[0], re2_ref[0]   # [Ht+1, Ht, CP] bf16
    ro0, ro1, ro2 = ro0_ref[0], ro1_ref[0], ro2_ref[0]   # [Ht,   Ht, CP] bf16
    taps = [re0[0:Ht], re1[0:Ht], re2[0:Ht],              # (ky,kx)=(0,0..2)
            ro0, ro1, ro2,                                 # (1,0..2)
            re0[1:Ht + 1], re1[1:Ht + 1], re2[1:Ht + 1]]   # (2,0..2)
    dww = dww_ref[...]                                     # [9, 1, CP] fp32
    acc = taps[0].astype(jnp.float32) * dww[0]
    for t in range(1, 9):
        acc = acc + taps[t].astype(jnp.float32) * dww[t]   # VPU, fp32
    hd = jax.nn.gelu(acc + dwb_ref[...], approximate=True)  # [Ht, Ht, CP]
    hd2 = hd.reshape(Ht * Ht, CP)
    y = jnp.dot(hd2.astype(jnp.bfloat16), pw_ref[...],
                preferred_element_type=jnp.float32) + pb_ref[...]
    # TODO(synk): SE (squeeze-excite) module of the timm MBConv is omitted.
    sc = jnp.dot(hs_ref[0], scw_ref[...],
                 preferred_element_type=jnp.float32) + scb_ref[...]
    z_ref[0] = (y + sc).astype(z_ref.dtype)


def mbconv_dw_proj(p, res, ros, h_sp):
    B, Htp1, Ht, _ = res[0].shape
    N_tok = Ht * Ht
    b4 = lambda i: (i, 0, 0, 0)
    b3 = lambda i: (i, 0, 0)
    in_specs = ([pl.BlockSpec((1, Htp1, Ht, CP), b4)] * 3
                + [pl.BlockSpec((1, Ht, Ht, CP), b4)] * 3
                + [_rep(p["mb_dw_w"].shape), _rep(p["mb_dw_b"].shape),
                   _rep(p["mb_proj_w"].shape), _rep(p["mb_proj_b"].shape),
                   pl.BlockSpec((1, N_tok, CP), b3),
                   _rep(p["mb_sc_w"].shape), _rep(p["mb_sc_b"].shape)])
    return pl.pallas_call(
        _mbconv_dw_proj_kernel,
        grid=(B,),
        in_specs=in_specs,
        out_specs=pl.BlockSpec((1, N_tok, CP), b3),
        out_shape=jax.ShapeDtypeStruct((B, N_tok, CP), jnp.bfloat16),
        compiler_params=_cparams(("parallel",)),
    )(*res, *ros, p["mb_dw_w"], p["mb_dw_b"], p["mb_proj_w"], p["mb_proj_b"],
      h_sp, p["mb_sc_w"], p["mb_sc_b"])


# ----------------------------------------------------------------------------
# K3 (fused): full transformer block per batch element
#   LN1 -> fused qkv matmul -> per-head softmax(QK^T*scale + bias) V ->
#   single out-projection -> +residual -> LN2 -> MLP -> +residual
# ----------------------------------------------------------------------------
def _transformer_block_kernel(scale, z_ref, g1_ref, b1_ref, wqkv_ref, bqkv_ref,
                              bias_ref, wp_ref, pb_ref, g2_ref, b2_ref,
                              w1_ref, bb1_ref, w2_ref, bb2_ref, o_ref):
    z = z_ref[0].astype(jnp.float32)                       # [N, CP]
    zn = _ln(z, g1_ref[...], b1_ref[...], C_TOK)
    qkv = jnp.dot(zn.astype(jnp.bfloat16), wqkv_ref[...],
                  preferred_element_type=jnp.float32) + bqkv_ref[...]  # [N,3CP]
    heads_out = []
    for h in range(HEADS):
        lo = h * D_HEAD
        qh = qkv[:, lo:lo + D_HEAD].astype(jnp.bfloat16)
        kh = qkv[:, CP + lo:CP + lo + D_HEAD].astype(jnp.bfloat16)
        vh = qkv[:, 2 * CP + lo:2 * CP + lo + D_HEAD].astype(jnp.bfloat16)
        s = jax.lax.dot_general(qh, kh, (((1,), (1,)), ((), ())),
                                preferred_element_type=jnp.float32)
        s = s * scale + bias_ref[h]
        s = s - jnp.max(s, axis=-1, keepdims=True)
        pr = jnp.exp(s)
        pr = pr / jnp.sum(pr, axis=-1, keepdims=True)
        heads_out.append(jnp.dot(pr.astype(jnp.bfloat16), vh,
                                 preferred_element_type=jnp.float32))  # [N, D]
    o_all = jnp.concatenate(heads_out, axis=-1).astype(jnp.bfloat16)    # [N,HD]
    attn = jnp.dot(o_all, wp_ref[...],
                   preferred_element_type=jnp.float32) + pb_ref[...]
    z1 = z + attn
    zn2 = _ln(z1, g2_ref[...], b2_ref[...], C_TOK)
    m = jnp.dot(zn2.astype(jnp.bfloat16), w1_ref[...],
                preferred_element_type=jnp.float32) + bb1_ref[...]
    m = jax.nn.gelu(m, approximate=True)
    y = jnp.dot(m.astype(jnp.bfloat16), w2_ref[...],
                preferred_element_type=jnp.float32) + bb2_ref[...]
    o_ref[0] = (z1 + y).astype(o_ref.dtype)


def transformer_block(p, z, scale):
    B, N, _ = z.shape
    zspec = pl.BlockSpec((1, N, CP), lambda i: (i, 0, 0))
    return pl.pallas_call(
        functools.partial(_transformer_block_kernel, scale),
        grid=(B,),
        in_specs=[zspec,
                  _rep(p["ln1_g"].shape), _rep(p["ln1_b"].shape),
                  _rep(p["wqkv"].shape), _rep(p["bqkv"].shape),
                  _rep(p["attn_bias"].shape),
                  _rep(p["wp"].shape), _rep(p["attn_proj_b"].shape),
                  _rep(p["ln2_g"].shape), _rep(p["ln2_b"].shape),
                  _rep(p["mlp_w1"].shape), _rep(p["mlp_b1"].shape),
                  _rep(p["mlp_w2"].shape), _rep(p["mlp_b2"].shape)],
        out_specs=zspec,
        out_shape=jax.ShapeDtypeStruct((B, N, CP), jnp.bfloat16),
        compiler_params=_cparams(("parallel",)),
    )(z, p["ln1_g"], p["ln1_b"], p["wqkv"], p["bqkv"], p["attn_bias"],
      p["wp"], p["attn_proj_b"], p["ln2_g"], p["ln2_b"],
      p["mlp_w1"], p["mlp_b1"], p["mlp_w2"], p["mlp_b2"])


# ----------------------------------------------------------------------------
# K4: global average pool + linear head + sigmoid
# ----------------------------------------------------------------------------
def _pool_head_kernel(x_ref, w_ref, b_ref, o_ref):
    pooled = jnp.mean(x_ref[...].astype(jnp.float32), axis=1)       # [B, CP]
    logits = jnp.dot(pooled.astype(jnp.bfloat16), w_ref[...],
                     preferred_element_type=jnp.float32) + b_ref[...]
    o_ref[...] = jax.nn.sigmoid(logits)


def pool_head(p, z2):
    B = z2.shape[0]
    return pl.pallas_call(
        _pool_head_kernel,
        out_shape=jax.ShapeDtypeStruct((B, CP), jnp.float32),
        in_specs=[_VMEM] * 3,
        out_specs=_VMEM,
        compiler_params=_cparams(),
    )(z2, p["head_w"], p["head_b"])


# ----------------------------------------------------------------------------
# JAX glue (pure data movement: transposes, padding, phase extraction)
# ----------------------------------------------------------------------------
def extract_taps(x_nhwc, stride):
    """9 shifted/strided views of a padded NHWC tensor (3x3, pad=1)."""
    B, H, W, C = x_nhwc.shape
    Ho, Wo = H // stride, W // stride
    xp = jnp.pad(x_nhwc, ((0, 0), (1, 1), (1, 1), (0, 0)))
    taps = []
    for ky in range(3):
        for kx in range(3):
            taps.append(xp[:, ky:ky + stride * Ho:stride,
                           kx:kx + stride * Wo:stride, :])
    return jnp.stack(taps, axis=0)  # [9, B, Ho, Wo, C]


def make_rel_coords(size):
    coords = jnp.stack(
        jnp.meshgrid(jnp.arange(size), jnp.arange(size), indexing="ij"),
        axis=-1).reshape(-1, 2)
    rel = coords[:, None, :] - coords[None, :, :]
    return (rel.astype(jnp.float32) / float(size - 1)).reshape(-1, 2)


# ----------------------------------------------------------------------------
# Parameters (zero-padded to 128 lanes; matmul weights stored in bf16)
# ----------------------------------------------------------------------------
def _pad_w(w, rows=CP, cols=CP):
    out = jnp.zeros((rows, cols), jnp.float32)
    out = out.at[:w.shape[0], :w.shape[1]].set(w)
    return out.astype(jnp.bfloat16)


def _pad_b(v, cols=CP):
    out = jnp.zeros((1, cols), jnp.float32)
    return out.at[0, :v.shape[0]].set(v)


def init_params(key, img_size=32):
    def dense(k, fan_in, shape):
        return jax.random.normal(k, shape, jnp.float32) / math.sqrt(fan_in)

    ks = iter(jax.random.split(key, 24))
    p = {}
    p["stem_w"] = _pad_w(dense(next(ks), 27, (27, C_STEM)), 32, CP)
    p["stem_b"] = jnp.zeros((1, CP), jnp.float32)
    p["mb_norm_g"] = _pad_b(jnp.ones((C_STEM,), jnp.float32))
    p["mb_norm_b"] = jnp.zeros((1, CP), jnp.float32)
    p["mb_exp_w"] = _pad_w(dense(next(ks), C_STEM, (C_STEM, C_EXP)))
    p["mb_exp_b"] = jnp.zeros((1, CP), jnp.float32)
    p["mb_dw_w"] = jnp.zeros((9, 1, CP), jnp.float32).at[:, 0, :C_EXP].set(
        dense(next(ks), 9, (9, C_EXP)))
    p["mb_dw_b"] = jnp.zeros((1, CP), jnp.float32)
    p["mb_proj_w"] = _pad_w(dense(next(ks), C_EXP, (C_EXP, C_TOK)))
    p["mb_proj_b"] = jnp.zeros((1, CP), jnp.float32)
    p["mb_sc_w"] = _pad_w(dense(next(ks), C_STEM, (C_STEM, C_TOK)))
    p["mb_sc_b"] = jnp.zeros((1, CP), jnp.float32)
    p["ln1_g"] = _pad_b(jnp.ones((C_TOK,), jnp.float32))
    p["ln1_b"] = jnp.zeros((1, CP), jnp.float32)
    # fused q|k|v weight: one [CP, 3*CP] matmul, split by 128-aligned lane slices
    wq = dense(next(ks), C_TOK, (C_TOK, C_TOK))
    wk = dense(next(ks), C_TOK, (C_TOK, C_TOK))
    wv = dense(next(ks), C_TOK, (C_TOK, C_TOK))
    wqkv = jnp.zeros((CP, 3 * CP), jnp.float32)
    wqkv = wqkv.at[:C_TOK, 0:C_TOK].set(wq)
    wqkv = wqkv.at[:C_TOK, CP:CP + C_TOK].set(wk)
    wqkv = wqkv.at[:C_TOK, 2 * CP:2 * CP + C_TOK].set(wv)
    p["wqkv"] = wqkv.astype(jnp.bfloat16)
    p["bqkv"] = jnp.zeros((1, 3 * CP), jnp.float32)
    wproj = dense(next(ks), C_TOK, (C_TOK, C_TOK))
    p["wp"] = _pad_w(wproj, HEADS * D_HEAD, CP)            # [H*D, CP]
    p["attn_proj_b"] = jnp.zeros((1, CP), jnp.float32)
    p["ln2_g"] = _pad_b(jnp.ones((C_TOK,), jnp.float32))
    p["ln2_b"] = jnp.zeros((1, CP), jnp.float32)
    p["mlp_w1"] = _pad_w(dense(next(ks), C_TOK, (C_TOK, MLP_HID)))
    p["mlp_b1"] = jnp.zeros((1, CP), jnp.float32)
    p["mlp_w2"] = _pad_w(dense(next(ks), MLP_HID, (MLP_HID, C_TOK)))
    p["mlp_b2"] = jnp.zeros((1, CP), jnp.float32)
    p["head_w"] = _pad_w(dense(next(ks), C_TOK, (C_TOK, N_CLASSES)))
    p["head_b"] = jnp.zeros((1, CP), jnp.float32)

    # relative-position-bias MLP: depends only on (params, Ht) -> computed once
    # at init instead of every forward (was K3 before).
    Ht = img_size // 4
    rel = make_rel_coords(Ht)                                        # [N*N, 2]
    rw1 = dense(next(ks), 2, (2, REL_HID))
    rw2 = dense(next(ks), REL_HID, (REL_HID, HEADS))
    hb = jnp.maximum(rel @ rw1, 0.0) @ rw2                           # [N*N, H]
    p["attn_bias"] = jnp.transpose(
        hb.reshape(Ht * Ht, Ht * Ht, HEADS), (2, 0, 1))              # [H, N, N]
    return p


# ----------------------------------------------------------------------------
# Forward pass
# ----------------------------------------------------------------------------
def coatnet_forward(p, x_nchw):
    B = x_nchw.shape[0]
    x = jnp.transpose(x_nchw, (0, 2, 3, 1)).astype(jnp.float32)   # NCHW -> NHWC
    H = x.shape[1]
    Hs, Ht = H // 2, H // 4
    N_tok = Ht * Ht
    M1 = B * Hs * Hs
    assert p["attn_bias"].shape[-1] == N_tok, "init img_size mismatch"

    # ---- stem im2col (3x3 s2 p1 on the 3-channel input; K padded 27 -> 32) ----
    taps = extract_taps(x, 2)                                       # [9,B,Hs,Hs,3]
    im2col = jnp.transpose(taps, (1, 2, 3, 0, 4)).reshape(M1, 27)
    im2col = jnp.pad(im2col, ((0, 0), (0, 32 - 27))).astype(jnp.bfloat16)

    # ---- K1: stem conv + pre-norm + expand (bf16 outputs) ----
    h, he = stem_mbconv_pre(p, im2col)                              # [M1,CP] x2

    # ---- dw-conv phase grids: column taps pre-split in XLA, rows split by
    #      parity; in-kernel tap selection only offsets the H axis ----
    he_sp = he.reshape(B, Hs, Hs, CP)
    xp = jnp.pad(he_sp, ((0, 0), (1, 1), (1, 1), (0, 0)))           # [B,Hs+2,Hs+2,CP]
    res = [xp[:, 0:2 * Ht + 1:2, kx:kx + 2 * Ht:2, :] for kx in range(3)]
    ros = [xp[:, 1:2 * Ht:2,     kx:kx + 2 * Ht:2, :] for kx in range(3)]

    # shortcut branch: 2x2 avg pool of the stem output (glue); 1x1 conv in K2
    # TODO(synk): could be emitted directly by K1 to drop this HBM round-trip.
    h_sp = h.reshape(B, Ht, 2, Ht, 2, CP).mean(axis=(2, 4)).reshape(B, N_tok, CP)

    # ---- K2: dwconv + project + shortcut conv + residual ----
    z = mbconv_dw_proj(p, res, ros, h_sp)                           # bf16 [B,N,CP]

    # ---- K3 (fused): LN + qkv + attention + out-proj + residual + LN + MLP ----
    z2 = transformer_block(p, z, 1.0 / math.sqrt(D_HEAD))           # bf16 [B,N,CP]

    # ---- K4: pool + head + sigmoid ----
    out = pool_head(p, z2)                                          # [B, CP] fp32
    return out[:, :N_CLASSES]


if __name__ == "__main__":
    key = jax.random.PRNGKey(0)
    x = jax.random.normal(key, (2, 3, 32, 32), jnp.float32)   # NCHW like PyTorch
    params = init_params(jax.random.PRNGKey(1), img_size=32)
    fwd = jax.jit(coatnet_forward)
    out = jax.block_until_ready(fwd(params, x))
    assert out.shape == (2, N_CLASSES)
    assert bool(jnp.all((out >= 0.0) & (out <= 1.0)))         # sigmoid range
    assert bool(jnp.all(jnp.isfinite(out)))
    print("KERNEL_OK")
</pallas_src>

<mosaic_0001>
module attributes {stable_mosaic.version = 11 : i64} {
  func.func @_stem_mbconv_pre_kernel(%arg0: i32, %arg1: memref<256x32xbf16, #tpu.memory_space<vmem>>, %arg2: memref<32x128xbf16, #tpu.memory_space<vmem>>, %arg3: memref<1x128xf32, #tpu.memory_space<vmem>>, %arg4: memref<1x128xf32, #tpu.memory_space<vmem>>, %arg5: memref<1x128xf32, #tpu.memory_space<vmem>>, %arg6: memref<128x128xbf16, #tpu.memory_space<vmem>>, %arg7: memref<1x128xf32, #tpu.memory_space<vmem>>, %arg8: memref<256x128xbf16, #tpu.memory_space<vmem>>, %arg9: memref<256x128xbf16, #tpu.memory_space<vmem>>) attributes {dimension_semantics = [#tpu.dimension_semantics<parallel>], iteration_bounds = array<i64: 2>, scalar_prefetch = 0 : i64, scratch_operands = 0 : i64, tpu.core_type = #tpu.core_type<tc>, window_params = [{transform_indices = @transform_0, window_bounds = array<i64: 256, 32>}, {pipeline_mode = #tpu.pipeline_mode<synchronous>, transform_indices = @transform_1, window_bounds = array<i64: 32, 128>}, {pipeline_mode = #tpu.pipeline_mode<synchronous>, transform_indices = @transform_2, window_bounds = array<i64: 1, 128>}, {pipeline_mode = #tpu.pipeline_mode<synchronous>, transform_indices = @transform_3, window_bounds = array<i64: 1, 128>}, {pipeline_mode = #tpu.pipeline_mode<synchronous>, transform_indices = @transform_4, window_bounds = array<i64: 1, 128>}, {pipeline_mode = #tpu.pipeline_mode<synchronous>, transform_indices = @transform_5, window_bounds = array<i64: 128, 128>}, {pipeline_mode = #tpu.pipeline_mode<synchronous>, transform_indices = @transform_6, window_bounds = array<i64: 1, 128>}, {transform_indices = @transform_7, window_bounds = array<i64: 256, 128>}, {transform_indices = @transform_8, window_bounds = array<i64: 256, 128>}]} {
    %c0 = arith.constant 0 : index
    %c0_0 = arith.constant 0 : index
    %0 = vector.load %arg1[%c0, %c0_0] : memref<256x32xbf16, #tpu.memory_space<vmem>>, vector<256x32xbf16>
    %c0_1 = arith.constant 0 : index
    %c0_2 = arith.constant 0 : index
    %1 = vector.load %arg2[%c0_1, %c0_2] : memref<32x128xbf16, #tpu.memory_space<vmem>>, vector<32x128xbf16>
    %cst = arith.constant dense<0.000000e+00> : vector<256x128xf32>
    %2 = tpu.matmul %0, %1, %cst {dimension_numbers = #tpu.dot_dimension_numbers<[1], [0], [0], [1], [0, 0, 1, 1], [], []>} : vector<256x32xbf16>, vector<32x128xbf16>, vector<256x128xf32> -> vector<256x128xf32>
    %c0_3 = arith.constant 0 : index
    %c0_4 = arith.constant 0 : index
    %3 = vector.load %arg3[%c0_3, %c0_4] : memref<1x128xf32, #tpu.memory_space<vmem>>, vector<1x128xf32>
    %4 = vector.broadcast %3 : vector<1x128xf32> to vector<256x128xf32>
    %5 = arith.addf %2, %4 : vector<256x128xf32>
    %6 = arith.mulf %5, %5 : vector<256x128xf32>
    %7 = arith.mulf %5, %6 : vector<256x128xf32>
    %cst_5 = arith.constant 4.471500e-02 : f32
    %8 = vector.broadcast %cst_5 : f32 to vector<256x128xf32>
    %9 = arith.mulf %8, %7 : vector<256x128xf32>
    %10 = arith.addf %5, %9 : vector<256x128xf32>
    %cst_6 = arith.constant 0.797884583 : f32
    %11 = vector.broadcast %cst_6 : f32 to vector<256x128xf32>
    %12 = arith.mulf %11, %10 : vector<256x128xf32>
    %13 = math.tanh %12 : vector<256x128xf32>
    %cst_7 = arith.constant 1.000000e+00 : f32
    %14 = vector.broadcast %cst_7 : f32 to vector<256x128xf32>
    %15 = arith.addf %14, %13 : vector<256x128xf32>
    %cst_8 = arith.constant 5.000000e-01 : f32
    %16 = vector.broadcast %cst_8 : f32 to vector<256x128xf32>
    %17 = arith.mulf %16, %15 : vector<256x128xf32>
    %18 = arith.mulf %5, %17 : vector<256x128xf32>
    %19 = arith.truncf %18 : vector<256x128xf32> to vector<256x128xbf16>
    %c0_9 = arith.constant 0 : index
    %c0_10 = arith.constant 0 : index
    %20 = vector.load %arg8[%c0_9, %c0_10] : memref<256x128xbf16, #tpu.memory_space<vmem>>, vector<256x128xbf16>
    tpu.vector_store %arg8[%c0_9, %c0_10], %19 {strides = array<i32>} : memref<256x128xbf16, #tpu.memory_space<vmem>>, vector<256x128xbf16>,
    %c0_11 = arith.constant 0 : index
    %c0_12 = arith.constant 0 : index
    %21 = vector.load %arg4[%c0_11, %c0_12] : memref<1x128xf32, #tpu.memory_space<vmem>>, vector<1x128xf32>
    %c0_13 = arith.constant 0 : index
    %c0_14 = arith.constant 0 : index
    %22 = vector.load %arg5[%c0_13, %c0_14] : memref<1x128xf32, #tpu.memory_space<vmem>>, vector<1x128xf32>
    %23 = tpu.iota {dimensions = array<i32: 1>} : vector<256x128xi32>
    %c16_i32 = arith.constant 16 : i32
    %24 = vector.broadcast %c16_i32 : i32 to vector<256x128xi32>
    %25 = arith.cmpi slt, %23, %24 : vector<256x128xi32>
    %cst_15 = arith.constant dense<0.000000e+00> : vector<256xf32>
    %26 = vector.multi_reduction <add>, %18, %cst_15 [1] : vector<256x128xf32> to vector<256xf32>
    %27 = vector.shape_cast %26 : vector<256xf32> to vector<256x1xf32>
    %cst_16 = arith.constant 1.600000e+01 : f32
    %28 = vector.broadcast %cst_16 : f32 to vector<256x1xf32>
    %29 = arith.divf %27, %28 : vector<256x1xf32>
    %30 = vector.broadcast %29 : vector<256x1xf32> to vector<256x128xf32>
    %31 = arith.subf %18, %30 : vector<256x128xf32>
    %cst_17 = arith.constant 0.000000e+00 : f32
    %32 = vector.broadcast %cst_17 : f32 to vector<256x128xf32>
    %33 = arith.select %25, %31, %32 : vector<256x128xi1>, vector<256x128xf32>
    %34 = arith.mulf %33, %33 : vector<256x128xf32>
    %cst_18 = arith.constant dense<0.000000e+00> : vector<256xf32>
    %35 = vector.multi_reduction <add>, %34, %cst_18 [1] : vector<256x128xf32> to vector<256xf32>
    %36 = vector.shape_cast %35 : vector<256xf32> to vector<256x1xf32>
    %cst_19 = arith.constant 1.600000e+01 : f32
    %37 = vector.broadcast %cst_19 : f32 to vector<256x1xf32>
    %38 = arith.divf %36, %37 : vector<256x1xf32>
    %cst_20 = arith.constant 9.99999974E-6 : f32
    %39 = vector.broadcast %cst_20 : f32 to vector<256x1xf32>
    %40 = arith.addf %38, %39 : vector<256x1xf32>
    %41 = math.rsqrt %40 : vector<256x1xf32>
    %42 = vector.broadcast %41 : vector<256x1xf32> to vector<256x128xf32>
    %43 = arith.mulf %33, %42 : vector<256x128xf32>
    %44 = vector.broadcast %21 : vector<1x128xf32> to vector<256x128xf32>
    %45 = arith.mulf %43, %44 : vector<256x128xf32>
    %46 = vector.broadcast %22 : vector<1x128xf32> to vector<256x128xf32>
    %47 = arith.addf %45, %46 : vector<256x128xf32>
    %48 = arith.truncf %47 : vector<256x128xf32> to vector<256x128xbf16>
    %c0_21 = arith.constant 0 : index
    %c0_22 = arith.constant 0 : index
    %49 = vector.load %arg6[%c0_21, %c0_22] : memref<128x128xbf16, #tpu.memory_space<vmem>>, vector<128x128xbf16>
    %cst_23 = arith.constant dense<0.000000e+00> : vector<256x128xf32>
    %50 = tpu.matmul %48, %49, %cst_23 {dimension_numbers = #tpu.dot_dimension_numbers<[1], [0], [0], [1], [0, 0, 1, 1], [], []>} : vector<256x128xbf16>, vector<128x128xbf16>, vector<256x128xf32> -> vector<256x128xf32>
    %c0_24 = arith.constant 0 : index
    %c0_25 = arith.constant 0 : index
    %51 = vector.load %arg7[%c0_24, %c0_25] : memref<1x128xf32, #tpu.memory_space<vmem>>, vector<1x128xf32>
    %52 = vector.broadcast %51 : vector<1x128xf32> to vector<256x128xf32>
    %53 = arith.addf %50, %52 : vector<256x128xf32>
    %54 = arith.mulf %53, %53 : vector<256x128xf32>
    %55 = arith.mulf %53, %54 : vector<256x128xf32>
    %cst_26 = arith.constant 4.471500e-02 : f32
    %56 = vector.broadcast %cst_26 : f32 to vector<256x128xf32>
    %57 = arith.mulf %56, %55 : vector<256x128xf32>
    %58 = arith.addf %53, %57 : vector<256x128xf32>
    %cst_27 = arith.constant 0.797884583 : f32
    %59 = vector.broadcast %cst_27 : f32 to vector<256x128xf32>
    %60 = arith.mulf %59, %58 : vector<256x128xf32>
    %61 = math.tanh %60 : vector<256x128xf32>
    %cst_28 = arith.constant 1.000000e+00 : f32
    %62 = vector.broadcast %cst_28 : f32 to vector<256x128xf32>
    %63 = arith.addf %62, %61 : vector<256x128xf32>
    %cst_29 = arith.constant 5.000000e-01 : f32
    %64 = vector.broadcast %cst_29 : f32 to vector<256x128xf32>
    %65 = arith.mulf %64, %63 : vector<256x128xf32>
    %66 = arith.mulf %53, %65 : vector<256x128xf32>
    %67 = arith.truncf %66 : vector<256x128xf32> to vector<256x128xbf16>
    %c0_30 = arith.constant 0 : index
    %c0_31 = arith.constant 0 : index
    %68 = vector.load %arg9[%c0_30, %c0_31] : memref<256x128xbf16, #tpu.memory_space<vmem>>, vector<256x128xbf16>
    tpu.vector_store %arg9[%c0_30, %c0_31], %67 {strides = array<i32>} : memref<256x128xbf16, #tpu.memory_space<vmem>>, vector<256x128xbf16>,
    return
  }
  func.func @transform_0(%arg0: i32) -> (i32, i32) {
    %c0_i32 = arith.constant 0 : i32
    %c0_i32_0 = arith.constant 0 : i32
    return %arg0, %c0_i32 : i32, i32
  }
  func.func @transform_1(%arg0: i32) -> (i32, i32) {
    %c0_i32 = arith.constant 0 : i32
    %c0_i32_0 = arith.constant 0 : i32
    %c0_i32_1 = arith.constant 0 : i32
    return %c0_i32, %c0_i32_0 : i32, i32
  }
  func.func @transform_2(%arg0: i32) -> (i32, i32) {
    %c0_i32 = arith.constant 0 : i32
    %c0_i32_0 = arith.constant 0 : i32
    %c0_i32_1 = arith.constant 0 : i32
    return %c0_i32, %c0_i32_0 : i32, i32
  }
  func.func @transform_3(%arg0: i32) -> (i32, i32) {
    %c0_i32 = arith.constant 0 : i32
    %c0_i32_0 = arith.constant 0 : i32
    %c0_i32_1 = arith.constant 0 : i32
    return %c0_i32, %c0_i32_0 : i32, i32
  }
  func.func @transform_4(%arg0: i32) -> (i32, i32) {
    %c0_i32 = arith.constant 0 : i32
    %c0_i32_0 = arith.constant 0 : i32
    %c0_i32_1 = arith.constant 0 : i32
    return %c0_i32, %c0_i32_0 : i32, i32
  }
  func.func @transform_5(%arg0: i32) -> (i32, i32) {
    %c0_i32 = arith.constant 0 : i32
    %c0_i32_0 = arith.constant 0 : i32
    %c0_i32_1 = arith.constant 0 : i32
    return %c0_i32, %c0_i32_0 : i32, i32
  }
  func.func @transform_6(%arg0: i32) -> (i32, i32) {
    %c0_i32 = arith.constant 0 : i32
    %c0_i32_0 = arith.constant 0 : i32
    %c0_i32_1 = arith.constant 0 : i32
    return %c0_i32, %c0_i32_0 : i32, i32
  }
  func.func @transform_7(%arg0: i32) -> (i32, i32) {
    %c0_i32 = arith.constant 0 : i32
    %c0_i32_0 = arith.constant 0 : i32
    return %arg0, %c0_i32 : i32, i32
  }
  func.func @transform_8(%arg0: i32) -> (i32, i32) {
    %c0_i32 = arith.constant 0 : i32
    %c0_i32_0 = arith.constant 0 : i32
    return %arg0, %c0_i32 : i32, i32
  }
}

module attributes {stable_mosaic.version = 11 : i64} {
  func.func @_mbconv_dw_proj_kernel(%arg0: i32, %arg1: memref<1x9x8x128xbf16, #tpu.memory_space<vmem>>, %arg2: memref<1x9x8x128xbf16, #tpu.memory_space<vmem>>, %arg3: memref<1x9x8x128xbf16, #tpu.memory_space<vmem>>, %arg4: memref<1x8x8x128xbf16, #tpu.memory_space<vmem>>, %arg5: memref<1x8x8x128xbf16, #tpu.memory_space<vmem>>, %arg6: memref<1x8x8x128xbf16, #tpu.memory_space<vmem>>, %arg7: memref<9x1x128xf32, #tpu.memory_space<vmem>>, %arg8: memref<1x128xf32, #tpu.memory_space<vmem>>, %arg9: memref<128x128xbf16, #tpu.memory_space<vmem>>, %arg10: memref<1x128xf32, #tpu.memory_space<vmem>>, %arg11: memref<1x64x128xbf16, #tpu.memory_space<vmem>>, %arg12: memref<128x128xbf16, #tpu.memory_space<vmem>>, %arg13: memref<1x128xf32, #tpu.memory_space<vmem>>, %arg14: memref<1x64x128xbf16, #tpu.memory_space<vmem>>) attributes {dimension_semantics = [#tpu.dimension_semantics<parallel>], iteration_bounds = array<i64: 2>, scalar_prefetch = 0 : i64, scratch_operands = 0 : i64, tpu.core_type = #tpu.core_type<tc>, window_params = [{transform_indices = @transform_0, window_bounds = array<i64: 1, 9, 8, 128>}, {transform_indices = @transform_1, window_bounds = array<i64: 1, 9, 8, 128>}, {transform_indices = @transform_2, window_bounds = array<i64: 1, 9, 8, 128>}, {transform_indices = @transform_3, window_bounds = array<i64: 1, 8, 8, 128>}, {transform_indices = @transform_4, window_bounds = array<i64: 1, 8, 8, 128>}, {transform_indices = @transform_5, window_bounds = array<i64: 1, 8, 8, 128>}, {pipeline_mode = #tpu.pipeline_mode<synchronous>, transform_indices = @transform_6, window_bounds = array<i64: 9, 1, 128>}, {pipeline_mode = #tpu.pipeline_mode<synchronous>, transform_indices = @transform_7, window_bounds = array<i64: 1, 128>}, {pipeline_mode = #tpu.pipeline_mode<synchronous>, transform_indices = @transform_8, window_bounds = array<i64: 128, 128>}, {pipeline_mode = #tpu.pipeline_mode<synchronous>, transform_indices = @transform_9, window_bounds = array<i64: 1, 128>}, {transform_indices = @transform_10, window_bounds = array<i64: 1, 64, 128>}, {pipeline_mode = #tpu.pipeline_mode<synchronous>, transform_indices = @transform_11, window_bounds = array<i64: 128, 128>}, {pipeline_mode = #tpu.pipeline_mode<synchronous>, transform_indices = @transform_12, window_bounds = array<i64: 1, 128>}, {transform_indices = @transform_13, window_bounds = array<i64: 1, 64, 128>}]} {
    %c0 = arith.constant 0 : index
    %c0_0 = arith.constant 0 : index
    %c0_1 = arith.constant 0 : index
    %c0_2 = arith.constant 0 : index
    %0 = vector.load %arg1[%c0, %c0_0, %c0_1, %c0_2] : memref<1x9x8x128xbf16, #tpu.memory_space<vmem>>, vector<1x9x8x128xbf16>
    %1 = vector.shape_cast %0 : vector<1x9x8x128xbf16> to vector<9x8x128xbf16>
    %c0_3 = arith.constant 0 : index
    %c0_4 = arith.constant 0 : index
    %c0_5 = arith.constant 0 : index
    %c0_6 = arith.constant 0 : index
    %2 = vector.load %arg2[%c0_3, %c0_4, %c0_5, %c0_6] : memref<1x9x8x128xbf16, #tpu.memory_space<vmem>>, vector<1x9x8x128xbf16>
    %3 = vector.shape_cast %2 : vector<1x9x8x128xbf16> to vector<9x8x128xbf16>
    %c0_7 = arith.constant 0 : index
    %c0_8 = arith.constant 0 : index
    %c0_9 = arith.constant 0 : index
    %c0_10 = arith.constant 0 : index
    %4 = vector.load %arg3[%c0_7, %c0_8, %c0_9, %c0_10] : memref<1x9x8x128xbf16, #tpu.memory_space<vmem>>, vector<1x9x8x128xbf16>
    %5 = vector.shape_cast %4 : vector<1x9x8x128xbf16> to vector<9x8x128xbf16>
    %c0_11 = arith.constant 0 : index
    %c0_12 = arith.constant 0 : index
    %c0_13 = arith.constant 0 : index
    %c0_14 = arith.constant 0 : index
    %6 = vector.load %arg4[%c0_11, %c0_12, %c0_13, %c0_14] : memref<1x8x8x128xbf16, #tpu.memory_space<vmem>>, vector<1x8x8x128xbf16>
    %7 = vector.shape_cast %6 : vector<1x8x8x128xbf16> to vector<8x8x128xbf16>
    %c0_15 = arith.constant 0 : index
    %c0_16 = arith.constant 0 : index
    %c0_17 = arith.constant 0 : index
    %c0_18 = arith.constant 0 : index
    %8 = vector.load %arg5[%c0_15, %c0_16, %c0_17, %c0_18] : memref<1x8x8x128xbf16, #tpu.memory_space<vmem>>, vector<1x8x8x128xbf16>
    %9 = vector.shape_cast %8 : vector<1x8x8x128xbf16> to vector<8x8x128xbf16>
    %c0_19 = arith.constant 0 : index
    %c0_20 = arith.constant 0 : index
    %c0_21 = arith.constant 0 : index
    %c0_22 = arith.constant 0 : index
    %10 = vector.load %arg6[%c0_19, %c0_20, %c0_21, %c0_22] : memref<1x8x8x128xbf16, #tpu.memory_space<vmem>>, vector<1x8x8x128xbf16>
    %11 = vector.shape_cast %10 : vector<1x8x8x128xbf16> to vector<8x8x128xbf16>
    %12 = vector.extract_strided_slice %1 {offsets = [0, 0, 0], sizes = [8, 8, 128], strides = [1, 1, 1]} : vector<9x8x128xbf16> to vector<8x8x128xbf16>
    %13 = vector.extract_strided_slice %3 {offsets = [0, 0, 0], sizes = [8, 8, 128], strides = [1, 1, 1]} : vector<9x8x128xbf16> to vector<8x8x128xbf16>
    %14 = vector.extract_strided_slice %5 {offsets = [0, 0, 0], sizes = [8, 8, 128], strides = [1, 1, 1]} : vector<9x8x128xbf16> to vector<8x8x128xbf16>
    %15 = vector.extract_strided_slice %1 {offsets = [1, 0, 0], sizes = [8, 8, 128], strides = [1, 1, 1]} : vector<9x8x128xbf16> to vector<8x8x128xbf16>
    %16 = vector.extract_strided_slice %3 {offsets = [1, 0, 0], sizes = [8, 8, 128], strides = [1, 1, 1]} : vector<9x8x128xbf16> to vector<8x8x128xbf16>
    %17 = vector.extract_strided_slice %5 {offsets = [1, 0, 0], sizes = [8, 8, 128], strides = [1, 1, 1]} : vector<9x8x128xbf16> to vector<8x8x128xbf16>
    %c0_23 = arith.constant 0 : index
    %c0_24 = arith.constant 0 : index
    %c0_25 = arith.constant 0 : index
    %18 = vector.load %arg7[%c0_23, %c0_24, %c0_25] : memref<9x1x128xf32, #tpu.memory_space<vmem>>, vector<9x1x128xf32>
    %19 = arith.extf %12 : vector<8x8x128xbf16> to vector<8x8x128xf32>
    %20 = vector.extract_strided_slice %18 {offsets = [0, 0, 0], sizes = [1, 1, 128], strides = [1, 1, 1]} : vector<9x1x128xf32> to vector<1x1x128xf32>
    %21 = vector.shape_cast %20 : vector<1x1x128xf32> to vector<1x128xf32>
    %22 = vector.shape_cast %21 : vector<1x128xf32> to vector<1x1x128xf32>
    %23 = vector.broadcast %22 : vector<1x1x128xf32> to vector<8x8x128xf32>
    %24 = arith.mulf %19, %23 : vector<8x8x128xf32>
    %25 = arith.extf %13 : vector<8x8x128xbf16> to vector<8x8x128xf32>
    %26 = vector.extract_strided_slice %18 {offsets = [1, 0, 0], sizes = [1, 1, 128], strides = [1, 1, 1]} : vector<9x1x128xf32> to vector<1x1x128xf32>
    %27 = vector.shape_cast %26 : vector<1x1x128xf32> to vector<1x128xf32>
    %28 = vector.shape_cast %27 : vector<1x128xf32> to vector<1x1x128xf32>
    %29 = vector.broadcast %28 : vector<1x1x128xf32> to vector<8x8x128xf32>
    %30 = arith.mulf %25, %29 : vector<8x8x128xf32>
    %31 = arith.addf %24, %30 : vector<8x8x128xf32>
    %32 = arith.extf %14 : vector<8x8x128xbf16> to vector<8x8x128xf32>
    %33 = vector.extract_strided_slice %18 {offsets = [2, 0, 0], sizes = [1, 1, 128], strides = [1, 1, 1]} : vector<9x1x128xf32> to vector<1x1x128xf32>
    %34 = vector.shape_cast %33 : vector<1x1x128xf32> to vector<1x128xf32>
    %35 = vector.shape_cast %34 : vector<1x128xf32> to vector<1x1x128xf32>
    %36 = vector.broadcast %35 : vector<1x1x128xf32> to vector<8x8x128xf32>
    %37 = arith.mulf %32, %36 : vector<8x8x128xf32>
    %38 = arith.addf %31, %37 : vector<8x8x128xf32>
    %39 = arith.extf %7 : vector<8x8x128xbf16> to vector<8x8x128xf32>
    %40 = vector.extract_strided_slice %18 {offsets = [3, 0, 0], sizes = [1, 1, 128], strides = [1, 1, 1]} : vector<9x1x128xf32> to vector<1x1x128xf32>
    %41 = vector.shape_cast %40 : vector<1x1x128xf32> to vector<1x128xf32>
    %42 = vector.shape_cast %41 : vector<1x128xf32> to vector<1x1x128xf32>
    %43 = vector.broadcast %42 : vector<1x1x128xf32> to vector<8x8x128xf32>
    %44 = arith.mulf %39, %43 : vector<8x8x128xf32>
    %45 = arith.addf %38, %44 : vector<8x8x128xf32>
    %46 = arith.extf %9 : vector<8x8x128xbf16> to vector<8x8x128xf32>
    %47 = vector.extract_strided_slice %18 {offsets = [4, 0, 0], sizes = [1, 1, 128], strides = [1, 1, 1]} : vector<9x1x128xf32> to vector<1x1x128xf32>
    %48 = vector.shape_cast %47 : vector<1x1x128xf32> to vector<1x128xf32>
    %49 = vector.shape_cast %48 : vector<1x128xf32> to vector<1x1x128xf32>
    %50 = vector.broadcast %49 : vector<1x1x128xf32> to vector<8x8x128xf32>
    %51 = arith.mulf %46, %50 : vector<8x8x128xf32>
    %52 = arith.addf %45, %51 : vector<8x8x128xf32>
    %53 = arith.extf %11 : vector<8x8x128xbf16> to vector<8x8x128xf32>
    %54 = vector.extract_strided_slice %18 {offsets = [5, 0, 0], sizes = [1, 1, 128], strides = [1, 1, 1]} : vector<9x1x128xf32> to vector<1x1x128xf32>
    %55 = vector.shape_cast %54 : vector<1x1x128xf32> to vector<1x128xf32>
    %56 = vector.shape_cast %55 : vector<1x128xf32> to vector<1x1x128xf32>
    %57 = vector.broadcast %56 : vector<1x1x128xf32> to vector<8x8x128xf32>
    %58 = arith.mulf %53, %57 : vector<8x8x128xf32>
    %59 = arith.addf %52, %58 : vector<8x8x128xf32>
    %60 = arith.extf %15 : vector<8x8x128xbf16> to vector<8x8x128xf32>
    %61 = vector.extract_strided_slice %18 {offsets = [6, 0, 0], sizes = [1, 1, 128], strides = [1, 1, 1]} : vector<9x1x128xf32> to vector<1x1x128xf32>
    %62 = vector.shape_cast %61 : vector<1x1x128xf32> to vector<1x128xf32>
    %63 = vector.shape_cast %62 : vector<1x128xf32> to vector<1x1x128xf32>
    %64 = vector.broadcast %63 : vector<1x1x128xf32> to vector<8x8x128xf32>
    %65 = arith.mulf %60, %64 : vector<8x8x128xf32>
    %66 = arith.addf %59, %65 : vector<8x8x128xf32>
    %67 = arith.extf %16 : vector<8x8x128xbf16> to vector<8x8x128xf32>
    %68 = vector.extract_strided_slice %18 {offsets = [7, 0, 0], sizes = [1, 1, 128], strides = [1, 1, 1]} : vector<9x1x128xf32> to vector<1x1x128xf32>
    %69 = vector.shape_cast %68 : vector<1x1x128xf32> to vector<1x128xf32>
    %70 = vector.shape_cast %69 : vector<1x128xf32> to vector<1x1x128xf32>
    %71 = vector.broadcast %70 : vector<1x1x128xf32> to vector<8x8x128xf32>
    %72 = arith.mulf %67, %71 : vector<8x8x128xf32>
    %73 = arith.addf %66, %72 : vector<8x8x128xf32>
    %74 = arith.extf %17 : vector<8x8x128xbf16> to vector<8x8x128xf32>
    %75 = vector.extract_strided_slice %18 {offsets = [8, 0, 0], sizes = [1, 1, 128], strides = [1, 1, 1]} : vector<9x1x128xf32> to vector<1x1x128xf32>
    %76 = vector.shape_cast %75 : vector<1x1x128xf32> to vector<1x128xf32>
    %77 = vector.shape_cast %76 : vector<1x128xf32> to vector<1x1x128xf32>
    %78 = vector.broadcast %77 : vector<1x1x128xf32> to vector<8x8x128xf32>
    %79 = arith.mulf %74, %78 : vector<8x8x128xf32>
    %80 = arith.addf %73, %79 : vector<8x8x128xf32>
    %c0_26 = arith.constant 0 : index
    %c0_27 = arith.constant 0 : index
    %81 = vector.load %arg8[%c0_26, %c0_27] : memref<1x128xf32, #tpu.memory_space<vmem>>, vector<1x128xf32>
    %82 = vector.shape_cast %81 : vector<1x128xf32> to vector<1x1x128xf32>
    %83 = vector.broadcast %82 : vector<1x1x128xf32> to vector<8x8x128xf32>
    %84 = arith.addf %80, %83 : vector<8x8x128xf32>
    %85 = arith.mulf %84, %84 : vector<8x8x128xf32>
    %86 = arith.mulf %84, %85 : vector<8x8x128xf32>
    %cst = arith.constant 4.471500e-02 : f32
    %87 = vector.broadcast %cst : f32 to vector<8x8x128xf32>
    %88 = arith.mulf %87, %86 : vector<8x8x128xf32>
    %89 = arith.addf %84, %88 : vector<8x8x128xf32>
    %cst_28 = arith.constant 0.797884583 : f32
    %90 = vector.broadcast %cst_28 : f32 to vector<8x8x128xf32>
    %91 = arith.mulf %90, %89 : vector<8x8x128xf32>
    %92 = math.tanh %91 : vector<8x8x128xf32>
    %cst_29 = arith.constant 1.000000e+00 : f32
    %93 = vector.broadcast %cst_29 : f32 to vector<8x8x128xf32>
    %94 = arith.addf %93, %92 : vector<8x8x128xf32>
    %cst_30 = arith.constant 5.000000e-01 : f32
    %95 = vector.broadcast %cst_30 : f32 to vector<8x8x128xf32>
    %96 = arith.mulf %95, %94 : vector<8x8x128xf32>
    %97 = arith.mulf %84, %96 : vector<8x8x128xf32>
    %98 = vector.shape_cast %97 : vector<8x8x128xf32> to vector<64x128xf32>
    %99 = arith.truncf %98 : vector<64x128xf32> to vector<64x128xbf16>
    %c0_31 = arith.constant 0 : index
    %c0_32 = arith.constant 0 : index
    %100 = vector.load %arg9[%c0_31, %c0_32] : memref<128x128xbf16, #tpu.memory_space<vmem>>, vector<128x128xbf16>
    %cst_33 = arith.constant dense<0.000000e+00> : vector<64x128xf32>
    %101 = tpu.matmul %99, %100, %cst_33 {dimension_numbers = #tpu.dot_dimension_numbers<[1], [0], [0], [1], [0, 0, 1, 1], [], []>} : vector<64x128xbf16>, vector<128x128xbf16>, vector<64x128xf32> -> vector<64x128xf32>
    %c0_34 = arith.constant 0 : index
    %c0_35 = arith.constant 0 : index
    %102 = vector.load %arg10[%c0_34, %c0_35] : memref<1x128xf32, #tpu.memory_space<vmem>>, vector<1x128xf32>
    %103 = vector.broadcast %102 : vector<1x128xf32> to vector<64x128xf32>
    %104 = arith.addf %101, %103 : vector<64x128xf32>
    %c0_36 = arith.constant 0 : index
    %c0_37 = arith.constant 0 : index
    %c0_38 = arith.constant 0 : index
    %105 = vector.load %arg11[%c0_36, %c0_37, %c0_38] : memref<1x64x128xbf16, #tpu.memory_space<vmem>>, vector<1x64x128xbf16>
    %106 = vector.shape_cast %105 : vector<1x64x128xbf16> to vector<64x128xbf16>
    %c0_39 = arith.constant 0 : index
    %c0_40 = arith.constant 0 : index
    %107 = vector.load %arg12[%c0_39, %c0_40] : memref<128x128xbf16, #tpu.memory_space<vmem>>, vector<128x128xbf16>
    %cst_41 = arith.constant dense<0.000000e+00> : vector<64x128xf32>
    %108 = tpu.matmul %106, %107, %cst_41 {dimension_numbers = #tpu.dot_dimension_numbers<[1], [0], [0], [1], [0, 0, 1, 1], [], []>} : vector<64x128xbf16>, vector<128x128xbf16>, vector<64x128xf32> -> vector<64x128xf32>
    %c0_42 = arith.constant 0 : index
    %c0_43 = arith.constant 0 : index
    %109 = vector.load %arg13[%c0_42, %c0_43] : memref<1x128xf32, #tpu.memory_space<vmem>>, vector<1x128xf32>
    %110 = vector.broadcast %109 : vector<1x128xf32> to vector<64x128xf32>
    %111 = arith.addf %108, %110 : vector<64x128xf32>
    %112 = arith.addf %104, %111 : vector<64x128xf32>
    %113 = arith.truncf %112 : vector<64x128xf32> to vector<64x128xbf16>
    %c0_44 = arith.constant 0 : index
    %c0_45 = arith.constant 0 : index
    %c0_46 = arith.constant 0 : index
    %114 = vector.load %arg14[%c0_44, %c0_45, %c0_46] : memref<1x64x128xbf16, #tpu.memory_space<vmem>>, vector<1x64x128xbf16>
    %115 = vector.shape_cast %114 : vector<1x64x128xbf16> to vector<64x128xbf16>
    %116 = vector.shape_cast %113 : vector<64x128xbf16> to vector<1x64x128xbf16>
    tpu.vector_store %arg14[%c0_44, %c0_45, %c0_46], %116 {strides = array<i32>} : memref<1x64x128xbf16, #tpu.memory_space<vmem>>, vector<1x64x128xbf16>,
    return
  }
  func.func @transform_0(%arg0: i32) -> (i32, i32, i32, i32) {
    %c0_i32 = arith.constant 0 : i32
    %c0_i32_0 = arith.constant 0 : i32
    %c0_i32_1 = arith.constant 0 : i32
    %c0_i32_2 = arith.constant 0 : i32
    return %arg0, %c0_i32, %c0_i32_0, %c0_i32_1 : i32, i32, i32, i32
  }
  func.func @transform_1(%arg0: i32) -> (i32, i32, i32, i32) {
    %c0_i32 = arith.constant 0 : i32
    %c0_i32_0 = arith.constant 0 : i32
    %c0_i32_1 = arith.constant 0 : i32
    %c0_i32_2 = arith.constant 0 : i32
    return %arg0, %c0_i32, %c0_i32_0, %c0_i32_1 : i32, i32, i32, i32
  }
  func.func @transform_2(%arg0: i32) -> (i32, i32, i32, i32) {
    %c0_i32 = arith.constant 0 : i32
    %c0_i32_0 = arith.constant 0 : i32
    %c0_i32_1 = arith.constant 0 : i32
    %c0_i32_2 = arith.constant 0 : i32
    return %arg0, %c0_i32, %c0_i32_0, %c0_i32_1 : i32, i32, i32, i32
  }
  func.func @transform_3(%arg0: i32) -> (i32, i32, i32, i32) {
    %c0_i32 = arith.constant 0 : i32
    %c0_i32_0 = arith.constant 0 : i32
    %c0_i32_1 = arith.constant 0 : i32
    %c0_i32_2 = arith.constant 0 : i32
    return %arg0, %c0_i32, %c0_i32_0, %c0_i32_1 : i32, i32, i32, i32
  }
  func.func @transform_4(%arg0: i32) -> (i32, i32, i32, i32) {
    %c0_i32 = arith.constant 0 : i32
    %c0_i32_0 = arith.constant 0 : i32
    %c0_i32_1 = arith.constant 0 : i32
    %c0_i32_2 = arith.constant 0 : i32
    return %arg0, %c0_i32, %c0_i32_0, %c0_i32_1 : i32, i32, i32, i32
  }
  func.func @transform_5(%arg0: i32) -> (i32, i32, i32, i32) {
    %c0_i32 = arith.constant 0 : i32
    %c0_i32_0 = arith.constant 0 : i32
    %c0_i32_1 = arith.constant 0 : i32
    %c0_i32_2 = arith.constant 0 : i32
    return %arg0, %c0_i32, %c0_i32_0, %c0_i32_1 : i32, i32, i32, i32
  }
  func.func @transform_6(%arg0: i32) -> (i32, i32, i32) {
    %c0_i32 = arith.constant 0 : i32
    %c0_i32_0 = arith.constant 0 : i32
    %c0_i32_1 = arith.constant 0 : i32
    %c0_i32_2 = arith.constant 0 : i32
    return %c0_i32, %c0_i32_0, %c0_i32_1 : i32, i32, i32
  }
  func.func @transform_7(%arg0: i32) -> (i32, i32) {
    %c0_i32 = arith.constant 0 : i32
    %c0_i32_0 = arith.constant 0 : i32
    %c0_i32_1 = arith.constant 0 : i32
    return %c0_i32, %c0_i32_0 : i32, i32
  }
  func.func @transform_8(%arg0: i32) -> (i32, i32) {
    %c0_i32 = arith.constant 0 : i32
    %c0_i32_0 = arith.constant 0 : i32
    %c0_i32_1 = arith.constant 0 : i32
    return %c0_i32, %c0_i32_0 : i32, i32
  }
  func.func @transform_9(%arg0: i32) -> (i32, i32) {
    %c0_i32 = arith.constant 0 : i32
    %c0_i32_0 = arith.constant 0 : i32
    %c0_i32_1 = arith.constant 0 : i32
    return %c0_i32, %c0_i32_0 : i32, i32
  }
  func.func @transform_10(%arg0: i32) -> (i32, i32, i32) {
    %c0_i32 = arith.constant 0 : i32
    %c0_i32_0 = arith.constant 0 : i32
    %c0_i32_1 = arith.constant 0 : i32
    return %arg0, %c0_i32, %c0_i32_0 : i32, i32, i32
  }
  func.func @transform_11(%arg0: i32) -> (i32, i32) {
    %c0_i32 = arith.constant 0 : i32
    %c0_i32_0 = arith.constant 0 : i32
    %c0_i32_1 = arith.constant 0 : i32
    return %c0_i32, %c0_i32_0 : i32, i32
  }
  func.func @transform_12(%arg0: i32) -> (i32, i32) {
    %c0_i32 = arith.constant 0 : i32
    %c0_i32_0 = arith.constant 0 : i32
    %c0_i32_1 = arith.constant 0 : i32
    return %c0_i32, %c0_i32_0 : i32, i32
  }
  func.func @transform_13(%arg0: i32) -> (i32, i32, i32) {
    %c0_i32 = arith.constant 0 : i32
    %c0_i32_0 = arith.constant 0 : i32
    %c0_i32_1 = arith.constant 0 : i32
    return %arg0, %c0_i32, %c0_i32_0 : i32, i32, i32
  }
}

module attributes {stable_mosaic.version = 11 : i64} {
  func.func @_transformer_block_kernel(%arg0: i32, %arg1: memref<1x64x128xbf16, #tpu.memory_space<vmem>>, %arg2: memref<1x128xf32, #tpu.memory_space<vmem>>, %arg3: memref<1x128xf32, #tpu.memory_space<vmem>>, %arg4: memref<128x384xbf16, #tpu.memory_space<vmem>>, %arg5: memref<1x384xf32, #tpu.memory_space<vmem>>, %arg6: memref<2x64x64xf32, #tpu.memory_space<vmem>>, %arg7: memref<32x128xbf16, #tpu.memory_space<vmem>>, %arg8: memref<1x128xf32, #tpu.memory_space<vmem>>, %arg9: memref<1x128xf32, #tpu.memory_space<vmem>>, %arg10: memref<1x128xf32, #tpu.memory_space<vmem>>, %arg11: memref<128x128xbf16, #tpu.memory_space<vmem>>, %arg12: memref<1x128xf32, #tpu.memory_space<vmem>>, %arg13: memref<128x128xbf16, #tpu.memory_space<vmem>>, %arg14: memref<1x128xf32, #tpu.memory_space<vmem>>, %arg15: memref<1x64x128xbf16, #tpu.memory_space<vmem>>) attributes {dimension_semantics = [#tpu.dimension_semantics<parallel>], iteration_bounds = array<i64: 2>, scalar_prefetch = 0 : i64, scratch_operands = 0 : i64, tpu.core_type = #tpu.core_type<tc>, window_params = [{transform_indices = @transform_0, window_bounds = array<i64: 1, 64, 128>}, {pipeline_mode = #tpu.pipeline_mode<synchronous>, transform_indices = @transform_1, window_bounds = array<i64: 1, 128>}, {pipeline_mode = #tpu.pipeline_mode<synchronous>, transform_indices = @transform_2, window_bounds = array<i64: 1, 128>}, {pipeline_mode = #tpu.pipeline_mode<synchronous>, transform_indices = @transform_3, window_bounds = array<i64: 128, 384>}, {pipeline_mode = #tpu.pipeline_mode<synchronous>, transform_indices = @transform_4, window_bounds = array<i64: 1, 384>}, {pipeline_mode = #tpu.pipeline_mode<synchronous>, transform_indices = @transform_5, window_bounds = array<i64: 2, 64, 64>}, {pipeline_mode = #tpu.pipeline_mode<synchronous>, transform_indices = @transform_6, window_bounds = array<i64: 32, 128>}, {pipeline_mode = #tpu.pipeline_mode<synchronous>, transform_indices = @transform_7, window_bounds = array<i64: 1, 128>}, {pipeline_mode = #tpu.pipeline_mode<synchronous>, transform_indices = @transform_8, window_bounds = array<i64: 1, 128>}, {pipeline_mode = #tpu.pipeline_mode<synchronous>, transform_indices = @transform_9, window_bounds = array<i64: 1, 128>}, {pipeline_mode = #tpu.pipeline_mode<synchronous>, transform_indices = @transform_10, window_bounds = array<i64: 128, 128>}, {pipeline_mode = #tpu.pipeline_mode<synchronous>, transform_indices = @transform_11, window_bounds = array<i64: 1, 128>}, {pipeline_mode = #tpu.pipeline_mode<synchronous>, transform_indices = @transform_12, window_bounds = array<i64: 128, 128>}, {pipeline_mode = #tpu.pipeline_mode<synchronous>, transform_indices = @transform_13, window_bounds = array<i64: 1, 128>}, {transform_indices = @transform_14, window_bounds = array<i64: 1, 64, 128>}]} {
    %c0 = arith.constant 0 : index
    %c0_0 = arith.constant 0 : index
    %c0_1 = arith.constant 0 : index
    %0 = vector.load %arg1[%c0, %c0_0, %c0_1] : memref<1x64x128xbf16, #tpu.memory_space<vmem>>, vector<1x64x128xbf16>
    %1 = vector.shape_cast %0 : vector<1x64x128xbf16> to vector<64x128xbf16>
    %2 = arith.extf %1 : vector<64x128xbf16> to vector<64x128xf32>
    %c0_2 = arith.constant 0 : index
    %c0_3 = arith.constant 0 : index
    %3 = vector.load %arg2[%c0_2, %c0_3] : memref<1x128xf32, #tpu.memory_space<vmem>>, vector<1x128xf32>
    %c0_4 = arith.constant 0 : index
    %c0_5 = arith.constant 0 : index
    %4 = vector.load %arg3[%c0_4, %c0_5] : memref<1x128xf32, #tpu.memory_space<vmem>>, vector<1x128xf32>
    %5 = tpu.iota {dimensions = array<i32: 1>} : vector<64x128xi32>
    %c32_i32 = arith.constant 32 : i32
    %6 = vector.broadcast %c32_i32 : i32 to vector<64x128xi32>
    %7 = arith.cmpi slt, %5, %6 : vector<64x128xi32>
    %cst = arith.constant dense<0.000000e+00> : vector<64xf32>
    %8 = vector.multi_reduction <add>, %2, %cst [1] : vector<64x128xf32> to vector<64xf32>
    %9 = vector.shape_cast %8 : vector<64xf32> to vector<64x1xf32>
    %cst_6 = arith.constant 3.200000e+01 : f32
    %10 = vector.broadcast %cst_6 : f32 to vector<64x1xf32>
    %11 = arith.divf %9, %10 : vector<64x1xf32>
    %12 = vector.broadcast %11 : vector<64x1xf32> to vector<64x128xf32>
    %13 = arith.subf %2, %12 : vector<64x128xf32>
    %cst_7 = arith.constant 0.000000e+00 : f32
    %14 = vector.broadcast %cst_7 : f32 to vector<64x128xf32>
    %15 = arith.select %7, %13, %14 : vector<64x128xi1>, vector<64x128xf32>
    %16 = arith.mulf %15, %15 : vector<64x128xf32>
    %cst_8 = arith.constant dense<0.000000e+00> : vector<64xf32>
    %17 = vector.multi_reduction <add>, %16, %cst_8 [1] : vector<64x128xf32> to vector<64xf32>
    %18 = vector.shape_cast %17 : vector<64xf32> to vector<64x1xf32>
    %cst_9 = arith.constant 3.200000e+01 : f32
    %19 = vector.broadcast %cst_9 : f32 to vector<64x1xf32>
    %20 = arith.divf %18, %19 : vector<64x1xf32>
    %cst_10 = arith.constant 9.99999974E-6 : f32
    %21 = vector.broadcast %cst_10 : f32 to vector<64x1xf32>
    %22 = arith.addf %20, %21 : vector<64x1xf32>
    %23 = math.rsqrt %22 : vector<64x1xf32>
    %24 = vector.broadcast %23 : vector<64x1xf32> to vector<64x128xf32>
    %25 = arith.mulf %15, %24 : vector<64x128xf32>
    %26 = vector.broadcast %3 : vector<1x128xf32> to vector<64x128xf32>
    %27 = arith.mulf %25, %26 : vector<64x128xf32>
    %28 = vector.broadcast %4 : vector<1x128xf32> to vector<64x128xf32>
    %29 = arith.addf %27, %28 : vector<64x128xf32>
    %30 = arith.truncf %29 : vector<64x128xf32> to vector<64x128xbf16>
    %c0_11 = arith.constant 0 : index
    %c0_12 = arith.constant 0 : index
    %31 = vector.load %arg4[%c0_11, %c0_12] : memref<128x384xbf16, #tpu.memory_space<vmem>>, vector<128x384xbf16>
    %cst_13 = arith.constant dense<0.000000e+00> : vector<64x384xf32>
    %32 = tpu.matmul %30, %31, %cst_13 {dimension_numbers = #tpu.dot_dimension_numbers<[1], [0], [0], [1], [0, 0, 1, 1], [], []>} : vector<64x128xbf16>, vector<128x384xbf16>, vector<64x384xf32> -> vector<64x384xf32>
    %c0_14 = arith.constant 0 : index
    %c0_15 = arith.constant 0 : index
    %33 = vector.load %arg5[%c0_14, %c0_15] : memref<1x384xf32, #tpu.memory_space<vmem>>, vector<1x384xf32>
    %34 = vector.broadcast %33 : vector<1x384xf32> to vector<64x384xf32>
    %35 = arith.addf %32, %34 : vector<64x384xf32>
    %36 = vector.extract_strided_slice %35 {offsets = [0, 0], sizes = [64, 16], strides = [1, 1]} : vector<64x384xf32> to vector<64x16xf32>
    %37 = arith.truncf %36 : vector<64x16xf32> to vector<64x16xbf16>
    %38 = vector.extract_strided_slice %35 {offsets = [0, 128], sizes = [64, 16], strides = [1, 1]} : vector<64x384xf32> to vector<64x16xf32>
    %39 = arith.truncf %38 : vector<64x16xf32> to vector<64x16xbf16>
    %40 = vector.extract_strided_slice %35 {offsets = [0, 256], sizes = [64, 16], strides = [1, 1]} : vector<64x384xf32> to vector<64x16xf32>
    %41 = arith.truncf %40 : vector<64x16xf32> to vector<64x16xbf16>
    %cst_16 = arith.constant dense<0.000000e+00> : vector<64x64xf32>
    %42 = tpu.matmul %37, %39, %cst_16 {dimension_numbers = #tpu.dot_dimension_numbers<[1], [1], [0], [0], [0, 0, 1, 0], [], []>} : vector<64x16xbf16>, vector<64x16xbf16>, vector<64x64xf32> -> vector<64x64xf32>
    %cst_17 = arith.constant 2.500000e-01 : f32
    %43 = vector.broadcast %cst_17 : f32 to vector<64x64xf32>
    %44 = arith.mulf %42, %43 : vector<64x64xf32>
    %c0_18 = arith.constant 0 : index
    %c0_19 = arith.constant 0 : index
    %c0_20 = arith.constant 0 : index
    %45 = vector.load %arg6[%c0_18, %c0_19, %c0_20] : memref<2x64x64xf32, #tpu.memory_space<vmem>>, vector<1x64x64xf32>
    %46 = vector.shape_cast %45 : vector<1x64x64xf32> to vector<64x64xf32>
    %47 = arith.addf %44, %46 : vector<64x64xf32>
    %cst_21 = arith.constant dense<0xFF800000> : vector<64xf32>
    %48 = vector.multi_reduction <maximumf>, %47, %cst_21 [1] : vector<64x64xf32> to vector<64xf32>
    %49 = vector.shape_cast %48 : vector<64xf32> to vector<64x1xf32>
    %50 = vector.broadcast %49 : vector<64x1xf32> to vector<64x64xf32>
    %51 = arith.subf %47, %50 : vector<64x64xf32>
    %52 = math.exp %51 : vector<64x64xf32>
    %cst_22 = arith.constant dense<0.000000e+00> : vector<64xf32>
    %53 = vector.multi_reduction <add>, %52, %cst_22 [1] : vector<64x64xf32> to vector<64xf32>
    %54 = vector.shape_cast %53 : vector<64xf32> to vector<64x1xf32>
    %55 = vector.broadcast %54 : vector<64x1xf32> to vector<64x64xf32>
    %56 = arith.divf %52, %55 : vector<64x64xf32>
    %57 = arith.truncf %56 : vector<64x64xf32> to vector<64x64xbf16>
    %cst_23 = arith.constant dense<0.000000e+00> : vector<64x16xf32>
    %58 = tpu.matmul %57, %41, %cst_23 {dimension_numbers = #tpu.dot_dimension_numbers<[1], [0], [0], [1], [0, 0, 1, 1], [], []>} : vector<64x64xbf16>, vector<64x16xbf16>, vector<64x16xf32> -> vector<64x16xf32>
    %59 = vector.extract_strided_slice %35 {offsets = [0, 16], sizes = [64, 16], strides = [1, 1]} : vector<64x384xf32> to vector<64x16xf32>
    %60 = arith.truncf %59 : vector<64x16xf32> to vector<64x16xbf16>
    %61 = vector.extract_strided_slice %35 {offsets = [0, 144], sizes = [64, 16], strides = [1, 1]} : vector<64x384xf32> to vector<64x16xf32>
    %62 = arith.truncf %61 : vector<64x16xf32> to vector<64x16xbf16>
    %63 = vector.extract_strided_slice %35 {offsets = [0, 272], sizes = [64, 16], strides = [1, 1]} : vector<64x384xf32> to vector<64x16xf32>
    %64 = arith.truncf %63 : vector<64x16xf32> to vector<64x16xbf16>
    %cst_24 = arith.constant dense<0.000000e+00> : vector<64x64xf32>
    %65 = tpu.matmul %60, %62, %cst_24 {dimension_numbers = #tpu.dot_dimension_numbers<[1], [1], [0], [0], [0, 0, 1, 0], [], []>} : vector<64x16xbf16>, vector<64x16xbf16>, vector<64x64xf32> -> vector<64x64xf32>
    %cst_25 = arith.constant 2.500000e-01 : f32
    %66 = vector.broadcast %cst_25 : f32 to vector<64x64xf32>
    %67 = arith.mulf %65, %66 : vector<64x64xf32>
    %c1 = arith.constant 1 : index
    %c0_26 = arith.constant 0 : index
    %c0_27 = arith.constant 0 : index
    %68 = vector.load %arg6[%c1, %c0_26, %c0_27] : memref<2x64x64xf32, #tpu.memory_space<vmem>>, vector<1x64x64xf32>
    %69 = vector.shape_cast %68 : vector<1x64x64xf32> to vector<64x64xf32>
    %70 = arith.addf %67, %69 : vector<64x64xf32>
    %cst_28 = arith.constant dense<0xFF800000> : vector<64xf32>
    %71 = vector.multi_reduction <maximumf>, %70, %cst_28 [1] : vector<64x64xf32> to vector<64xf32>
    %72 = vector.shape_cast %71 : vector<64xf32> to vector<64x1xf32>
    %73 = vector.broadcast %72 : vector<64x1xf32> to vector<64x64xf32>
    %74 = arith.subf %70, %73 : vector<64x64xf32>
    %75 = math.exp %74 : vector<64x64xf32>
    %cst_29 = arith.constant dense<0.000000e+00> : vector<64xf32>
    %76 = vector.multi_reduction <add>, %75, %cst_29 [1] : vector<64x64xf32> to vector<64xf32>
    %77 = vector.shape_cast %76 : vector<64xf32> to vector<64x1xf32>
    %78 = vector.broadcast %77 : vector<64x1xf32> to vector<64x64xf32>
    %79 = arith.divf %75, %78 : vector<64x64xf32>
    %80 = arith.truncf %79 : vector<64x64xf32> to vector<64x64xbf16>
    %cst_30 = arith.constant dense<0.000000e+00> : vector<64x16xf32>
    %81 = tpu.matmul %80, %64, %cst_30 {dimension_numbers = #tpu.dot_dimension_numbers<[1], [0], [0], [1], [0, 0, 1, 1], [], []>} : vector<64x64xbf16>, vector<64x16xbf16>, vector<64x16xf32> -> vector<64x16xf32>
    %82 = tpu.concatenate %58, %81 in 1 : vector<64x16xf32>, vector<64x16xf32> -> vector<64x32xf32>
    %83 = arith.truncf %82 : vector<64x32xf32> to vector<64x32xbf16>
    %c0_31 = arith.constant 0 : index
    %c0_32 = arith.constant 0 : index
    %84 = vector.load %arg7[%c0_31, %c0_32] : memref<32x128xbf16, #tpu.memory_space<vmem>>, vector<32x128xbf16>
    %cst_33 = arith.constant dense<0.000000e+00> : vector<64x128xf32>
    %85 = tpu.matmul %83, %84, %cst_33 {dimension_numbers = #tpu.dot_dimension_numbers<[1], [0], [0], [1], [0, 0, 1, 1], [], []>} : vector<64x32xbf16>, vector<32x128xbf16>, vector<64x128xf32> -> vector<64x128xf32>
    %c0_34 = arith.constant 0 : index
    %c0_35 = arith.constant 0 : index
    %86 = vector.load %arg8[%c0_34, %c0_35] : memref<1x128xf32, #tpu.memory_space<vmem>>, vector<1x128xf32>
    %87 = vector.broadcast %86 : vector<1x128xf32> to vector<64x128xf32>
    %88 = arith.addf %85, %87 : vector<64x128xf32>
    %89 = arith.addf %2, %88 : vector<64x128xf32>
    %c0_36 = arith.constant 0 : index
    %c0_37 = arith.constant 0 : index
    %90 = vector.load %arg9[%c0_36, %c0_37] : memref<1x128xf32, #tpu.memory_space<vmem>>, vector<1x128xf32>
    %c0_38 = arith.constant 0 : index
    %c0_39 = arith.constant 0 : index
    %91 = vector.load %arg10[%c0_38, %c0_39] : memref<1x128xf32, #tpu.memory_space<vmem>>, vector<1x128xf32>
    %92 = tpu.iota {dimensions = array<i32: 1>} : vector<64x128xi32>
    %c32_i32_40 = arith.constant 32 : i32
    %93 = vector.broadcast %c32_i32_40 : i32 to vector<64x128xi32>
    %94 = arith.cmpi slt, %92, %93 : vector<64x128xi32>
    %cst_41 = arith.constant dense<0.000000e+00> : vector<64xf32>
    %95 = vector.multi_reduction <add>, %89, %cst_41 [1] : vector<64x128xf32> to vector<64xf32>
    %96 = vector.shape_cast %95 : vector<64xf32> to vector<64x1xf32>
    %cst_42 = arith.constant 3.200000e+01 : f32
    %97 = vector.broadcast %cst_42 : f32 to vector<64x1xf32>
    %98 = arith.divf %96, %97 : vector<64x1xf32>
    %99 = vector.broadcast %98 : vector<64x1xf32> to vector<64x128xf32>
    %100 = arith.subf %89, %99 : vector<64x128xf32>
    %cst_43 = arith.constant 0.000000e+00 : f32
    %101 = vector.broadcast %cst_43 : f32 to vector<64x128xf32>
    %102 = arith.select %94, %100, %101 : vector<64x128xi1>, vector<64x128xf32>
    %103 = arith.mulf %102, %102 : vector<64x128xf32>
    %cst_44 = arith.constant dense<0.000000e+00> : vector<64xf32>
    %104 = vector.multi_reduction <add>, %103, %cst_44 [1] : vector<64x128xf32> to vector<64xf32>
    %105 = vector.shape_cast %104 : vector<64xf32> to vector<64x1xf32>
    %cst_45 = arith.constant 3.200000e+01 : f32
    %106 = vector.broadcast %cst_45 : f32 to vector<64x1xf32>
    %107 = arith.divf %105, %106 : vector<64x1xf32>
    %cst_46 = arith.constant 9.99999974E-6 : f32
    %108 = vector.broadcast %cst_46 : f32 to vector<64x1xf32>
    %109 = arith.addf %107, %108 : vector<64x1xf32>
    %110 = math.rsqrt %109 : vector<64x1xf32>
    %111 = vector.broadcast %110 : vector<64x1xf32> to vector<64x128xf32>
    %112 = arith.mulf %102, %111 : vector<64x128xf32>
    %113 = vector.broadcast %90 : vector<1x128xf32> to vector<64x128xf32>
    %114 = arith.mulf %112, %113 : vector<64x128xf32>
    %115 = vector.broadcast %91 : vector<1x128xf32> to vector<64x128xf32>
    %116 = arith.addf %114, %115 : vector<64x128xf32>
    %117 = arith.truncf %116 : vector<64x128xf32> to vector<64x128xbf16>
    %c0_47 = arith.constant 0 : index
    %c0_48 = arith.constant 0 : index
    %118 = vector.load %arg11[%c0_47, %c0_48] : memref<128x128xbf16, #tpu.memory_space<vmem>>, vector<128x128xbf16>
    %cst_49 = arith.constant dense<0.000000e+00> : vector<64x128xf32>
    %119 = tpu.matmul %117, %118, %cst_49 {dimension_numbers = #tpu.dot_dimension_numbers<[1], [0], [0], [1], [0, 0, 1, 1], [], []>} : vector<64x128xbf16>, vector<128x128xbf16>, vector<64x128xf32> -> vector<64x128xf32>
    %c0_50 = arith.constant 0 : index
    %c0_51 = arith.constant 0 : index
    %120 = vector.load %arg12[%c0_50, %c0_51] : memref<1x128xf32, #tpu.memory_space<vmem>>, vector<1x128xf32>
    %121 = vector.broadcast %120 : vector<1x128xf32> to vector<64x128xf32>
    %122 = arith.addf %119, %121 : vector<64x128xf32>
    %123 = arith.mulf %122, %122 : vector<64x128xf32>
    %124 = arith.mulf %122, %123 : vector<64x128xf32>
    %cst_52 = arith.constant 4.471500e-02 : f32
    %125 = vector.broadcast %cst_52 : f32 to vector<64x128xf32>
    %126 = arith.mulf %125, %124 : vector<64x128xf32>
    %127 = arith.addf %122, %126 : vector<64x128xf32>
    %cst_53 = arith.constant 0.797884583 : f32
    %128 = vector.broadcast %cst_53 : f32 to vector<64x128xf32>
    %129 = arith.mulf %128, %127 : vector<64x128xf32>
    %130 = math.tanh %129 : vector<64x128xf32>
    %cst_54 = arith.constant 1.000000e+00 : f32
    %131 = vector.broadcast %cst_54 : f32 to vector<64x128xf32>
    %132 = arith.addf %131, %130 : vector<64x128xf32>
    %cst_55 = arith.constant 5.000000e-01 : f32
    %133 = vector.broadcast %cst_55 : f32 to vector<64x128xf32>
    %134 = arith.mulf %133, %132 : vector<64x128xf32>
    %135 = arith.mulf %122, %134 : vector<64x128xf32>
    %136 = arith.truncf %135 : vector<64x128xf32> to vector<64x128xbf16>
    %c0_56 = arith.constant 0 : index
    %c0_57 = arith.constant 0 : index
    %137 = vector.load %arg13[%c0_56, %c0_57] : memref<128x128xbf16, #tpu.memory_space<vmem>>, vector<128x128xbf16>
    %cst_58 = arith.constant dense<0.000000e+00> : vector<64x128xf32>
    %138 = tpu.matmul %136, %137, %cst_58 {dimension_numbers = #tpu.dot_dimension_numbers<[1], [0], [0], [1], [0, 0, 1, 1], [], []>} : vector<64x128xbf16>, vector<128x128xbf16>, vector<64x128xf32> -> vector<64x128xf32>
    %c0_59 = arith.constant 0 : index
    %c0_60 = arith.constant 0 : index
    %139 = vector.load %arg14[%c0_59, %c0_60] : memref<1x128xf32, #tpu.memory_space<vmem>>, vector<1x128xf32>
    %140 = vector.broadcast %139 : vector<1x128xf32> to vector<64x128xf32>
    %141 = arith.addf %138, %140 : vector<64x128xf32>
    %142 = arith.addf %89, %141 : vector<64x128xf32>
    %143 = arith.truncf %142 : vector<64x128xf32> to vector<64x128xbf16>
    %c0_61 = arith.constant 0 : index
    %c0_62 = arith.constant 0 : index
    %c0_63 = arith.constant 0 : index
    %144 = vector.load %arg15[%c0_61, %c0_62, %c0_63] : memref<1x64x128xbf16, #tpu.memory_space<vmem>>, vector<1x64x128xbf16>
    %145 = vector.shape_cast %144 : vector<1x64x128xbf16> to vector<64x128xbf16>
    %146 = vector.shape_cast %143 : vector<64x128xbf16> to vector<1x64x128xbf16>
    tpu.vector_store %arg15[%c0_61, %c0_62, %c0_63], %146 {strides = array<i32>} : memref<1x64x128xbf16, #tpu.memory_space<vmem>>, vector<1x64x128xbf16>,
    return
  }
  func.func @transform_0(%arg0: i32) -> (i32, i32, i32) {
    %c0_i32 = arith.constant 0 : i32
    %c0_i32_0 = arith.constant 0 : i32
    %c0_i32_1 = arith.constant 0 : i32
    return %arg0, %c0_i32, %c0_i32_0 : i32, i32, i32
  }
  func.func @transform_1(%arg0: i32) -> (i32, i32) {
    %c0_i32 = arith.constant 0 : i32
    %c0_i32_0 = arith.constant 0 : i32
    %c0_i32_1 = arith.constant 0 : i32
    return %c0_i32, %c0_i32_0 : i32, i32
  }
  func.func @transform_2(%arg0: i32) -> (i32, i32) {
    %c0_i32 = arith.constant 0 : i32
    %c0_i32_0 = arith.constant 0 : i32
    %c0_i32_1 = arith.constant 0 : i32
    return %c0_i32, %c0_i32_0 : i32, i32
  }
  func.func @transform_3(%arg0: i32) -> (i32, i32) {
    %c0_i32 = arith.constant 0 : i32
    %c0_i32_0 = arith.constant 0 : i32
    %c0_i32_1 = arith.constant 0 : i32
    return %c0_i32, %c0_i32_0 : i32, i32
  }
  func.func @transform_4(%arg0: i32) -> (i32, i32) {
    %c0_i32 = arith.constant 0 : i32
    %c0_i32_0 = arith.constant 0 : i32
    %c0_i32_1 = arith.constant 0 : i32
    return %c0_i32, %c0_i32_0 : i32, i32
  }
  func.func @transform_5(%arg0: i32) -> (i32, i32, i32) {
    %c0_i32 = arith.constant 0 : i32
    %c0_i32_0 = arith.constant 0 : i32
    %c0_i32_1 = arith.constant 0 : i32
    %c0_i32_2 = arith.constant 0 : i32
    return %c0_i32, %c0_i32_0, %c0_i32_1 : i32, i32, i32
  }
  func.func @transform_6(%arg0: i32) -> (i32, i32) {
    %c0_i32 = arith.constant 0 : i32
    %c0_i32_0 = arith.constant 0 : i32
    %c0_i32_1 = arith.constant 0 : i32
    return %c0_i32, %c0_i32_0 : i32, i32
  }
  func.func @transform_7(%arg0: i32) -> (i32, i32) {
    %c0_i32 = arith.constant 0 : i32
    %c0_i32_0 = arith.constant 0 : i32
    %c0_i32_1 = arith.constant 0 : i32
    return %c0_i32, %c0_i32_0 : i32, i32
  }
  func.func @transform_8(%arg0: i32) -> (i32, i32) {
    %c0_i32 = arith.constant 0 : i32
    %c0_i32_0 = arith.constant 0 : i32
    %c0_i32_1 = arith.constant 0 : i32
    return %c0_i32, %c0_i32_0 : i32, i32
  }
  func.func @transform_9(%arg0: i32) -> (i32, i32) {
    %c0_i32 = arith.constant 0 : i32
    %c0_i32_0 = arith.constant 0 : i32
    %c0_i32_1 = arith.constant 0 : i32
    return %c0_i32, %c0_i32_0 : i32, i32
  }
  func.func @transform_10(%arg0: i32) -> (i32, i32) {
    %c0_i32 = arith.constant 0 : i32
    %c0_i32_0 = arith.constant 0 : i32
    %c0_i32_1 = arith.constant 0 : i32
    return %c0_i32, %c0_i32_0 : i32, i32
  }
  func.func @transform_11(%arg0: i32) -> (i32, i32) {
    %c0_i32 = arith.constant 0 : i32
    %c0_i32_0 = arith.constant 0 : i32
    %c0_i32_1 = arith.constant 0 : i32
    return %c0_i32, %c0_i32_0 : i32, i32
  }
  func.func @transform_12(%arg0: i32) -> (i32, i32) {
    %c0_i32 = arith.constant 0 : i32
    %c0_i32_0 = arith.constant 0 : i32
    %c0_i32_1 = arith.constant 0 : i32
    return %c0_i32, %c0_i32_0 : i32, i32
  }
  func.func @transform_13(%arg0: i32) -> (i32, i32) {
    %c0_i32 = arith.constant 0 : i32
    %c0_i32_0 = arith.constant 0 : i32
    %c0_i32_1 = arith.constant 0 : i32
    return %c0_i32, %c0_i32_0 : i32, i32
  }
  func.func @transform_14(%arg0: i32) -> (i32, i32, i32) {
    %c0_i32 = arith.constant 0 : i32
    %c0_i32_0 = arith.constant 0 : i32
    %c0_i32_1 = arith.constant 0 : i32
    return %arg0, %c0_i32, %c0_i32_0 : i32, i32, i32
  }
}

module attributes {stable_mosaic.version = 11 : i64} {
  func.func @_pool_head_kernel(%arg0: memref<2x64x128xbf16, #tpu.memory_space<vmem>>, %arg1: memref<128x128xbf16, #tpu.memory_space<vmem>>, %arg2: memref<1x128xf32, #tpu.memory_space<vmem>>, %arg3: memref<2x128xf32, #tpu.memory_space<vmem>>) attributes {dimension_semantics = [], scalar_prefetch = 0 : i64, scratch_operands = 0 : i64, tpu.core_type = #tpu.core_type<tc>} {
    %c0 = arith.constant 0 : index
    %c0_0 = arith.constant 0 : index
    %c0_1 = arith.constant 0 : index
    %0 = vector.load %arg0[%c0, %c0_0, %c0_1] : memref<2x64x128xbf16, #tpu.memory_space<vmem>>, vector<2x64x128xbf16>
    %1 = arith.extf %0 : vector<2x64x128xbf16> to vector<2x64x128xf32>
    %cst = arith.constant dense<0.000000e+00> : vector<2x128xf32>
    %2 = vector.multi_reduction <add>, %1, %cst [1] : vector<2x64x128xf32> to vector<2x128xf32>
    %cst_2 = arith.constant 6.400000e+01 : f32
    %3 = vector.broadcast %cst_2 : f32 to vector<2x128xf32>
    %4 = arith.divf %2, %3 : vector<2x128xf32>
    %5 = arith.truncf %4 : vector<2x128xf32> to vector<2x128xbf16>
    %c0_3 = arith.constant 0 : index
    %c0_4 = arith.constant 0 : index
    %6 = vector.load %arg1[%c0_3, %c0_4] : memref<128x128xbf16, #tpu.memory_space<vmem>>, vector<128x128xbf16>
    %cst_5 = arith.constant dense<0.000000e+00> : vector<2x128xf32>
    %7 = tpu.matmul %5, %6, %cst_5 {dimension_numbers = #tpu.dot_dimension_numbers<[1], [0], [0], [1], [0, 0, 1, 1], [], []>} : vector<2x128xbf16>, vector<128x128xbf16>, vector<2x128xf32> -> vector<2x128xf32>
    %c0_6 = arith.constant 0 : index
    %c0_7 = arith.constant 0 : index
    %8 = vector.load %arg2[%c0_6, %c0_7] : memref<1x128xf32, #tpu.memory_space<vmem>>, vector<1x128xf32>
    %9 = vector.broadcast %8 : vector<1x128xf32> to vector<2x128xf32>
    %10 = arith.addf %7, %9 : vector<2x128xf32>
    %11 = arith.negf %10 : vector<2x128xf32>
    %12 = math.exp %11 : vector<2x128xf32>
    %cst_8 = arith.constant 1.000000e+00 : f32
    %13 = vector.broadcast %cst_8 : f32 to vector<2x128xf32>
    %14 = arith.addf %13, %12 : vector<2x128xf32>
    %15 = arith.divf %13, %14 : vector<2x128xf32>
    %c0_9 = arith.constant 0 : index
    %c0_10 = arith.constant 0 : index
    %16 = vector.load %arg3[%c0_9, %c0_10] : memref<2x128xf32, #tpu.memory_space<vmem>>, vector<2x128xf32>
    tpu.vector_store %arg3[%c0_9, %c0_10], %15 {strides = array<i32>} : memref<2x128xf32, #tpu.memory_space<vmem>>, vector<2x128xf32>,
    return
  }
}

</mosaic_0001>

<llo_original>
// kernel: coatnet_forward.5
$region0: #{coatnet_forward.5}
  #allocation0 [shape = 'u32[]', space=smem, size = 0x4, offset = 0x4, fixed_abs, tag = 'smem constant byte address 0x4 - core index']
  #allocation1 [shape = 'u32[72,128]{1,0:T(1,128)}', space=vmem, size = 0x9000, scoped, tag = 'internal scratch']
  %s0 = inlined_call_operand.vmem [shape: bf16[2,9,8,128], index: 0, kind: input, shape index: {}]
  %s1 = inlined_call_operand.vmem [shape: bf16[2,9,8,128], index: 1, kind: input, shape index: {}]
  %s2 = inlined_call_operand.vmem [shape: bf16[2,9,8,128], index: 2, kind: input, shape index: {}]
  %s3 = inlined_call_operand.vmem [shape: bf16[2,8,8,128], index: 3, kind: input, shape index: {}]
  %s4 = inlined_call_operand.vmem [shape: bf16[2,8,8,128], index: 4, kind: input, shape index: {}]
  %s5 = inlined_call_operand.vmem [shape: bf16[2,8,8,128], index: 5, kind: input, shape index: {}]
  %s6 = inlined_call_operand.vmem [shape: f32[9,1,128], index: 6, kind: input, shape index: {}]
  %s7 = inlined_call_operand.vmem [shape: f32[1,128], index: 7, kind: input, shape index: {}]
  %s8 = inlined_call_operand.vmem [shape: bf16[128,128], index: 8, kind: input, shape index: {}]
  %s9 = inlined_call_operand.vmem [shape: f32[1,128], index: 9, kind: input, shape index: {}]
  %s10 = inlined_call_operand.vmem [shape: bf16[2,64,128], index: 10, kind: input, shape index: {}]
  %s11 = inlined_call_operand.vmem [shape: bf16[128,128], index: 11, kind: input, shape index: {}]
  %s12 = inlined_call_operand.vmem [shape: f32[1,128], index: 12, kind: input, shape index: {}]
  %s13 = inlined_call_operand.vmem [shape: bf16[2,64,128], index: 13, kind: output, shape index: {}]
  %s14 = sld [smem:[#allocation0]]
  $region85: #{coatnet_forward.5} parent=0
    _
  %s16 = ssub.s32 1, %s14
  %s17 = scalar_select 0, %s16, %s14
  loop: start=0, step=1, limit=4
  $region2: #{coatnet_forward.5} parent=0 // loop_pre_header
    _
  $region3: #{coatnet_forward.5} parent=0 // loop_header
    %s19 = sphi 0, %s23
    %p20 = scmp.ge.s32.totalorder %s19, 4
    %s29 = sphi 0, %s31
    %s32 = sphi 0, %s29
    %s33 = sphi 0, %s32
    %s49 = sphi 0, %s33
    %s55 = sphi 0, %s57
    %s58 = sphi 0, %s55
    %s59 = sphi 0, %s58
    %s75 = sphi 0, %s59
    %s81 = sphi 0, %s83
    %s84 = sphi 0, %s81
    %s85 = sphi 0, %s84
    %s101 = sphi 0, %s85
    %s107 = sphi 0, %s109
    %s110 = sphi 0, %s107
    %s111 = sphi 0, %s110
    %s127 = sphi 0, %s111
    %s133 = sphi 0, %s135
    %s136 = sphi 0, %s133
    %s137 = sphi 0, %s136
    %s153 = sphi 0, %s137
    %s159 = sphi 0, %s161
    %s162 = sphi 0, %s159
    %s163 = sphi 0, %s162
    %s179 = sphi 0, %s163
    %s183 = sphi 0, %s183
    %s185 = sphi 0, %s183
    %s186 = sphi 0, %s185
    %s200 = sphi 0, %s186
    %s204 = sphi 0, %s204
    %s206 = sphi 0, %s204
    %s207 = sphi 0, %s206
    %s221 = sphi 0, %s207
    %s225 = sphi 0, %s225
    %s227 = sphi 0, %s225
    %s228 = sphi 0, %s227
    %s242 = sphi 0, %s228
    %s246 = sphi 0, %s246
    %s248 = sphi 0, %s246
    %s249 = sphi 0, %s248
    %s263 = sphi 0, %s249
    %s269 = sphi 0, %s271
    %s272 = sphi 0, %s269
    %s273 = sphi 0, %s272
    %s289 = sphi 0, %s273
    %s293 = sphi 0, %s293
    %s295 = sphi 0, %s293
    %s296 = sphi 0, %s295
    %s310 = sphi 0, %s296
    %s314 = sphi 0, %s314
    %s316 = sphi 0, %s314
    %s317 = sphi 0, %s316
    %s331 = sphi 0, %s317
    %s337 = sphi 0, %s339
    %s340 = sphi 0, %s337
    %s341 = sphi 0, %s340
    %s357 = sphi 0, %s341
  $region4: #{coatnet_forward.5} parent=0 // loop_header_branch
    %22 = sbr.rel (%p20) target = $region8
  $region5: #{coatnet_forward.5} parent=0 // loop_body
    %s24 = ssub.s32 %s19, 1
    %s25 = ssub.s32 %s19, 2
    %s26 = sadd.s32 %s19, 1
    %s27 = ssub.s32 %s19, %s26
    %p28 = scmp.eq.s32.totalorder %s27, 0
    %s30 = sadd.s32 %s29, 1
    %s31 = scalar_select %p28, %s29, %s30
    %p34 = pneg %p28
    %p35 = scmp.eq.s32.totalorder %s19, 1
    %p36 = por %p34, %p35
    %p37 = scmp.ne.s32.totalorder %s29, %s32
    %p38 = scmp.eq.s32.totalorder %s19, 0
    %p39 = por %p37, %p38
    %p40 = scmp.ne.s32.totalorder %s29, %s32
    %p41 = scmp.eq.s32.totalorder %s24, 1
    %p42 = por %p40, %p41
    %p43 = scmp.ne.s32.totalorder %s32, %s33
    %p44 = scmp.eq.s32.totalorder %s24, 0
    %p45 = por %p43, %p44
    %p46 = scmp.ne.s32.totalorder %s32, %s33
    %p47 = scmp.eq.s32.totalorder %s25, 1
    %p48 = por %p46, %p47
    %p50 = scmp.ne.s32.totalorder %s33, %s49
    %p51 = scmp.eq.s32.totalorder %s25, 0
    %p52 = por %p50, %p51
    %s53 = ssub.s32 %s19, %s26
    %p54 = scmp.eq.s32.totalorder %s53, 0
    %s56 = sadd.s32 %s55, 1
    %s57 = scalar_select %p54, %s55, %s56
    %p60 = pneg %p54
    %p61 = scmp.eq.s32.totalorder %s19, 1
    %p62 = por %p60, %p61
    %p63 = scmp.ne.s32.totalorder %s55, %s58
    %p64 = scmp.eq.s32.totalorder %s19, 0
    %p65 = por %p63, %p64
    %p66 = scmp.ne.s32.totalorder %s55, %s58
    %p67 = scmp.eq.s32.totalorder %s24, 1
    %p68 = por %p66, %p67
    %p69 = scmp.ne.s32.totalorder %s58, %s59
    %p70 = scmp.eq.s32.totalorder %s24, 0
    %p71 = por %p69, %p70
    %p72 = scmp.ne.s32.totalorder %s58, %s59
    %p73 = scmp.eq.s32.totalorder %s25, 1
    %p74 = por %p72, %p73
    %p76 = scmp.ne.s32.totalorder %s59, %s75
    %p77 = scmp.eq.s32.totalorder %s25, 0
    %p78 = por %p76, %p77
    %s79 = ssub.s32 %s19, %s26
    %p80 = scmp.eq.s32.totalorder %s79, 0
    %s82 = sadd.s32 %s81, 1
    %s83 = scalar_select %p80, %s81, %s82
    %p86 = pneg %p80
    %p87 = scmp.eq.s32.totalorder %s19, 1
    %p88 = por %p86, %p87
    %p89 = scmp.ne.s32.totalorder %s81, %s84
    %p90 = scmp.eq.s32.totalorder %s19, 0
    %p91 = por %p89, %p90
    %p92 = scmp.ne.s32.totalorder %s81, %s84
    %p93 = scmp.eq.s32.totalorder %s24, 1
    %p94 = por %p92, %p93
    %p95 = scmp.ne.s32.totalorder %s84, %s85
    %p96 = scmp.eq.s32.totalorder %s24, 0
    %p97 = por %p95, %p96
    %p98 = scmp.ne.s32.totalorder %s84, %s85
    %p99 = scmp.eq.s32.totalorder %s25, 1
    %p100 = por %p98, %p99
    %p102 = scmp.ne.s32.totalorder %s85, %s101
    %p103 = scmp.eq.s32.totalorder %s25, 0
    %p104 = por %p102, %p103
    %s105 = ssub.s32 %s19, %s26
    %p106 = scmp.eq.s32.totalorder %s105, 0
    %s108 = sadd.s32 %s107, 1
    %s109 = scalar_select %p106, %s107, %s108
    %p112 = pneg %p106
    %p113 = scmp.eq.s32.totalorder %s19, 1
    %p114 = por %p112, %p113
    %p115 = scmp.ne.s32.totalorder %s107, %s110
    %p116 = scmp.eq.s32.totalorder %s19, 0
    %p117 = por %p115, %p116
    %p118 = scmp.ne.s32.totalorder %s107, %s110
    %p119 = scmp.eq.s32.totalorder %s24, 1
    %p120 = por %p118, %p119
    %p121 = scmp.ne.s32.totalorder %s110, %s111
    %p122 = scmp.eq.s32.totalorder %s24, 0
    %p123 = por %p121, %p122
    %p124 = scmp.ne.s32.totalorder %s110, %s111
    %p125 = scmp.eq.s32.totalorder %s25, 1
    %p126 = por %p124, %p125
    %p128 = scmp.ne.s32.totalorder %s111, %s127
    %p129 = scmp.eq.s32.totalorder %s25, 0
    %p130 = por %p128, %p129
    %s131 = ssub.s32 %s19, %s26
    %p132 = scmp.eq.s32.totalorder %s131, 0
    %s134 = sadd.s32 %s133, 1
    %s135 = scalar_select %p132, %s133, %s134
    %p138 = pneg %p132
    %p139 = scmp.eq.s32.totalorder %s19, 1
    %p140 = por %p138, %p139
    %p141 = scmp.ne.s32.totalorder %s133, %s136
    %p142 = scmp.eq.s32.totalorder %s19, 0
    %p143 = por %p141, %p142
    %p144 = scmp.ne.s32.totalorder %s133, %s136
    %p145 = scmp.eq.s32.totalorder %s24, 1
    %p146 = por %p144, %p145
    %p147 = scmp.ne.s32.totalorder %s136, %s137
    %p148 = scmp.eq.s32.totalorder %s24, 0
    %p149 = por %p147, %p148
    %p150 = scmp.ne.s32.totalorder %s136, %s137
    %p151 = scmp.eq.s32.totalorder %s25, 1
    %p152 = por %p150, %p151
    %p154 = scmp.ne.s32.totalorder %s137, %s153
    %p155 = scmp.eq.s32.totalorder %s25, 0
    %p156 = por %p154, %p155
    %s157 = ssub.s32 %s19, %s26
    %p158 = scmp.eq.s32.totalorder %s157, 0
    %s160 = sadd.s32 %s159, 1
    %s161 = scalar_select %p158, %s159, %s160
    %p164 = pneg %p158
    %p165 = scmp.eq.s32.totalorder %s19, 1
    %p166 = por %p164, %p165
    %p167 = scmp.ne.s32.totalorder %s159, %s162
    %p168 = scmp.eq.s32.totalorder %s19, 0
    %p169 = por %p167, %p168
    %p170 = scmp.ne.s32.totalorder %s159, %s162
    %p171 = scmp.eq.s32.totalorder %s24, 1
    %p172 = por %p170, %p171
    %p173 = scmp.ne.s32.totalorder %s162, %s163
    %p174 = scmp.eq.s32.totalorder %s24, 0
    %p175 = por %p173, %p174
    %p176 = scmp.ne.s32.totalorder %s162, %s163
    %p177 = scmp.eq.s32.totalorder %s25, 1
    %p178 = por %p176, %p177
    %p180 = scmp.ne.s32.totalorder %s163, %s179
    %p181 = scmp.eq.s32.totalorder %s25, 0
    %p182 = por %p180, %p181
    %s184 = sadd.s32 %s183, 1
    %p187 = scmp.eq.s32.totalorder %s19, 1
    %p188 = scmp.ne.s32.totalorder %s183, %s185
    %p189 = scmp.eq.s32.totalorder %s19, 0
    %p190 = por %p188, %p189
    %p191 = scmp.ne.s32.totalorder %s183, %s185
    %p192 = scmp.eq.s32.totalorder %s24, 1
    %p193 = por %p191, %p192
    %p194 = scmp.ne.s32.totalorder %s185, %s186
    %p195 = scmp.eq.s32.totalorder %s24, 0
    %p196 = por %p194, %p195
    %p197 = scmp.ne.s32.totalorder %s185, %s186
    %p198 = scmp.eq.s32.totalorder %s25, 1
    %p199 = por %p197, %p198
    %p201 = scmp.ne.s32.totalorder %s186, %s200
    %p202 = scmp.eq.s32.totalorder %s25, 0
    %p203 = por %p201, %p202
    %s205 = sadd.s32 %s204, 1
    %p208 = scmp.eq.s32.totalorder %s19, 1
    %p209 = scmp.ne.s32.totalorder %s204, %s206
    %p210 = scmp.eq.s32.totalorder %s19, 0
    %p211 = por %p209, %p210
    %p212 = scmp.ne.s32.totalorder %s204, %s206
    %p213 = scmp.eq.s32.totalorder %s24, 1
    %p214 = por %p212, %p213
    %p215 = scmp.ne.s32.totalorder %s206, %s207
    %p216 = scmp.eq.s32.totalorder %s24, 0
    %p217 = por %p215, %p216
    %p218 = scmp.ne.s32.totalorder %s206, %s207
    %p219 = scmp.eq.s32.totalorder %s25, 1
    %p220 = por %p218, %p219
    %p222 = scmp.ne.s32.totalorder %s207, %s221
    %p223 = scmp.eq.s32.totalorder %s25, 0
    %p224 = por %p222, %p223
    %s226 = sadd.s32 %s225, 1
    %p229 = scmp.eq.s32.totalorder %s19, 1
    %p230 = scmp.ne.s32.totalorder %s225, %s227
    %p231 = scmp.eq.s32.totalorder %s19, 0
    %p232 = por %p230, %p231
    %p233 = scmp.ne.s32.totalorder %s225, %s227
    %p234 = scmp.eq.s32.totalorder %s24, 1
    %p235 = por %p233, %p234
    %p236 = scmp.ne.s32.totalorder %s227, %s228
    %p237 = scmp.eq.s32.totalorder %s24, 0
    %p238 = por %p236, %p237
    %p239 = scmp.ne.s32.totalorder %s227, %s228
    %p240 = scmp.eq.s32.totalorder %s25, 1
    %p241 = por %p239, %p240
    %p243 = scmp.ne.s32.totalorder %s228, %s242
    %p244 = scmp.eq.s32.totalorder %s25, 0
    %p245 = por %p243, %p244
    %s247 = sadd.s32 %s246, 1
    %p250 = scmp.eq.s32.totalorder %s19, 1
    %p251 = scmp.ne.s32.totalorder %s246, %s248
    %p252 = scmp.eq.s32.totalorder %s19, 0
    %p253 = por %p251, %p252
    %p254 = scmp.ne.s32.totalorder %s246, %s248
    %p255 = scmp.eq.s32.totalorder %s24, 1
    %p256 = por %p254, %p255
    %p257 = scmp.ne.s32.totalorder %s248, %s249
    %p258 = scmp.eq.s32.totalorder %s24, 0
    %p259 = por %p257, %p258
    %p260 = scmp.ne.s32.totalorder %s248, %s249
    %p261 = scmp.eq.s32.totalorder %s25, 1
    %p262 = por %p260, %p261
    %p264 = scmp.ne.s32.totalorder %s249, %s263
    %p265 = scmp.eq.s32.totalorder %s25, 0
    %p266 = por %p264, %p265
    %s267 = ssub.s32 %s19, %s26
    %p268 = scmp.eq.s32.totalorder %s267, 0
    %s270 = sadd.s32 %s269, 1
    %s271 = scalar_select %p268, %s269, %s270
    %p274 = pneg %p268
    %p275 = scmp.eq.s32.totalorder %s19, 1
    %p276 = por %p274, %p275
    %p277 = scmp.ne.s32.totalorder %s269, %s272
    %p278 = scmp.eq.s32.totalorder %s19, 0
    %p279 = por %p277, %p278
    %p280 = scmp.ne.s32.totalorder %s269, %s272
    %p281 = scmp.eq.s32.totalorder %s24, 1
    %p282 = por %p280, %p281
    %p283 = scmp.ne.s32.totalorder %s272, %s273
    %p284 = scmp.eq.s32.totalorder %s24, 0
    %p285 = por %p283, %p284
    %p286 = scmp.ne.s32.totalorder %s272, %s273
    %p287 = scmp.eq.s32.totalorder %s25, 1
    %p288 = por %p286, %p287
    %p290 = scmp.ne.s32.totalorder %s273, %s289
    %p291 = scmp.eq.s32.totalorder %s25, 0
    %p292 = por %p290, %p291
    %s294 = sadd.s32 %s293, 1
    %p297 = scmp.eq.s32.totalorder %s19, 1
    %p298 = scmp.ne.s32.totalorder %s293, %s295
    %p299 = scmp.eq.s32.totalorder %s19, 0
    %p300 = por %p298, %p299
    %p301 = scmp.ne.s32.totalorder %s293, %s295
    %p302 = scmp.eq.s32.totalorder %s24, 1
    %p303 = por %p301, %p302
    %p304 = scmp.ne.s32.totalorder %s295, %s296
    %p305 = scmp.eq.s32.totalorder %s24, 0
    %p306 = por %p304, %p305
    %p307 = scmp.ne.s32.totalorder %s295, %s296
    %p308 = scmp.eq.s32.totalorder %s25, 1
    %p309 = por %p307, %p308
    %p311 = scmp.ne.s32.totalorder %s296, %s310
    %p312 = scmp.eq.s32.totalorder %s25, 0
    %p313 = por %p311, %p312
    %s315 = sadd.s32 %s314, 1
    %p318 = scmp.eq.s32.totalorder %s19, 1
    %p319 = scmp.ne.s32.totalorder %s314, %s316
    %p320 = scmp.eq.s32.totalorder %s19, 0
    %p321 = por %p319, %p320
    %p322 = scmp.ne.s32.totalorder %s314, %s316
    %p323 = scmp.eq.s32.totalorder %s24, 1
    %p324 = por %p322, %p323
    %p325 = scmp.ne.s32.totalorder %s316, %s317
    %p326 = scmp.eq.s32.totalorder %s24, 0
    %p327 = por %p325, %p326
    %p328 = scmp.ne.s32.totalorder %s316, %s317
    %p329 = scmp.eq.s32.totalorder %s25, 1
    %p330 = por %p328, %p329
    %p332 = scmp.ne.s32.totalorder %s317, %s331
    %p333 = scmp.eq.s32.totalorder %s25, 0
    %p334 = por %p332, %p333
    %s335 = ssub.s32 %s19, %s26
    %p336 = scmp.eq.s32.totalorder %s335, 0
    %s338 = sadd.s32 %s337, 1
    %s339 = scalar_select %p336, %s337, %s338
    %p342 = pneg %p336
    %p343 = scmp.eq.s32.totalorder %s19, 1
    %p344 = por %p342, %p343
    %p345 = scmp.ne.s32.totalorder %s337, %s340
    %p346 = scmp.eq.s32.totalorder %s19, 0
    %p347 = por %p345, %p346
    %p348 = scmp.ne.s32.totalorder %s337, %s340
    %p349 = scmp.eq.s32.totalorder %s24, 1
    %p350 = por %p348, %p349
    %p351 = scmp.ne.s32.totalorder %s340, %s341
    %p352 = scmp.eq.s32.totalorder %s24, 0
    %p353 = por %p351, %p352
    %p354 = scmp.ne.s32.totalorder %s340, %s341
    %p355 = scmp.eq.s32.totalorder %s25, 1
    %p356 = por %p354, %p355
    %p358 = scmp.ne.s32.totalorder %s341, %s357
    %p359 = scmp.eq.s32.totalorder %s25, 0
    %p360 = por %p358, %p359
    %p361 = scmp.le.s32.totalorder 1, %s19
    %p362 = scmp.lt.s32.totalorder %s19, 3
    %p363 = pnand %p361, %p362
    %p364 = pneg %p363
    // Predicated region
    $region9: #{coatnet_forward.5} parent=5 // pred_check
      _
    $region10: #{coatnet_forward.5} parent=5 // pred_check_branch
      %366 = sbr.rel (%p363) target = $region12
    $region11: #{coatnet_forward.5} parent=5 // pred_region
      %s367 = ssub.s32 %s19, 1
      // Predicated region
      $region13: #{coatnet_forward.5} parent=11 // pred_check
        %p368 = pneg %p196
      $region14: #{coatnet_forward.5} parent=11 // pred_check_branch
        %370 = sbr.rel (%p368) target = $region16
      $region15: #{coatnet_forward.5} parent=11 // pred_region
        _
      $region16: #{coatnet_forward.5} parent=11 // pred_fallthru
        _
      // Predicated region
      $region17: #{coatnet_forward.5} parent=11 // pred_check
        %p371 = pneg %p217
      $region18: #{coatnet_forward.5} parent=11 // pred_check_branch
        %373 = sbr.rel (%p371) target = $region20
      $region19: #{coatnet_forward.5} parent=11 // pred_region
        _
      $region20: #{coatnet_forward.5} parent=11 // pred_fallthru
        _
      // Predicated region
      $region21: #{coatnet_forward.5} parent=11 // pred_check
        %p374 = pneg %p238
      $region22: #{coatnet_forward.5} parent=11 // pred_check_branch
        %376 = sbr.rel (%p374) target = $region24
      $region23: #{coatnet_forward.5} parent=11 // pred_region
        _
      $region24: #{coatnet_forward.5} parent=11 // pred_fallthru
        _
      // Predicated region
      $region25: #{coatnet_forward.5} parent=11 // pred_check
        %p377 = pneg %p259
      $region26: #{coatnet_forward.5} parent=11 // pred_check_branch
        %379 = sbr.rel (%p377) target = $region28
      $region27: #{coatnet_forward.5} parent=11 // pred_region
        _
      $region28: #{coatnet_forward.5} parent=11 // pred_fallthru
        _
      // Predicated region
      $region29: #{coatnet_forward.5} parent=11 // pred_check
        %p380 = pneg %p306
      $region30: #{coatnet_forward.5} parent=11 // pred_check_branch
        %382 = sbr.rel (%p380) target = $region32
      $region31: #{coatnet_forward.5} parent=11 // pred_region
        _
      $region32: #{coatnet_forward.5} parent=11 // pred_fallthru
        _
      // Predicated region
      $region33: #{coatnet_forward.5} parent=11 // pred_check
        %p383 = pneg %p327
      $region34: #{coatnet_forward.5} parent=11 // pred_check_branch
        %385 = sbr.rel (%p383) target = $region36
      $region35: #{coatnet_forward.5} parent=11 // pred_region
        _
      $region36: #{coatnet_forward.5} parent=11 // pred_fallthru
        _
    $region12: #{coatnet_forward.5} parent=5 // pred_fallthru
      _
    %p386 = scmp.lt.s32.totalorder %s19, 2
    // Predicated region
    $region37: #{coatnet_forward.5} parent=5 // pred_check
      %p387 = pneg %p386
    $region38: #{coatnet_forward.5} parent=5 // pred_check_branch
      %389 = sbr.rel (%p387) target = $region40
    $region39: #{coatnet_forward.5} parent=5 // pred_region
      // Predicated region
      $region41: #{coatnet_forward.5} parent=39 // pred_check
        %p390 = pneg %p39
      $region42: #{coatnet_forward.5} parent=39 // pred_check_branch
        %392 = sbr.rel (%p390) target = $region44
      $region43: #{coatnet_forward.5} parent=39 // pred_region
        %p393 = scmp.lt.s32.totalorder %s19, 1
        %s394 = scalar_select %p393, %s19, 1
        %s395 = smul.addr %s394, 9
        %s396 = smul.addr %s395, 4
        %s397 = scalar_lea.vmem %s0, %s396
      $region44: #{coatnet_forward.5} parent=39 // pred_fallthru
        _
      // Predicated region
      $region45: #{coatnet_forward.5} parent=39 // pred_check
        %p398 = pneg %p65
      $region46: #{coatnet_forward.5} parent=39 // pred_check_branch
        %400 = sbr.rel (%p398) target = $region48
      $region47: #{coatnet_forward.5} parent=39 // pred_region
        %p401 = scmp.lt.s32.totalorder %s19, 1
        %s402 = scalar_select %p401, %s19, 1
        %s403 = smul.addr %s402, 9
        %s404 = smul.addr %s403, 4
        %s405 = scalar_lea.vmem %s1, %s404
      $region48: #{coatnet_forward.5} parent=39 // pred_fallthru
        _
      // Predicated region
      $region49: #{coatnet_forward.5} parent=39 // pred_check
        %p406 = pneg %p91
      $region50: #{coatnet_forward.5} parent=39 // pred_check_branch
        %408 = sbr.rel (%p406) target = $region52
      $region51: #{coatnet_forward.5} parent=39 // pred_region
        %p409 = scmp.lt.s32.totalorder %s19, 1
        %s410 = scalar_select %p409, %s19, 1
        %s411 = smul.addr %s410, 9
        %s412 = smul.addr %s411, 4
        %s413 = scalar_lea.vmem %s2, %s412
      $region52: #{coatnet_forward.5} parent=39 // pred_fallthru
        _
      // Predicated region
      $region53: #{coatnet_forward.5} parent=39 // pred_check
        %p414 = pneg %p117
      $region54: #{coatnet_forward.5} parent=39 // pred_check_branch
        %416 = sbr.rel (%p414) target = $region56
      $region55: #{coatnet_forward.5} parent=39 // pred_region
        %p417 = scmp.lt.s32.totalorder %s19, 1
        %s418 = scalar_select %p417, %s19, 1
        %s419 = smul.addr %s418, 8
        %s420 = smul.addr %s419, 4
        %s421 = scalar_lea.vmem %s3, %s420
      $region56: #{coatnet_forward.5} parent=39 // pred_fallthru
        _
      // Predicated region
      $region57: #{coatnet_forward.5} parent=39 // pred_check
        %p422 = pneg %p143
      $region58: #{coatnet_forward.5} parent=39 // pred_check_branch
        %424 = sbr.rel (%p422) target = $region60
      $region59: #{coatnet_forward.5} parent=39 // pred_region
        %p425 = scmp.lt.s32.totalorder %s19, 1
        %s426 = scalar_select %p425, %s19, 1
        %s427 = smul.addr %s426, 8
        %s428 = smul.addr %s427, 4
        %s429 = scalar_lea.vmem %s4, %s428
      $region60: #{coatnet_forward.5} parent=39 // pred_fallthru
        _
      // Predicated region
      $region61: #{coatnet_forward.5} parent=39 // pred_check
        %p430 = pneg %p169
      $region62: #{coatnet_forward.5} parent=39 // pred_check_branch
        %432 = sbr.rel (%p430) target = $region64
      $region63: #{coatnet_forward.5} parent=39 // pred_region
        %p433 = scmp.lt.s32.totalorder %s19, 1
        %s434 = scalar_select %p433, %s19, 1
        %s435 = smul.addr %s434, 8
        %s436 = smul.addr %s435, 4
        %s437 = scalar_lea.vmem %s5, %s436
      $region64: #{coatnet_forward.5} parent=39 // pred_fallthru
        _
      // Predicated region
      $region65: #{coatnet_forward.5} parent=39 // pred_check
        %p438 = pneg %p279
      $region66: #{coatnet_forward.5} parent=39 // pred_check_branch
        %440 = sbr.rel (%p438) target = $region68
      $region67: #{coatnet_forward.5} parent=39 // pred_region
        %p441 = scmp.lt.s32.totalorder %s19, 1
        %s442 = scalar_select %p441, %s19, 1
        %s443 = smul.addr %s442, 8
        %s444 = smul.addr %s443, 4
        %s445 = scalar_lea.vmem %s10, %s444
      $region68: #{coatnet_forward.5} parent=39 // pred_fallthru
        _
    $region40: #{coatnet_forward.5} parent=5 // pred_fallthru
      _
    %p446 = scmp.le.s32.totalorder 1, %s19
    %p447 = scmp.lt.s32.totalorder %s19, 3
    %p448 = pnand %p446, %p447
    %p449 = pneg %p448
    // Predicated region
    $region69: #{coatnet_forward.5} parent=5 // pred_check
      _
    $region70: #{coatnet_forward.5} parent=5 // pred_check_branch
      %451 = sbr.rel (%p448) target = $region72
    $region71: #{coatnet_forward.5} parent=5 // pred_region
      %s452 = ssub.s32 %s19, 1
      %p453 = scmp.lt.s32.totalorder %s24, 1
      %s454 = scalar_select %p453, %s24, 1
      %s455 = smul.addr %s454, 9
      %s456 = smul.addr %s455, 4
      %s457 = scalar_lea.vmem %s0, %s456
      %p458 = pneg %p45
      %p459 = pneg %p42
      %p460 = scmp.lt.s32.totalorder %s24, 1
      %s461 = scalar_select %p460, %s24, 1
      %s462 = smul.addr %s461, 9
      %s463 = smul.addr %s462, 4
      %s464 = scalar_lea.vmem %s1, %s463
      %p465 = pneg %p71
      %p466 = pneg %p68
      %p467 = scmp.lt.s32.totalorder %s24, 1
      %s468 = scalar_select %p467, %s24, 1
      %s469 = smul.addr %s468, 9
      %s470 = smul.addr %s469, 4
      %s471 = scalar_lea.vmem %s2, %s470
      %p472 = pneg %p97
      %p473 = pneg %p94
      %p474 = scmp.lt.s32.totalorder %s24, 1
      %s475 = scalar_select %p474, %s24, 1
      %s476 = smul.addr %s475, 8
      %s477 = smul.addr %s476, 4
      %s478 = scalar_lea.vmem %s3, %s477
      %p479 = pneg %p123
      %p480 = pneg %p120
      %p481 = scmp.lt.s32.totalorder %s24, 1
      %s482 = scalar_select %p481, %s24, 1
      %s483 = smul.addr %s482, 8
      %s484 = smul.addr %s483, 4
      %s485 = scalar_lea.vmem %s4, %s484
      %p486 = pneg %p149
      %p487 = pneg %p146
      %p488 = scmp.lt.s32.totalorder %s24, 1
      %s489 = scalar_select %p488, %s24, 1
      %s490 = smul.addr %s489, 8
      %s491 = smul.addr %s490, 4
      %s492 = scalar_lea.vmem %s5, %s491
      %p493 = pneg %p175
      %p494 = pneg %p172
      %p495 = pneg %p196
      %p496 = pneg %p193
      %p497 = pneg %p217
      %p498 = pneg %p214
      %p499 = pneg %p238
      %p500 = pneg %p235
      %p501 = pneg %p259
      %p502 = pneg %p256
      %p503 = scmp.lt.s32.totalorder %s24, 1
      %s504 = scalar_select %p503, %s24, 1
      %s505 = smul.addr %s504, 8
      %s506 = smul.addr %s505, 4
      %s507 = scalar_lea.vmem %s10, %s506
      %p508 = pneg %p285
      %p509 = pneg %p282
      %p510 = pneg %p306
      %p511 = pneg %p303
      %p512 = pneg %p327
      %p513 = pneg %p324
      %p514 = pneg %p353
      %p515 = pneg %p350
      %p516 = scmp.lt.s32.totalorder %s24, 1
      %s517 = scalar_select %p516, %s24, 1
      %s518 = smul.addr %s517, 8
      %s519 = smul.addr %s518, 4
      %s520 = scalar_lea.vmem %s13, %s519
      %p521 = scmp.lt.s32.totalorder %s24, 1
      %s522 = scalar_select %p521, %s24, 1
      %s523 = smul.addr %s522, 9
      %s524 = smul.addr %s523, 4
      %s525 = scalar_lea.vmem %s0, %s524
      %p526 = scmp.lt.s32.totalorder %s24, 1
      %s527 = scalar_select %p526, %s24, 1
      %s528 = smul.addr %s527, 9
      %s529 = smul.addr %s528, 4
      %s530 = scalar_lea.vmem %s1, %s529
      %p531 = scmp.lt.s32.totalorder %s24, 1
      %s532 = scalar_select %p531, %s24, 1
      %s533 = smul.addr %s532, 9
      %s534 = smul.addr %s533, 4
      %s535 = scalar_lea.vmem %s2, %s534
      %p536 = scmp.lt.s32.totalorder %s24, 1
      %s537 = scalar_select %p536, %s24, 1
      %s538 = smul.addr %s537, 8
      %s539 = smul.addr %s538, 4
      %s540 = scalar_lea.vmem %s3, %s539
      %p541 = scmp.lt.s32.totalorder %s24, 1
      %s542 = scalar_select %p541, %s24, 1
      %s543 = smul.addr %s542, 8
      %s544 = smul.addr %s543, 4
      %s545 = scalar_lea.vmem %s4, %s544
      %p546 = scmp.lt.s32.totalorder %s24, 1
      %s547 = scalar_select %p546, %s24, 1
      %s548 = smul.addr %s547, 8
      %s549 = smul.addr %s548, 4
      %s550 = scalar_lea.vmem %s5, %s549
      %p551 = scmp.lt.s32.totalorder %s24, 1
      %s552 = scalar_select %p551, %s24, 1
      %s553 = smul.addr %s552, 8
      %s554 = smul.addr %s553, 4
      %s555 = scalar_lea.vmem %s10, %s554
      %p556 = scmp.lt.s32.totalorder %s24, 1
      %s557 = scalar_select %p556, %s24, 1
      %s558 = smul.addr %s557, 8
      %s559 = smul.addr %s558, 4
      %s560 = scalar_lea.vmem %s13, %s559
      %v561 = vld [vmem:[%s525] sm:$0xf]
      %v562 = vld [vmem:[%s525 + $0x4] sm:$0xf]
      %v563 = vld [vmem:[%s525 + $0x8] sm:$0xf]
      %v564 = vld [vmem:[%s525 + $0xc] sm:$0xf]
      %v565 = vld [vmem:[%s525 + $0x10] sm:$0xf]
      %v566 = vld [vmem:[%s525 + $0x14] sm:$0xf]
      %v567 = vld [vmem:[%s525 + $0x18] sm:$0xf]
      %v568 = vld [vmem:[%s525 + $0x1c] sm:$0xf]
      %v569 = vld [vmem:[%s525 + $0x20] sm:$0xf]
      %v570 = vld [vmem:[%s530] sm:$0xf]
      %v571 = vld [vmem:[%s530 + $0x4] sm:$0xf]
      %v572 = vld [vmem:[%s530 + $0x8] sm:$0xf]
      %v573 = vld [vmem:[%s530 + $0xc] sm:$0xf]
      %v574 = vld [vmem:[%s530 + $0x10] sm:$0xf]
      %v575 = vld [vmem:[%s530 + $0x14] sm:$0xf]
      %v576 = vld [vmem:[%s530 + $0x18] sm:$0xf]
      %v577 = vld [vmem:[%s530 + $0x1c] sm:$0xf]
      %v578 = vld [vmem:[%s530 + $0x20] sm:$0xf]
      %v579 = vld [vmem:[%s535] sm:$0xf]
      %v580 = vld [vmem:[%s535 + $0x4] sm:$0xf]
      %v581 = vld [vmem:[%s535 + $0x8] sm:$0xf]
      %v582 = vld [vmem:[%s535 + $0xc] sm:$0xf]
      %v583 = vld [vmem:[%s535 + $0x10] sm:$0xf]
      %v584 = vld [vmem:[%s535 + $0x14] sm:$0xf]
      %v585 = vld [vmem:[%s535 + $0x18] sm:$0xf]
      %v586 = vld [vmem:[%s535 + $0x1c] sm:$0xf]
      %v587 = vld [vmem:[%s535 + $0x20] sm:$0xf]
      %v588 = vld [vmem:[%s540] sm:$0xf]
      %v589 = vld [vmem:[%s540 + $0x4] sm:$0xf]
      %v590 = vld [vmem:[%s540 + $0x8] sm:$0xf]
      %v591 = vld [vmem:[%s540 + $0xc] sm:$0xf]
      %v592 = vld [vmem:[%s540 + $0x10] sm:$0xf]
      %v593 = vld [vmem:[%s540 + $0x14] sm:$0xf]
      %v594 = vld [vmem:[%s540 + $0x18] sm:$0xf]
      %v595 = vld [vmem:[%s540 + $0x1c] sm:$0xf]
      %v596 = vld [vmem:[%s545] sm:$0xf]
      %v597 = vld [vmem:[%s545 + $0x4] sm:$0xf]
      %v598 = vld [vmem:[%s545 + $0x8] sm:$0xf]
      %v599 = vld [vmem:[%s545 + $0xc] sm:$0xf]
      %v600 = vld [vmem:[%s545 + $0x10] sm:$0xf]
      %v601 = vld [vmem:[%s545 + $0x14] sm:$0xf]
      %v602 = vld [vmem:[%s545 + $0x18] sm:$0xf]
      %v603 = vld [vmem:[%s545 + $0x1c] sm:$0xf]
      %v604 = vld [vmem:[%s550] sm:$0xf]
      %v605 = vld [vmem:[%s550 + $0x4] sm:$0xf]
      %v606 = vld [vmem:[%s550 + $0x8] sm:$0xf]
      %v607 = vld [vmem:[%s550 + $0xc] sm:$0xf]
      %v608 = vld [vmem:[%s550 + $0x10] sm:$0xf]
      %v609 = vld [vmem:[%s550 + $0x14] sm:$0xf]
      %v610 = vld [vmem:[%s550 + $0x18] sm:$0xf]
      %v611 = vld [vmem:[%s550 + $0x1c] sm:$0xf]
      %v612 = vld [vmem:[%s6] sm:$0x1]
      %v613 = vld [vmem:[%s6 + $0x1] sm:$0x1]
      %v614 = vld [vmem:[%s6 + $0x2] sm:$0x1]
      %v615 = vld [vmem:[%s6 + $0x3] sm:$0x1]
      %v616 = vld [vmem:[%s6 + $0x4] sm:$0x1]
      %v617 = vld [vmem:[%s6 + $0x5] sm:$0x1]
      %v618 = vld [vmem:[%s6 + $0x6] sm:$0x1]
      %v619 = vld [vmem:[%s6 + $0x7] sm:$0x1]
      %v620 = vld [vmem:[%s6 + $0x8] sm:$0x1]
      %v621 = vunpack.c.l.bf16 %v561
      %v622 = vunpack.c.l.bf16 %v562
      %v623 = vunpack.c.l.bf16 %v563
      %v624 = vunpack.c.l.bf16 %v564
      %v625 = vunpack.c.l.bf16 %v565
      %v626 = vunpack.c.l.bf16 %v566
      %v627 = vunpack.c.l.bf16 %v567
      %v628 = vunpack.c.l.bf16 %v568
      %v630 = vperm.slane %v612, 0
      %v632 = vmul.f32 %v621, %v630
      %v633 = vmul.f32 %v622, %v630
      %v634 = vmul.f32 %v623, %v630
      %v635 = vmul.f32 %v624, %v630
      %v636 = vmul.f32 %v625, %v630
      %v637 = vmul.f32 %v626, %v630
      %v638 = vmul.f32 %v627, %v630
      %v639 = vmul.f32 %v628, %v630
      %v640 = vunpack.c.l.bf16 %v570
      %v641 = vunpack.c.l.bf16 %v571
      %v642 = vunpack.c.l.bf16 %v572
      %v643 = vunpack.c.l.bf16 %v573
      %v644 = vunpack.c.l.bf16 %v574
      %v645 = vunpack.c.l.bf16 %v575
      %v646 = vunpack.c.l.bf16 %v576
      %v647 = vunpack.c.l.bf16 %v577
      %v649 = vperm.slane %v613, 0
      %v651 = vmul.f32 %v640, %v649
      %v652 = vmul.f32 %v641, %v649
      %v653 = vmul.f32 %v642, %v649
      %v654 = vmul.f32 %v643, %v649
      %v655 = vmul.f32 %v644, %v649
      %v656 = vmul.f32 %v645, %v649
      %v657 = vmul.f32 %v646, %v649
      %v658 = vmul.f32 %v647, %v649
      %v659 = vadd.f32 %v632, %v651
      %v660 = vadd.f32 %v633, %v652
      %v661 = vadd.f32 %v634, %v653
      %v662 = vadd.f32 %v635, %v654
      %v663 = vadd.f32 %v636, %v655
      %v664 = vadd.f32 %v637, %v656
      %v665 = vadd.f32 %v638, %v657
      %v666 = vadd.f32 %v639, %v658
      %v667 = vunpack.c.l.bf16 %v579
      %v668 = vunpack.c.l.bf16 %v580
      %v669 = vunpack.c.l.bf16 %v581
      %v670 = vunpack.c.l.bf16 %v582
      %v671 = vunpack.c.l.bf16 %v583
      %v672 = vunpack.c.l.bf16 %v584
      %v673 = vunpack.c.l.bf16 %v585
      %v674 = vunpack.c.l.bf16 %v586
      %v676 = vperm.slane %v614, 0
      %v678 = vmul.f32 %v667, %v676
      %v679 = vmul.f32 %v668, %v676
      %v680 = vmul.f32 %v669, %v676
      %v681 = vmul.f32 %v670, %v676
      %v682 = vmul.f32 %v671, %v676
      %v683 = vmul.f32 %v672, %v676
      %v684 = vmul.f32 %v673, %v676
      %v685 = vmul.f32 %v674, %v676
      %v686 = vadd.f32 %v659, %v678
      %v687 = vadd.f32 %v660, %v679
      %v688 = vadd.f32 %v661, %v680
      %v689 = vadd.f32 %v662, %v681
      %v690 = vadd.f32 %v663, %v682
      %v691 = vadd.f32 %v664, %v683
      %v692 = vadd.f32 %v665, %v684
      %v693 = vadd.f32 %v666, %v685
      %v694 = vunpack.c.l.bf16 %v588
      %v695 = vunpack.c.l.bf16 %v589
      %v696 = vunpack.c.l.bf16 %v590
      %v697 = vunpack.c.l.bf16 %v591
      %v698 = vunpack.c.l.bf16 %v592
      %v699 = vunpack.c.l.bf16 %v593
      %v700 = vunpack.c.l.bf16 %v594
      %v701 = vunpack.c.l.bf16 %v595
      %v703 = vperm.slane %v615, 0
      %v705 = vmul.f32 %v694, %v703
      %v706 = vmul.f32 %v695, %v703
      %v707 = vmul.f32 %v696, %v703
      %v708 = vmul.f32 %v697, %v703
      %v709 = vmul.f32 %v698, %v703
      %v710 = vmul.f32 %v699, %v703
      %v711 = vmul.f32 %v700, %v703
      %v712 = vmul.f32 %v701, %v703
      %v713 = vadd.f32 %v686, %v705
      %v714 = vadd.f32 %v687, %v706
      %v715 = vadd.f32 %v688, %v707
      %v716 = vadd.f32 %v689, %v708
      %v717 = vadd.f32 %v690, %v709
      %v718 = vadd.f32 %v691, %v710
      %v719 = vadd.f32 %v692, %v711
      %v720 = vadd.f32 %v693, %v712
      %v721 = vunpack.c.l.bf16 %v596
      %v722 = vunpack.c.l.bf16 %v597
      %v723 = vunpack.c.l.bf16 %v598
      %v724 = vunpack.c.l.bf16 %v599
      %v725 = vunpack.c.l.bf16 %v600
      %v726 = vunpack.c.l.bf16 %v601
      %v727 = vunpack.c.l.bf16 %v602
      %v728 = vunpack.c.l.bf16 %v603
      %v730 = vperm.slane %v616, 0
      %v732 = vmul.f32 %v721, %v730
      %v733 = vmul.f32 %v722, %v730
      %v734 = vmul.f32 %v723, %v730
      %v735 = vmul.f32 %v724, %v730
      %v736 = vmul.f32 %v725, %v730
      %v737 = vmul.f32 %v726, %v730
      %v738 = vmul.f32 %v727, %v730
      %v739 = vmul.f32 %v728, %v730
      %v740 = vadd.f32 %v713, %v732
      %v741 = vadd.f32 %v714, %v733
      %v742 = vadd.f32 %v715, %v734
      %v743 = vadd.f32 %v716, %v735
      %v744 = vadd.f32 %v717, %v736
      %v745 = vadd.f32 %v718, %v737
      %v746 = vadd.f32 %v719, %v738
      %v747 = vadd.f32 %v720, %v739
      %v748 = vunpack.c.l.bf16 %v604
      %v749 = vunpack.c.l.bf16 %v605
      %v750 = vunpack.c.l.bf16 %v606
      %v751 = vunpack.c.l.bf16 %v607
      %v752 = vunpack.c.l.bf16 %v608
      %v753 = vunpack.c.l.bf16 %v609
      %v754 = vunpack.c.l.bf16 %v610
      %v755 = vunpack.c.l.bf16 %v611
      %v757 = vperm.slane %v617, 0
      %v759 = vmul.f32 %v748, %v757
      %v760 = vmul.f32 %v749, %v757
      %v761 = vmul.f32 %v750, %v757
      %v762 = vmul.f32 %v751, %v757
      %v763 = vmul.f32 %v752, %v757
      %v764 = vmul.f32 %v753, %v757
      %v765 = vmul.f32 %v754, %v757
      %v766 = vmul.f32 %v755, %v757
      %v767 = vadd.f32 %v740, %v759
      %v768 = vadd.f32 %v741, %v760
      %v769 = vadd.f32 %v742, %v761
      %v770 = vadd.f32 %v743, %v762
      %v771 = vadd.f32 %v744, %v763
      %v772 = vadd.f32 %v745, %v764
      %v773 = vadd.f32 %v746, %v765
      %v774 = vadd.f32 %v747, %v766
      %v775 = vunpack.c.l.bf16 %v569
      %v777 = vperm.slane %v618, 0
      %v779 = vmul.f32 %v622, %v777
      %v780 = vmul.f32 %v623, %v777
      %v781 = vmul.f32 %v624, %v777
      %v782 = vmul.f32 %v625, %v777
      %v783 = vmul.f32 %v626, %v777
      %v784 = vmul.f32 %v627, %v777
      %v785 = vmul.f32 %v628, %v777
      %v786 = vmul.f32 %v775, %v777
      %v787 = vadd.f32 %v767, %v779
      %v788 = vadd.f32 %v768, %v780
      %v789 = vadd.f32 %v769, %v781
      %v790 = vadd.f32 %v770, %v782
      %v791 = vadd.f32 %v771, %v783
      %v792 = vadd.f32 %v772, %v784
      %v793 = vadd.f32 %v773, %v785
      %v794 = vadd.f32 %v774, %v786
      %v795 = vunpack.c.l.bf16 %v578
      %v797 = vperm.slane %v619, 0
      %v799 = vmul.f32 %v641, %v797
      %v800 = vmul.f32 %v642, %v797
      %v801 = vmul.f32 %v643, %v797
      %v802 = vmul.f32 %v644, %v797
      %v803 = vmul.f32 %v645, %v797
      %v804 = vmul.f32 %v646, %v797
      %v805 = vmul.f32 %v647, %v797
      %v806 = vmul.f32 %v795, %v797
      %v807 = vadd.f32 %v787, %v799
      %v808 = vadd.f32 %v788, %v800
      %v809 = vadd.f32 %v789, %v801
      %v810 = vadd.f32 %v790, %v802
      %v811 = vadd.f32 %v791, %v803
      %v812 = vadd.f32 %v792, %v804
      %v813 = vadd.f32 %v793, %v805
      %v814 = vadd.f32 %v794, %v806
      %v815 = vunpack.c.l.bf16 %v587
      %v817 = vperm.slane %v620, 0
      %v819 = vmul.f32 %v668, %v817
      %v820 = vmul.f32 %v669, %v817
      %v821 = vmul.f32 %v670, %v817
      %v822 = vmul.f32 %v671, %v817
      %v823 = vmul.f32 %v672, %v817
      %v824 = vmul.f32 %v673, %v817
      %v825 = vmul.f32 %v674, %v817
      %v826 = vmul.f32 %v815, %v817
      %v827 = vadd.f32 %v807, %v819
      %v828 = vadd.f32 %v808, %v820
      %v829 = vadd.f32 %v809, %v821
      %v830 = vadd.f32 %v810, %v822
      %v831 = vadd.f32 %v811, %v823
      %v832 = vadd.f32 %v812, %v824
      %v833 = vadd.f32 %v813, %v825
      %v834 = vadd.f32 %v814, %v826
      %v835 = vld [vmem:[%s7] sm:$0x1]
      %v837 = vperm.slane %v835, 0
      %v839 = vadd.f32 %v827, %v837
      %v840 = vadd.f32 %v828, %v837
      %v841 = vadd.f32 %v829, %v837
      %v842 = vadd.f32 %v830, %v837
      %v843 = vadd.f32 %v831, %v837
      %v844 = vadd.f32 %v832, %v837
      %v845 = vadd.f32 %v833, %v837
      %v846 = vadd.f32 %v834, %v837
      %v847 = vmul.f32 %v839, %v839
      %v848 = vmul.f32 %v840, %v840
      %v849 = vmul.f32 %v841, %v841
      %v850 = vmul.f32 %v842, %v842
      %v851 = vmul.f32 %v843, %v843
      %v852 = vmul.f32 %v844, %v844
      %v853 = vmul.f32 %v845, %v845
      %v854 = vmul.f32 %v846, %v846
      %v855 = vmul.f32 %v839, %v847
      %v856 = vmul.f32 %v840, %v848
      %v857 = vmul.f32 %v841, %v849
      %v858 = vmul.f32 %v842, %v850
      %v859 = vmul.f32 %v843, %v851
      %v860 = vmul.f32 %v844, %v852
      %v861 = vmul.f32 %v845, %v853
      %v862 = vmul.f32 %v846, %v854
      %v863 = vmul.f32 %v855, 0.044715
      %v864 = vmul.f32 %v856, 0.044715
      %v865 = vmul.f32 %v857, 0.044715
      %v866 = vmul.f32 %v858, 0.044715
      %v867 = vmul.f32 %v859, 0.044715
      %v868 = vmul.f32 %v860, 0.044715
      %v869 = vmul.f32 %v861, 0.044715
      %v870 = vmul.f32 %v862, 0.044715
      %v871 = vadd.f32 %v839, %v863
      %v872 = vadd.f32 %v840, %v864
      %v873 = vadd.f32 %v841, %v865
      %v874 = vadd.f32 %v842, %v866
      %v875 = vadd.f32 %v843, %v867
      %v876 = vadd.f32 %v844, %v868
      %v877 = vadd.f32 %v845, %v869
      %v878 = vadd.f32 %v846, %v870
      %v879 = vmul.f32 %v871, 0.7978846
      %v880 = vmul.f32 %v872, 0.7978846
      %v881 = vmul.f32 %v873, 0.7978846
      %v882 = vmul.f32 %v874, 0.7978846
      %v883 = vmul.f32 %v875, 0.7978846
      %v884 = vmul.f32 %v876, 0.7978846
      %v885 = vmul.f32 %v877, 0.7978846
      %v886 = vmul.f32 %v878, 0.7978846
      %v887 = vtanh.pop %v879
      %v888 = vtanh.pop %v880
      %v889 = vtanh.pop %v881
      %v890 = vtanh.pop %v882
      %v891 = vtanh.pop %v883
      %v892 = vtanh.pop %v884
      %v893 = vtanh.pop %v885
      %v894 = vtanh.pop %v886
      %v895 = vadd.f32 %v887, 1.0
      %v896 = vadd.f32 %v888, 1.0
      %v897 = vadd.f32 %v889, 1.0
      %v898 = vadd.f32 %v890, 1.0
      %v899 = vadd.f32 %v891, 1.0
      %v900 = vadd.f32 %v892, 1.0
      %v901 = vadd.f32 %v893, 1.0
      %v902 = vadd.f32 %v894, 1.0
      %v903 = vmul.f32 %v895, 0.5
      %v904 = vmul.f32 %v896, 0.5
      %v905 = vmul.f32 %v897, 0.5
      %v906 = vmul.f32 %v898, 0.5
      %v907 = vmul.f32 %v899, 0.5
      %v908 = vmul.f32 %v900, 0.5
      %v909 = vmul.f32 %v901, 0.5
      %v910 = vmul.f32 %v902, 0.5
      %v911 = vmul.f32 %v839, %v903
      %v912 = vmul.f32 %v840, %v904
      %v913 = vmul.f32 %v841, %v905
      %v914 = vmul.f32 %v842, %v906
      %v915 = vmul.f32 %v843, %v907
      %v916 = vmul.f32 %v844, %v908
      %v917 = vmul.f32 %v845, %v909
      %v918 = vmul.f32 %v846, %v910
      %v919 = vpack.c.bf16 %v912, %v911
      %v920 = vpack.c.bf16 %v914, %v913
      %v921 = vpack.c.bf16 %v916, %v915
      %v922 = vpack.c.bf16 %v918, %v917
      %v923 = vld [vmem:[%s8] sm:$0xf]
      %v924 = vld [vmem:[%s8 + $0x4] sm:$0xf]
      %v925 = vld [vmem:[%s8 + $0x8] sm:$0xf]
      %v926 = vld [vmem:[%s8 + $0xc] sm:$0xf]
      %v927 = vld [vmem:[%s8 + $0x10] sm:$0xf]
      %v928 = vld [vmem:[%s8 + $0x14] sm:$0xf]
      %v929 = vld [vmem:[%s8 + $0x18] sm:$0xf]
      %v930 = vld [vmem:[%s8 + $0x1c] sm:$0xf]
      %v931 = vld [vmem:[%s8 + $0x20] sm:$0xf]
      %v932 = vld [vmem:[%s8 + $0x24] sm:$0xf]
      %v933 = vld [vmem:[%s8 + $0x28] sm:$0xf]
      %v934 = vld [vmem:[%s8 + $0x2c] sm:$0xf]
      %v935 = vld [vmem:[%s8 + $0x30] sm:$0xf]
      %v936 = vld [vmem:[%s8 + $0x34] sm:$0xf]
      %v937 = vld [vmem:[%s8 + $0x38] sm:$0xf]
      %v938 = vld [vmem:[%s8 + $0x3c] sm:$0xf]
      %v939 = vld [vmem:[%s9] sm:$0x1]
      %v941 = vperm.slane %v939, 0
      %v959 = vunpack.c.l.b16 %v923
      %v960 = vunpack.c.l.b16 %v924
      %v961 = vunpack.c.l.b16 %v925
      %v962 = vunpack.c.l.b16 %v926
      %v963 = vunpack.c.l.b16 %v927
      %v964 = vunpack.c.l.b16 %v928
      %v965 = vunpack.c.l.b16 %v929
      %v966 = vunpack.c.l.b16 %v930
      %v967 = vunpack.c.l.b16 %v931
      %v968 = vunpack.c.l.b16 %v932
      %v969 = vunpack.c.l.b16 %v933
      %v970 = vunpack.c.l.b16 %v934
      %v971 = vunpack.c.l.b16 %v935
      %v972 = vunpack.c.l.b16 %v936
      %v973 = vunpack.c.l.b16 %v937
      %v974 = vunpack.c.l.b16 %v938
      %v975 = vpack.c.b16 %v960, %v959
      %v976 = vpack.c.b16 %v962, %v961
      %v977 = vpack.c.b16 %v964, %v963
      %v978 = vpack.c.b16 %v966, %v965
      %v979 = vpack.c.b16 %v968, %v967
      %v980 = vpack.c.b16 %v970, %v969
      %v981 = vpack.c.b16 %v972, %v971
      %v982 = vpack.c.b16 %v974, %v973
      %991 = vmatpush.bf16.msra.mxu0 %v982
      %992 = vmatpush.bf16.msra.mxu0 %v981
      %993 = vmatpush.bf16.msra.mxu0 %v980
      %994 = vmatpush.bf16.msra.mxu0 %v979
      %995 = vmatpush.bf16.msra.mxu0 %v978
      %996 = vmatpush.bf16.msra.mxu0 %v977
      %997 = vmatpush.bf16.msra.mxu0 %v976
      %998 = vmatpush.bf16.msra.mxu0 %v975
      %999 = vmatmul.bf16.gmra.mxu0 %v919
      %v1000 = vpop.f32.mrf.mxu0
      %v1001 = vadd.f32 %v941, %v1000
      %v1002 = vpop.f32.mrf.mxu0
      %v1003 = vadd.f32 %v941, %v1002
      %1004 = vmatmul.bf16.gmra.mxu0 %v920
      %v1005 = vpop.f32.mrf.mxu0
      %v1006 = vadd.f32 %v941, %v1005
      %v1007 = vpop.f32.mrf.mxu0
      %v1008 = vadd.f32 %v941, %v1007
      %1009 = vmatmul.bf16.gmra.mxu0 %v921
      %v1010 = vpop.f32.mrf.mxu0
      %v1011 = vadd.f32 %v941, %v1010
      %v1012 = vpop.f32.mrf.mxu0
      %v1013 = vadd.f32 %v941, %v1012
      %1014 = vmatmul.bf16.gmra.mxu0 %v922
      %v1015 = vpop.f32.mrf.mxu0
      %v1016 = vadd.f32 %v941, %v1015
      %v1017 = vpop.f32.mrf.mxu0
      %v1018 = vadd.f32 %v941, %v1017
      %1019 = vdwg.mxu0
      %v1020 = vld [vmem:[%s555] sm:$0xf]
      %v1021 = vld [vmem:[%s555 + $0x4] sm:$0xf]
      %v1022 = vld [vmem:[%s555 + $0x8] sm:$0xf]
      %v1023 = vld [vmem:[%s555 + $0xc] sm:$0xf]
      %v1024 = vld [vmem:[%s555 + $0x10] sm:$0xf]
      %v1025 = vld [vmem:[%s555 + $0x14] sm:$0xf]
      %v1026 = vld [vmem:[%s555 + $0x18] sm:$0xf]
      %v1027 = vld [vmem:[%s555 + $0x1c] sm:$0xf]
      %v1028 = vld [vmem:[%s11] sm:$0xf]
      %v1029 = vld [vmem:[%s11 + $0x4] sm:$0xf]
      %v1030 = vld [vmem:[%s11 + $0x8] sm:$0xf]
      %v1031 = vld [vmem:[%s11 + $0xc] sm:$0xf]
      %v1032 = vld [vmem:[%s11 + $0x10] sm:$0xf]
      %v1033 = vld [vmem:[%s11 + $0x14] sm:$0xf]
      %v1034 = vld [vmem:[%s11 + $0x18] sm:$0xf]
      %v1035 = vld [vmem:[%s11 + $0x1c] sm:$0xf]
      %v1036 = vld [vmem:[%s11 + $0x20] sm:$0xf]
      %v1037 = vld [vmem:[%s11 + $0x24] sm:$0xf]
      %v1038 = vld [vmem:[%s11 + $0x28] sm:$0xf]
      %v1039 = vld [vmem:[%s11 + $0x2c] sm:$0xf]
      %v1040 = vld [vmem:[%s11 + $0x30] sm:$0xf]
      %v1041 = vld [vmem:[%s11 + $0x34] sm:$0xf]
      %v1042 = vld [vmem:[%s11 + $0x38] sm:$0xf]
      %v1043 = vld [vmem:[%s11 + $0x3c] sm:$0xf]
      %v1044 = vld [vmem:[%s12] sm:$0x1]
      %v1046 = vperm.slane %v1044, 0
      %v1056 = vunpack.c.l.b16 %v1020
      %v1057 = vunpack.c.l.b16 %v1021
      %v1058 = vunpack.c.l.b16 %v1022
      %v1059 = vunpack.c.l.b16 %v1023
      %v1060 = vunpack.c.l.b16 %v1024
      %v1061 = vunpack.c.l.b16 %v1025
      %v1062 = vunpack.c.l.b16 %v1026
      %v1063 = vunpack.c.l.b16 %v1027
      %v1064 = vpack.c.b16 %v1057, %v1056
      %v1065 = vpack.c.b16 %v1059, %v1058
      %v1066 = vpack.c.b16 %v1061, %v1060
      %v1067 = vpack.c.b16 %v1063, %v1062
      %v1088 = vunpack.c.l.b16 %v1028
      %v1089 = vunpack.c.l.b16 %v1029
      %v1090 = vunpack.c.l.b16 %v1030
      %v1091 = vunpack.c.l.b16 %v1031
      %v1092 = vunpack.c.l.b16 %v1032
      %v1093 = vunpack.c.l.b16 %v1033
      %v1094 = vunpack.c.l.b16 %v1034
      %v1095 = vunpack.c.l.b16 %v1035
      %v1096 = vunpack.c.l.b16 %v1036
      %v1097 = vunpack.c.l.b16 %v1037
      %v1098 = vunpack.c.l.b16 %v1038
      %v1099 = vunpack.c.l.b16 %v1039
      %v1100 = vunpack.c.l.b16 %v1040
      %v1101 = vunpack.c.l.b16 %v1041
      %v1102 = vunpack.c.l.b16 %v1042
      %v1103 = vunpack.c.l.b16 %v1043
      %v1104 = vpack.c.b16 %v1089, %v1088
      %v1105 = vpack.c.b16 %v1091, %v1090
      %v1106 = vpack.c.b16 %v1093, %v1092
      %v1107 = vpack.c.b16 %v1095, %v1094
      %v1108 = vpack.c.b16 %v1097, %v1096
      %v1109 = vpack.c.b16 %v1099, %v1098
      %v1110 = vpack.c.b16 %v1101, %v1100
      %v1111 = vpack.c.b16 %v1103, %v1102
      %1120 = vmatpush.bf16.msra.mxu0 %v1111
      %1121 = vmatpush.bf16.msra.mxu0 %v1110
      %1122 = vmatpush.bf16.msra.mxu0 %v1109
      %1123 = vmatpush.bf16.msra.mxu0 %v1108
      %1124 = vmatpush.bf16.msra.mxu0 %v1107
      %1125 = vmatpush.bf16.msra.mxu0 %v1106
      %1126 = vmatpush.bf16.msra.mxu0 %v1105
      %1127 = vmatpush.bf16.msra.mxu0 %v1104
      %1128 = vmatmul.bf16.gmra.mxu0 %v1064
      %v1129 = vpop.f32.mrf.mxu0
      %v1130 = vadd.f32 %v1046, %v1129
      %v1131 = vpop.f32.mrf.mxu0
      %v1132 = vadd.f32 %v1046, %v1131
      %1133 = vmatmul.bf16.gmra.mxu0 %v1065
      %v1134 = vpop.f32.mrf.mxu0
      %v1135 = vadd.f32 %v1046, %v1134
      %v1136 = vpop.f32.mrf.mxu0
      %v1137 = vadd.f32 %v1046, %v1136
      %1138 = vmatmul.bf16.gmra.mxu0 %v1066
      %v1139 = vpop.f32.mrf.mxu0
      %v1140 = vadd.f32 %v1046, %v1139
      %v1141 = vpop.f32.mrf.mxu0
      %v1142 = vadd.f32 %v1046, %v1141
      %1143 = vmatmul.bf16.gmra.mxu0 %v1067
      %v1144 = vpop.f32.mrf.mxu0
      %v1145 = vadd.f32 %v1046, %v1144
      %v1146 = vpop.f32.mrf.mxu0
      %v1147 = vadd.f32 %v1046, %v1146
      %1148 = vdwg.mxu0
      %v1149 = vadd.f32 %v1001, %v1130
      %v1150 = vadd.f32 %v1003, %v1132
      %v1151 = vadd.f32 %v1006, %v1135
      %v1152 = vadd.f32 %v1008, %v1137
      %v1153 = vadd.f32 %v1011, %v1140
      %v1154 = vadd.f32 %v1013, %v1142
      %v1155 = vadd.f32 %v1016, %v1145
      %v1156 = vadd.f32 %v1018, %v1147
      %v1157 = vpack.c.bf16 %v1149, %v1149
      %v1158 = vpack.c.bf16 %v1150, %v1150
      %v1159 = vpack.c.bf16 %v1151, %v1151
      %v1160 = vpack.c.bf16 %v1152, %v1152
      %v1161 = vpack.c.bf16 %v1153, %v1153
      %v1162 = vpack.c.bf16 %v1154, %v1154
      %v1163 = vpack.c.bf16 %v1155, %v1155
      %v1164 = vpack.c.bf16 %v1156, %v1156
      %1165 = vst [vmem:[%s560] sm:$0xf] %v1157
      %1166 = vst [vmem:[%s560 + $0x4] sm:$0xf] %v1158
      %1167 = vst [vmem:[%s560 + $0x8] sm:$0xf] %v1159
      %1168 = vst [vmem:[%s560 + $0xc] sm:$0xf] %v1160
      %1169 = vst [vmem:[%s560 + $0x10] sm:$0xf] %v1161
      %1170 = vst [vmem:[%s560 + $0x14] sm:$0xf] %v1162
      %1171 = vst [vmem:[%s560 + $0x18] sm:$0xf] %v1163
      %1172 = vst [vmem:[%s560 + $0x1c] sm:$0xf] %v1164
      %p1173 = scmp.lt.s32.totalorder %s24, 1
      %s1174 = scalar_select %p1173, %s24, 1
      %s1175 = smul.addr %s1174, 8
      %s1176 = smul.addr %s1175, 4
      %s1177 = scalar_lea.vmem %s13, %s1176
      // Predicated region
      $region73: #{coatnet_forward.5} parent=71 // pred_check
        %p1178 = pneg %p350
      $region74: #{coatnet_forward.5} parent=71 // pred_check_branch
        %1180 = sbr.rel (%p1178) target = $region76
      $region75: #{coatnet_forward.5} parent=71 // pred_region
        _
      $region76: #{coatnet_forward.5} parent=71 // pred_fallthru
        _
    $region72: #{coatnet_forward.5} parent=5 // pred_fallthru
      _
    %p1181 = scmp.le.s32.totalorder 2, %s19
    // Predicated region
    $region77: #{coatnet_forward.5} parent=5 // pred_check
      %p1182 = pneg %p1181
    $region78: #{coatnet_forward.5} parent=5 // pred_check_branch
      %1184 = sbr.rel (%p1182) target = $region80
    $region79: #{coatnet_forward.5} parent=5 // pred_region
      %s1185 = ssub.s32 %s19, 2
      // Predicated region
      $region81: #{coatnet_forward.5} parent=79 // pred_check
        %p1186 = pneg %p356
      $region82: #{coatnet_forward.5} parent=79 // pred_check_branch
        %1188 = sbr.rel (%p1186) target = $region84
      $region83: #{coatnet_forward.5} parent=79 // pred_region
        %p1189 = scmp.lt.s32.totalorder %s25, 1
        %s1190 = scalar_select %p1189, %s25, 1
        %s1191 = smul.addr %s1190, 8
        %s1192 = smul.addr %s1191, 4
        %s1193 = scalar_lea.vmem %s13, %s1192
      $region84: #{coatnet_forward.5} parent=79 // pred_fallthru
        _
    $region80: #{coatnet_forward.5} parent=5 // pred_fallthru
      _
  $region6: #{coatnet_forward.5} parent=0 // loop_footer
    %s23 = sadd.s32 1, %s19
  $region7: #{coatnet_forward.5} parent=0 // loop_footer_branch
    %18 = sbr.rel target = $region3
  $region8: #{coatnet_forward.5} parent=0 // loop_exit
    _

// kernel: coatnet_forward.4
$region0: #{coatnet_forward.4}
  #allocation0 [shape = 'u32[]', space=smem, size = 0x4, offset = 0x4, fixed_abs, tag = 'smem constant byte address 0x4 - core index']
  #allocation1 [shape = 'u32[72,128]{1,0:T(1,128)}', space=vmem, size = 0x9000, scoped, tag = 'internal scratch']
  %s0 = inlined_call_operand.vmem [shape: bf16[512,32], index: 0, kind: input, shape index: {}]
  %s1 = inlined_call_operand.vmem [shape: bf16[32,128], index: 1, kind: input, shape index: {}]
  %s2 = inlined_call_operand.vmem [shape: f32[1,128], index: 2, kind: input, shape index: {}]
  %s3 = inlined_call_operand.vmem [shape: f32[1,128], index: 3, kind: input, shape index: {}]
  %s4 = inlined_call_operand.vmem [shape: f32[1,128], index: 4, kind: input, shape index: {}]
  %s5 = inlined_call_operand.vmem [shape: bf16[128,128], index: 5, kind: input, shape index: {}]
  %s6 = inlined_call_operand.vmem [shape: f32[1,128], index: 6, kind: input, shape index: {}]
  %s7 = inlined_call_operand.vmem [shape: bf16[512,128], index: 7, kind: output, shape index: {0}]
  %s8 = inlined_call_operand.vmem [shape: bf16[512,128], index: 8, kind: output, shape index: {1}]
  %9 = xla_tuple %s7, %s8
  %s10 = sld [smem:[#allocation0]]
  $region69: #{coatnet_forward.4} parent=0
    _
  %s12 = ssub.s32 1, %s10
  %s13 = scalar_select 0, %s12, %s10
  loop: start=0, step=1, limit=4
  $region2: #{coatnet_forward.4} parent=0 // loop_pre_header
    _
  $region3: #{coatnet_forward.4} parent=0 // loop_header
    %s15 = sphi 0, %s19
    %p16 = scmp.ge.s32.totalorder %s15, 4
    %s25 = sphi 0, %s27
    %s28 = sphi 0, %s25
    %s29 = sphi 0, %s28
    %s45 = sphi 0, %s29
    %s49 = sphi 0, %s49
    %s51 = sphi 0, %s49
    %s52 = sphi 0, %s51
    %s66 = sphi 0, %s52
    %s70 = sphi 0, %s70
    %s72 = sphi 0, %s70
    %s73 = sphi 0, %s72
    %s87 = sphi 0, %s73
    %s91 = sphi 0, %s91
    %s93 = sphi 0, %s91
    %s94 = sphi 0, %s93
    %s108 = sphi 0, %s94
    %s112 = sphi 0, %s112
    %s114 = sphi 0, %s112
    %s115 = sphi 0, %s114
    %s129 = sphi 0, %s115
    %s133 = sphi 0, %s133
    %s135 = sphi 0, %s133
    %s136 = sphi 0, %s135
    %s150 = sphi 0, %s136
    %s154 = sphi 0, %s154
    %s156 = sphi 0, %s154
    %s157 = sphi 0, %s156
    %s171 = sphi 0, %s157
    %s177 = sphi 0, %s179
    %s180 = sphi 0, %s177
    %s181 = sphi 0, %s180
    %s197 = sphi 0, %s181
    %s203 = sphi 0, %s205
    %s206 = sphi 0, %s203
    %s207 = sphi 0, %s206
    %s223 = sphi 0, %s207
  $region4: #{coatnet_forward.4} parent=0 // loop_header_branch
    %18 = sbr.rel (%p16) target = $region8
  $region5: #{coatnet_forward.4} parent=0 // loop_body
    %s20 = ssub.s32 %s15, 1
    %s21 = ssub.s32 %s15, 2
    %s22 = sadd.s32 %s15, 1
    %s23 = ssub.s32 %s15, %s22
    %p24 = scmp.eq.s32.totalorder %s23, 0
    %s26 = sadd.s32 %s25, 1
    %s27 = scalar_select %p24, %s25, %s26
    %p30 = pneg %p24
    %p31 = scmp.eq.s32.totalorder %s15, 1
    %p32 = por %p30, %p31
    %p33 = scmp.ne.s32.totalorder %s25, %s28
    %p34 = scmp.eq.s32.totalorder %s15, 0
    %p35 = por %p33, %p34
    %p36 = scmp.ne.s32.totalorder %s25, %s28
    %p37 = scmp.eq.s32.totalorder %s20, 1
    %p38 = por %p36, %p37
    %p39 = scmp.ne.s32.totalorder %s28, %s29
    %p40 = scmp.eq.s32.totalorder %s20, 0
    %p41 = por %p39, %p40
    %p42 = scmp.ne.s32.totalorder %s28, %s29
    %p43 = scmp.eq.s32.totalorder %s21, 1
    %p44 = por %p42, %p43
    %p46 = scmp.ne.s32.totalorder %s29, %s45
    %p47 = scmp.eq.s32.totalorder %s21, 0
    %p48 = por %p46, %p47
    %s50 = sadd.s32 %s49, 1
    %p53 = scmp.eq.s32.totalorder %s15, 1
    %p54 = scmp.ne.s32.totalorder %s49, %s51
    %p55 = scmp.eq.s32.totalorder %s15, 0
    %p56 = por %p54, %p55
    %p57 = scmp.ne.s32.totalorder %s49, %s51
    %p58 = scmp.eq.s32.totalorder %s20, 1
    %p59 = por %p57, %p58
    %p60 = scmp.ne.s32.totalorder %s51, %s52
    %p61 = scmp.eq.s32.totalorder %s20, 0
    %p62 = por %p60, %p61
    %p63 = scmp.ne.s32.totalorder %s51, %s52
    %p64 = scmp.eq.s32.totalorder %s21, 1
    %p65 = por %p63, %p64
    %p67 = scmp.ne.s32.totalorder %s52, %s66
    %p68 = scmp.eq.s32.totalorder %s21, 0
    %p69 = por %p67, %p68
    %s71 = sadd.s32 %s70, 1
    %p74 = scmp.eq.s32.totalorder %s15, 1
    %p75 = scmp.ne.s32.totalorder %s70, %s72
    %p76 = scmp.eq.s32.totalorder %s15, 0
    %p77 = por %p75, %p76
    %p78 = scmp.ne.s32.totalorder %s70, %s72
    %p79 = scmp.eq.s32.totalorder %s20, 1
    %p80 = por %p78, %p79
    %p81 = scmp.ne.s32.totalorder %s72, %s73
    %p82 = scmp.eq.s32.totalorder %s20, 0
    %p83 = por %p81, %p82
    %p84 = scmp.ne.s32.totalorder %s72, %s73
    %p85 = scmp.eq.s32.totalorder %s21, 1
    %p86 = por %p84, %p85
    %p88 = scmp.ne.s32.totalorder %s73, %s87
    %p89 = scmp.eq.s32.totalorder %s21, 0
    %p90 = por %p88, %p89
    %s92 = sadd.s32 %s91, 1
    %p95 = scmp.eq.s32.totalorder %s15, 1
    %p96 = scmp.ne.s32.totalorder %s91, %s93
    %p97 = scmp.eq.s32.totalorder %s15, 0
    %p98 = por %p96, %p97
    %p99 = scmp.ne.s32.totalorder %s91, %s93
    %p100 = scmp.eq.s32.totalorder %s20, 1
    %p101 = por %p99, %p100
    %p102 = scmp.ne.s32.totalorder %s93, %s94
    %p103 = scmp.eq.s32.totalorder %s20, 0
    %p104 = por %p102, %p103
    %p105 = scmp.ne.s32.totalorder %s93, %s94
    %p106 = scmp.eq.s32.totalorder %s21, 1
    %p107 = por %p105, %p106
    %p109 = scmp.ne.s32.totalorder %s94, %s108
    %p110 = scmp.eq.s32.totalorder %s21, 0
    %p111 = por %p109, %p110
    %s113 = sadd.s32 %s112, 1
    %p116 = scmp.eq.s32.totalorder %s15, 1
    %p117 = scmp.ne.s32.totalorder %s112, %s114
    %p118 = scmp.eq.s32.totalorder %s15, 0
    %p119 = por %p117, %p118
    %p120 = scmp.ne.s32.totalorder %s112, %s114
    %p121 = scmp.eq.s32.totalorder %s20, 1
    %p122 = por %p120, %p121
    %p123 = scmp.ne.s32.totalorder %s114, %s115
    %p124 = scmp.eq.s32.totalorder %s20, 0
    %p125 = por %p123, %p124
    %p126 = scmp.ne.s32.totalorder %s114, %s115
    %p127 = scmp.eq.s32.totalorder %s21, 1
    %p128 = por %p126, %p127
    %p130 = scmp.ne.s32.totalorder %s115, %s129
    %p131 = scmp.eq.s32.totalorder %s21, 0
    %p132 = por %p130, %p131
    %s134 = sadd.s32 %s133, 1
    %p137 = scmp.eq.s32.totalorder %s15, 1
    %p138 = scmp.ne.s32.totalorder %s133, %s135
    %p139 = scmp.eq.s32.totalorder %s15, 0
    %p140 = por %p138, %p139
    %p141 = scmp.ne.s32.totalorder %s133, %s135
    %p142 = scmp.eq.s32.totalorder %s20, 1
    %p143 = por %p141, %p142
    %p144 = scmp.ne.s32.totalorder %s135, %s136
    %p145 = scmp.eq.s32.totalorder %s20, 0
    %p146 = por %p144, %p145
    %p147 = scmp.ne.s32.totalorder %s135, %s136
    %p148 = scmp.eq.s32.totalorder %s21, 1
    %p149 = por %p147, %p148
    %p151 = scmp.ne.s32.totalorder %s136, %s150
    %p152 = scmp.eq.s32.totalorder %s21, 0
    %p153 = por %p151, %p152
    %s155 = sadd.s32 %s154, 1
    %p158 = scmp.eq.s32.totalorder %s15, 1
    %p159 = scmp.ne.s32.totalorder %s154, %s156
    %p160 = scmp.eq.s32.totalorder %s15, 0
    %p161 = por %p159, %p160
    %p162 = scmp.ne.s32.totalorder %s154, %s156
    %p163 = scmp.eq.s32.totalorder %s20, 1
    %p164 = por %p162, %p163
    %p165 = scmp.ne.s32.totalorder %s156, %s157
    %p166 = scmp.eq.s32.totalorder %s20, 0
    %p167 = por %p165, %p166
    %p168 = scmp.ne.s32.totalorder %s156, %s157
    %p169 = scmp.eq.s32.totalorder %s21, 1
    %p170 = por %p168, %p169
    %p172 = scmp.ne.s32.totalorder %s157, %s171
    %p173 = scmp.eq.s32.totalorder %s21, 0
    %p174 = por %p172, %p173
    %s175 = ssub.s32 %s15, %s22
    %p176 = scmp.eq.s32.totalorder %s175, 0
    %s178 = sadd.s32 %s177, 1
    %s179 = scalar_select %p176, %s177, %s178
    %p182 = pneg %p176
    %p183 = scmp.eq.s32.totalorder %s15, 1
    %p184 = por %p182, %p183
    %p185 = scmp.ne.s32.totalorder %s177, %s180
    %p186 = scmp.eq.s32.totalorder %s15, 0
    %p187 = por %p185, %p186
    %p188 = scmp.ne.s32.totalorder %s177, %s180
    %p189 = scmp.eq.s32.totalorder %s20, 1
    %p190 = por %p188, %p189
    %p191 = scmp.ne.s32.totalorder %s180, %s181
    %p192 = scmp.eq.s32.totalorder %s20, 0
    %p193 = por %p191, %p192
    %p194 = scmp.ne.s32.totalorder %s180, %s181
    %p195 = scmp.eq.s32.totalorder %s21, 1
    %p196 = por %p194, %p195
    %p198 = scmp.ne.s32.totalorder %s181, %s197
    %p199 = scmp.eq.s32.totalorder %s21, 0
    %p200 = por %p198, %p199
    %s201 = ssub.s32 %s15, %s22
    %p202 = scmp.eq.s32.totalorder %s201, 0
    %s204 = sadd.s32 %s203, 1
    %s205 = scalar_select %p202, %s203, %s204
    %p208 = pneg %p202
    %p209 = scmp.eq.s32.totalorder %s15, 1
    %p210 = por %p208, %p209
    %p211 = scmp.ne.s32.totalorder %s203, %s206
    %p212 = scmp.eq.s32.totalorder %s15, 0
    %p213 = por %p211, %p212
    %p214 = scmp.ne.s32.totalorder %s203, %s206
    %p215 = scmp.eq.s32.totalorder %s20, 1
    %p216 = por %p214, %p215
    %p217 = scmp.ne.s32.totalorder %s206, %s207
    %p218 = scmp.eq.s32.totalorder %s20, 0
    %p219 = por %p217, %p218
    %p220 = scmp.ne.s32.totalorder %s206, %s207
    %p221 = scmp.eq.s32.totalorder %s21, 1
    %p222 = por %p220, %p221
    %p224 = scmp.ne.s32.totalorder %s207, %s223
    %p225 = scmp.eq.s32.totalorder %s21, 0
    %p226 = por %p224, %p225
    %p227 = scmp.le.s32.totalorder 1, %s15
    %p228 = scmp.lt.s32.totalorder %s15, 3
    %p229 = pnand %p227, %p228
    %p230 = pneg %p229
    // Predicated region
    $region9: #{coatnet_forward.4} parent=5 // pred_check
      _
    $region10: #{coatnet_forward.4} parent=5 // pred_check_branch
      %232 = sbr.rel (%p229) target = $region12
    $region11: #{coatnet_forward.4} parent=5 // pred_region
      %s233 = ssub.s32 %s15, 1
      // Predicated region
      $region13: #{coatnet_forward.4} parent=11 // pred_check
        %p234 = pneg %p62
      $region14: #{coatnet_forward.4} parent=11 // pred_check_branch
        %236 = sbr.rel (%p234) target = $region16
      $region15: #{coatnet_forward.4} parent=11 // pred_region
        _
      $region16: #{coatnet_forward.4} parent=11 // pred_fallthru
        _
      // Predicated region
      $region17: #{coatnet_forward.4} parent=11 // pred_check
        %p237 = pneg %p83
      $region18: #{coatnet_forward.4} parent=11 // pred_check_branch
        %239 = sbr.rel (%p237) target = $region20
      $region19: #{coatnet_forward.4} parent=11 // pred_region
        _
      $region20: #{coatnet_forward.4} parent=11 // pred_fallthru
        _
      // Predicated region
      $region21: #{coatnet_forward.4} parent=11 // pred_check
        %p240 = pneg %p104
      $region22: #{coatnet_forward.4} parent=11 // pred_check_branch
        %242 = sbr.rel (%p240) target = $region24
      $region23: #{coatnet_forward.4} parent=11 // pred_region
        _
      $region24: #{coatnet_forward.4} parent=11 // pred_fallthru
        _
      // Predicated region
      $region25: #{coatnet_forward.4} parent=11 // pred_check
        %p243 = pneg %p125
      $region26: #{coatnet_forward.4} parent=11 // pred_check_branch
        %245 = sbr.rel (%p243) target = $region28
      $region27: #{coatnet_forward.4} parent=11 // pred_region
        _
      $region28: #{coatnet_forward.4} parent=11 // pred_fallthru
        _
      // Predicated region
      $region29: #{coatnet_forward.4} parent=11 // pred_check
        %p246 = pneg %p146
      $region30: #{coatnet_forward.4} parent=11 // pred_check_branch
        %248 = sbr.rel (%p246) target = $region32
      $region31: #{coatnet_forward.4} parent=11 // pred_region
        _
      $region32: #{coatnet_forward.4} parent=11 // pred_fallthru
        _
      // Predicated region
      $region33: #{coatnet_forward.4} parent=11 // pred_check
        %p249 = pneg %p167
      $region34: #{coatnet_forward.4} parent=11 // pred_check_branch
        %251 = sbr.rel (%p249) target = $region36
      $region35: #{coatnet_forward.4} parent=11 // pred_region
        _
      $region36: #{coatnet_forward.4} parent=11 // pred_fallthru
        _
    $region12: #{coatnet_forward.4} parent=5 // pred_fallthru
      _
    %p252 = scmp.lt.s32.totalorder %s15, 2
    // Predicated region
    $region37: #{coatnet_forward.4} parent=5 // pred_check
      %p253 = pneg %p252
    $region38: #{coatnet_forward.4} parent=5 // pred_check_branch
      %255 = sbr.rel (%p253) target = $region40
    $region39: #{coatnet_forward.4} parent=5 // pred_region
      // Predicated region
      $region41: #{coatnet_forward.4} parent=39 // pred_check
        %p256 = pneg %p35
      $region42: #{coatnet_forward.4} parent=39 // pred_check_branch
        %258 = sbr.rel (%p256) target = $region44
      $region43: #{coatnet_forward.4} parent=39 // pred_region
        %s259 = smul.u32 32, %s15
        %p260 = scmp.lt.s32.totalorder %s259, 63
        %s261 = scalar_select %p260, %s259, 63
        %s262 = smul.addr %s261, 4
        %s263 = scalar_lea.vmem %s0, %s262
        %s264 = smul.u32 32, %s15
      $region44: #{coatnet_forward.4} parent=39 // pred_fallthru
        _
    $region40: #{coatnet_forward.4} parent=5 // pred_fallthru
      _
    %p265 = scmp.le.s32.totalorder 1, %s15
    %p266 = scmp.lt.s32.totalorder %s15, 3
    %p267 = pnand %p265, %p266
    %p268 = pneg %p267
    // Predicated region
    $region45: #{coatnet_forward.4} parent=5 // pred_check
      _
    $region46: #{coatnet_forward.4} parent=5 // pred_check_branch
      %270 = sbr.rel (%p267) target = $region48
    $region47: #{coatnet_forward.4} parent=5 // pred_region
      %s271 = ssub.s32 %s15, 1
      %s272 = smul.u32 32, %s20
      %p273 = scmp.lt.s32.totalorder %s272, 63
      %s274 = scalar_select %p273, %s272, 63
      %s275 = smul.addr %s274, 4
      %s276 = scalar_lea.vmem %s0, %s275
      %p277 = pneg %p41
      %p278 = pneg %p38
      %p279 = pneg %p62
      %p280 = pneg %p59
      %p281 = pneg %p83
      %p282 = pneg %p80
      %p283 = pneg %p104
      %p284 = pneg %p101
      %p285 = pneg %p125
      %p286 = pneg %p122
      %p287 = pneg %p146
      %p288 = pneg %p143
      %p289 = pneg %p167
      %p290 = pneg %p164
      %p291 = pneg %p193
      %p292 = pneg %p190
      %s293 = smul.u32 32, %s20
      %p294 = scmp.lt.s32.totalorder %s293, 63
      %s295 = scalar_select %p294, %s293, 63
      %s296 = smul.addr %s295, 4
      %s297 = scalar_lea.vmem %s7, %s296
      %p298 = pneg %p219
      %p299 = pneg %p216
      %s300 = smul.u32 32, %s20
      %p301 = scmp.lt.s32.totalorder %s300, 63
      %s302 = scalar_select %p301, %s300, 63
      %s303 = smul.addr %s302, 4
      %s304 = scalar_lea.vmem %s8, %s303
      %s305 = smul.u32 32, %s20
      %p306 = scmp.lt.s32.totalorder %s305, 63
      %s307 = scalar_select %p306, %s305, 63
      %s308 = smul.addr %s307, 4
      %s309 = scalar_lea.vmem %s0, %s308
      %s310 = smul.u32 32, %s20
      %s311 = smul.u32 32, %s20
      %p312 = scmp.lt.s32.totalorder %s311, 63
      %s313 = scalar_select %p312, %s311, 63
      %s314 = smul.addr %s313, 4
      %s315 = scalar_lea.vmem %s7, %s314
      %s316 = smul.u32 32, %s20
      %s317 = smul.u32 32, %s20
      %p318 = scmp.lt.s32.totalorder %s317, 63
      %s319 = scalar_select %p318, %s317, 63
      %s320 = smul.addr %s319, 4
      %s321 = scalar_lea.vmem %s8, %s320
      %s322 = smul.u32 32, %s20
      %v324 = vld [vmem:[%s309] sm:$0xf]
      %v325 = vld [vmem:[%s309 + $0x4] sm:$0xf]
      %v326 = vld [vmem:[%s309 + $0x8] sm:$0xf]
      %v327 = vld [vmem:[%s309 + $0xc] sm:$0xf]
      %v328 = vld [vmem:[%s309 + $0x10] sm:$0xf]
      %v329 = vld [vmem:[%s309 + $0x14] sm:$0xf]
      %v330 = vld [vmem:[%s309 + $0x18] sm:$0xf]
      %v331 = vld [vmem:[%s309 + $0x1c] sm:$0xf]
      %v332 = vld [vmem:[%s309 + $0x20] sm:$0xf]
      %v333 = vld [vmem:[%s309 + $0x24] sm:$0xf]
      %v334 = vld [vmem:[%s309 + $0x28] sm:$0xf]
      %v335 = vld [vmem:[%s309 + $0x2c] sm:$0xf]
      %v336 = vld [vmem:[%s309 + $0x30] sm:$0xf]
      %v337 = vld [vmem:[%s309 + $0x34] sm:$0xf]
      %v338 = vld [vmem:[%s309 + $0x38] sm:$0xf]
      %v339 = vld [vmem:[%s309 + $0x3c] sm:$0xf]
      %v340 = vld [vmem:[%s309 + $0x40] sm:$0xf]
      %v341 = vld [vmem:[%s309 + $0x44] sm:$0xf]
      %v342 = vld [vmem:[%s309 + $0x48] sm:$0xf]
      %v343 = vld [vmem:[%s309 + $0x4c] sm:$0xf]
      %v344 = vld [vmem:[%s309 + $0x50] sm:$0xf]
      %v345 = vld [vmem:[%s309 + $0x54] sm:$0xf]
      %v346 = vld [vmem:[%s309 + $0x58] sm:$0xf]
      %v347 = vld [vmem:[%s309 + $0x5c] sm:$0xf]
      %v348 = vld [vmem:[%s309 + $0x60] sm:$0xf]
      %v349 = vld [vmem:[%s309 + $0x64] sm:$0xf]
      %v350 = vld [vmem:[%s309 + $0x68] sm:$0xf]
      %v351 = vld [vmem:[%s309 + $0x6c] sm:$0xf]
      %v352 = vld [vmem:[%s309 + $0x70] sm:$0xf]
      %v353 = vld [vmem:[%s309 + $0x74] sm:$0xf]
      %v354 = vld [vmem:[%s309 + $0x78] sm:$0xf]
      %v355 = vld [vmem:[%s309 + $0x7c] sm:$0xf]
      %v356 = vld [vmem:[%s1] sm:$0xf]
      %v357 = vld [vmem:[%s1 + $0x4] sm:$0xf]
      %v358 = vld [vmem:[%s1 + $0x8] sm:$0xf]
      %v359 = vld [vmem:[%s1 + $0xc] sm:$0xf]
      %v360 = vld [vmem:[%s2] sm:$0x1]
      %v362 = vperm.slane %v360, 0
      %v396 = vunpack.c.l.b16 %v324
      %v397 = vunpack.c.l.b16 %v325
      %v398 = vunpack.c.l.b16 %v326
      %v399 = vunpack.c.l.b16 %v327
      %v400 = vunpack.c.l.b16 %v328
      %v401 = vunpack.c.l.b16 %v329
      %v402 = vunpack.c.l.b16 %v330
      %v403 = vunpack.c.l.b16 %v331
      %v404 = vunpack.c.l.b16 %v332
      %v405 = vunpack.c.l.b16 %v333
      %v406 = vunpack.c.l.b16 %v334
      %v407 = vunpack.c.l.b16 %v335
      %v408 = vunpack.c.l.b16 %v336
      %v409 = vunpack.c.l.b16 %v337
      %v410 = vunpack.c.l.b16 %v338
      %v411 = vunpack.c.l.b16 %v339
      %v412 = vunpack.c.l.b16 %v340
      %v413 = vunpack.c.l.b16 %v341
      %v414 = vunpack.c.l.b16 %v342
      %v415 = vunpack.c.l.b16 %v343
      %v416 = vunpack.c.l.b16 %v344
      %v417 = vunpack.c.l.b16 %v345
      %v418 = vunpack.c.l.b16 %v346
      %v419 = vunpack.c.l.b16 %v347
      %v420 = vunpack.c.l.b16 %v348
      %v421 = vunpack.c.l.b16 %v349
      %v422 = vunpack.c.l.b16 %v350
      %v423 = vunpack.c.l.b16 %v351
      %v424 = vunpack.c.l.b16 %v352
      %v425 = vunpack.c.l.b16 %v353
      %v426 = vunpack.c.l.b16 %v354
      %v427 = vunpack.c.l.b16 %v355
      %v428 = vpack.c.b16 %v397, %v396
      %v429 = vpack.c.b16 %v399, %v398
      %v430 = vpack.c.b16 %v401, %v400
      %v431 = vpack.c.b16 %v403, %v402
      %v432 = vpack.c.b16 %v405, %v404
      %v433 = vpack.c.b16 %v407, %v406
      %v434 = vpack.c.b16 %v409, %v408
      %v435 = vpack.c.b16 %v411, %v410
      %v436 = vpack.c.b16 %v413, %v412
      %v437 = vpack.c.b16 %v415, %v414
      %v438 = vpack.c.b16 %v417, %v416
      %v439 = vpack.c.b16 %v419, %v418
      %v440 = vpack.c.b16 %v421, %v420
      %v441 = vpack.c.b16 %v423, %v422
      %v442 = vpack.c.b16 %v425, %v424
      %v443 = vpack.c.b16 %v427, %v426
      %v448 = vunpack.c.l.b16 %v356
      %v449 = vunpack.c.l.b16 %v357
      %v450 = vunpack.c.l.b16 %v358
      %v451 = vunpack.c.l.b16 %v359
      %v452 = vpack.c.b16 %v449, %v448
      %v453 = vpack.c.b16 %v451, %v450
      %vm456 = vcmask 261120
      %v458 = vsel %vm456, %v428, 0
      %v461 = vsel %vm456, %v429, 0
      %v464 = vsel %vm456, %v430, 0
      %v467 = vsel %vm456, %v431, 0
      %v470 = vsel %vm456, %v432, 0
      %v473 = vsel %vm456, %v433, 0
      %v476 = vsel %vm456, %v434, 0
      %v479 = vsel %vm456, %v435, 0
      %v482 = vsel %vm456, %v436, 0
      %v485 = vsel %vm456, %v437, 0
      %v488 = vsel %vm456, %v438, 0
      %v491 = vsel %vm456, %v439, 0
      %v494 = vsel %vm456, %v440, 0
      %v497 = vsel %vm456, %v441, 0
      %v500 = vsel %vm456, %v442, 0
      %v503 = vsel %vm456, %v443, 0
      %505 = vmatpush.bf16.msra.mxu0 0
      %506 = vmatpush.bf16.msra.mxu0 0
      %507 = vmatpush.bf16.msra.mxu0 0
      %508 = vmatpush.bf16.msra.mxu0 0
      %509 = vmatpush.bf16.msra.mxu0 0
      %510 = vmatpush.bf16.msra.mxu0 0
      %511 = vmatpush.bf16.msra.mxu0 %v453
      %512 = vmatpush.bf16.msra.mxu0 %v452
      %513 = vmatmul.bf16.gmra.mxu0 %v458
      %v514 = vpop.f32.mrf.mxu0
      %v515 = vadd.f32 %v362, %v514
      %v516 = vpop.f32.mrf.mxu0
      %v517 = vadd.f32 %v362, %v516
      %518 = vmatmul.bf16.gmra.mxu0 %v461
      %v519 = vpop.f32.mrf.mxu0
      %v520 = vadd.f32 %v362, %v519
      %v521 = vpop.f32.mrf.mxu0
      %v522 = vadd.f32 %v362, %v521
      %523 = vmatmul.bf16.gmra.mxu0 %v464
      %v524 = vpop.f32.mrf.mxu0
      %v525 = vadd.f32 %v362, %v524
      %v526 = vpop.f32.mrf.mxu0
      %v527 = vadd.f32 %v362, %v526
      %528 = vmatmul.bf16.gmra.mxu0 %v467
      %v529 = vpop.f32.mrf.mxu0
      %v530 = vadd.f32 %v362, %v529
      %v531 = vpop.f32.mrf.mxu0
      %v532 = vadd.f32 %v362, %v531
      %533 = vmatmul.bf16.gmra.mxu0 %v470
      %v534 = vpop.f32.mrf.mxu0
      %v535 = vadd.f32 %v362, %v534
      %v536 = vpop.f32.mrf.mxu0
      %v537 = vadd.f32 %v362, %v536
      %538 = vmatmul.bf16.gmra.mxu0 %v473
      %v539 = vpop.f32.mrf.mxu0
      %v540 = vadd.f32 %v362, %v539
      %v541 = vpop.f32.mrf.mxu0
      %v542 = vadd.f32 %v362, %v541
      %543 = vmatmul.bf16.gmra.mxu0 %v476
      %v544 = vpop.f32.mrf.mxu0
      %v545 = vadd.f32 %v362, %v544
      %v546 = vpop.f32.mrf.mxu0
      %v547 = vadd.f32 %v362, %v546
      %548 = vmatmul.bf16.gmra.mxu0 %v479
      %v549 = vpop.f32.mrf.mxu0
      %v550 = vadd.f32 %v362, %v549
      %v551 = vpop.f32.mrf.mxu0
      %v552 = vadd.f32 %v362, %v551
      %553 = vmatmul.bf16.gmra.mxu0 %v482
      %v554 = vpop.f32.mrf.mxu0
      %v555 = vadd.f32 %v362, %v554
      %v556 = vpop.f32.mrf.mxu0
      %v557 = vadd.f32 %v362, %v556
      %558 = vmatmul.bf16.gmra.mxu0 %v485
      %v559 = vpop.f32.mrf.mxu0
      %v560 = vadd.f32 %v362, %v559
      %v561 = vpop.f32.mrf.mxu0
      %v562 = vadd.f32 %v362, %v561
      %563 = vmatmul.bf16.gmra.mxu0 %v488
      %v564 = vpop.f32.mrf.mxu0
      %v565 = vadd.f32 %v362, %v564
      %v566 = vpop.f32.mrf.mxu0
      %v567 = vadd.f32 %v362, %v566
      %568 = vmatmul.bf16.gmra.mxu0 %v491
      %v569 = vpop.f32.mrf.mxu0
      %v570 = vadd.f32 %v362, %v569
      %v571 = vpop.f32.mrf.mxu0
      %v572 = vadd.f32 %v362, %v571
      %573 = vmatmul.bf16.gmra.mxu0 %v494
      %v574 = vpop.f32.mrf.mxu0
      %v575 = vadd.f32 %v362, %v574
      %v576 = vpop.f32.mrf.mxu0
      %v577 = vadd.f32 %v362, %v576
      %578 = vmatmul.bf16.gmra.mxu0 %v497
      %v579 = vpop.f32.mrf.mxu0
      %v580 = vadd.f32 %v362, %v579
      %v581 = vpop.f32.mrf.mxu0
      %v582 = vadd.f32 %v362, %v581
      %583 = vmatmul.bf16.gmra.mxu0 %v500
      %v584 = vpop.f32.mrf.mxu0
      %v585 = vadd.f32 %v362, %v584
      %v586 = vpop.f32.mrf.mxu0
      %v587 = vadd.f32 %v362, %v586
      %588 = vmatmul.bf16.gmra.mxu0 %v503
      %v589 = vpop.f32.mrf.mxu0
      %v590 = vadd.f32 %v362, %v589
      %v591 = vpop.f32.mrf.mxu0
      %v592 = vadd.f32 %v362, %v591
      %593 = vdwg.mxu0
      %v594 = vmul.f32 %v515, %v515
      %v595 = vmul.f32 %v517, %v517
      %v596 = vmul.f32 %v520, %v520
      %v597 = vmul.f32 %v522, %v522
      %v598 = vmul.f32 %v525, %v525
      %v599 = vmul.f32 %v527, %v527
      %v600 = vmul.f32 %v530, %v530
      %v601 = vmul.f32 %v532, %v532
      %v602 = vmul.f32 %v535, %v535
      %v603 = vmul.f32 %v537, %v537
      %v604 = vmul.f32 %v540, %v540
      %v605 = vmul.f32 %v542, %v542
      %v606 = vmul.f32 %v545, %v545
      %v607 = vmul.f32 %v547, %v547
      %v608 = vmul.f32 %v550, %v550
      %v609 = vmul.f32 %v552, %v552
      %v610 = vmul.f32 %v555, %v555
      %v611 = vmul.f32 %v557, %v557
      %v612 = vmul.f32 %v560, %v560
      %v613 = vmul.f32 %v562, %v562
      %v614 = vmul.f32 %v565, %v565
      %v615 = vmul.f32 %v567, %v567
      %v616 = vmul.f32 %v570, %v570
      %v617 = vmul.f32 %v572, %v572
      %v618 = vmul.f32 %v575, %v575
      %v619 = vmul.f32 %v577, %v577
      %v620 = vmul.f32 %v580, %v580
      %v621 = vmul.f32 %v582, %v582
      %v622 = vmul.f32 %v585, %v585
      %v623 = vmul.f32 %v587, %v587
      %v624 = vmul.f32 %v590, %v590
      %v625 = vmul.f32 %v592, %v592
      %v626 = vmul.f32 %v515, %v594
      %v627 = vmul.f32 %v517, %v595
      %v628 = vmul.f32 %v520, %v596
      %v629 = vmul.f32 %v522, %v597
      %v630 = vmul.f32 %v525, %v598
      %v631 = vmul.f32 %v527, %v599
      %v632 = vmul.f32 %v530, %v600
      %v633 = vmul.f32 %v532, %v601
      %v634 = vmul.f32 %v535, %v602
      %v635 = vmul.f32 %v537, %v603
      %v636 = vmul.f32 %v540, %v604
      %v637 = vmul.f32 %v542, %v605
      %v638 = vmul.f32 %v545, %v606
      %v639 = vmul.f32 %v547, %v607
      %v640 = vmul.f32 %v550, %v608
      %v641 = vmul.f32 %v552, %v609
      %v642 = vmul.f32 %v555, %v610
      %v643 = vmul.f32 %v557, %v611
      %v644 = vmul.f32 %v560, %v612
      %v645 = vmul.f32 %v562, %v613
      %v646 = vmul.f32 %v565, %v614
      %v647 = vmul.f32 %v567, %v615
      %v648 = vmul.f32 %v570, %v616
      %v649 = vmul.f32 %v572, %v617
      %v650 = vmul.f32 %v575, %v618
      %v651 = vmul.f32 %v577, %v619
      %v652 = vmul.f32 %v580, %v620
      %v653 = vmul.f32 %v582, %v621
      %v654 = vmul.f32 %v585, %v622
      %v655 = vmul.f32 %v587, %v623
      %v656 = vmul.f32 %v590, %v624
      %v657 = vmul.f32 %v592, %v625
      %v658 = vmul.f32 %v626, 0.044715
      %v659 = vmul.f32 %v627, 0.044715
      %v660 = vmul.f32 %v628, 0.044715
      %v661 = vmul.f32 %v629, 0.044715
      %v662 = vmul.f32 %v630, 0.044715
      %v663 = vmul.f32 %v631, 0.044715
      %v664 = vmul.f32 %v632, 0.044715
      %v665 = vmul.f32 %v633, 0.044715
      %v666 = vmul.f32 %v634, 0.044715
      %v667 = vmul.f32 %v635, 0.044715
      %v668 = vmul.f32 %v636, 0.044715
      %v669 = vmul.f32 %v637, 0.044715
      %v670 = vmul.f32 %v638, 0.044715
      %v671 = vmul.f32 %v639, 0.044715
      %v672 = vmul.f32 %v640, 0.044715
      %v673 = vmul.f32 %v641, 0.044715
      %v674 = vmul.f32 %v642, 0.044715
      %v675 = vmul.f32 %v643, 0.044715
      %v676 = vmul.f32 %v644, 0.044715
      %v677 = vmul.f32 %v645, 0.044715
      %v678 = vmul.f32 %v646, 0.044715
      %v679 = vmul.f32 %v647, 0.044715
      %v680 = vmul.f32 %v648, 0.044715
      %v681 = vmul.f32 %v649, 0.044715
      %v682 = vmul.f32 %v650, 0.044715
      %v683 = vmul.f32 %v651, 0.044715
      %v684 = vmul.f32 %v652, 0.044715
      %v685 = vmul.f32 %v653, 0.044715
      %v686 = vmul.f32 %v654, 0.044715
      %v687 = vmul.f32 %v655, 0.044715
      %v688 = vmul.f32 %v656, 0.044715
      %v689 = vmul.f32 %v657, 0.044715
      %v690 = vadd.f32 %v515, %v658
      %v691 = vadd.f32 %v517, %v659
      %v692 = vadd.f32 %v520, %v660
      %v693 = vadd.f32 %v522, %v661
      %v694 = vadd.f32 %v525, %v662
      %v695 = vadd.f32 %v527, %v663
      %v696 = vadd.f32 %v530, %v664
      %v697 = vadd.f32 %v532, %v665
      %v698 = vadd.f32 %v535, %v666
      %v699 = vadd.f32 %v537, %v667
      %v700 = vadd.f32 %v540, %v668
      %v701 = vadd.f32 %v542, %v669
      %v702 = vadd.f32 %v545, %v670
      %v703 = vadd.f32 %v547, %v671
      %v704 = vadd.f32 %v550, %v672
      %v705 = vadd.f32 %v552, %v673
      %v706 = vadd.f32 %v555, %v674
      %v707 = vadd.f32 %v557, %v675
      %v708 = vadd.f32 %v560, %v676
      %v709 = vadd.f32 %v562, %v677
      %v710 = vadd.f32 %v565, %v678
      %v711 = vadd.f32 %v567, %v679
      %v712 = vadd.f32 %v570, %v680
      %v713 = vadd.f32 %v572, %v681
      %v714 = vadd.f32 %v575, %v682
      %v715 = vadd.f32 %v577, %v683
      %v716 = vadd.f32 %v580, %v684
      %v717 = vadd.f32 %v582, %v685
      %v718 = vadd.f32 %v585, %v686
      %v719 = vadd.f32 %v587, %v687
      %v720 = vadd.f32 %v590, %v688
      %v721 = vadd.f32 %v592, %v689
      %v722 = vmul.f32 %v690, 0.7978846
      %v723 = vmul.f32 %v691, 0.7978846
      %v724 = vmul.f32 %v692, 0.7978846
      %v725 = vmul.f32 %v693, 0.7978846
      %v726 = vmul.f32 %v694, 0.7978846
      %v727 = vmul.f32 %v695, 0.7978846
      %v728 = vmul.f32 %v696, 0.7978846
      %v729 = vmul.f32 %v697, 0.7978846
      %v730 = vmul.f32 %v698, 0.7978846
      %v731 = vmul.f32 %v699, 0.7978846
      %v732 = vmul.f32 %v700, 0.7978846
      %v733 = vmul.f32 %v701, 0.7978846
      %v734 = vmul.f32 %v702, 0.7978846
      %v735 = vmul.f32 %v703, 0.7978846
      %v736 = vmul.f32 %v704, 0.7978846
      %v737 = vmul.f32 %v705, 0.7978846
      %v738 = vmul.f32 %v706, 0.7978846
      %v739 = vmul.f32 %v707, 0.7978846
      %v740 = vmul.f32 %v708, 0.7978846
      %v741 = vmul.f32 %v709, 0.7978846
      %v742 = vmul.f32 %v710, 0.7978846
      %v743 = vmul.f32 %v711, 0.7978846
      %v744 = vmul.f32 %v712, 0.7978846
      %v745 = vmul.f32 %v713, 0.7978846
      %v746 = vmul.f32 %v714, 0.7978846
      %v747 = vmul.f32 %v715, 0.7978846
      %v748 = vmul.f32 %v716, 0.7978846
      %v749 = vmul.f32 %v717, 0.7978846
      %v750 = vmul.f32 %v718, 0.7978846
      %v751 = vmul.f32 %v719, 0.7978846
      %v752 = vmul.f32 %v720, 0.7978846
      %v753 = vmul.f32 %v721, 0.7978846
      %v754 = vtanh.pop %v722
      %v755 = vtanh.pop %v723
      %v756 = vtanh.pop %v724
      %v757 = vtanh.pop %v725
      %v758 = vtanh.pop %v726
      %v759 = vtanh.pop %v727
      %v760 = vtanh.pop %v728
      %v761 = vtanh.pop %v729
      %v762 = vtanh.pop %v730
      %v763 = vtanh.pop %v731
      %v764 = vtanh.pop %v732
      %v765 = vtanh.pop %v733
      %v766 = vtanh.pop %v734
      %v767 = vtanh.pop %v735
      %v768 = vtanh.pop %v736
      %v769 = vtanh.pop %v737
      %v770 = vtanh.pop %v738
      %v771 = vtanh.pop %v739
      %v772 = vtanh.pop %v740
      %v773 = vtanh.pop %v741
      %v774 = vtanh.pop %v742
      %v775 = vtanh.pop %v743
      %v776 = vtanh.pop %v744
      %v777 = vtanh.pop %v745
      %v778 = vtanh.pop %v746
      %v779 = vtanh.pop %v747
      %v780 = vtanh.pop %v748
      %v781 = vtanh.pop %v749
      %v782 = vtanh.pop %v750
      %v783 = vtanh.pop %v751
      %v784 = vtanh.pop %v752
      %v785 = vtanh.pop %v753
      %v786 = vadd.f32 %v754, 1.0
      %v787 = vadd.f32 %v755, 1.0
      %v788 = vadd.f32 %v756, 1.0
      %v789 = vadd.f32 %v757, 1.0
      %v790 = vadd.f32 %v758, 1.0
      %v791 = vadd.f32 %v759, 1.0
      %v792 = vadd.f32 %v760, 1.0
      %v793 = vadd.f32 %v761, 1.0
      %v794 = vadd.f32 %v762, 1.0
      %v795 = vadd.f32 %v763, 1.0
      %v796 = vadd.f32 %v764, 1.0
      %v797 = vadd.f32 %v765, 1.0
      %v798 = vadd.f32 %v766, 1.0
      %v799 = vadd.f32 %v767, 1.0
      %v800 = vadd.f32 %v768, 1.0
      %v801 = vadd.f32 %v769, 1.0
      %v802 = vadd.f32 %v770, 1.0
      %v803 = vadd.f32 %v771, 1.0
      %v804 = vadd.f32 %v772, 1.0
      %v805 = vadd.f32 %v773, 1.0
      %v806 = vadd.f32 %v774, 1.0
      %v807 = vadd.f32 %v775, 1.0
      %v808 = vadd.f32 %v776, 1.0
      %v809 = vadd.f32 %v777, 1.0
      %v810 = vadd.f32 %v778, 1.0
      %v811 = vadd.f32 %v779, 1.0
      %v812 = vadd.f32 %v780, 1.0
      %v813 = vadd.f32 %v781, 1.0
      %v814 = vadd.f32 %v782, 1.0
      %v815 = vadd.f32 %v783, 1.0
      %v816 = vadd.f32 %v784, 1.0
      %v817 = vadd.f32 %v785, 1.0
      %v818 = vmul.f32 %v786, 0.5
      %v819 = vmul.f32 %v787, 0.5
      %v820 = vmul.f32 %v788, 0.5
      %v821 = vmul.f32 %v789, 0.5
      %v822 = vmul.f32 %v790, 0.5
      %v823 = vmul.f32 %v791, 0.5
      %v824 = vmul.f32 %v792, 0.5
      %v825 = vmul.f32 %v793, 0.5
      %v826 = vmul.f32 %v794, 0.5
      %v827 = vmul.f32 %v795, 0.5
      %v828 = vmul.f32 %v796, 0.5
      %v829 = vmul.f32 %v797, 0.5
      %v830 = vmul.f32 %v798, 0.5
      %v831 = vmul.f32 %v799, 0.5
      %v832 = vmul.f32 %v800, 0.5
      %v833 = vmul.f32 %v801, 0.5
      %v834 = vmul.f32 %v802, 0.5
      %v835 = vmul.f32 %v803, 0.5
      %v836 = vmul.f32 %v804, 0.5
      %v837 = vmul.f32 %v805, 0.5
      %v838 = vmul.f32 %v806, 0.5
      %v839 = vmul.f32 %v807, 0.5
      %v840 = vmul.f32 %v808, 0.5
      %v841 = vmul.f32 %v809, 0.5
      %v842 = vmul.f32 %v810, 0.5
      %v843 = vmul.f32 %v811, 0.5
      %v844 = vmul.f32 %v812, 0.5
      %v845 = vmul.f32 %v813, 0.5
      %v846 = vmul.f32 %v814, 0.5
      %v847 = vmul.f32 %v815, 0.5
      %v848 = vmul.f32 %v816, 0.5
      %v849 = vmul.f32 %v817, 0.5
      %v850 = vmul.f32 %v515, %v818
      %v851 = vmul.f32 %v517, %v819
      %v852 = vmul.f32 %v520, %v820
      %v853 = vmul.f32 %v522, %v821
      %v854 = vmul.f32 %v525, %v822
      %v855 = vmul.f32 %v527, %v823
      %v856 = vmul.f32 %v530, %v824
      %v857 = vmul.f32 %v532, %v825
      %v858 = vmul.f32 %v535, %v826
      %v859 = vmul.f32 %v537, %v827
      %v860 = vmul.f32 %v540, %v828
      %v861 = vmul.f32 %v542, %v829
      %v862 = vmul.f32 %v545, %v830
      %v863 = vmul.f32 %v547, %v831
      %v864 = vmul.f32 %v550, %v832
      %v865 = vmul.f32 %v552, %v833
      %v866 = vmul.f32 %v555, %v834
      %v867 = vmul.f32 %v557, %v835
      %v868 = vmul.f32 %v560, %v836
      %v869 = vmul.f32 %v562, %v837
      %v870 = vmul.f32 %v565, %v838
      %v871 = vmul.f32 %v567, %v839
      %v872 = vmul.f32 %v570, %v840
      %v873 = vmul.f32 %v572, %v841
      %v874 = vmul.f32 %v575, %v842
      %v875 = vmul.f32 %v577, %v843
      %v876 = vmul.f32 %v580, %v844
      %v877 = vmul.f32 %v582, %v845
      %v878 = vmul.f32 %v585, %v846
      %v879 = vmul.f32 %v587, %v847
      %v880 = vmul.f32 %v590, %v848
      %v881 = vmul.f32 %v592, %v849
      %v882 = vpack.c.bf16 %v850, %v850
      %v883 = vpack.c.bf16 %v851, %v851
      %v884 = vpack.c.bf16 %v852, %v852
      %v885 = vpack.c.bf16 %v853, %v853
      %v886 = vpack.c.bf16 %v854, %v854
      %v887 = vpack.c.bf16 %v855, %v855
      %v888 = vpack.c.bf16 %v856, %v856
      %v889 = vpack.c.bf16 %v857, %v857
      %v890 = vpack.c.bf16 %v858, %v858
      %v891 = vpack.c.bf16 %v859, %v859
      %v892 = vpack.c.bf16 %v860, %v860
      %v893 = vpack.c.bf16 %v861, %v861
      %v894 = vpack.c.bf16 %v862, %v862
      %v895 = vpack.c.bf16 %v863, %v863
      %v896 = vpack.c.bf16 %v864, %v864
      %v897 = vpack.c.bf16 %v865, %v865
      %v898 = vpack.c.bf16 %v866, %v866
      %v899 = vpack.c.bf16 %v867, %v867
      %v900 = vpack.c.bf16 %v868, %v868
      %v901 = vpack.c.bf16 %v869, %v869
      %v902 = vpack.c.bf16 %v870, %v870
      %v903 = vpack.c.bf16 %v871, %v871
      %v904 = vpack.c.bf16 %v872, %v872
      %v905 = vpack.c.bf16 %v873, %v873
      %v906 = vpack.c.bf16 %v874, %v874
      %v907 = vpack.c.bf16 %v875, %v875
      %v908 = vpack.c.bf16 %v876, %v876
      %v909 = vpack.c.bf16 %v877, %v877
      %v910 = vpack.c.bf16 %v878, %v878
      %v911 = vpack.c.bf16 %v879, %v879
      %v912 = vpack.c.bf16 %v880, %v880
      %v913 = vpack.c.bf16 %v881, %v881
      %914 = vst [vmem:[%s315] sm:$0xf] %v882
      %915 = vst [vmem:[%s315 + $0x4] sm:$0xf] %v883
      %916 = vst [vmem:[%s315 + $0x8] sm:$0xf] %v884
      %917 = vst [vmem:[%s315 + $0xc] sm:$0xf] %v885
      %918 = vst [vmem:[%s315 + $0x10] sm:$0xf] %v886
      %919 = vst [vmem:[%s315 + $0x14] sm:$0xf] %v887
      %920 = vst [vmem:[%s315 + $0x18] sm:$0xf] %v888
      %921 = vst [vmem:[%s315 + $0x1c] sm:$0xf] %v889
      %922 = vst [vmem:[%s315 + $0x20] sm:$0xf] %v890
      %923 = vst [vmem:[%s315 + $0x24] sm:$0xf] %v891
      %924 = vst [vmem:[%s315 + $0x28] sm:$0xf] %v892
      %925 = vst [vmem:[%s315 + $0x2c] sm:$0xf] %v893
      %926 = vst [vmem:[%s315 + $0x30] sm:$0xf] %v894
      %927 = vst [vmem:[%s315 + $0x34] sm:$0xf] %v895
      %928 = vst [vmem:[%s315 + $0x38] sm:$0xf] %v896
      %929 = vst [vmem:[%s315 + $0x3c] sm:$0xf] %v897
      %930 = vst [vmem:[%s315 + $0x40] sm:$0xf] %v898
      %931 = vst [vmem:[%s315 + $0x44] sm:$0xf] %v899
      %932 = vst [vmem:[%s315 + $0x48] sm:$0xf] %v900
      %933 = vst [vmem:[%s315 + $0x4c] sm:$0xf] %v901
      %934 = vst [vmem:[%s315 + $0x50] sm:$0xf] %v902
      %935 = vst [vmem:[%s315 + $0x54] sm:$0xf] %v903
      %936 = vst [vmem:[%s315 + $0x58] sm:$0xf] %v904
      %937 = vst [vmem:[%s315 + $0x5c] sm:$0xf] %v905
      %938 = vst [vmem:[%s315 + $0x60] sm:$0xf] %v906
      %939 = vst [vmem:[%s315 + $0x64] sm:$0xf] %v907
      %940 = vst [vmem:[%s315 + $0x68] sm:$0xf] %v908
      %941 = vst [vmem:[%s315 + $0x6c] sm:$0xf] %v909
      %942 = vst [vmem:[%s315 + $0x70] sm:$0xf] %v910
      %943 = vst [vmem:[%s315 + $0x74] sm:$0xf] %v911
      %944 = vst [vmem:[%s315 + $0x78] sm:$0xf] %v912
      %945 = vst [vmem:[%s315 + $0x7c] sm:$0xf] %v913
      %v946 = vld [vmem:[%s3] sm:$0x1]
      %v947 = vld [vmem:[%s4] sm:$0x1]
      %v948 = vlaneseq
      %v949 = vand.u32 %v948, 127
      %vm950 = vcmp.lt.s32.totalorder %v949, 16
      %951 = vadd.xlane.f32.xlu0 %v850
      %v952 = vpop.xlane.xlu0 %951
      %953 = vadd.xlane.f32.xlu0 %v851
      %v954 = vpop.xlane.xlu0 %953
      %955 = vadd.xlane.f32.xlu0 %v852
      %v956 = vpop.xlane.xlu0 %955
      %957 = vadd.xlane.f32.xlu0 %v853
      %v958 = vpop.xlane.xlu0 %957
      %959 = vadd.xlane.f32.xlu0 %v854
      %v960 = vpop.xlane.xlu0 %959
      %961 = vadd.xlane.f32.xlu0 %v855
      %v962 = vpop.xlane.xlu0 %961
      %963 = vadd.xlane.f32.xlu0 %v856
      %v964 = vpop.xlane.xlu0 %963
      %965 = vadd.xlane.f32.xlu0 %v857
      %v966 = vpop.xlane.xlu0 %965
      %967 = vadd.xlane.f32.xlu0 %v858
      %v968 = vpop.xlane.xlu0 %967
      %969 = vadd.xlane.f32.xlu0 %v859
      %v970 = vpop.xlane.xlu0 %969
      %971 = vadd.xlane.f32.xlu0 %v860
      %v972 = vpop.xlane.xlu0 %971
      %973 = vadd.xlane.f32.xlu0 %v861
      %v974 = vpop.xlane.xlu0 %973
      %975 = vadd.xlane.f32.xlu0 %v862
      %v976 = vpop.xlane.xlu0 %975
      %977 = vadd.xlane.f32.xlu0 %v863
      %v978 = vpop.xlane.xlu0 %977
      %979 = vadd.xlane.f32.xlu0 %v864
      %v980 = vpop.xlane.xlu0 %979
      %981 = vadd.xlane.f32.xlu0 %v865
      %v982 = vpop.xlane.xlu0 %981
      %983 = vadd.xlane.f32.xlu0 %v866
      %v984 = vpop.xlane.xlu0 %983
      %985 = vadd.xlane.f32.xlu0 %v867
      %v986 = vpop.xlane.xlu0 %985
      %987 = vadd.xlane.f32.xlu0 %v868
      %v988 = vpop.xlane.xlu0 %987
      %989 = vadd.xlane.f32.xlu0 %v869
      %v990 = vpop.xlane.xlu0 %989
      %991 = vadd.xlane.f32.xlu0 %v870
      %v992 = vpop.xlane.xlu0 %991
      %993 = vadd.xlane.f32.xlu0 %v871
      %v994 = vpop.xlane.xlu0 %993
      %995 = vadd.xlane.f32.xlu0 %v872
      %v996 = vpop.xlane.xlu0 %995
      %997 = vadd.xlane.f32.xlu0 %v873
      %v998 = vpop.xlane.xlu0 %997
      %999 = vadd.xlane.f32.xlu0 %v874
      %v1000 = vpop.xlane.xlu0 %999
      %1001 = vadd.xlane.f32.xlu0 %v875
      %v1002 = vpop.xlane.xlu0 %1001
      %1003 = vadd.xlane.f32.xlu0 %v876
      %v1004 = vpop.xlane.xlu0 %1003
      %1005 = vadd.xlane.f32.xlu0 %v877
      %v1006 = vpop.xlane.xlu0 %1005
      %1007 = vadd.xlane.f32.xlu0 %v878
      %v1008 = vpop.xlane.xlu0 %1007
      %1009 = vadd.xlane.f32.xlu0 %v879
      %v1010 = vpop.xlane.xlu0 %1009
      %1011 = vadd.xlane.f32.xlu0 %v880
      %v1012 = vpop.xlane.xlu0 %1011
      %1013 = vadd.xlane.f32.xlu0 %v881
      %v1014 = vpop.xlane.xlu0 %1013
      %v1015 = vrcp.pop 16.0
      %v1016 = vmul.f32 16.0, %v1015
      %v1017 = vsub.f32 1.0, %v1016
      %v1018 = vmul.f32 %v1015, %v1017
      %v1019 = vadd.f32 %v1015, %v1018
      %vm1020 = vweird.f32 %v1015
      %v1021 = vsel %vm1020, %v1015, %v1019
      %v1022 = vmul.f32 %v952, %v1021
      %v1023 = vmul.f32 %v954, %v1021
      %v1024 = vmul.f32 %v956, %v1021
      %v1025 = vmul.f32 %v958, %v1021
      %v1026 = vmul.f32 %v960, %v1021
      %v1027 = vmul.f32 %v962, %v1021
      %v1028 = vmul.f32 %v964, %v1021
      %v1029 = vmul.f32 %v966, %v1021
      %v1030 = vmul.f32 %v968, %v1021
      %v1031 = vmul.f32 %v970, %v1021
      %v1032 = vmul.f32 %v972, %v1021
      %v1033 = vmul.f32 %v974, %v1021
      %v1034 = vmul.f32 %v976, %v1021
      %v1035 = vmul.f32 %v978, %v1021
      %v1036 = vmul.f32 %v980, %v1021
      %v1037 = vmul.f32 %v982, %v1021
      %v1038 = vmul.f32 %v984, %v1021
      %v1039 = vmul.f32 %v986, %v1021
      %v1040 = vmul.f32 %v988, %v1021
      %v1041 = vmul.f32 %v990, %v1021
      %v1042 = vmul.f32 %v992, %v1021
      %v1043 = vmul.f32 %v994, %v1021
      %v1044 = vmul.f32 %v996, %v1021
      %v1045 = vmul.f32 %v998, %v1021
      %v1046 = vmul.f32 %v1000, %v1021
      %v1047 = vmul.f32 %v1002, %v1021
      %v1048 = vmul.f32 %v1004, %v1021
      %v1049 = vmul.f32 %v1006, %v1021
      %v1050 = vmul.f32 %v1008, %v1021
      %v1051 = vmul.f32 %v1010, %v1021
      %v1052 = vmul.f32 %v1012, %v1021
      %v1053 = vmul.f32 %v1014, %v1021
      %v1054 = vsub.f32 %v850, %v1022
      %v1055 = vsub.f32 %v851, %v1023
      %v1056 = vsub.f32 %v852, %v1024
      %v1057 = vsub.f32 %v853, %v1025
      %v1058 = vsub.f32 %v854, %v1026
      %v1059 = vsub.f32 %v855, %v1027
      %v1060 = vsub.f32 %v856, %v1028
      %v1061 = vsub.f32 %v857, %v1029
      %v1062 = vsub.f32 %v858, %v1030
      %v1063 = vsub.f32 %v859, %v1031
      %v1064 = vsub.f32 %v860, %v1032
      %v1065 = vsub.f32 %v861, %v1033
      %v1066 = vsub.f32 %v862, %v1034
      %v1067 = vsub.f32 %v863, %v1035
      %v1068 = vsub.f32 %v864, %v1036
      %v1069 = vsub.f32 %v865, %v1037
      %v1070 = vsub.f32 %v866, %v1038
      %v1071 = vsub.f32 %v867, %v1039
      %v1072 = vsub.f32 %v868, %v1040
      %v1073 = vsub.f32 %v869, %v1041
      %v1074 = vsub.f32 %v870, %v1042
      %v1075 = vsub.f32 %v871, %v1043
      %v1076 = vsub.f32 %v872, %v1044
      %v1077 = vsub.f32 %v873, %v1045
      %v1078 = vsub.f32 %v874, %v1046
      %v1079 = vsub.f32 %v875, %v1047
      %v1080 = vsub.f32 %v876, %v1048
      %v1081 = vsub.f32 %v877, %v1049
      %v1082 = vsub.f32 %v878, %v1050
      %v1083 = vsub.f32 %v879, %v1051
      %v1084 = vsub.f32 %v880, %v1052
      %v1085 = vsub.f32 %v881, %v1053
      %v1086 = vsel %vm950, %v1054, 0.0
      %v1087 = vsel %vm950, %v1055, 0.0
      %v1088 = vsel %vm950, %v1056, 0.0
      %v1089 = vsel %vm950, %v1057, 0.0
      %v1090 = vsel %vm950, %v1058, 0.0
      %v1091 = vsel %vm950, %v1059, 0.0
      %v1092 = vsel %vm950, %v1060, 0.0
      %v1093 = vsel %vm950, %v1061, 0.0
      %v1094 = vsel %vm950, %v1062, 0.0
      %v1095 = vsel %vm950, %v1063, 0.0
      %v1096 = vsel %vm950, %v1064, 0.0
      %v1097 = vsel %vm950, %v1065, 0.0
      %v1098 = vsel %vm950, %v1066, 0.0
      %v1099 = vsel %vm950, %v1067, 0.0
      %v1100 = vsel %vm950, %v1068, 0.0
      %v1101 = vsel %vm950, %v1069, 0.0
      %v1102 = vsel %vm950, %v1070, 0.0
      %v1103 = vsel %vm950, %v1071, 0.0
      %v1104 = vsel %vm950, %v1072, 0.0
      %v1105 = vsel %vm950, %v1073, 0.0
      %v1106 = vsel %vm950, %v1074, 0.0
      %v1107 = vsel %vm950, %v1075, 0.0
      %v1108 = vsel %vm950, %v1076, 0.0
      %v1109 = vsel %vm950, %v1077, 0.0
      %v1110 = vsel %vm950, %v1078, 0.0
      %v1111 = vsel %vm950, %v1079, 0.0
      %v1112 = vsel %vm950, %v1080, 0.0
      %v1113 = vsel %vm950, %v1081, 0.0
      %v1114 = vsel %vm950, %v1082, 0.0
      %v1115 = vsel %vm950, %v1083, 0.0
      %v1116 = vsel %vm950, %v1084, 0.0
      %v1117 = vsel %vm950, %v1085, 0.0
      %v1118 = vmul.f32 %v1086, %v1086
      %v1119 = vmul.f32 %v1087, %v1087
      %v1120 = vmul.f32 %v1088, %v1088
      %v1121 = vmul.f32 %v1089, %v1089
      %v1122 = vmul.f32 %v1090, %v1090
      %v1123 = vmul.f32 %v1091, %v1091
      %v1124 = vmul.f32 %v1092, %v1092
      %v1125 = vmul.f32 %v1093, %v1093
      %v1126 = vmul.f32 %v1094, %v1094
      %v1127 = vmul.f32 %v1095, %v1095
      %v1128 = vmul.f32 %v1096, %v1096
      %v1129 = vmul.f32 %v1097, %v1097
      %v1130 = vmul.f32 %v1098, %v1098
      %v1131 = vmul.f32 %v1099, %v1099
      %v1132 = vmul.f32 %v1100, %v1100
      %v1133 = vmul.f32 %v1101, %v1101
      %v1134 = vmul.f32 %v1102, %v1102
      %v1135 = vmul.f32 %v1103, %v1103
      %v1136 = vmul.f32 %v1104, %v1104
      %v1137 = vmul.f32 %v1105, %v1105
      %v1138 = vmul.f32 %v1106, %v1106
      %v1139 = vmul.f32 %v1107, %v1107
      %v1140 = vmul.f32 %v1108, %v1108
      %v1141 = vmul.f32 %v1109, %v1109
      %v1142 = vmul.f32 %v1110, %v1110
      %v1143 = vmul.f32 %v1111, %v1111
      %v1144 = vmul.f32 %v1112, %v1112
      %v1145 = vmul.f32 %v1113, %v1113
      %v1146 = vmul.f32 %v1114, %v1114
      %v1147 = vmul.f32 %v1115, %v1115
      %v1148 = vmul.f32 %v1116, %v1116
      %v1149 = vmul.f32 %v1117, %v1117
      %1150 = vadd.xlane.f32.xlu0 %v1118
      %v1151 = vpop.xlane.xlu0 %1150
      %1152 = vadd.xlane.f32.xlu0 %v1119
      %v1153 = vpop.xlane.xlu0 %1152
      %1154 = vadd.xlane.f32.xlu0 %v1120
      %v1155 = vpop.xlane.xlu0 %1154
      %1156 = vadd.xlane.f32.xlu0 %v1121
      %v1157 = vpop.xlane.xlu0 %1156
      %1158 = vadd.xlane.f32.xlu0 %v1122
      %v1159 = vpop.xlane.xlu0 %1158
      %1160 = vadd.xlane.f32.xlu0 %v1123
      %v1161 = vpop.xlane.xlu0 %1160
      %1162 = vadd.xlane.f32.xlu0 %v1124
      %v1163 = vpop.xlane.xlu0 %1162
      %1164 = vadd.xlane.f32.xlu0 %v1125
      %v1165 = vpop.xlane.xlu0 %1164
      %1166 = vadd.xlane.f32.xlu0 %v1126
      %v1167 = vpop.xlane.xlu0 %1166
      %1168 = vadd.xlane.f32.xlu0 %v1127
      %v1169 = vpop.xlane.xlu0 %1168
      %1170 = vadd.xlane.f32.xlu0 %v1128
      %v1171 = vpop.xlane.xlu0 %1170
      %1172 = vadd.xlane.f32.xlu0 %v1129
      %v1173 = vpop.xlane.xlu0 %1172
      %1174 = vadd.xlane.f32.xlu0 %v1130
      %v1175 = vpop.xlane.xlu0 %1174
      %1176 = vadd.xlane.f32.xlu0 %v1131
      %v1177 = vpop.xlane.xlu0 %1176
      %1178 = vadd.xlane.f32.xlu0 %v1132
      %v1179 = vpop.xlane.xlu0 %1178
      %1180 = vadd.xlane.f32.xlu0 %v1133
      %v1181 = vpop.xlane.xlu0 %1180
      %1182 = vadd.xlane.f32.xlu0 %v1134
      %v1183 = vpop.xlane.xlu0 %1182
      %1184 = vadd.xlane.f32.xlu0 %v1135
      %v1185 = vpop.xlane.xlu0 %1184
      %1186 = vadd.xlane.f32.xlu0 %v1136
      %v1187 = vpop.xlane.xlu0 %1186
      %1188 = vadd.xlane.f32.xlu0 %v1137
      %v1189 = vpop.xlane.xlu0 %1188
      %1190 = vadd.xlane.f32.xlu0 %v1138
      %v1191 = vpop.xlane.xlu0 %1190
      %1192 = vadd.xlane.f32.xlu0 %v1139
      %v1193 = vpop.xlane.xlu0 %1192
      %1194 = vadd.xlane.f32.xlu0 %v1140
      %v1195 = vpop.xlane.xlu0 %1194
      %1196 = vadd.xlane.f32.xlu0 %v1141
      %v1197 = vpop.xlane.xlu0 %1196
      %1198 = vadd.xlane.f32.xlu0 %v1142
      %v1199 = vpop.xlane.xlu0 %1198
      %1200 = vadd.xlane.f32.xlu0 %v1143
      %v1201 = vpop.xlane.xlu0 %1200
      %1202 = vadd.xlane.f32.xlu0 %v1144
      %v1203 = vpop.xlane.xlu0 %1202
      %1204 = vadd.xlane.f32.xlu0 %v1145
      %v1205 = vpop.xlane.xlu0 %1204
      %1206 = vadd.xlane.f32.xlu0 %v1146
      %v1207 = vpop.xlane.xlu0 %1206
      %1208 = vadd.xlane.f32.xlu0 %v1147
      %v1209 = vpop.xlane.xlu0 %1208
      %1210 = vadd.xlane.f32.xlu0 %v1148
      %v1211 = vpop.xlane.xlu0 %1210
      %1212 = vadd.xlane.f32.xlu0 %v1149
      %v1213 = vpop.xlane.xlu0 %1212
      %v1214 = vmul.f32 %v1151, %v1021
      %v1215 = vmul.f32 %v1153, %v1021
      %v1216 = vmul.f32 %v1155, %v1021
      %v1217 = vmul.f32 %v1157, %v1021
      %v1218 = vmul.f32 %v1159, %v1021
      %v1219 = vmul.f32 %v1161, %v1021
      %v1220 = vmul.f32 %v1163, %v1021
      %v1221 = vmul.f32 %v1165, %v1021
      %v1222 = vmul.f32 %v1167, %v1021
      %v1223 = vmul.f32 %v1169, %v1021
      %v1224 = vmul.f32 %v1171, %v1021
      %v1225 = vmul.f32 %v1173, %v1021
      %v1226 = vmul.f32 %v1175, %v1021
      %v1227 = vmul.f32 %v1177, %v1021
      %v1228 = vmul.f32 %v1179, %v1021
      %v1229 = vmul.f32 %v1181, %v1021
      %v1230 = vmul.f32 %v1183, %v1021
      %v1231 = vmul.f32 %v1185, %v1021
      %v1232 = vmul.f32 %v1187, %v1021
      %v1233 = vmul.f32 %v1189, %v1021
      %v1234 = vmul.f32 %v1191, %v1021
      %v1235 = vmul.f32 %v1193, %v1021
      %v1236 = vmul.f32 %v1195, %v1021
      %v1237 = vmul.f32 %v1197, %v1021
      %v1238 = vmul.f32 %v1199, %v1021
      %v1239 = vmul.f32 %v1201, %v1021
      %v1240 = vmul.f32 %v1203, %v1021
      %v1241 = vmul.f32 %v1205, %v1021
      %v1242 = vmul.f32 %v1207, %v1021
      %v1243 = vmul.f32 %v1209, %v1021
      %v1244 = vmul.f32 %v1211, %v1021
      %v1245 = vmul.f32 %v1213, %v1021
      %v1246 = vadd.f32 %v1214, 1e-05
      %v1247 = vadd.f32 %v1215, 1e-05
      %v1248 = vadd.f32 %v1216, 1e-05
      %v1249 = vadd.f32 %v1217, 1e-05
      %v1250 = vadd.f32 %v1218, 1e-05
      %v1251 = vadd.f32 %v1219, 1e-05
      %v1252 = vadd.f32 %v1220, 1e-05
      %v1253 = vadd.f32 %v1221, 1e-05
      %v1254 = vadd.f32 %v1222, 1e-05
      %v1255 = vadd.f32 %v1223, 1e-05
      %v1256 = vadd.f32 %v1224, 1e-05
      %v1257 = vadd.f32 %v1225, 1e-05
      %v1258 = vadd.f32 %v1226, 1e-05
      %v1259 = vadd.f32 %v1227, 1e-05
      %v1260 = vadd.f32 %v1228, 1e-05
      %v1261 = vadd.f32 %v1229, 1e-05
      %v1262 = vadd.f32 %v1230, 1e-05
      %v1263 = vadd.f32 %v1231, 1e-05
      %v1264 = vadd.f32 %v1232, 1e-05
      %v1265 = vadd.f32 %v1233, 1e-05
      %v1266 = vadd.f32 %v1234, 1e-05
      %v1267 = vadd.f32 %v1235, 1e-05
      %v1268 = vadd.f32 %v1236, 1e-05
      %v1269 = vadd.f32 %v1237, 1e-05
      %v1270 = vadd.f32 %v1238, 1e-05
      %v1271 = vadd.f32 %v1239, 1e-05
      %v1272 = vadd.f32 %v1240, 1e-05
      %v1273 = vadd.f32 %v1241, 1e-05
      %v1274 = vadd.f32 %v1242, 1e-05
      %v1275 = vadd.f32 %v1243, 1e-05
      %v1276 = vadd.f32 %v1244, 1e-05
      %v1277 = vadd.f32 %v1245, 1e-05
      %v1278 = vrsqrt.pop %v1246
      %v1279 = vmul.f32 %v1278, %v1246
      %v1280 = vmul.f32 %v1279, %v1278
      %v1281 = vmul.f32 0.5, %v1280
      %v1282 = vsub.f32 1.5, %v1281
      %v1283 = vmul.f32 %v1278, %v1282
      %vm1284 = vweird.f32 %v1246
      %vm1285 = vweird.f32 %v1278
      %vm1286 = vmor %vm1284, %vm1285
      %v1287 = vsel %vm1286, %v1278, %v1283
      %v1288 = vrsqrt.pop %v1247
      %v1289 = vmul.f32 %v1288, %v1247
      %v1290 = vmul.f32 %v1289, %v1288
      %v1291 = vmul.f32 0.5, %v1290
      %v1292 = vsub.f32 1.5, %v1291
      %v1293 = vmul.f32 %v1288, %v1292
      %vm1294 = vweird.f32 %v1247
      %vm1295 = vweird.f32 %v1288
      %vm1296 = vmor %vm1294, %vm1295
      %v1297 = vsel %vm1296, %v1288, %v1293
      %v1298 = vrsqrt.pop %v1248
      %v1299 = vmul.f32 %v1298, %v1248
      %v1300 = vmul.f32 %v1299, %v1298
      %v1301 = vmul.f32 0.5, %v1300
      %v1302 = vsub.f32 1.5, %v1301
      %v1303 = vmul.f32 %v1298, %v1302
      %vm1304 = vweird.f32 %v1248
      %vm1305 = vweird.f32 %v1298
      %vm1306 = vmor %vm1304, %vm1305
      %v1307 = vsel %vm1306, %v1298, %v1303
      %v1308 = vrsqrt.pop %v1249
      %v1309 = vmul.f32 %v1308, %v1249
      %v1310 = vmul.f32 %v1309, %v1308
      %v1311 = vmul.f32 0.5, %v1310
      %v1312 = vsub.f32 1.5, %v1311
      %v1313 = vmul.f32 %v1308, %v1312
      %vm1314 = vweird.f32 %v1249
      %vm1315 = vweird.f32 %v1308
      %vm1316 = vmor %vm1314, %vm1315
      %v1317 = vsel %vm1316, %v1308, %v1313
      %v1318 = vrsqrt.pop %v1250
      %v1319 = vmul.f32 %v1318, %v1250
      %v1320 = vmul.f32 %v1319, %v1318
      %v1321 = vmul.f32 0.5, %v1320
      %v1322 = vsub.f32 1.5, %v1321
      %v1323 = vmul.f32 %v1318, %v1322
      %vm1324 = vweird.f32 %v1250
      %vm1325 = vweird.f32 %v1318
      %vm1326 = vmor %vm1324, %vm1325
      %v1327 = vsel %vm1326, %v1318, %v1323
      %v1328 = vrsqrt.pop %v1251
      %v1329 = vmul.f32 %v1328, %v1251
      %v1330 = vmul.f32 %v1329, %v1328
      %v1331 = vmul.f32 0.5, %v1330
      %v1332 = vsub.f32 1.5, %v1331
      %v1333 = vmul.f32 %v1328, %v1332
      %vm1334 = vweird.f32 %v1251
      %vm1335 = vweird.f32 %v1328
      %vm1336 = vmor %vm1334, %vm1335
      %v1337 = vsel %vm1336, %v1328, %v1333
      %v1338 = vrsqrt.pop %v1252
      %v1339 = vmul.f32 %v1338, %v1252
      %v1340 = vmul.f32 %v1339, %v1338
      %v1341 = vmul.f32 0.5, %v1340
      %v1342 = vsub.f32 1.5, %v1341
      %v1343 = vmul.f32 %v1338, %v1342
      %vm1344 = vweird.f32 %v1252
      %vm1345 = vweird.f32 %v1338
      %vm1346 = vmor %vm1344, %vm1345
      %v1347 = vsel %vm1346, %v1338, %v1343
      %v1348 = vrsqrt.pop %v1253
      %v1349 = vmul.f32 %v1348, %v1253
      %v1350 = vmul.f32 %v1349, %v1348
      %v1351 = vmul.f32 0.5, %v1350
      %v1352 = vsub.f32 1.5, %v1351
      %v1353 = vmul.f32 %v1348, %v1352
      %vm1354 = vweird.f32 %v1253
      %vm1355 = vweird.f32 %v1348
      %vm1356 = vmor %vm1354, %vm1355
      %v1357 = vsel %vm1356, %v1348, %v1353
      %v1358 = vrsqrt.pop %v1254
      %v1359 = vmul.f32 %v1358, %v1254
      %v1360 = vmul.f32 %v1359, %v1358
      %v1361 = vmul.f32 0.5, %v1360
      %v1362 = vsub.f32 1.5, %v1361
      %v1363 = vmul.f32 %v1358, %v1362
      %vm1364 = vweird.f32 %v1254
      %vm1365 = vweird.f32 %v1358
      %vm1366 = vmor %vm1364, %vm1365
      %v1367 = vsel %vm1366, %v1358, %v1363
      %v1368 = vrsqrt.pop %v1255
      %v1369 = vmul.f32 %v1368, %v1255
      %v1370 = vmul.f32 %v1369, %v1368
      %v1371 = vmul.f32 0.5, %v1370
      %v1372 = vsub.f32 1.5, %v1371
      %v1373 = vmul.f32 %v1368, %v1372
      %vm1374 = vweird.f32 %v1255
      %vm1375 = vweird.f32 %v1368
      %vm1376 = vmor %vm1374, %vm1375
      %v1377 = vsel %vm1376, %v1368, %v1373
      %v1378 = vrsqrt.pop %v1256
      %v1379 = vmul.f32 %v1378, %v1256
      %v1380 = vmul.f32 %v1379, %v1378
      %v1381 = vmul.f32 0.5, %v1380
      %v1382 = vsub.f32 1.5, %v1381
      %v1383 = vmul.f32 %v1378, %v1382
      %vm1384 = vweird.f32 %v1256
      %vm1385 = vweird.f32 %v1378
      %vm1386 = vmor %vm1384, %vm1385
      %v1387 = vsel %vm1386, %v1378, %v1383
      %v1388 = vrsqrt.pop %v1257
      %v1389 = vmul.f32 %v1388, %v1257
      %v1390 = vmul.f32 %v1389, %v1388
      %v1391 = vmul.f32 0.5, %v1390
      %v1392 = vsub.f32 1.5, %v1391
      %v1393 = vmul.f32 %v1388, %v1392
      %vm1394 = vweird.f32 %v1257
      %vm1395 = vweird.f32 %v1388
      %vm1396 = vmor %vm1394, %vm1395
      %v1397 = vsel %vm1396, %v1388, %v1393
      %v1398 = vrsqrt.pop %v1258
      %v1399 = vmul.f32 %v1398, %v1258
      %v1400 = vmul.f32 %v1399, %v1398
      %v1401 = vmul.f32 0.5, %v1400
      %v1402 = vsub.f32 1.5, %v1401
      %v1403 = vmul.f32 %v1398, %v1402
      %vm1404 = vweird.f32 %v1258
      %vm1405 = vweird.f32 %v1398
      %vm1406 = vmor %vm1404, %vm1405
      %v1407 = vsel %vm1406, %v1398, %v1403
      %v1408 = vrsqrt.pop %v1259
      %v1409 = vmul.f32 %v1408, %v1259
      %v1410 = vmul.f32 %v1409, %v1408
      %v1411 = vmul.f32 0.5, %v1410
      %v1412 = vsub.f32 1.5, %v1411
      %v1413 = vmul.f32 %v1408, %v1412
      %vm1414 = vweird.f32 %v1259
      %vm1415 = vweird.f32 %v1408
      %vm1416 = vmor %vm1414, %vm1415
      %v1417 = vsel %vm1416, %v1408, %v1413
      %v1418 = vrsqrt.pop %v1260
      %v1419 = vmul.f32 %v1418, %v1260
      %v1420 = vmul.f32 %v1419, %v1418
      %v1421 = vmul.f32 0.5, %v1420
      %v1422 = vsub.f32 1.5, %v1421
      %v1423 = vmul.f32 %v1418, %v1422
      %vm1424 = vweird.f32 %v1260
      %vm1425 = vweird.f32 %v1418
      %vm1426 = vmor %vm1424, %vm1425
      %v1427 = vsel %vm1426, %v1418, %v1423
      %v1428 = vrsqrt.pop %v1261
      %v1429 = vmul.f32 %v1428, %v1261
      %v1430 = vmul.f32 %v1429, %v1428
      %v1431 = vmul.f32 0.5, %v1430
      %v1432 = vsub.f32 1.5, %v1431
      %v1433 = vmul.f32 %v1428, %v1432
      %vm1434 = vweird.f32 %v1261
      %vm1435 = vweird.f32 %v1428
      %vm1436 = vmor %vm1434, %vm1435
      %v1437 = vsel %vm1436, %v1428, %v1433
      %v1438 = vrsqrt.pop %v1262
      %v1439 = vmul.f32 %v1438, %v1262
      %v1440 = vmul.f32 %v1439, %v1438
      %v1441 = vmul.f32 0.5, %v1440
      %v1442 = vsub.f32 1.5, %v1441
      %v1443 = vmul.f32 %v1438, %v1442
      %vm1444 = vweird.f32 %v1262
      %vm1445 = vweird.f32 %v1438
      %vm1446 = vmor %vm1444, %vm1445
      %v1447 = vsel %vm1446, %v1438, %v1443
      %v1448 = vrsqrt.pop %v1263
      %v1449 = vmul.f32 %v1448, %v1263
      %v1450 = vmul.f32 %v1449, %v1448
      %v1451 = vmul.f32 0.5, %v1450
      %v1452 = vsub.f32 1.5, %v1451
      %v1453 = vmul.f32 %v1448, %v1452
      %vm1454 = vweird.f32 %v1263
      %vm1455 = vweird.f32 %v1448
      %vm1456 = vmor %vm1454, %vm1455
      %v1457 = vsel %vm1456, %v1448, %v1453
      %v1458 = vrsqrt.pop %v1264
      %v1459 = vmul.f32 %v1458, %v1264
      %v1460 = vmul.f32 %v1459, %v1458
      %v1461 = vmul.f32 0.5, %v1460
      %v1462 = vsub.f32 1.5, %v1461
      %v1463 = vmul.f32 %v1458, %v1462
      %vm1464 = vweird.f32 %v1264
      %vm1465 = vweird.f32 %v1458
      %vm1466 = vmor %vm1464, %vm1465
      %v1467 = vsel %vm1466, %v1458, %v1463
      %v1468 = vrsqrt.pop %v1265
      %v1469 = vmul.f32 %v1468, %v1265
      %v1470 = vmul.f32 %v1469, %v1468
      %v1471 = vmul.f32 0.5, %v1470
      %v1472 = vsub.f32 1.5, %v1471
      %v1473 = vmul.f32 %v1468, %v1472
      %vm1474 = vweird.f32 %v1265
      %vm1475 = vweird.f32 %v1468
      %vm1476 = vmor %vm1474, %vm1475
      %v1477 = vsel %vm1476, %v1468, %v1473
      %v1478 = vrsqrt.pop %v1266
      %v1479 = vmul.f32 %v1478, %v1266
      %v1480 = vmul.f32 %v1479, %v1478
      %v1481 = vmul.f32 0.5, %v1480
      %v1482 = vsub.f32 1.5, %v1481
      %v1483 = vmul.f32 %v1478, %v1482
      %vm1484 = vweird.f32 %v1266
      %vm1485 = vweird.f32 %v1478
      %vm1486 = vmor %vm1484, %vm1485
      %v1487 = vsel %vm1486, %v1478, %v1483
      %v1488 = vrsqrt.pop %v1267
      %v1489 = vmul.f32 %v1488, %v1267
      %v1490 = vmul.f32 %v1489, %v1488
      %v1491 = vmul.f32 0.5, %v1490
      %v1492 = vsub.f32 1.5, %v1491
      %v1493 = vmul.f32 %v1488, %v1492
      %vm1494 = vweird.f32 %v1267
      %vm1495 = vweird.f32 %v1488
      %vm1496 = vmor %vm1494, %vm1495
      %v1497 = vsel %vm1496, %v1488, %v1493
      %v1498 = vrsqrt.pop %v1268
      %v1499 = vmul.f32 %v1498, %v1268
      %v1500 = vmul.f32 %v1499, %v1498
      %v1501 = vmul.f32 0.5, %v1500
      %v1502 = vsub.f32 1.5, %v1501
      %v1503 = vmul.f32 %v1498, %v1502
      %vm1504 = vweird.f32 %v1268
      %vm1505 = vweird.f32 %v1498
      %vm1506 = vmor %vm1504, %vm1505
      %v1507 = vsel %vm1506, %v1498, %v1503
      %v1508 = vrsqrt.pop %v1269
      %v1509 = vmul.f32 %v1508, %v1269
      %v1510 = vmul.f32 %v1509, %v1508
      %v1511 = vmul.f32 0.5, %v1510
      %v1512 = vsub.f32 1.5, %v1511
      %v1513 = vmul.f32 %v1508, %v1512
      %vm1514 = vweird.f32 %v1269
      %vm1515 = vweird.f32 %v1508
      %vm1516 = vmor %vm1514, %vm1515
      %v1517 = vsel %vm1516, %v1508, %v1513
      %v1518 = vrsqrt.pop %v1270
      %v1519 = vmul.f32 %v1518, %v1270
      %v1520 = vmul.f32 %v1519, %v1518
      %v1521 = vmul.f32 0.5, %v1520
      %v1522 = vsub.f32 1.5, %v1521
      %v1523 = vmul.f32 %v1518, %v1522
      %vm1524 = vweird.f32 %v1270
      %vm1525 = vweird.f32 %v1518
      %vm1526 = vmor %vm1524, %vm1525
      %v1527 = vsel %vm1526, %v1518, %v1523
      %v1528 = vrsqrt.pop %v1271
      %v1529 = vmul.f32 %v1528, %v1271
      %v1530 = vmul.f32 %v1529, %v1528
      %v1531 = vmul.f32 0.5, %v1530
      %v1532 = vsub.f32 1.5, %v1531
      %v1533 = vmul.f32 %v1528, %v1532
      %vm1534 = vweird.f32 %v1271
      %vm1535 = vweird.f32 %v1528
      %vm1536 = vmor %vm1534, %vm1535
      %v1537 = vsel %vm1536, %v1528, %v1533
      %v1538 = vrsqrt.pop %v1272
      %v1539 = vmul.f32 %v1538, %v1272
      %v1540 = vmul.f32 %v1539, %v1538
      %v1541 = vmul.f32 0.5, %v1540
      %v1542 = vsub.f32 1.5, %v1541
      %v1543 = vmul.f32 %v1538, %v1542
      %vm1544 = vweird.f32 %v1272
      %vm1545 = vweird.f32 %v1538
      %vm1546 = vmor %vm1544, %vm1545
      %v1547 = vsel %vm1546, %v1538, %v1543
      %v1548 = vrsqrt.pop %v1273
      %v1549 = vmul.f32 %v1548, %v1273
      %v1550 = vmul.f32 %v1549, %v1548
      %v1551 = vmul.f32 0.5, %v1550
      %v1552 = vsub.f32 1.5, %v1551
      %v1553 = vmul.f32 %v1548, %v1552
      %vm1554 = vweird.f32 %v1273
      %vm1555 = vweird.f32 %v1548
      %vm1556 = vmor %vm1554, %vm1555
      %v1557 = vsel %vm1556, %v1548, %v1553
      %v1558 = vrsqrt.pop %v1274
      %v1559 = vmul.f32 %v1558, %v1274
      %v1560 = vmul.f32 %v1559, %v1558
      %v1561 = vmul.f32 0.5, %v1560
      %v1562 = vsub.f32 1.5, %v1561
      %v1563 = vmul.f32 %v1558, %v1562
      %vm1564 = vweird.f32 %v1274
      %vm1565 = vweird.f32 %v1558
      %vm1566 = vmor %vm1564, %vm1565
      %v1567 = vsel %vm1566, %v1558, %v1563
      %v1568 = vrsqrt.pop %v1275
      %v1569 = vmul.f32 %v1568, %v1275
      %v1570 = vmul.f32 %v1569, %v1568
      %v1571 = vmul.f32 0.5, %v1570
      %v1572 = vsub.f32 1.5, %v1571
      %v1573 = vmul.f32 %v1568, %v1572
      %vm1574 = vweird.f32 %v1275
      %vm1575 = vweird.f32 %v1568
      %vm1576 = vmor %vm1574, %vm1575
      %v1577 = vsel %vm1576, %v1568, %v1573
      %v1578 = vrsqrt.pop %v1276
      %v1579 = vmul.f32 %v1578, %v1276
      %v1580 = vmul.f32 %v1579, %v1578
      %v1581 = vmul.f32 0.5, %v1580
      %v1582 = vsub.f32 1.5, %v1581
      %v1583 = vmul.f32 %v1578, %v1582
      %vm1584 = vweird.f32 %v1276
      %vm1585 = vweird.f32 %v1578
      %vm1586 = vmor %vm1584, %vm1585
      %v1587 = vsel %vm1586, %v1578, %v1583
      %v1588 = vrsqrt.pop %v1277
      %v1589 = vmul.f32 %v1588, %v1277
      %v1590 = vmul.f32 %v1589, %v1588
      %v1591 = vmul.f32 0.5, %v1590
      %v1592 = vsub.f32 1.5, %v1591
      %v1593 = vmul.f32 %v1588, %v1592
      %vm1594 = vweird.f32 %v1277
      %vm1595 = vweird.f32 %v1588
      %vm1596 = vmor %vm1594, %vm1595
      %v1597 = vsel %vm1596, %v1588, %v1593
      %v1598 = vmul.f32 %v1086, %v1287
      %v1599 = vmul.f32 %v1087, %v1297
      %v1600 = vmul.f32 %v1088, %v1307
      %v1601 = vmul.f32 %v1089, %v1317
      %v1602 = vmul.f32 %v1090, %v1327
      %v1603 = vmul.f32 %v1091, %v1337
      %v1604 = vmul.f32 %v1092, %v1347
      %v1605 = vmul.f32 %v1093, %v1357
      %v1606 = vmul.f32 %v1094, %v1367
      %v1607 = vmul.f32 %v1095, %v1377
      %v1608 = vmul.f32 %v1096, %v1387
      %v1609 = vmul.f32 %v1097, %v1397
      %v1610 = vmul.f32 %v1098, %v1407
      %v1611 = vmul.f32 %v1099, %v1417
      %v1612 = vmul.f32 %v1100, %v1427
      %v1613 = vmul.f32 %v1101, %v1437
      %v1614 = vmul.f32 %v1102, %v1447
      %v1615 = vmul.f32 %v1103, %v1457
      %v1616 = vmul.f32 %v1104, %v1467
      %v1617 = vmul.f32 %v1105, %v1477
      %v1618 = vmul.f32 %v1106, %v1487
      %v1619 = vmul.f32 %v1107, %v1497
      %v1620 = vmul.f32 %v1108, %v1507
      %v1621 = vmul.f32 %v1109, %v1517
      %v1622 = vmul.f32 %v1110, %v1527
      %v1623 = vmul.f32 %v1111, %v1537
      %v1624 = vmul.f32 %v1112, %v1547
      %v1625 = vmul.f32 %v1113, %v1557
      %v1626 = vmul.f32 %v1114, %v1567
      %v1627 = vmul.f32 %v1115, %v1577
      %v1628 = vmul.f32 %v1116, %v1587
      %v1629 = vmul.f32 %v1117, %v1597
      %v1631 = vperm.slane %v946, 0
      %v1633 = vmul.f32 %v1598, %v1631
      %v1634 = vmul.f32 %v1599, %v1631
      %v1635 = vmul.f32 %v1600, %v1631
      %v1636 = vmul.f32 %v1601, %v1631
      %v1637 = vmul.f32 %v1602, %v1631
      %v1638 = vmul.f32 %v1603, %v1631
      %v1639 = vmul.f32 %v1604, %v1631
      %v1640 = vmul.f32 %v1605, %v1631
      %v1641 = vmul.f32 %v1606, %v1631
      %v1642 = vmul.f32 %v1607, %v1631
      %v1643 = vmul.f32 %v1608, %v1631
      %v1644 = vmul.f32 %v1609, %v1631
      %v1645 = vmul.f32 %v1610, %v1631
      %v1646 = vmul.f32 %v1611, %v1631
      %v1647 = vmul.f32 %v1612, %v1631
      %v1648 = vmul.f32 %v1613, %v1631
      %v1649 = vmul.f32 %v1614, %v1631
      %v1650 = vmul.f32 %v1615, %v1631
      %v1651 = vmul.f32 %v1616, %v1631
      %v1652 = vmul.f32 %v1617, %v1631
      %v1653 = vmul.f32 %v1618, %v1631
      %v1654 = vmul.f32 %v1619, %v1631
      %v1655 = vmul.f32 %v1620, %v1631
      %v1656 = vmul.f32 %v1621, %v1631
      %v1657 = vmul.f32 %v1622, %v1631
      %v1658 = vmul.f32 %v1623, %v1631
      %v1659 = vmul.f32 %v1624, %v1631
      %v1660 = vmul.f32 %v1625, %v1631
      %v1661 = vmul.f32 %v1626, %v1631
      %v1662 = vmul.f32 %v1627, %v1631
      %v1663 = vmul.f32 %v1628, %v1631
      %v1664 = vmul.f32 %v1629, %v1631
      %v1666 = vperm.slane %v947, 0
      %v1668 = vadd.f32 %v1633, %v1666
      %v1669 = vadd.f32 %v1634, %v1666
      %v1670 = vadd.f32 %v1635, %v1666
      %v1671 = vadd.f32 %v1636, %v1666
      %v1672 = vadd.f32 %v1637, %v1666
      %v1673 = vadd.f32 %v1638, %v1666
      %v1674 = vadd.f32 %v1639, %v1666
      %v1675 = vadd.f32 %v1640, %v1666
      %v1676 = vadd.f32 %v1641, %v1666
      %v1677 = vadd.f32 %v1642, %v1666
      %v1678 = vadd.f32 %v1643, %v1666
      %v1679 = vadd.f32 %v1644, %v1666
      %v1680 = vadd.f32 %v1645, %v1666
      %v1681 = vadd.f32 %v1646, %v1666
      %v1682 = vadd.f32 %v1647, %v1666
      %v1683 = vadd.f32 %v1648, %v1666
      %v1684 = vadd.f32 %v1649, %v1666
      %v1685 = vadd.f32 %v1650, %v1666
      %v1686 = vadd.f32 %v1651, %v1666
      %v1687 = vadd.f32 %v1652, %v1666
      %v1688 = vadd.f32 %v1653, %v1666
      %v1689 = vadd.f32 %v1654, %v1666
      %v1690 = vadd.f32 %v1655, %v1666
      %v1691 = vadd.f32 %v1656, %v1666
      %v1692 = vadd.f32 %v1657, %v1666
      %v1693 = vadd.f32 %v1658, %v1666
      %v1694 = vadd.f32 %v1659, %v1666
      %v1695 = vadd.f32 %v1660, %v1666
      %v1696 = vadd.f32 %v1661, %v1666
      %v1697 = vadd.f32 %v1662, %v1666
      %v1698 = vadd.f32 %v1663, %v1666
      %v1699 = vadd.f32 %v1664, %v1666
      %v1700 = vpack.c.bf16 %v1669, %v1668
      %v1701 = vpack.c.bf16 %v1671, %v1670
      %v1702 = vpack.c.bf16 %v1673, %v1672
      %v1703 = vpack.c.bf16 %v1675, %v1674
      %v1704 = vpack.c.bf16 %v1677, %v1676
      %v1705 = vpack.c.bf16 %v1679, %v1678
      %v1706 = vpack.c.bf16 %v1681, %v1680
      %v1707 = vpack.c.bf16 %v1683, %v1682
      %v1708 = vpack.c.bf16 %v1685, %v1684
      %v1709 = vpack.c.bf16 %v1687, %v1686
      %v1710 = vpack.c.bf16 %v1689, %v1688
      %v1711 = vpack.c.bf16 %v1691, %v1690
      %v1712 = vpack.c.bf16 %v1693, %v1692
      %v1713 = vpack.c.bf16 %v1695, %v1694
      %v1714 = vpack.c.bf16 %v1697, %v1696
      %v1715 = vpack.c.bf16 %v1699, %v1698
      %v1716 = vld [vmem:[%s5] sm:$0xf]
      %v1717 = vld [vmem:[%s5 + $0x4] sm:$0xf]
      %v1718 = vld [vmem:[%s5 + $0x8] sm:$0xf]
      %v1719 = vld [vmem:[%s5 + $0xc] sm:$0xf]
      %v1720 = vld [vmem:[%s5 + $0x10] sm:$0xf]
      %v1721 = vld [vmem:[%s5 + $0x14] sm:$0xf]
      %v1722 = vld [vmem:[%s5 + $0x18] sm:$0xf]
      %v1723 = vld [vmem:[%s5 + $0x1c] sm:$0xf]
      %v1724 = vld [vmem:[%s5 + $0x20] sm:$0xf]
      %v1725 = vld [vmem:[%s5 + $0x24] sm:$0xf]
      %v1726 = vld [vmem:[%s5 + $0x28] sm:$0xf]
      %v1727 = vld [vmem:[%s5 + $0x2c] sm:$0xf]
      %v1728 = vld [vmem:[%s5 + $0x30] sm:$0xf]
      %v1729 = vld [vmem:[%s5 + $0x34] sm:$0xf]
      %v1730 = vld [vmem:[%s5 + $0x38] sm:$0xf]
      %v1731 = vld [vmem:[%s5 + $0x3c] sm:$0xf]
      %v1732 = vld [vmem:[%s6] sm:$0x1]
      %v1734 = vperm.slane %v1732, 0
      %v1752 = vunpack.c.l.b16 %v1716
      %v1753 = vunpack.c.l.b16 %v1717
      %v1754 = vunpack.c.l.b16 %v1718
      %v1755 = vunpack.c.l.b16 %v1719
      %v1756 = vunpack.c.l.b16 %v1720
      %v1757 = vunpack.c.l.b16 %v1721
      %v1758 = vunpack.c.l.b16 %v1722
      %v1759 = vunpack.c.l.b16 %v1723
      %v1760 = vunpack.c.l.b16 %v1724
      %v1761 = vunpack.c.l.b16 %v1725
      %v1762 = vunpack.c.l.b16 %v1726
      %v1763 = vunpack.c.l.b16 %v1727
      %v1764 = vunpack.c.l.b16 %v1728
      %v1765 = vunpack.c.l.b16 %v1729
      %v1766 = vunpack.c.l.b16 %v1730
      %v1767 = vunpack.c.l.b16 %v1731
      %v1768 = vpack.c.b16 %v1753, %v1752
      %v1769 = vpack.c.b16 %v1755, %v1754
      %v1770 = vpack.c.b16 %v1757, %v1756
      %v1771 = vpack.c.b16 %v1759, %v1758
      %v1772 = vpack.c.b16 %v1761, %v1760
      %v1773 = vpack.c.b16 %v1763, %v1762
      %v1774 = vpack.c.b16 %v1765, %v1764
      %v1775 = vpack.c.b16 %v1767, %v1766
      %1784 = vmatpush.bf16.msra.mxu0 %v1775
      %1785 = vmatpush.bf16.msra.mxu0 %v1774
      %1786 = vmatpush.bf16.msra.mxu0 %v1773
      %1787 = vmatpush.bf16.msra.mxu0 %v1772
      %1788 = vmatpush.bf16.msra.mxu0 %v1771
      %1789 = vmatpush.bf16.msra.mxu0 %v1770
      %1790 = vmatpush.bf16.msra.mxu0 %v1769
      %1791 = vmatpush.bf16.msra.mxu0 %v1768
      %1792 = vmatmul.bf16.gmra.mxu0 %v1700
      %v1793 = vpop.f32.mrf.mxu0
      %v1794 = vadd.f32 %v1734, %v1793
      %v1795 = vpop.f32.mrf.mxu0
      %v1796 = vadd.f32 %v1734, %v1795
      %1797 = vmatmul.bf16.gmra.mxu0 %v1701
      %v1798 = vpop.f32.mrf.mxu0
      %v1799 = vadd.f32 %v1734, %v1798
      %v1800 = vpop.f32.mrf.mxu0
      %v1801 = vadd.f32 %v1734, %v1800
      %1802 = vmatmul.bf16.gmra.mxu0 %v1702
      %v1803 = vpop.f32.mrf.mxu0
      %v1804 = vadd.f32 %v1734, %v1803
      %v1805 = vpop.f32.mrf.mxu0
      %v1806 = vadd.f32 %v1734, %v1805
      %1807 = vmatmul.bf16.gmra.mxu0 %v1703
      %v1808 = vpop.f32.mrf.mxu0
      %v1809 = vadd.f32 %v1734, %v1808
      %v1810 = vpop.f32.mrf.mxu0
      %v1811 = vadd.f32 %v1734, %v1810
      %1812 = vmatmul.bf16.gmra.mxu0 %v1704
      %v1813 = vpop.f32.mrf.mxu0
      %v1814 = vadd.f32 %v1734, %v1813
      %v1815 = vpop.f32.mrf.mxu0
      %v1816 = vadd.f32 %v1734, %v1815
      %1817 = vmatmul.bf16.gmra.mxu0 %v1705
      %v1818 = vpop.f32.mrf.mxu0
      %v1819 = vadd.f32 %v1734, %v1818
      %v1820 = vpop.f32.mrf.mxu0
      %v1821 = vadd.f32 %v1734, %v1820
      %1822 = vmatmul.bf16.gmra.mxu0 %v1706
      %v1823 = vpop.f32.mrf.mxu0
      %v1824 = vadd.f32 %v1734, %v1823
      %v1825 = vpop.f32.mrf.mxu0
      %v1826 = vadd.f32 %v1734, %v1825
      %1827 = vmatmul.bf16.gmra.mxu0 %v1707
      %v1828 = vpop.f32.mrf.mxu0
      %v1829 = vadd.f32 %v1734, %v1828
      %v1830 = vpop.f32.mrf.mxu0
      %v1831 = vadd.f32 %v1734, %v1830
      %1832 = vmatmul.bf16.gmra.mxu0 %v1708
      %v1833 = vpop.f32.mrf.mxu0
      %v1834 = vadd.f32 %v1734, %v1833
      %v1835 = vpop.f32.mrf.mxu0
      %v1836 = vadd.f32 %v1734, %v1835
      %1837 = vmatmul.bf16.gmra.mxu0 %v1709
      %v1838 = vpop.f32.mrf.mxu0
      %v1839 = vadd.f32 %v1734, %v1838
      %v1840 = vpop.f32.mrf.mxu0
      %v1841 = vadd.f32 %v1734, %v1840
      %1842 = vmatmul.bf16.gmra.mxu0 %v1710
      %v1843 = vpop.f32.mrf.mxu0
      %v1844 = vadd.f32 %v1734, %v1843
      %v1845 = vpop.f32.mrf.mxu0
      %v1846 = vadd.f32 %v1734, %v1845
      %1847 = vmatmul.bf16.gmra.mxu0 %v1711
      %v1848 = vpop.f32.mrf.mxu0
      %v1849 = vadd.f32 %v1734, %v1848
      %v1850 = vpop.f32.mrf.mxu0
      %v1851 = vadd.f32 %v1734, %v1850
      %1852 = vmatmul.bf16.gmra.mxu0 %v1712
      %v1853 = vpop.f32.mrf.mxu0
      %v1854 = vadd.f32 %v1734, %v1853
      %v1855 = vpop.f32.mrf.mxu0
      %v1856 = vadd.f32 %v1734, %v1855
      %1857 = vmatmul.bf16.gmra.mxu0 %v1713
      %v1858 = vpop.f32.mrf.mxu0
      %v1859 = vadd.f32 %v1734, %v1858
      %v1860 = vpop.f32.mrf.mxu0
      %v1861 = vadd.f32 %v1734, %v1860
      %1862 = vmatmul.bf16.gmra.mxu0 %v1714
      %v1863 = vpop.f32.mrf.mxu0
      %v1864 = vadd.f32 %v1734, %v1863
      %v1865 = vpop.f32.mrf.mxu0
      %v1866 = vadd.f32 %v1734, %v1865
      %1867 = vmatmul.bf16.gmra.mxu0 %v1715
      %v1868 = vpop.f32.mrf.mxu0
      %v1869 = vadd.f32 %v1734, %v1868
      %v1870 = vpop.f32.mrf.mxu0
      %v1871 = vadd.f32 %v1734, %v1870
      %1872 = vdwg.mxu0
      %v1873 = vmul.f32 %v1794, %v1794
      %v1874 = vmul.f32 %v1796, %v1796
      %v1875 = vmul.f32 %v1799, %v1799
      %v1876 = vmul.f32 %v1801, %v1801
      %v1877 = vmul.f32 %v1804, %v1804
      %v1878 = vmul.f32 %v1806, %v1806
      %v1879 = vmul.f32 %v1809, %v1809
      %v1880 = vmul.f32 %v1811, %v1811
      %v1881 = vmul.f32 %v1814, %v1814
      %v1882 = vmul.f32 %v1816, %v1816
      %v1883 = vmul.f32 %v1819, %v1819
      %v1884 = vmul.f32 %v1821, %v1821
      %v1885 = vmul.f32 %v1824, %v1824
      %v1886 = vmul.f32 %v1826, %v1826
      %v1887 = vmul.f32 %v1829, %v1829
      %v1888 = vmul.f32 %v1831, %v1831
      %v1889 = vmul.f32 %v1834, %v1834
      %v1890 = vmul.f32 %v1836, %v1836
      %v1891 = vmul.f32 %v1839, %v1839
      %v1892 = vmul.f32 %v1841, %v1841
      %v1893 = vmul.f32 %v1844, %v1844
      %v1894 = vmul.f32 %v1846, %v1846
      %v1895 = vmul.f32 %v1849, %v1849
      %v1896 = vmul.f32 %v1851, %v1851
      %v1897 = vmul.f32 %v1854, %v1854
      %v1898 = vmul.f32 %v1856, %v1856
      %v1899 = vmul.f32 %v1859, %v1859
      %v1900 = vmul.f32 %v1861, %v1861
      %v1901 = vmul.f32 %v1864, %v1864
      %v1902 = vmul.f32 %v1866, %v1866
      %v1903 = vmul.f32 %v1869, %v1869
      %v1904 = vmul.f32 %v1871, %v1871
      %v1905 = vmul.f32 %v1794, %v1873
      %v1906 = vmul.f32 %v1796, %v1874
      %v1907 = vmul.f32 %v1799, %v1875
      %v1908 = vmul.f32 %v1801, %v1876
      %v1909 = vmul.f32 %v1804, %v1877
      %v1910 = vmul.f32 %v1806, %v1878
      %v1911 = vmul.f32 %v1809, %v1879
      %v1912 = vmul.f32 %v1811, %v1880
      %v1913 = vmul.f32 %v1814, %v1881
      %v1914 = vmul.f32 %v1816, %v1882
      %v1915 = vmul.f32 %v1819, %v1883
      %v1916 = vmul.f32 %v1821, %v1884
      %v1917 = vmul.f32 %v1824, %v1885
      %v1918 = vmul.f32 %v1826, %v1886
      %v1919 = vmul.f32 %v1829, %v1887
      %v1920 = vmul.f32 %v1831, %v1888
      %v1921 = vmul.f32 %v1834, %v1889
      %v1922 = vmul.f32 %v1836, %v1890
      %v1923 = vmul.f32 %v1839, %v1891
      %v1924 = vmul.f32 %v1841, %v1892
      %v1925 = vmul.f32 %v1844, %v1893
      %v1926 = vmul.f32 %v1846, %v1894
      %v1927 = vmul.f32 %v1849, %v1895
      %v1928 = vmul.f32 %v1851, %v1896
      %v1929 = vmul.f32 %v1854, %v1897
      %v1930 = vmul.f32 %v1856, %v1898
      %v1931 = vmul.f32 %v1859, %v1899
      %v1932 = vmul.f32 %v1861, %v1900
      %v1933 = vmul.f32 %v1864, %v1901
      %v1934 = vmul.f32 %v1866, %v1902
      %v1935 = vmul.f32 %v1869, %v1903
      %v1936 = vmul.f32 %v1871, %v1904
      %v1937 = vmul.f32 %v1905, 0.044715
      %v1938 = vmul.f32 %v1906, 0.044715
      %v1939 = vmul.f32 %v1907, 0.044715
      %v1940 = vmul.f32 %v1908, 0.044715
      %v1941 = vmul.f32 %v1909, 0.044715
      %v1942 = vmul.f32 %v1910, 0.044715
      %v1943 = vmul.f32 %v1911, 0.044715
      %v1944 = vmul.f32 %v1912, 0.044715
      %v1945 = vmul.f32 %v1913, 0.044715
      %v1946 = vmul.f32 %v1914, 0.044715
      %v1947 = vmul.f32 %v1915, 0.044715
      %v1948 = vmul.f32 %v1916, 0.044715
      %v1949 = vmul.f32 %v1917, 0.044715
      %v1950 = vmul.f32 %v1918, 0.044715
      %v1951 = vmul.f32 %v1919, 0.044715
      %v1952 = vmul.f32 %v1920, 0.044715
      %v1953 = vmul.f32 %v1921, 0.044715
      %v1954 = vmul.f32 %v1922, 0.044715
      %v1955 = vmul.f32 %v1923, 0.044715
      %v1956 = vmul.f32 %v1924, 0.044715
      %v1957 = vmul.f32 %v1925, 0.044715
      %v1958 = vmul.f32 %v1926, 0.044715
      %v1959 = vmul.f32 %v1927, 0.044715
      %v1960 = vmul.f32 %v1928, 0.044715
      %v1961 = vmul.f32 %v1929, 0.044715
      %v1962 = vmul.f32 %v1930, 0.044715
      %v1963 = vmul.f32 %v1931, 0.044715
      %v1964 = vmul.f32 %v1932, 0.044715
      %v1965 = vmul.f32 %v1933, 0.044715
      %v1966 = vmul.f32 %v1934, 0.044715
      %v1967 = vmul.f32 %v1935, 0.044715
      %v1968 = vmul.f32 %v1936, 0.044715
      %v1969 = vadd.f32 %v1794, %v1937
      %v1970 = vadd.f32 %v1796, %v1938
      %v1971 = vadd.f32 %v1799, %v1939
      %v1972 = vadd.f32 %v1801, %v1940
      %v1973 = vadd.f32 %v1804, %v1941
      %v1974 = vadd.f32 %v1806, %v1942
      %v1975 = vadd.f32 %v1809, %v1943
      %v1976 = vadd.f32 %v1811, %v1944
      %v1977 = vadd.f32 %v1814, %v1945
      %v1978 = vadd.f32 %v1816, %v1946
      %v1979 = vadd.f32 %v1819, %v1947
      %v1980 = vadd.f32 %v1821, %v1948
      %v1981 = vadd.f32 %v1824, %v1949
      %v1982 = vadd.f32 %v1826, %v1950
      %v1983 = vadd.f32 %v1829, %v1951
      %v1984 = vadd.f32 %v1831, %v1952
      %v1985 = vadd.f32 %v1834, %v1953
      %v1986 = vadd.f32 %v1836, %v1954
      %v1987 = vadd.f32 %v1839, %v1955
      %v1988 = vadd.f32 %v1841, %v1956
      %v1989 = vadd.f32 %v1844, %v1957
      %v1990 = vadd.f32 %v1846, %v1958
      %v1991 = vadd.f32 %v1849, %v1959
      %v1992 = vadd.f32 %v1851, %v1960
      %v1993 = vadd.f32 %v1854, %v1961
      %v1994 = vadd.f32 %v1856, %v1962
      %v1995 = vadd.f32 %v1859, %v1963
      %v1996 = vadd.f32 %v1861, %v1964
      %v1997 = vadd.f32 %v1864, %v1965
      %v1998 = vadd.f32 %v1866, %v1966
      %v1999 = vadd.f32 %v1869, %v1967
      %v2000 = vadd.f32 %v1871, %v1968
      %v2001 = vmul.f32 %v1969, 0.7978846
      %v2002 = vmul.f32 %v1970, 0.7978846
      %v2003 = vmul.f32 %v1971, 0.7978846
      %v2004 = vmul.f32 %v1972, 0.7978846
      %v2005 = vmul.f32 %v1973, 0.7978846
      %v2006 = vmul.f32 %v1974, 0.7978846
      %v2007 = vmul.f32 %v1975, 0.7978846
      %v2008 = vmul.f32 %v1976, 0.7978846
      %v2009 = vmul.f32 %v1977, 0.7978846
      %v2010 = vmul.f32 %v1978, 0.7978846
      %v2011 = vmul.f32 %v1979, 0.7978846
      %v2012 = vmul.f32 %v1980, 0.7978846
      %v2013 = vmul.f32 %v1981, 0.7978846
      %v2014 = vmul.f32 %v1982, 0.7978846
      %v2015 = vmul.f32 %v1983, 0.7978846
      %v2016 = vmul.f32 %v1984, 0.7978846
      %v2017 = vmul.f32 %v1985, 0.7978846
      %v2018 = vmul.f32 %v1986, 0.7978846
      %v2019 = vmul.f32 %v1987, 0.7978846
      %v2020 = vmul.f32 %v1988, 0.7978846
      %v2021 = vmul.f32 %v1989, 0.7978846
      %v2022 = vmul.f32 %v1990, 0.7978846
      %v2023 = vmul.f32 %v1991, 0.7978846
      %v2024 = vmul.f32 %v1992, 0.7978846
      %v2025 = vmul.f32 %v1993, 0.7978846
      %v2026 = vmul.f32 %v1994, 0.7978846
      %v2027 = vmul.f32 %v1995, 0.7978846
      %v2028 = vmul.f32 %v1996, 0.7978846
      %v2029 = vmul.f32 %v1997, 0.7978846
      %v2030 = vmul.f32 %v1998, 0.7978846
      %v2031 = vmul.f32 %v1999, 0.7978846
      %v2032 = vmul.f32 %v2000, 0.7978846
      %v2033 = vtanh.pop %v2001
      %v2034 = vtanh.pop %v2002
      %v2035 = vtanh.pop %v2003
      %v2036 = vtanh.pop %v2004
      %v2037 = vtanh.pop %v2005
      %v2038 = vtanh.pop %v2006
      %v2039 = vtanh.pop %v2007
      %v2040 = vtanh.pop %v2008
      %v2041 = vtanh.pop %v2009
      %v2042 = vtanh.pop %v2010
      %v2043 = vtanh.pop %v2011
      %v2044 = vtanh.pop %v2012
      %v2045 = vtanh.pop %v2013
      %v2046 = vtanh.pop %v2014
      %v2047 = vtanh.pop %v2015
      %v2048 = vtanh.pop %v2016
      %v2049 = vtanh.pop %v2017
      %v2050 = vtanh.pop %v2018
      %v2051 = vtanh.pop %v2019
      %v2052 = vtanh.pop %v2020
      %v2053 = vtanh.pop %v2021
      %v2054 = vtanh.pop %v2022
      %v2055 = vtanh.pop %v2023
      %v2056 = vtanh.pop %v2024
      %v2057 = vtanh.pop %v2025
      %v2058 = vtanh.pop %v2026
      %v2059 = vtanh.pop %v2027
      %v2060 = vtanh.pop %v2028
      %v2061 = vtanh.pop %v2029
      %v2062 = vtanh.pop %v2030
      %v2063 = vtanh.pop %v2031
      %v2064 = vtanh.pop %v2032
      %v2065 = vadd.f32 %v2033, 1.0
      %v2066 = vadd.f32 %v2034, 1.0
      %v2067 = vadd.f32 %v2035, 1.0
      %v2068 = vadd.f32 %v2036, 1.0
      %v2069 = vadd.f32 %v2037, 1.0
      %v2070 = vadd.f32 %v2038, 1.0
      %v2071 = vadd.f32 %v2039, 1.0
      %v2072 = vadd.f32 %v2040, 1.0
      %v2073 = vadd.f32 %v2041, 1.0
      %v2074 = vadd.f32 %v2042, 1.0
      %v2075 = vadd.f32 %v2043, 1.0
      %v2076 = vadd.f32 %v2044, 1.0
      %v2077 = vadd.f32 %v2045, 1.0
      %v2078 = vadd.f32 %v2046, 1.0
      %v2079 = vadd.f32 %v2047, 1.0
      %v2080 = vadd.f32 %v2048, 1.0
      %v2081 = vadd.f32 %v2049, 1.0
      %v2082 = vadd.f32 %v2050, 1.0
      %v2083 = vadd.f32 %v2051, 1.0
      %v2084 = vadd.f32 %v2052, 1.0
      %v2085 = vadd.f32 %v2053, 1.0
      %v2086 = vadd.f32 %v2054, 1.0
      %v2087 = vadd.f32 %v2055, 1.0
      %v2088 = vadd.f32 %v2056, 1.0
      %v2089 = vadd.f32 %v2057, 1.0
      %v2090 = vadd.f32 %v2058, 1.0
      %v2091 = vadd.f32 %v2059, 1.0
      %v2092 = vadd.f32 %v2060, 1.0
      %v2093 = vadd.f32 %v2061, 1.0
      %v2094 = vadd.f32 %v2062, 1.0
      %v2095 = vadd.f32 %v2063, 1.0
      %v2096 = vadd.f32 %v2064, 1.0
      %v2097 = vmul.f32 %v2065, 0.5
      %v2098 = vmul.f32 %v2066, 0.5
      %v2099 = vmul.f32 %v2067, 0.5
      %v2100 = vmul.f32 %v2068, 0.5
      %v2101 = vmul.f32 %v2069, 0.5
      %v2102 = vmul.f32 %v2070, 0.5
      %v2103 = vmul.f32 %v2071, 0.5
      %v2104 = vmul.f32 %v2072, 0.5
      %v2105 = vmul.f32 %v2073, 0.5
      %v2106 = vmul.f32 %v2074, 0.5
      %v2107 = vmul.f32 %v2075, 0.5
      %v2108 = vmul.f32 %v2076, 0.5
      %v2109 = vmul.f32 %v2077, 0.5
      %v2110 = vmul.f32 %v2078, 0.5
      %v2111 = vmul.f32 %v2079, 0.5
      %v2112 = vmul.f32 %v2080, 0.5
      %v2113 = vmul.f32 %v2081, 0.5
      %v2114 = vmul.f32 %v2082, 0.5
      %v2115 = vmul.f32 %v2083, 0.5
      %v2116 = vmul.f32 %v2084, 0.5
      %v2117 = vmul.f32 %v2085, 0.5
      %v2118 = vmul.f32 %v2086, 0.5
      %v2119 = vmul.f32 %v2087, 0.5
      %v2120 = vmul.f32 %v2088, 0.5
      %v2121 = vmul.f32 %v2089, 0.5
      %v2122 = vmul.f32 %v2090, 0.5
      %v2123 = vmul.f32 %v2091, 0.5
      %v2124 = vmul.f32 %v2092, 0.5
      %v2125 = vmul.f32 %v2093, 0.5
      %v2126 = vmul.f32 %v2094, 0.5
      %v2127 = vmul.f32 %v2095, 0.5
      %v2128 = vmul.f32 %v2096, 0.5
      %v2129 = vmul.f32 %v1794, %v2097
      %v2130 = vmul.f32 %v1796, %v2098
      %v2131 = vmul.f32 %v1799, %v2099
      %v2132 = vmul.f32 %v1801, %v2100
      %v2133 = vmul.f32 %v1804, %v2101
      %v2134 = vmul.f32 %v1806, %v2102
      %v2135 = vmul.f32 %v1809, %v2103
      %v2136 = vmul.f32 %v1811, %v2104
      %v2137 = vmul.f32 %v1814, %v2105
      %v2138 = vmul.f32 %v1816, %v2106
      %v2139 = vmul.f32 %v1819, %v2107
      %v2140 = vmul.f32 %v1821, %v2108
      %v2141 = vmul.f32 %v1824, %v2109
      %v2142 = vmul.f32 %v1826, %v2110
      %v2143 = vmul.f32 %v1829, %v2111
      %v2144 = vmul.f32 %v1831, %v2112
      %v2145 = vmul.f32 %v1834, %v2113
      %v2146 = vmul.f32 %v1836, %v2114
      %v2147 = vmul.f32 %v1839, %v2115
      %v2148 = vmul.f32 %v1841, %v2116
      %v2149 = vmul.f32 %v1844, %v2117
      %v2150 = vmul.f32 %v1846, %v2118
      %v2151 = vmul.f32 %v1849, %v2119
      %v2152 = vmul.f32 %v1851, %v2120
      %v2153 = vmul.f32 %v1854, %v2121
      %v2154 = vmul.f32 %v1856, %v2122
      %v2155 = vmul.f32 %v1859, %v2123
      %v2156 = vmul.f32 %v1861, %v2124
      %v2157 = vmul.f32 %v1864, %v2125
      %v2158 = vmul.f32 %v1866, %v2126
      %v2159 = vmul.f32 %v1869, %v2127
      %v2160 = vmul.f32 %v1871, %v2128
      %v2161 = vpack.c.bf16 %v2129, %v2129
      %v2162 = vpack.c.bf16 %v2130, %v2130
      %v2163 = vpack.c.bf16 %v2131, %v2131
      %v2164 = vpack.c.bf16 %v2132, %v2132
      %v2165 = vpack.c.bf16 %v2133, %v2133
      %v2166 = vpack.c.bf16 %v2134, %v2134
      %v2167 = vpack.c.bf16 %v2135, %v2135
      %v2168 = vpack.c.bf16 %v2136, %v2136
      %v2169 = vpack.c.bf16 %v2137, %v2137
      %v2170 = vpack.c.bf16 %v2138, %v2138
      %v2171 = vpack.c.bf16 %v2139, %v2139
      %v2172 = vpack.c.bf16 %v2140, %v2140
      %v2173 = vpack.c.bf16 %v2141, %v2141
      %v2174 = vpack.c.bf16 %v2142, %v2142
      %v2175 = vpack.c.bf16 %v2143, %v2143
      %v2176 = vpack.c.bf16 %v2144, %v2144
      %v2177 = vpack.c.bf16 %v2145, %v2145
      %v2178 = vpack.c.bf16 %v2146, %v2146
      %v2179 = vpack.c.bf16 %v2147, %v2147
      %v2180 = vpack.c.bf16 %v2148, %v2148
      %v2181 = vpack.c.bf16 %v2149, %v2149
      %v2182 = vpack.c.bf16 %v2150, %v2150
      %v2183 = vpack.c.bf16 %v2151, %v2151
      %v2184 = vpack.c.bf16 %v2152, %v2152
      %v2185 = vpack.c.bf16 %v2153, %v2153
      %v2186 = vpack.c.bf16 %v2154, %v2154
      %v2187 = vpack.c.bf16 %v2155, %v2155
      %v2188 = vpack.c.bf16 %v2156, %v2156
      %v2189 = vpack.c.bf16 %v2157, %v2157
      %v2190 = vpack.c.bf16 %v2158, %v2158
      %v2191 = vpack.c.bf16 %v2159, %v2159
      %v2192 = vpack.c.bf16 %v2160, %v2160
      %2193 = vst [vmem:[%s321] sm:$0xf] %v2161
      %2194 = vst [vmem:[%s321 + $0x4] sm:$0xf] %v2162
      %2195 = vst [vmem:[%s321 + $0x8] sm:$0xf] %v2163
      %2196 = vst [vmem:[%s321 + $0xc] sm:$0xf] %v2164
      %2197 = vst [vmem:[%s321 + $0x10] sm:$0xf] %v2165
      %2198 = vst [vmem:[%s321 + $0x14] sm:$0xf] %v2166
      %2199 = vst [vmem:[%s321 + $0x18] sm:$0xf] %v2167
      %2200 = vst [vmem:[%s321 + $0x1c] sm:$0xf] %v2168
      %2201 = vst [vmem:[%s321 + $0x20] sm:$0xf] %v2169
      %2202 = vst [vmem:[%s321 + $0x24] sm:$0xf] %v2170
      %2203 = vst [vmem:[%s321 + $0x28] sm:$0xf] %v2171
      %2204 = vst [vmem:[%s321 + $0x2c] sm:$0xf] %v2172
      %2205 = vst [vmem:[%s321 + $0x30] sm:$0xf] %v2173
      %2206 = vst [vmem:[%s321 + $0x34] sm:$0xf] %v2174
      %2207 = vst [vmem:[%s321 + $0x38] sm:$0xf] %v2175
      %2208 = vst [vmem:[%s321 + $0x3c] sm:$0xf] %v2176
      %2209 = vst [vmem:[%s321 + $0x40] sm:$0xf] %v2177
      %2210 = vst [vmem:[%s321 + $0x44] sm:$0xf] %v2178
      %2211 = vst [vmem:[%s321 + $0x48] sm:$0xf] %v2179
      %2212 = vst [vmem:[%s321 + $0x4c] sm:$0xf] %v2180
      %2213 = vst [vmem:[%s321 + $0x50] sm:$0xf] %v2181
      %2214 = vst [vmem:[%s321 + $0x54] sm:$0xf] %v2182
      %2215 = vst [vmem:[%s321 + $0x58] sm:$0xf] %v2183
      %2216 = vst [vmem:[%s321 + $0x5c] sm:$0xf] %v2184
      %2217 = vst [vmem:[%s321 + $0x60] sm:$0xf] %v2185
      %2218 = vst [vmem:[%s321 + $0x64] sm:$0xf] %v2186
      %2219 = vst [vmem:[%s321 + $0x68] sm:$0xf] %v2187
      %2220 = vst [vmem:[%s321 + $0x6c] sm:$0xf] %v2188
      %2221 = vst [vmem:[%s321 + $0x70] sm:$0xf] %v2189
      %2222 = vst [vmem:[%s321 + $0x74] sm:$0xf] %v2190
      %2223 = vst [vmem:[%s321 + $0x78] sm:$0xf] %v2191
      %2224 = vst [vmem:[%s321 + $0x7c] sm:$0xf] %v2192
      %s2225 = smul.u32 32, %s20
      %p2226 = scmp.lt.s32.totalorder %s2225, 63
      %s2227 = scalar_select %p2226, %s2225, 63
      %s2228 = smul.addr %s2227, 4
      %s2229 = scalar_lea.vmem %s7, %s2228
      %s2230 = smul.u32 32, %s20
      %p2231 = scmp.lt.s32.totalorder %s2230, 63
      %s2232 = scalar_select %p2231, %s2230, 63
      %s2233 = smul.addr %s2232, 4
      %s2234 = scalar_lea.vmem %s8, %s2233
      // Predicated region
      $region49: #{coatnet_forward.4} parent=47 // pred_check
        %p2235 = pneg %p190
      $region50: #{coatnet_forward.4} parent=47 // pred_check_branch
        %2237 = sbr.rel (%p2235) target = $region52
      $region51: #{coatnet_forward.4} parent=47 // pred_region
        %s2238 = smul.u32 32, %s20
      $region52: #{coatnet_forward.4} parent=47 // pred_fallthru
        _
      // Predicated region
      $region53: #{coatnet_forward.4} parent=47 // pred_check
        %p2239 = pneg %p216
      $region54: #{coatnet_forward.4} parent=47 // pred_check_branch
        %2241 = sbr.rel (%p2239) target = $region56
      $region55: #{coatnet_forward.4} parent=47 // pred_region
        %s2242 = smul.u32 32, %s20
      $region56: #{coatnet_forward.4} parent=47 // pred_fallthru
        _
    $region48: #{coatnet_forward.4} parent=5 // pred_fallthru
      _
    %p2243 = scmp.le.s32.totalorder 2, %s15
    // Predicated region
    $region57: #{coatnet_forward.4} parent=5 // pred_check
      %p2244 = pneg %p2243
    $region58: #{coatnet_forward.4} parent=5 // pred_check_branch
      %2246 = sbr.rel (%p2244) target = $region60
    $region59: #{coatnet_forward.4} parent=5 // pred_region
      %s2247 = ssub.s32 %s15, 2
      // Predicated region
      $region61: #{coatnet_forward.4} parent=59 // pred_check
        %p2248 = pneg %p196
      $region62: #{coatnet_forward.4} parent=59 // pred_check_branch
        %2250 = sbr.rel (%p2248) target = $region64
      $region63: #{coatnet_forward.4} parent=59 // pred_region
        %s2251 = smul.u32 32, %s21
        %p2252 = scmp.lt.s32.totalorder %s2251, 63
        %s2253 = scalar_select %p2252, %s2251, 63
        %s2254 = smul.addr %s2253, 4
        %s2255 = scalar_lea.vmem %s7, %s2254
      $region64: #{coatnet_forward.4} parent=59 // pred_fallthru
        _
      // Predicated region
      $region65: #{coatnet_forward.4} parent=59 // pred_check
        %p2256 = pneg %p222
      $region66: #{coatnet_forward.4} parent=59 // pred_check_branch
        %2258 = sbr.rel (%p2256) target = $region68
      $region67: #{coatnet_forward.4} parent=59 // pred_region
        %s2259 = smul.u32 32, %s21
        %p2260 = scmp.lt.s32.totalorder %s2259, 63
        %s2261 = scalar_select %p2260, %s2259, 63
        %s2262 = smul.addr %s2261, 4
        %s2263 = scalar_lea.vmem %s8, %s2262
      $region68: #{coatnet_forward.4} parent=59 // pred_fallthru
        _
    $region60: #{coatnet_forward.4} parent=5 // pred_fallthru
      _
  $region6: #{coatnet_forward.4} parent=0 // loop_footer
    %s19 = sadd.s32 1, %s15
  $region7: #{coatnet_forward.4} parent=0 // loop_footer_branch
    %14 = sbr.rel target = $region3
  $region8: #{coatnet_forward.4} parent=0 // loop_exit
    _

// kernel: coatnet_forward.7
$region0: #{coatnet_forward.7}
  #allocation0 [shape = 'u32[]', space=smem, size = 0x4, offset = 0x4, fixed_abs, tag = 'smem constant byte address 0x4 - core index']
  #allocation1 [shape = 'u32[72,128]{1,0:T(1,128)}', space=vmem, size = 0x9000, scoped, tag = 'internal scratch']
  %s0 = inlined_call_operand.vmem [shape: bf16[2,64,128], index: 0, kind: input, shape index: {}]
  %s1 = inlined_call_operand.vmem [shape: bf16[128,128], index: 1, kind: input, shape index: {}]
  %s2 = inlined_call_operand.vmem [shape: f32[1,128], index: 2, kind: input, shape index: {}]
  %s3 = inlined_call_operand.hbm [shape: f32[2,128], index: 3, kind: output, shape index: {}]
  %s4 = sld [smem:[#allocation0]]
  $region22: #{coatnet_forward.7} parent=0
    _
  %s6 = ssub.s32 1, %s4
  %s7 = scalar_select 0, %s6, %s4
  $region1: #{coatnet_forward.7} parent=0
    #allocation2 [shape = 'u8[1024]{0}', space=vmem, size = 0x400, scoped, tag = 'output window, operand 0, single buffered']
    #allocation3 [shape = 's32[1]{0}', space=sflag, size = 0x4, scoped, tag = 'scoped memory for coatnet_forward.7']
    %8 = vsyncpa [#allocation3], 0
    // Predicated region
    $region2: #{coatnet_forward.7} parent=1 // pred_check
      _
    $region3: #{coatnet_forward.7} parent=1 // pred_check_branch
      %10 = sbr.rel (0) target = $region5
    $region4: #{coatnet_forward.7} parent=1 // pred_region
      _
    $region5: #{coatnet_forward.7} parent=1 // pred_fallthru
      _
    // Predicated region
    $region6: #{coatnet_forward.7} parent=1 // pred_check
      _
    $region7: #{coatnet_forward.7} parent=1 // pred_check_branch
      %12 = sbr.rel (0) target = $region9
    $region8: #{coatnet_forward.7} parent=1 // pred_region
      _
    $region9: #{coatnet_forward.7} parent=1 // pred_fallthru
      _
    // Predicated region
    $region10: #{coatnet_forward.7} parent=1 // pred_check
      _
    $region11: #{coatnet_forward.7} parent=1 // pred_check_branch
      %14 = sbr.rel (0) target = $region13
    $region12: #{coatnet_forward.7} parent=1 // pred_region
      _
    $region13: #{coatnet_forward.7} parent=1 // pred_fallthru
      _
    %v15 = vld [vmem:[%s0] sm:$0xf]
    %v16 = vld [vmem:[%s0 + $0x4] sm:$0xf]
    %v17 = vld [vmem:[%s0 + $0x8] sm:$0xf]
    %v18 = vld [vmem:[%s0 + $0xc] sm:$0xf]
    %v19 = vld [vmem:[%s0 + $0x10] sm:$0xf]
    %v20 = vld [vmem:[%s0 + $0x14] sm:$0xf]
    %v21 = vld [vmem:[%s0 + $0x18] sm:$0xf]
    %v22 = vld [vmem:[%s0 + $0x1c] sm:$0xf]
    %v23 = vld [vmem:[%s0 + $0x20] sm:$0xf]
    %v24 = vld [vmem:[%s0 + $0x24] sm:$0xf]
    %v25 = vld [vmem:[%s0 + $0x28] sm:$0xf]
    %v26 = vld [vmem:[%s0 + $0x2c] sm:$0xf]
    %v27 = vld [vmem:[%s0 + $0x30] sm:$0xf]
    %v28 = vld [vmem:[%s0 + $0x34] sm:$0xf]
    %v29 = vld [vmem:[%s0 + $0x38] sm:$0xf]
    %v30 = vld [vmem:[%s0 + $0x3c] sm:$0xf]
    %v31 = vunpack.c.l.bf16 %v15
    %v32 = vunpack.c.l.bf16 %v16
    %v33 = vunpack.c.l.bf16 %v17
    %v34 = vunpack.c.l.bf16 %v18
    %v35 = vunpack.c.l.bf16 %v19
    %v36 = vunpack.c.l.bf16 %v20
    %v37 = vunpack.c.l.bf16 %v21
    %v38 = vunpack.c.l.bf16 %v22
    %v39 = vunpack.c.l.bf16 %v23
    %v40 = vunpack.c.l.bf16 %v24
    %v41 = vunpack.c.l.bf16 %v25
    %v42 = vunpack.c.l.bf16 %v26
    %v43 = vunpack.c.l.bf16 %v27
    %v44 = vunpack.c.l.bf16 %v28
    %v45 = vunpack.c.l.bf16 %v29
    %v46 = vunpack.c.l.bf16 %v30
    %v47 = vadd.f32 %v31, %v32
    %v48 = vadd.f32 %v47, %v33
    %v49 = vadd.f32 %v48, %v34
    %v50 = vadd.f32 %v49, %v35
    %v51 = vadd.f32 %v50, %v36
    %v52 = vadd.f32 %v51, %v37
    %v53 = vadd.f32 %v52, %v38
    %v54 = vrot.slane %v53, 4
    %v55 = vadd.f32 %v53, %v54
    %v56 = vrot.slane %v55, 2
    %v57 = vadd.f32 %v55, %v56
    %v58 = vrot.slane %v57, 1
    %v59 = vadd.f32 %v57, %v58
    %v60 = vadd.f32 %v39, %v40
    %v61 = vadd.f32 %v60, %v41
    %v62 = vadd.f32 %v61, %v42
    %v63 = vadd.f32 %v62, %v43
    %v64 = vadd.f32 %v63, %v44
    %v65 = vadd.f32 %v64, %v45
    %v66 = vadd.f32 %v65, %v46
    %v67 = vrot.slane %v66, 4
    %v68 = vadd.f32 %v66, %v67
    %v69 = vrot.slane %v68, 2
    %v70 = vadd.f32 %v68, %v69
    %v71 = vrot.slane %v70, 1
    %v72 = vadd.f32 %v70, %v71
    %v73 = vrcp.pop 64.0
    %v74 = vmul.f32 64.0, %v73
    %v75 = vsub.f32 1.0, %v74
    %v76 = vmul.f32 %v73, %v75
    %v77 = vadd.f32 %v73, %v76
    %vm78 = vweird.f32 %v73
    %v79 = vsel %vm78, %v73, %v77
    %v80 = vmul.f32 %v59, %v79
    %v81 = vmul.f32 %v72, %v79
    %v82 = vpack.c.bf16 %v80, %v80
    %v83 = vpack.c.bf16 %v81, %v81
    %v84 = vld [vmem:[%s1] sm:$0xf]
    %v85 = vld [vmem:[%s1 + $0x4] sm:$0xf]
    %v86 = vld [vmem:[%s1 + $0x8] sm:$0xf]
    %v87 = vld [vmem:[%s1 + $0xc] sm:$0xf]
    %v88 = vld [vmem:[%s1 + $0x10] sm:$0xf]
    %v89 = vld [vmem:[%s1 + $0x14] sm:$0xf]
    %v90 = vld [vmem:[%s1 + $0x18] sm:$0xf]
    %v91 = vld [vmem:[%s1 + $0x1c] sm:$0xf]
    %v92 = vld [vmem:[%s1 + $0x20] sm:$0xf]
    %v93 = vld [vmem:[%s1 + $0x24] sm:$0xf]
    %v94 = vld [vmem:[%s1 + $0x28] sm:$0xf]
    %v95 = vld [vmem:[%s1 + $0x2c] sm:$0xf]
    %v96 = vld [vmem:[%s1 + $0x30] sm:$0xf]
    %v97 = vld [vmem:[%s1 + $0x34] sm:$0xf]
    %v98 = vld [vmem:[%s1 + $0x38] sm:$0xf]
    %v99 = vld [vmem:[%s1 + $0x3c] sm:$0xf]
    %v100 = vld [vmem:[%s2] sm:$0x1]
    %v102 = vperm.slane %v100, 0
    %v106 = vunpack.c.l.b16 %v82
    %v107 = vunpack.c.l.b16 %v83
    %vm108 = vcmask 1041409
    %v109 = vsel %vm108, %v107, %v106
    %v110 = vpack.c.b16 %v109, %v109
    %v128 = vunpack.c.l.b16 %v84
    %v129 = vunpack.c.l.b16 %v85
    %v130 = vunpack.c.l.b16 %v86
    %v131 = vunpack.c.l.b16 %v87
    %v132 = vunpack.c.l.b16 %v88
    %v133 = vunpack.c.l.b16 %v89
    %v134 = vunpack.c.l.b16 %v90
    %v135 = vunpack.c.l.b16 %v91
    %v136 = vunpack.c.l.b16 %v92
    %v137 = vunpack.c.l.b16 %v93
    %v138 = vunpack.c.l.b16 %v94
    %v139 = vunpack.c.l.b16 %v95
    %v140 = vunpack.c.l.b16 %v96
    %v141 = vunpack.c.l.b16 %v97
    %v142 = vunpack.c.l.b16 %v98
    %v143 = vunpack.c.l.b16 %v99
    %v144 = vpack.c.b16 %v129, %v128
    %v145 = vpack.c.b16 %v131, %v130
    %v146 = vpack.c.b16 %v133, %v132
    %v147 = vpack.c.b16 %v135, %v134
    %v148 = vpack.c.b16 %v137, %v136
    %v149 = vpack.c.b16 %v139, %v138
    %v150 = vpack.c.b16 %v141, %v140
    %v151 = vpack.c.b16 %v143, %v142
    %160 = vmatpush.bf16.msra.mxu0 %v151
    %161 = vmatpush.bf16.msra.mxu0 %v150
    %162 = vmatpush.bf16.msra.mxu0 %v149
    %163 = vmatpush.bf16.msra.mxu0 %v148
    %164 = vmatpush.bf16.msra.mxu0 %v147
    %165 = vmatpush.bf16.msra.mxu0 %v146
    %166 = vmatpush.bf16.msra.mxu0 %v145
    %167 = vmatpush.bf16.msra.mxu0 %v144
    %168 = vmatmul.bf16.gmra.mxu0 %v110
    %v169 = vpop.f32.mrf.mxu0
    %v170 = vadd.f32 %v102, %v169
    %v171 = vpop.f32.mrf.mxu0
    %172 = vdwg.mxu0
    %v173 = vxor.u32 %v170, 2147483648
    %v174 = vmul.f32 %v173, 1.442695
    %v175 = vpow.pop %v174
    %v176 = vadd.f32 %v175, 1.0
    %v177 = vrcp.pop %v176
    %v178 = vmul.f32 %v176, %v177
    %v179 = vsub.f32 1.0, %v178
    %v180 = vmul.f32 %v177, %v179
    %v181 = vadd.f32 %v177, %v180
    %vm182 = vweird.f32 %v176
    %vm183 = vweird.f32 %v177
    %vm184 = vmor %vm182, %vm183
    %v185 = vsel %vm184, %v177, %v181
    %v186 = vand.u32 2147483647, %v176
    %vm187 = vcmp.eq.f32.partialorder %v186, 8.507059e+37
    %v188 = vand.u32 %v176, 2147483648
    %v189 = vor.u32 1.1754944e-38, %v188
    %v190 = vsel %vm187, %v189, %v185
    %v191 = vmul.f32 1.0, %v190
    %192 = vst [vmem:[#allocation2] sm:$0x3] %v191
    // Predicated region
    $region14: #{coatnet_forward.7} parent=1 // pred_check
      _
    $region15: #{coatnet_forward.7} parent=1 // pred_check_branch
      %194 = sbr.rel (0) target = $region17
    $region16: #{coatnet_forward.7} parent=1 // pred_region
      %196 = vsyncadd [#allocation3], 0
      %s198 = sshll.u32 [#allocation2], 4
      %s199 = int_to_ptr.vmem [resolvable:$true] %s198
      %s200 = sshll.u32 %s3, 4
      %s201 = int_to_ptr.hbm [resolvable:$true] %s200
      %203 = dma.vmem_to_hbm [thread:$0]  %s199, 32, %s201, [#allocation3]
    $region17: #{coatnet_forward.7} parent=1 // pred_fallthru
      _
    // Predicated region
    $region18: #{coatnet_forward.7} parent=1 // pred_check
      _
    $region19: #{coatnet_forward.7} parent=1 // pred_check_branch
      %205 = sbr.rel (0) target = $region21
    $region20: #{coatnet_forward.7} parent=1 // pred_region
      %207 = dma.done [#allocation3], 32
    $region21: #{coatnet_forward.7} parent=1 // pred_fallthru
      _
    %208 = vsyncpa [#allocation3], 1

// kernel: coatnet_forward.6
$region0: #{coatnet_forward.6}
  #allocation0 [shape = 'u32[]', space=smem, size = 0x4, offset = 0x4, fixed_abs, tag = 'smem constant byte address 0x4 - core index']
  #allocation1 [shape = 'u32[72,128]{1,0:T(1,128)}', space=vmem, size = 0x9000, scoped, tag = 'internal scratch']
  %s0 = inlined_call_operand.vmem [shape: bf16[2,64,128], index: 0, kind: input, shape index: {}]
  %s1 = inlined_call_operand.vmem [shape: f32[1,128], index: 1, kind: input, shape index: {}]
  %s2 = inlined_call_operand.vmem [shape: f32[1,128], index: 2, kind: input, shape index: {}]
  %s3 = inlined_call_operand.vmem [shape: bf16[128,384], index: 3, kind: input, shape index: {}]
  %s4 = inlined_call_operand.vmem [shape: f32[1,384], index: 4, kind: input, shape index: {}]
  %s5 = inlined_call_operand.vmem [shape: f32[2,64,64], index: 5, kind: input, shape index: {}]
  %s6 = inlined_call_operand.vmem [shape: bf16[32,128], index: 6, kind: input, shape index: {}]
  %s7 = inlined_call_operand.vmem [shape: f32[1,128], index: 7, kind: input, shape index: {}]
  %s8 = inlined_call_operand.vmem [shape: f32[1,128], index: 8, kind: input, shape index: {}]
  %s9 = inlined_call_operand.vmem [shape: f32[1,128], index: 9, kind: input, shape index: {}]
  %s10 = inlined_call_operand.vmem [shape: bf16[128,128], index: 10, kind: input, shape index: {}]
  %s11 = inlined_call_operand.vmem [shape: f32[1,128], index: 11, kind: input, shape index: {}]
  %s12 = inlined_call_operand.vmem [shape: bf16[128,128], index: 12, kind: input, shape index: {}]
  %s13 = inlined_call_operand.vmem [shape: f32[1,128], index: 13, kind: input, shape index: {}]
  %s14 = inlined_call_operand.vmem [shape: bf16[2,64,128], index: 14, kind: output, shape index: {}]
  %s15 = sld [smem:[#allocation0]]
  $region89: #{coatnet_forward.6} parent=0
    _
  %s17 = ssub.s32 1, %s15
  %s18 = scalar_select 0, %s17, %s15
  loop: start=0, step=1, limit=4
  $region2: #{coatnet_forward.6} parent=0 // loop_pre_header
    _
  $region3: #{coatnet_forward.6} parent=0 // loop_header
    %s20 = sphi 0, %s24
    %p21 = scmp.ge.s32.totalorder %s20, 4
    %s30 = sphi 0, %s32
    %s33 = sphi 0, %s30
    %s34 = sphi 0, %s33
    %s50 = sphi 0, %s34
    %s54 = sphi 0, %s54
    %s56 = sphi 0, %s54
    %s57 = sphi 0, %s56
    %s71 = sphi 0, %s57
    %s75 = sphi 0, %s75
    %s77 = sphi 0, %s75
    %s78 = sphi 0, %s77
    %s92 = sphi 0, %s78
    %s96 = sphi 0, %s96
    %s98 = sphi 0, %s96
    %s99 = sphi 0, %s98
    %s113 = sphi 0, %s99
    %s117 = sphi 0, %s117
    %s119 = sphi 0, %s117
    %s120 = sphi 0, %s119
    %s134 = sphi 0, %s120
    %s138 = sphi 0, %s138
    %s140 = sphi 0, %s138
    %s141 = sphi 0, %s140
    %s155 = sphi 0, %s141
    %s159 = sphi 0, %s159
    %s161 = sphi 0, %s159
    %s162 = sphi 0, %s161
    %s176 = sphi 0, %s162
    %s180 = sphi 0, %s180
    %s182 = sphi 0, %s180
    %s183 = sphi 0, %s182
    %s197 = sphi 0, %s183
    %s201 = sphi 0, %s201
    %s203 = sphi 0, %s201
    %s204 = sphi 0, %s203
    %s218 = sphi 0, %s204
    %s222 = sphi 0, %s222
    %s224 = sphi 0, %s222
    %s225 = sphi 0, %s224
    %s239 = sphi 0, %s225
    %s243 = sphi 0, %s243
    %s245 = sphi 0, %s243
    %s246 = sphi 0, %s245
    %s260 = sphi 0, %s246
    %s264 = sphi 0, %s264
    %s266 = sphi 0, %s264
    %s267 = sphi 0, %s266
    %s281 = sphi 0, %s267
    %s285 = sphi 0, %s285
    %s287 = sphi 0, %s285
    %s288 = sphi 0, %s287
    %s302 = sphi 0, %s288
    %s306 = sphi 0, %s306
    %s308 = sphi 0, %s306
    %s309 = sphi 0, %s308
    %s323 = sphi 0, %s309
    %s329 = sphi 0, %s331
    %s332 = sphi 0, %s329
    %s333 = sphi 0, %s332
    %s349 = sphi 0, %s333
  $region4: #{coatnet_forward.6} parent=0 // loop_header_branch
    %23 = sbr.rel (%p21) target = $region8
  $region5: #{coatnet_forward.6} parent=0 // loop_body
    %s25 = ssub.s32 %s20, 1
    %s26 = ssub.s32 %s20, 2
    %s27 = sadd.s32 %s20, 1
    %s28 = ssub.s32 %s20, %s27
    %p29 = scmp.eq.s32.totalorder %s28, 0
    %s31 = sadd.s32 %s30, 1
    %s32 = scalar_select %p29, %s30, %s31
    %p35 = pneg %p29
    %p36 = scmp.eq.s32.totalorder %s20, 1
    %p37 = por %p35, %p36
    %p38 = scmp.ne.s32.totalorder %s30, %s33
    %p39 = scmp.eq.s32.totalorder %s20, 0
    %p40 = por %p38, %p39
    %p41 = scmp.ne.s32.totalorder %s30, %s33
    %p42 = scmp.eq.s32.totalorder %s25, 1
    %p43 = por %p41, %p42
    %p44 = scmp.ne.s32.totalorder %s33, %s34
    %p45 = scmp.eq.s32.totalorder %s25, 0
    %p46 = por %p44, %p45
    %p47 = scmp.ne.s32.totalorder %s33, %s34
    %p48 = scmp.eq.s32.totalorder %s26, 1
    %p49 = por %p47, %p48
    %p51 = scmp.ne.s32.totalorder %s34, %s50
    %p52 = scmp.eq.s32.totalorder %s26, 0
    %p53 = por %p51, %p52
    %s55 = sadd.s32 %s54, 1
    %p58 = scmp.eq.s32.totalorder %s20, 1
    %p59 = scmp.ne.s32.totalorder %s54, %s56
    %p60 = scmp.eq.s32.totalorder %s20, 0
    %p61 = por %p59, %p60
    %p62 = scmp.ne.s32.totalorder %s54, %s56
    %p63 = scmp.eq.s32.totalorder %s25, 1
    %p64 = por %p62, %p63
    %p65 = scmp.ne.s32.totalorder %s56, %s57
    %p66 = scmp.eq.s32.totalorder %s25, 0
    %p67 = por %p65, %p66
    %p68 = scmp.ne.s32.totalorder %s56, %s57
    %p69 = scmp.eq.s32.totalorder %s26, 1
    %p70 = por %p68, %p69
    %p72 = scmp.ne.s32.totalorder %s57, %s71
    %p73 = scmp.eq.s32.totalorder %s26, 0
    %p74 = por %p72, %p73
    %s76 = sadd.s32 %s75, 1
    %p79 = scmp.eq.s32.totalorder %s20, 1
    %p80 = scmp.ne.s32.totalorder %s75, %s77
    %p81 = scmp.eq.s32.totalorder %s20, 0
    %p82 = por %p80, %p81
    %p83 = scmp.ne.s32.totalorder %s75, %s77
    %p84 = scmp.eq.s32.totalorder %s25, 1
    %p85 = por %p83, %p84
    %p86 = scmp.ne.s32.totalorder %s77, %s78
    %p87 = scmp.eq.s32.totalorder %s25, 0
    %p88 = por %p86, %p87
    %p89 = scmp.ne.s32.totalorder %s77, %s78
    %p90 = scmp.eq.s32.totalorder %s26, 1
    %p91 = por %p89, %p90
    %p93 = scmp.ne.s32.totalorder %s78, %s92
    %p94 = scmp.eq.s32.totalorder %s26, 0
    %p95 = por %p93, %p94
    %s97 = sadd.s32 %s96, 1
    %p100 = scmp.eq.s32.totalorder %s20, 1
    %p101 = scmp.ne.s32.totalorder %s96, %s98
    %p102 = scmp.eq.s32.totalorder %s20, 0
    %p103 = por %p101, %p102
    %p104 = scmp.ne.s32.totalorder %s96, %s98
    %p105 = scmp.eq.s32.totalorder %s25, 1
    %p106 = por %p104, %p105
    %p107 = scmp.ne.s32.totalorder %s98, %s99
    %p108 = scmp.eq.s32.totalorder %s25, 0
    %p109 = por %p107, %p108
    %p110 = scmp.ne.s32.totalorder %s98, %s99
    %p111 = scmp.eq.s32.totalorder %s26, 1
    %p112 = por %p110, %p111
    %p114 = scmp.ne.s32.totalorder %s99, %s113
    %p115 = scmp.eq.s32.totalorder %s26, 0
    %p116 = por %p114, %p115
    %s118 = sadd.s32 %s117, 1
    %p121 = scmp.eq.s32.totalorder %s20, 1
    %p122 = scmp.ne.s32.totalorder %s117, %s119
    %p123 = scmp.eq.s32.totalorder %s20, 0
    %p124 = por %p122, %p123
    %p125 = scmp.ne.s32.totalorder %s117, %s119
    %p126 = scmp.eq.s32.totalorder %s25, 1
    %p127 = por %p125, %p126
    %p128 = scmp.ne.s32.totalorder %s119, %s120
    %p129 = scmp.eq.s32.totalorder %s25, 0
    %p130 = por %p128, %p129
    %p131 = scmp.ne.s32.totalorder %s119, %s120
    %p132 = scmp.eq.s32.totalorder %s26, 1
    %p133 = por %p131, %p132
    %p135 = scmp.ne.s32.totalorder %s120, %s134
    %p136 = scmp.eq.s32.totalorder %s26, 0
    %p137 = por %p135, %p136
    %s139 = sadd.s32 %s138, 1
    %p142 = scmp.eq.s32.totalorder %s20, 1
    %p143 = scmp.ne.s32.totalorder %s138, %s140
    %p144 = scmp.eq.s32.totalorder %s20, 0
    %p145 = por %p143, %p144
    %p146 = scmp.ne.s32.totalorder %s138, %s140
    %p147 = scmp.eq.s32.totalorder %s25, 1
    %p148 = por %p146, %p147
    %p149 = scmp.ne.s32.totalorder %s140, %s141
    %p150 = scmp.eq.s32.totalorder %s25, 0
    %p151 = por %p149, %p150
    %p152 = scmp.ne.s32.totalorder %s140, %s141
    %p153 = scmp.eq.s32.totalorder %s26, 1
    %p154 = por %p152, %p153
    %p156 = scmp.ne.s32.totalorder %s141, %s155
    %p157 = scmp.eq.s32.totalorder %s26, 0
    %p158 = por %p156, %p157
    %s160 = sadd.s32 %s159, 1
    %p163 = scmp.eq.s32.totalorder %s20, 1
    %p164 = scmp.ne.s32.totalorder %s159, %s161
    %p165 = scmp.eq.s32.totalorder %s20, 0
    %p166 = por %p164, %p165
    %p167 = scmp.ne.s32.totalorder %s159, %s161
    %p168 = scmp.eq.s32.totalorder %s25, 1
    %p169 = por %p167, %p168
    %p170 = scmp.ne.s32.totalorder %s161, %s162
    %p171 = scmp.eq.s32.totalorder %s25, 0
    %p172 = por %p170, %p171
    %p173 = scmp.ne.s32.totalorder %s161, %s162
    %p174 = scmp.eq.s32.totalorder %s26, 1
    %p175 = por %p173, %p174
    %p177 = scmp.ne.s32.totalorder %s162, %s176
    %p178 = scmp.eq.s32.totalorder %s26, 0
    %p179 = por %p177, %p178
    %s181 = sadd.s32 %s180, 1
    %p184 = scmp.eq.s32.totalorder %s20, 1
    %p185 = scmp.ne.s32.totalorder %s180, %s182
    %p186 = scmp.eq.s32.totalorder %s20, 0
    %p187 = por %p185, %p186
    %p188 = scmp.ne.s32.totalorder %s180, %s182
    %p189 = scmp.eq.s32.totalorder %s25, 1
    %p190 = por %p188, %p189
    %p191 = scmp.ne.s32.totalorder %s182, %s183
    %p192 = scmp.eq.s32.totalorder %s25, 0
    %p193 = por %p191, %p192
    %p194 = scmp.ne.s32.totalorder %s182, %s183
    %p195 = scmp.eq.s32.totalorder %s26, 1
    %p196 = por %p194, %p195
    %p198 = scmp.ne.s32.totalorder %s183, %s197
    %p199 = scmp.eq.s32.totalorder %s26, 0
    %p200 = por %p198, %p199
    %s202 = sadd.s32 %s201, 1
    %p205 = scmp.eq.s32.totalorder %s20, 1
    %p206 = scmp.ne.s32.totalorder %s201, %s203
    %p207 = scmp.eq.s32.totalorder %s20, 0
    %p208 = por %p206, %p207
    %p209 = scmp.ne.s32.totalorder %s201, %s203
    %p210 = scmp.eq.s32.totalorder %s25, 1
    %p211 = por %p209, %p210
    %p212 = scmp.ne.s32.totalorder %s203, %s204
    %p213 = scmp.eq.s32.totalorder %s25, 0
    %p214 = por %p212, %p213
    %p215 = scmp.ne.s32.totalorder %s203, %s204
    %p216 = scmp.eq.s32.totalorder %s26, 1
    %p217 = por %p215, %p216
    %p219 = scmp.ne.s32.totalorder %s204, %s218
    %p220 = scmp.eq.s32.totalorder %s26, 0
    %p221 = por %p219, %p220
    %s223 = sadd.s32 %s222, 1
    %p226 = scmp.eq.s32.totalorder %s20, 1
    %p227 = scmp.ne.s32.totalorder %s222, %s224
    %p228 = scmp.eq.s32.totalorder %s20, 0
    %p229 = por %p227, %p228
    %p230 = scmp.ne.s32.totalorder %s222, %s224
    %p231 = scmp.eq.s32.totalorder %s25, 1
    %p232 = por %p230, %p231
    %p233 = scmp.ne.s32.totalorder %s224, %s225
    %p234 = scmp.eq.s32.totalorder %s25, 0
    %p235 = por %p233, %p234
    %p236 = scmp.ne.s32.totalorder %s224, %s225
    %p237 = scmp.eq.s32.totalorder %s26, 1
    %p238 = por %p236, %p237
    %p240 = scmp.ne.s32.totalorder %s225, %s239
    %p241 = scmp.eq.s32.totalorder %s26, 0
    %p242 = por %p240, %p241
    %s244 = sadd.s32 %s243, 1
    %p247 = scmp.eq.s32.totalorder %s20, 1
    %p248 = scmp.ne.s32.totalorder %s243, %s245
    %p249 = scmp.eq.s32.totalorder %s20, 0
    %p250 = por %p248, %p249
    %p251 = scmp.ne.s32.totalorder %s243, %s245
    %p252 = scmp.eq.s32.totalorder %s25, 1
    %p253 = por %p251, %p252
    %p254 = scmp.ne.s32.totalorder %s245, %s246
    %p255 = scmp.eq.s32.totalorder %s25, 0
    %p256 = por %p254, %p255
    %p257 = scmp.ne.s32.totalorder %s245, %s246
    %p258 = scmp.eq.s32.totalorder %s26, 1
    %p259 = por %p257, %p258
    %p261 = scmp.ne.s32.totalorder %s246, %s260
    %p262 = scmp.eq.s32.totalorder %s26, 0
    %p263 = por %p261, %p262
    %s265 = sadd.s32 %s264, 1
    %p268 = scmp.eq.s32.totalorder %s20, 1
    %p269 = scmp.ne.s32.totalorder %s264, %s266
    %p270 = scmp.eq.s32.totalorder %s20, 0
    %p271 = por %p269, %p270
    %p272 = scmp.ne.s32.totalorder %s264, %s266
    %p273 = scmp.eq.s32.totalorder %s25, 1
    %p274 = por %p272, %p273
    %p275 = scmp.ne.s32.totalorder %s266, %s267
    %p276 = scmp.eq.s32.totalorder %s25, 0
    %p277 = por %p275, %p276
    %p278 = scmp.ne.s32.totalorder %s266, %s267
    %p279 = scmp.eq.s32.totalorder %s26, 1
    %p280 = por %p278, %p279
    %p282 = scmp.ne.s32.totalorder %s267, %s281
    %p283 = scmp.eq.s32.totalorder %s26, 0
    %p284 = por %p282, %p283
    %s286 = sadd.s32 %s285, 1
    %p289 = scmp.eq.s32.totalorder %s20, 1
    %p290 = scmp.ne.s32.totalorder %s285, %s287
    %p291 = scmp.eq.s32.totalorder %s20, 0
    %p292 = por %p290, %p291
    %p293 = scmp.ne.s32.totalorder %s285, %s287
    %p294 = scmp.eq.s32.totalorder %s25, 1
    %p295 = por %p293, %p294
    %p296 = scmp.ne.s32.totalorder %s287, %s288
    %p297 = scmp.eq.s32.totalorder %s25, 0
    %p298 = por %p296, %p297
    %p299 = scmp.ne.s32.totalorder %s287, %s288
    %p300 = scmp.eq.s32.totalorder %s26, 1
    %p301 = por %p299, %p300
    %p303 = scmp.ne.s32.totalorder %s288, %s302
    %p304 = scmp.eq.s32.totalorder %s26, 0
    %p305 = por %p303, %p304
    %s307 = sadd.s32 %s306, 1
    %p310 = scmp.eq.s32.totalorder %s20, 1
    %p311 = scmp.ne.s32.totalorder %s306, %s308
    %p312 = scmp.eq.s32.totalorder %s20, 0
    %p313 = por %p311, %p312
    %p314 = scmp.ne.s32.totalorder %s306, %s308
    %p315 = scmp.eq.s32.totalorder %s25, 1
    %p316 = por %p314, %p315
    %p317 = scmp.ne.s32.totalorder %s308, %s309
    %p318 = scmp.eq.s32.totalorder %s25, 0
    %p319 = por %p317, %p318
    %p320 = scmp.ne.s32.totalorder %s308, %s309
    %p321 = scmp.eq.s32.totalorder %s26, 1
    %p322 = por %p320, %p321
    %p324 = scmp.ne.s32.totalorder %s309, %s323
    %p325 = scmp.eq.s32.totalorder %s26, 0
    %p326 = por %p324, %p325
    %s327 = ssub.s32 %s20, %s27
    %p328 = scmp.eq.s32.totalorder %s327, 0
    %s330 = sadd.s32 %s329, 1
    %s331 = scalar_select %p328, %s329, %s330
    %p334 = pneg %p328
    %p335 = scmp.eq.s32.totalorder %s20, 1
    %p336 = por %p334, %p335
    %p337 = scmp.ne.s32.totalorder %s329, %s332
    %p338 = scmp.eq.s32.totalorder %s20, 0
    %p339 = por %p337, %p338
    %p340 = scmp.ne.s32.totalorder %s329, %s332
    %p341 = scmp.eq.s32.totalorder %s25, 1
    %p342 = por %p340, %p341
    %p343 = scmp.ne.s32.totalorder %s332, %s333
    %p344 = scmp.eq.s32.totalorder %s25, 0
    %p345 = por %p343, %p344
    %p346 = scmp.ne.s32.totalorder %s332, %s333
    %p347 = scmp.eq.s32.totalorder %s26, 1
    %p348 = por %p346, %p347
    %p350 = scmp.ne.s32.totalorder %s333, %s349
    %p351 = scmp.eq.s32.totalorder %s26, 0
    %p352 = por %p350, %p351
    %p353 = scmp.le.s32.totalorder 1, %s20
    %p354 = scmp.lt.s32.totalorder %s20, 3
    %p355 = pnand %p353, %p354
    %p356 = pneg %p355
    // Predicated region
    $region9: #{coatnet_forward.6} parent=5 // pred_check
      _
    $region10: #{coatnet_forward.6} parent=5 // pred_check_branch
      %358 = sbr.rel (%p355) target = $region12
    $region11: #{coatnet_forward.6} parent=5 // pred_region
      %s359 = ssub.s32 %s20, 1
      // Predicated region
      $region13: #{coatnet_forward.6} parent=11 // pred_check
        %p360 = pneg %p67
      $region14: #{coatnet_forward.6} parent=11 // pred_check_branch
        %362 = sbr.rel (%p360) target = $region16
      $region15: #{coatnet_forward.6} parent=11 // pred_region
        _
      $region16: #{coatnet_forward.6} parent=11 // pred_fallthru
        _
      // Predicated region
      $region17: #{coatnet_forward.6} parent=11 // pred_check
        %p363 = pneg %p88
      $region18: #{coatnet_forward.6} parent=11 // pred_check_branch
        %365 = sbr.rel (%p363) target = $region20
      $region19: #{coatnet_forward.6} parent=11 // pred_region
        _
      $region20: #{coatnet_forward.6} parent=11 // pred_fallthru
        _
      // Predicated region
      $region21: #{coatnet_forward.6} parent=11 // pred_check
        %p366 = pneg %p109
      $region22: #{coatnet_forward.6} parent=11 // pred_check_branch
        %368 = sbr.rel (%p366) target = $region24
      $region23: #{coatnet_forward.6} parent=11 // pred_region
        _
      $region24: #{coatnet_forward.6} parent=11 // pred_fallthru
        _
      // Predicated region
      $region25: #{coatnet_forward.6} parent=11 // pred_check
        %p369 = pneg %p130
      $region26: #{coatnet_forward.6} parent=11 // pred_check_branch
        %371 = sbr.rel (%p369) target = $region28
      $region27: #{coatnet_forward.6} parent=11 // pred_region
        _
      $region28: #{coatnet_forward.6} parent=11 // pred_fallthru
        _
      // Predicated region
      $region29: #{coatnet_forward.6} parent=11 // pred_check
        %p372 = pneg %p151
      $region30: #{coatnet_forward.6} parent=11 // pred_check_branch
        %374 = sbr.rel (%p372) target = $region32
      $region31: #{coatnet_forward.6} parent=11 // pred_region
        _
      $region32: #{coatnet_forward.6} parent=11 // pred_fallthru
        _
      // Predicated region
      $region33: #{coatnet_forward.6} parent=11 // pred_check
        %p375 = pneg %p172
      $region34: #{coatnet_forward.6} parent=11 // pred_check_branch
        %377 = sbr.rel (%p375) target = $region36
      $region35: #{coatnet_forward.6} parent=11 // pred_region
        _
      $region36: #{coatnet_forward.6} parent=11 // pred_fallthru
        _
      // Predicated region
      $region37: #{coatnet_forward.6} parent=11 // pred_check
        %p378 = pneg %p193
      $region38: #{coatnet_forward.6} parent=11 // pred_check_branch
        %380 = sbr.rel (%p378) target = $region40
      $region39: #{coatnet_forward.6} parent=11 // pred_region
        _
      $region40: #{coatnet_forward.6} parent=11 // pred_fallthru
        _
      // Predicated region
      $region41: #{coatnet_forward.6} parent=11 // pred_check
        %p381 = pneg %p214
      $region42: #{coatnet_forward.6} parent=11 // pred_check_branch
        %383 = sbr.rel (%p381) target = $region44
      $region43: #{coatnet_forward.6} parent=11 // pred_region
        _
      $region44: #{coatnet_forward.6} parent=11 // pred_fallthru
        _
      // Predicated region
      $region45: #{coatnet_forward.6} parent=11 // pred_check
        %p384 = pneg %p235
      $region46: #{coatnet_forward.6} parent=11 // pred_check_branch
        %386 = sbr.rel (%p384) target = $region48
      $region47: #{coatnet_forward.6} parent=11 // pred_region
        _
      $region48: #{coatnet_forward.6} parent=11 // pred_fallthru
        _
      // Predicated region
      $region49: #{coatnet_forward.6} parent=11 // pred_check
        %p387 = pneg %p256
      $region50: #{coatnet_forward.6} parent=11 // pred_check_branch
        %389 = sbr.rel (%p387) target = $region52
      $region51: #{coatnet_forward.6} parent=11 // pred_region
        _
      $region52: #{coatnet_forward.6} parent=11 // pred_fallthru
        _
      // Predicated region
      $region53: #{coatnet_forward.6} parent=11 // pred_check
        %p390 = pneg %p277
      $region54: #{coatnet_forward.6} parent=11 // pred_check_branch
        %392 = sbr.rel (%p390) target = $region56
      $region55: #{coatnet_forward.6} parent=11 // pred_region
        _
      $region56: #{coatnet_forward.6} parent=11 // pred_fallthru
        _
      // Predicated region
      $region57: #{coatnet_forward.6} parent=11 // pred_check
        %p393 = pneg %p298
      $region58: #{coatnet_forward.6} parent=11 // pred_check_branch
        %395 = sbr.rel (%p393) target = $region60
      $region59: #{coatnet_forward.6} parent=11 // pred_region
        _
      $region60: #{coatnet_forward.6} parent=11 // pred_fallthru
        _
      // Predicated region
      $region61: #{coatnet_forward.6} parent=11 // pred_check
        %p396 = pneg %p319
      $region62: #{coatnet_forward.6} parent=11 // pred_check_branch
        %398 = sbr.rel (%p396) target = $region64
      $region63: #{coatnet_forward.6} parent=11 // pred_region
        _
      $region64: #{coatnet_forward.6} parent=11 // pred_fallthru
        _
    $region12: #{coatnet_forward.6} parent=5 // pred_fallthru
      _
    %p399 = scmp.lt.s32.totalorder %s20, 2
    // Predicated region
    $region65: #{coatnet_forward.6} parent=5 // pred_check
      %p400 = pneg %p399
    $region66: #{coatnet_forward.6} parent=5 // pred_check_branch
      %402 = sbr.rel (%p400) target = $region68
    $region67: #{coatnet_forward.6} parent=5 // pred_region
      // Predicated region
      $region69: #{coatnet_forward.6} parent=67 // pred_check
        %p403 = pneg %p40
      $region70: #{coatnet_forward.6} parent=67 // pred_check_branch
        %405 = sbr.rel (%p403) target = $region72
      $region71: #{coatnet_forward.6} parent=67 // pred_region
        %p406 = scmp.lt.s32.totalorder %s20, 1
        %s407 = scalar_select %p406, %s20, 1
        %s408 = smul.addr %s407, 8
        %s409 = smul.addr %s408, 4
        %s410 = scalar_lea.vmem %s0, %s409
      $region72: #{coatnet_forward.6} parent=67 // pred_fallthru
        _
    $region68: #{coatnet_forward.6} parent=5 // pred_fallthru
      _
    %p411 = scmp.le.s32.totalorder 1, %s20
    %p412 = scmp.lt.s32.totalorder %s20, 3
    %p413 = pnand %p411, %p412
    %p414 = pneg %p413
    // Predicated region
    $region73: #{coatnet_forward.6} parent=5 // pred_check
      _
    $region74: #{coatnet_forward.6} parent=5 // pred_check_branch
      %416 = sbr.rel (%p413) target = $region76
    $region75: #{coatnet_forward.6} parent=5 // pred_region
      %s417 = ssub.s32 %s20, 1
      %p418 = scmp.lt.s32.totalorder %s25, 1
      %s419 = scalar_select %p418, %s25, 1
      %s420 = smul.addr %s419, 8
      %s421 = smul.addr %s420, 4
      %s422 = scalar_lea.vmem %s0, %s421
      %p423 = pneg %p46
      %p424 = pneg %p43
      %p425 = pneg %p67
      %p426 = pneg %p64
      %p427 = pneg %p88
      %p428 = pneg %p85
      %p429 = pneg %p109
      %p430 = pneg %p106
      %p431 = pneg %p130
      %p432 = pneg %p127
      %p433 = pneg %p151
      %p434 = pneg %p148
      %p435 = pneg %p172
      %p436 = pneg %p169
      %p437 = pneg %p193
      %p438 = pneg %p190
      %p439 = pneg %p214
      %p440 = pneg %p211
      %p441 = pneg %p235
      %p442 = pneg %p232
      %p443 = pneg %p256
      %p444 = pneg %p253
      %p445 = pneg %p277
      %p446 = pneg %p274
      %p447 = pneg %p298
      %p448 = pneg %p295
      %p449 = pneg %p319
      %p450 = pneg %p316
      %p451 = pneg %p345
      %p452 = pneg %p342
      %p453 = scmp.lt.s32.totalorder %s25, 1
      %s454 = scalar_select %p453, %s25, 1
      %s455 = smul.addr %s454, 8
      %s456 = smul.addr %s455, 4
      %s457 = scalar_lea.vmem %s14, %s456
      %p458 = scmp.lt.s32.totalorder %s25, 1
      %s459 = scalar_select %p458, %s25, 1
      %s460 = smul.addr %s459, 8
      %s461 = smul.addr %s460, 4
      %s462 = scalar_lea.vmem %s0, %s461
      %p463 = scmp.lt.s32.totalorder %s25, 1
      %s464 = scalar_select %p463, %s25, 1
      %s465 = smul.addr %s464, 8
      %s466 = smul.addr %s465, 4
      %s467 = scalar_lea.vmem %s14, %s466
      %v469 = vld [vmem:[%s462] sm:$0xf]
      %v470 = vld [vmem:[%s462 + $0x4] sm:$0xf]
      %v471 = vld [vmem:[%s462 + $0x8] sm:$0xf]
      %v472 = vld [vmem:[%s462 + $0xc] sm:$0xf]
      %v473 = vld [vmem:[%s462 + $0x10] sm:$0xf]
      %v474 = vld [vmem:[%s462 + $0x14] sm:$0xf]
      %v475 = vld [vmem:[%s462 + $0x18] sm:$0xf]
      %v476 = vld [vmem:[%s462 + $0x1c] sm:$0xf]
      %v477 = vunpack.c.l.bf16 %v469
      %v478 = vunpack.c.l.bf16 %v470
      %v479 = vunpack.c.l.bf16 %v471
      %v480 = vunpack.c.l.bf16 %v472
      %v481 = vunpack.c.l.bf16 %v473
      %v482 = vunpack.c.l.bf16 %v474
      %v483 = vunpack.c.l.bf16 %v475
      %v484 = vunpack.c.l.bf16 %v476
      %v485 = vld [vmem:[%s1] sm:$0x1]
      %v486 = vld [vmem:[%s2] sm:$0x1]
      %v487 = vlaneseq
      %v488 = vand.u32 %v487, 127
      %vm489 = vcmp.lt.s32.totalorder %v488, 32
      %490 = vadd.xlane.f32.xlu0 %v477
      %v491 = vpop.xlane.xlu0 %490
      %492 = vadd.xlane.f32.xlu0 %v478
      %v493 = vpop.xlane.xlu0 %492
      %494 = vadd.xlane.f32.xlu0 %v479
      %v495 = vpop.xlane.xlu0 %494
      %496 = vadd.xlane.f32.xlu0 %v480
      %v497 = vpop.xlane.xlu0 %496
      %498 = vadd.xlane.f32.xlu0 %v481
      %v499 = vpop.xlane.xlu0 %498
      %500 = vadd.xlane.f32.xlu0 %v482
      %v501 = vpop.xlane.xlu0 %500
      %502 = vadd.xlane.f32.xlu0 %v483
      %v503 = vpop.xlane.xlu0 %502
      %504 = vadd.xlane.f32.xlu0 %v484
      %v505 = vpop.xlane.xlu0 %504
      %v506 = vrcp.pop 32.0
      %v507 = vmul.f32 32.0, %v506
      %v508 = vsub.f32 1.0, %v507
      %v509 = vmul.f32 %v506, %v508
      %v510 = vadd.f32 %v506, %v509
      %vm511 = vweird.f32 %v506
      %v512 = vsel %vm511, %v506, %v510
      %v513 = vmul.f32 %v491, %v512
      %v514 = vmul.f32 %v493, %v512
      %v515 = vmul.f32 %v495, %v512
      %v516 = vmul.f32 %v497, %v512
      %v517 = vmul.f32 %v499, %v512
      %v518 = vmul.f32 %v501, %v512
      %v519 = vmul.f32 %v503, %v512
      %v520 = vmul.f32 %v505, %v512
      %v521 = vsub.f32 %v477, %v513
      %v522 = vsub.f32 %v478, %v514
      %v523 = vsub.f32 %v479, %v515
      %v524 = vsub.f32 %v480, %v516
      %v525 = vsub.f32 %v481, %v517
      %v526 = vsub.f32 %v482, %v518
      %v527 = vsub.f32 %v483, %v519
      %v528 = vsub.f32 %v484, %v520
      %v529 = vsel %vm489, %v521, 0.0
      %v530 = vsel %vm489, %v522, 0.0
      %v531 = vsel %vm489, %v523, 0.0
      %v532 = vsel %vm489, %v524, 0.0
      %v533 = vsel %vm489, %v525, 0.0
      %v534 = vsel %vm489, %v526, 0.0
      %v535 = vsel %vm489, %v527, 0.0
      %v536 = vsel %vm489, %v528, 0.0
      %v537 = vmul.f32 %v529, %v529
      %v538 = vmul.f32 %v530, %v530
      %v539 = vmul.f32 %v531, %v531
      %v540 = vmul.f32 %v532, %v532
      %v541 = vmul.f32 %v533, %v533
      %v542 = vmul.f32 %v534, %v534
      %v543 = vmul.f32 %v535, %v535
      %v544 = vmul.f32 %v536, %v536
      %545 = vadd.xlane.f32.xlu0 %v537
      %v546 = vpop.xlane.xlu0 %545
      %547 = vadd.xlane.f32.xlu0 %v538
      %v548 = vpop.xlane.xlu0 %547
      %549 = vadd.xlane.f32.xlu0 %v539
      %v550 = vpop.xlane.xlu0 %549
      %551 = vadd.xlane.f32.xlu0 %v540
      %v552 = vpop.xlane.xlu0 %551
      %553 = vadd.xlane.f32.xlu0 %v541
      %v554 = vpop.xlane.xlu0 %553
      %555 = vadd.xlane.f32.xlu0 %v542
      %v556 = vpop.xlane.xlu0 %555
      %557 = vadd.xlane.f32.xlu0 %v543
      %v558 = vpop.xlane.xlu0 %557
      %559 = vadd.xlane.f32.xlu0 %v544
      %v560 = vpop.xlane.xlu0 %559
      %v561 = vmul.f32 %v546, %v512
      %v562 = vmul.f32 %v548, %v512
      %v563 = vmul.f32 %v550, %v512
      %v564 = vmul.f32 %v552, %v512
      %v565 = vmul.f32 %v554, %v512
      %v566 = vmul.f32 %v556, %v512
      %v567 = vmul.f32 %v558, %v512
      %v568 = vmul.f32 %v560, %v512
      %v569 = vadd.f32 %v561, 1e-05
      %v570 = vadd.f32 %v562, 1e-05
      %v571 = vadd.f32 %v563, 1e-05
      %v572 = vadd.f32 %v564, 1e-05
      %v573 = vadd.f32 %v565, 1e-05
      %v574 = vadd.f32 %v566, 1e-05
      %v575 = vadd.f32 %v567, 1e-05
      %v576 = vadd.f32 %v568, 1e-05
      %v577 = vrsqrt.pop %v569
      %v578 = vmul.f32 %v577, %v569
      %v579 = vmul.f32 %v578, %v577
      %v580 = vmul.f32 0.5, %v579
      %v581 = vsub.f32 1.5, %v580
      %v582 = vmul.f32 %v577, %v581
      %vm583 = vweird.f32 %v569
      %vm584 = vweird.f32 %v577
      %vm585 = vmor %vm583, %vm584
      %v586 = vsel %vm585, %v577, %v582
      %v587 = vrsqrt.pop %v570
      %v588 = vmul.f32 %v587, %v570
      %v589 = vmul.f32 %v588, %v587
      %v590 = vmul.f32 0.5, %v589
      %v591 = vsub.f32 1.5, %v590
      %v592 = vmul.f32 %v587, %v591
      %vm593 = vweird.f32 %v570
      %vm594 = vweird.f32 %v587
      %vm595 = vmor %vm593, %vm594
      %v596 = vsel %vm595, %v587, %v592
      %v597 = vrsqrt.pop %v571
      %v598 = vmul.f32 %v597, %v571
      %v599 = vmul.f32 %v598, %v597
      %v600 = vmul.f32 0.5, %v599
      %v601 = vsub.f32 1.5, %v600
      %v602 = vmul.f32 %v597, %v601
      %vm603 = vweird.f32 %v571
      %vm604 = vweird.f32 %v597
      %vm605 = vmor %vm603, %vm604
      %v606 = vsel %vm605, %v597, %v602
      %v607 = vrsqrt.pop %v572
      %v608 = vmul.f32 %v607, %v572
      %v609 = vmul.f32 %v608, %v607
      %v610 = vmul.f32 0.5, %v609
      %v611 = vsub.f32 1.5, %v610
      %v612 = vmul.f32 %v607, %v611
      %vm613 = vweird.f32 %v572
      %vm614 = vweird.f32 %v607
      %vm615 = vmor %vm613, %vm614
      %v616 = vsel %vm615, %v607, %v612
      %v617 = vrsqrt.pop %v573
      %v618 = vmul.f32 %v617, %v573
      %v619 = vmul.f32 %v618, %v617
      %v620 = vmul.f32 0.5, %v619
      %v621 = vsub.f32 1.5, %v620
      %v622 = vmul.f32 %v617, %v621
      %vm623 = vweird.f32 %v573
      %vm624 = vweird.f32 %v617
      %vm625 = vmor %vm623, %vm624
      %v626 = vsel %vm625, %v617, %v622
      %v627 = vrsqrt.pop %v574
      %v628 = vmul.f32 %v627, %v574
      %v629 = vmul.f32 %v628, %v627
      %v630 = vmul.f32 0.5, %v629
      %v631 = vsub.f32 1.5, %v630
      %v632 = vmul.f32 %v627, %v631
      %vm633 = vweird.f32 %v574
      %vm634 = vweird.f32 %v627
      %vm635 = vmor %vm633, %vm634
      %v636 = vsel %vm635, %v627, %v632
      %v637 = vrsqrt.pop %v575
      %v638 = vmul.f32 %v637, %v575
      %v639 = vmul.f32 %v638, %v637
      %v640 = vmul.f32 0.5, %v639
      %v641 = vsub.f32 1.5, %v640
      %v642 = vmul.f32 %v637, %v641
      %vm643 = vweird.f32 %v575
      %vm644 = vweird.f32 %v637
      %vm645 = vmor %vm643, %vm644
      %v646 = vsel %vm645, %v637, %v642
      %v647 = vrsqrt.pop %v576
      %v648 = vmul.f32 %v647, %v576
      %v649 = vmul.f32 %v648, %v647
      %v650 = vmul.f32 0.5, %v649
      %v651 = vsub.f32 1.5, %v650
      %v652 = vmul.f32 %v647, %v651
      %vm653 = vweird.f32 %v576
      %vm654 = vweird.f32 %v647
      %vm655 = vmor %vm653, %vm654
      %v656 = vsel %vm655, %v647, %v652
      %v657 = vmul.f32 %v529, %v586
      %v658 = vmul.f32 %v530, %v596
      %v659 = vmul.f32 %v531, %v606
      %v660 = vmul.f32 %v532, %v616
      %v661 = vmul.f32 %v533, %v626
      %v662 = vmul.f32 %v534, %v636
      %v663 = vmul.f32 %v535, %v646
      %v664 = vmul.f32 %v536, %v656
      %v666 = vperm.slane %v485, 0
      %v668 = vmul.f32 %v657, %v666
      %v669 = vmul.f32 %v658, %v666
      %v670 = vmul.f32 %v659, %v666
      %v671 = vmul.f32 %v660, %v666
      %v672 = vmul.f32 %v661, %v666
      %v673 = vmul.f32 %v662, %v666
      %v674 = vmul.f32 %v663, %v666
      %v675 = vmul.f32 %v664, %v666
      %v677 = vperm.slane %v486, 0
      %v679 = vadd.f32 %v668, %v677
      %v680 = vadd.f32 %v669, %v677
      %v681 = vadd.f32 %v670, %v677
      %v682 = vadd.f32 %v671, %v677
      %v683 = vadd.f32 %v672, %v677
      %v684 = vadd.f32 %v673, %v677
      %v685 = vadd.f32 %v674, %v677
      %v686 = vadd.f32 %v675, %v677
      %v687 = vpack.c.bf16 %v680, %v679
      %v688 = vpack.c.bf16 %v682, %v681
      %v689 = vpack.c.bf16 %v684, %v683
      %v690 = vpack.c.bf16 %v686, %v685
      %v691 = vld [vmem:[%s3] sm:$0xff]
      %v692 = vld [vmem:[%s3 + $0x8] sm:$0xf]
      %v693 = vld [vmem:[%s3 + $0xc] sm:$0xff]
      %v694 = vld [vmem:[%s3 + $0x14] sm:$0xf]
      %v695 = vld [vmem:[%s3 + $0x18] sm:$0xff]
      %v696 = vld [vmem:[%s3 + $0x20] sm:$0xf]
      %v697 = vld [vmem:[%s3 + $0x24] sm:$0xff]
      %v698 = vld [vmem:[%s3 + $0x2c] sm:$0xf]
      %v699 = vld [vmem:[%s3 + $0x30] sm:$0xff]
      %v700 = vld [vmem:[%s3 + $0x38] sm:$0xf]
      %v701 = vld [vmem:[%s3 + $0x3c] sm:$0xff]
      %v702 = vld [vmem:[%s3 + $0x44] sm:$0xf]
      %v703 = vld [vmem:[%s3 + $0x48] sm:$0xff]
      %v704 = vld [vmem:[%s3 + $0x50] sm:$0xf]
      %v705 = vld [vmem:[%s3 + $0x54] sm:$0xff]
      %v706 = vld [vmem:[%s3 + $0x5c] sm:$0xf]
      %v707 = vld [vmem:[%s3 + $0x60] sm:$0xff]
      %v708 = vld [vmem:[%s3 + $0x68] sm:$0xf]
      %v709 = vld [vmem:[%s3 + $0x6c] sm:$0xff]
      %v710 = vld [vmem:[%s3 + $0x74] sm:$0xf]
      %v711 = vld [vmem:[%s3 + $0x78] sm:$0xff]
      %v712 = vld [vmem:[%s3 + $0x80] sm:$0xf]
      %v713 = vld [vmem:[%s3 + $0x84] sm:$0xff]
      %v714 = vld [vmem:[%s3 + $0x8c] sm:$0xf]
      %v715 = vld [vmem:[%s3 + $0x90] sm:$0xff]
      %v716 = vld [vmem:[%s3 + $0x98] sm:$0xf]
      %v717 = vld [vmem:[%s3 + $0x9c] sm:$0xff]
      %v718 = vld [vmem:[%s3 + $0xa4] sm:$0xf]
      %v719 = vld [vmem:[%s3 + $0xa8] sm:$0xff]
      %v720 = vld [vmem:[%s3 + $0xb0] sm:$0xf]
      %v721 = vld [vmem:[%s3 + $0xb4] sm:$0xff]
      %v722 = vld [vmem:[%s3 + $0xbc] sm:$0xf]
      %v723 = vld [vmem:[%s4] sm:$0x7]
      %v725 = vperm.slane %v723, 0
      %v726 = vperm.slane %v723, 1
      %v727 = vperm.slane %v723, 2
      %v763 = vunpack.c.l.b16 %v691
      %v764 = vunpack.c.h.b16 %v691
      %v765 = vunpack.c.l.b16 %v692
      %v766 = vunpack.c.l.b16 %v693
      %v767 = vunpack.c.h.b16 %v693
      %v768 = vunpack.c.l.b16 %v694
      %v769 = vunpack.c.l.b16 %v695
      %v770 = vunpack.c.h.b16 %v695
      %v771 = vunpack.c.l.b16 %v696
      %v772 = vunpack.c.l.b16 %v697
      %v773 = vunpack.c.h.b16 %v697
      %v774 = vunpack.c.l.b16 %v698
      %v775 = vunpack.c.l.b16 %v699
      %v776 = vunpack.c.h.b16 %v699
      %v777 = vunpack.c.l.b16 %v700
      %v778 = vunpack.c.l.b16 %v701
      %v779 = vunpack.c.h.b16 %v701
      %v780 = vunpack.c.l.b16 %v702
      %v781 = vunpack.c.l.b16 %v703
      %v782 = vunpack.c.h.b16 %v703
      %v783 = vunpack.c.l.b16 %v704
      %v784 = vunpack.c.l.b16 %v705
      %v785 = vunpack.c.h.b16 %v705
      %v786 = vunpack.c.l.b16 %v706
      %v787 = vunpack.c.l.b16 %v707
      %v788 = vunpack.c.h.b16 %v707
      %v789 = vunpack.c.l.b16 %v708
      %v790 = vunpack.c.l.b16 %v709
      %v791 = vunpack.c.h.b16 %v709
      %v792 = vunpack.c.l.b16 %v710
      %v793 = vunpack.c.l.b16 %v711
      %v794 = vunpack.c.h.b16 %v711
      %v795 = vunpack.c.l.b16 %v712
      %v796 = vunpack.c.l.b16 %v713
      %v797 = vunpack.c.h.b16 %v713
      %v798 = vunpack.c.l.b16 %v714
      %v799 = vunpack.c.l.b16 %v715
      %v800 = vunpack.c.h.b16 %v715
      %v801 = vunpack.c.l.b16 %v716
      %v802 = vunpack.c.l.b16 %v717
      %v803 = vunpack.c.h.b16 %v717
      %v804 = vunpack.c.l.b16 %v718
      %v805 = vunpack.c.l.b16 %v719
      %v806 = vunpack.c.h.b16 %v719
      %v807 = vunpack.c.l.b16 %v720
      %v808 = vunpack.c.l.b16 %v721
      %v809 = vunpack.c.h.b16 %v721
      %v810 = vunpack.c.l.b16 %v722
      %v811 = vpack.c.b16 %v766, %v763
      %v812 = vpack.c.b16 %v767, %v764
      %v813 = vpack.c.b16 %v768, %v765
      %v814 = vpack.c.b16 %v772, %v769
      %v815 = vpack.c.b16 %v773, %v770
      %v816 = vpack.c.b16 %v774, %v771
      %v817 = vpack.c.b16 %v778, %v775
      %v818 = vpack.c.b16 %v779, %v776
      %v819 = vpack.c.b16 %v780, %v777
      %v820 = vpack.c.b16 %v784, %v781
      %v821 = vpack.c.b16 %v785, %v782
      %v822 = vpack.c.b16 %v786, %v783
      %v823 = vpack.c.b16 %v790, %v787
      %v824 = vpack.c.b16 %v791, %v788
      %v825 = vpack.c.b16 %v792, %v789
      %v826 = vpack.c.b16 %v796, %v793
      %v827 = vpack.c.b16 %v797, %v794
      %v828 = vpack.c.b16 %v798, %v795
      %v829 = vpack.c.b16 %v802, %v799
      %v830 = vpack.c.b16 %v803, %v800
      %v831 = vpack.c.b16 %v804, %v801
      %v832 = vpack.c.b16 %v808, %v805
      %v833 = vpack.c.b16 %v809, %v806
      %v834 = vpack.c.b16 %v810, %v807
      %859 = vmatpush.bf16.msra.mxu0 %v832
      %860 = vmatpush.bf16.msra.mxu0 %v829
      %861 = vmatpush.bf16.msra.mxu0 %v826
      %862 = vmatpush.bf16.msra.mxu0 %v823
      %863 = vmatpush.bf16.msra.mxu0 %v820
      %864 = vmatpush.bf16.msra.mxu0 %v817
      %865 = vmatpush.bf16.msra.mxu0 %v814
      %866 = vmatpush.bf16.msra.mxu0 %v811
      %867 = vmatmul.bf16.gmra.mxu0 %v687
      %v868 = vpop.f32.mrf.mxu0
      %v869 = vadd.f32 %v725, %v868
      %v870 = vpop.f32.mrf.mxu0
      %v871 = vadd.f32 %v725, %v870
      %872 = vmatmul.bf16.gmra.mxu0 %v688
      %v873 = vpop.f32.mrf.mxu0
      %v874 = vadd.f32 %v725, %v873
      %v875 = vpop.f32.mrf.mxu0
      %v876 = vadd.f32 %v725, %v875
      %877 = vmatmul.bf16.gmra.mxu0 %v689
      %v878 = vpop.f32.mrf.mxu0
      %v879 = vadd.f32 %v725, %v878
      %v880 = vpop.f32.mrf.mxu0
      %v881 = vadd.f32 %v725, %v880
      %882 = vmatmul.bf16.gmra.mxu0 %v690
      %v883 = vpop.f32.mrf.mxu0
      %v884 = vadd.f32 %v725, %v883
      %v885 = vpop.f32.mrf.mxu0
      %v886 = vadd.f32 %v725, %v885
      %887 = vdwg.mxu0
      %888 = vmatpush.bf16.msra.mxu0 %v833
      %889 = vmatpush.bf16.msra.mxu0 %v830
      %890 = vmatpush.bf16.msra.mxu0 %v827
      %891 = vmatpush.bf16.msra.mxu0 %v824
      %892 = vmatpush.bf16.msra.mxu0 %v821
      %893 = vmatpush.bf16.msra.mxu0 %v818
      %894 = vmatpush.bf16.msra.mxu0 %v815
      %895 = vmatpush.bf16.msra.mxu0 %v812
      %896 = vmatmul.bf16.gmra.mxu0 %v687
      %v897 = vpop.f32.mrf.mxu0
      %v898 = vadd.f32 %v726, %v897
      %v899 = vpop.f32.mrf.mxu0
      %v900 = vadd.f32 %v726, %v899
      %901 = vmatmul.bf16.gmra.mxu0 %v688
      %v902 = vpop.f32.mrf.mxu0
      %v903 = vadd.f32 %v726, %v902
      %v904 = vpop.f32.mrf.mxu0
      %v905 = vadd.f32 %v726, %v904
      %906 = vmatmul.bf16.gmra.mxu0 %v689
      %v907 = vpop.f32.mrf.mxu0
      %v908 = vadd.f32 %v726, %v907
      %v909 = vpop.f32.mrf.mxu0
      %v910 = vadd.f32 %v726, %v909
      %911 = vmatmul.bf16.gmra.mxu0 %v690
      %v912 = vpop.f32.mrf.mxu0
      %v913 = vadd.f32 %v726, %v912
      %v914 = vpop.f32.mrf.mxu0
      %v915 = vadd.f32 %v726, %v914
      %916 = vdwg.mxu0
      %917 = vmatpush.bf16.msra.mxu0 %v834
      %918 = vmatpush.bf16.msra.mxu0 %v831
      %919 = vmatpush.bf16.msra.mxu0 %v828
      %920 = vmatpush.bf16.msra.mxu0 %v825
      %921 = vmatpush.bf16.msra.mxu0 %v822
      %922 = vmatpush.bf16.msra.mxu0 %v819
      %923 = vmatpush.bf16.msra.mxu0 %v816
      %924 = vmatpush.bf16.msra.mxu0 %v813
      %925 = vmatmul.bf16.gmra.mxu0 %v687
      %v926 = vpop.f32.mrf.mxu0
      %v927 = vadd.f32 %v727, %v926
      %v928 = vpop.f32.mrf.mxu0
      %v929 = vadd.f32 %v727, %v928
      %930 = vmatmul.bf16.gmra.mxu0 %v688
      %v931 = vpop.f32.mrf.mxu0
      %v932 = vadd.f32 %v727, %v931
      %v933 = vpop.f32.mrf.mxu0
      %v934 = vadd.f32 %v727, %v933
      %935 = vmatmul.bf16.gmra.mxu0 %v689
      %v936 = vpop.f32.mrf.mxu0
      %v937 = vadd.f32 %v727, %v936
      %v938 = vpop.f32.mrf.mxu0
      %v939 = vadd.f32 %v727, %v938
      %940 = vmatmul.bf16.gmra.mxu0 %v690
      %v941 = vpop.f32.mrf.mxu0
      %v942 = vadd.f32 %v727, %v941
      %v943 = vpop.f32.mrf.mxu0
      %v944 = vadd.f32 %v727, %v943
      %945 = vdwg.mxu0
      %v946 = vpack.c.bf16 %v871, %v869
      %v947 = vpack.c.bf16 %v876, %v874
      %v948 = vpack.c.bf16 %v881, %v879
      %v949 = vpack.c.bf16 %v886, %v884
      %v950 = vpack.c.bf16 %v900, %v898
      %v951 = vpack.c.bf16 %v905, %v903
      %v952 = vpack.c.bf16 %v910, %v908
      %v953 = vpack.c.bf16 %v915, %v913
      %v954 = vpack.c.bf16 %v929, %v927
      %v955 = vpack.c.bf16 %v934, %v932
      %v956 = vpack.c.bf16 %v939, %v937
      %v957 = vpack.c.bf16 %v944, %v942
      %vm958 = vcmask 130048
      %v960 = vsel %vm958, %v946, 0
      %v963 = vsel %vm958, %v947, 0
      %v966 = vsel %vm958, %v948, 0
      %v969 = vsel %vm958, %v949, 0
      %v972 = vsel %vm958, %v950, 0
      %v975 = vsel %vm958, %v951, 0
      %v978 = vsel %vm958, %v952, 0
      %v981 = vsel %vm958, %v953, 0
      %983 = vmatpush.bf16.xpose.msra.mxu0 0
      %984 = vmatpush.bf16.xpose.msra.mxu0 0
      %985 = vmatpush.bf16.xpose.msra.mxu0 0
      %986 = vmatpush.bf16.xpose.msra.mxu0 0
      %987 = vmatpush.bf16.xpose.msra.mxu0 %v981
      %988 = vmatpush.bf16.xpose.msra.mxu0 %v978
      %989 = vmatpush.bf16.xpose.msra.mxu0 %v975
      %990 = vmatpush.bf16.xpose.msra.mxu0 %v972
      %991 = vmatmul.bf16.gmra.mxu0 %v960
      %v992 = vpop.f32.mrf.mxu0
      %v993 = vadd.f32 0.0, %v992
      %v994 = vpop.f32.mrf.mxu0
      %v995 = vadd.f32 0.0, %v994
      %996 = vmatmul.bf16.gmra.mxu0 %v963
      %v997 = vpop.f32.mrf.mxu0
      %v998 = vadd.f32 0.0, %v997
      %v999 = vpop.f32.mrf.mxu0
      %v1000 = vadd.f32 0.0, %v999
      %1001 = vmatmul.bf16.gmra.mxu0 %v966
      %v1002 = vpop.f32.mrf.mxu0
      %v1003 = vadd.f32 0.0, %v1002
      %v1004 = vpop.f32.mrf.mxu0
      %v1005 = vadd.f32 0.0, %v1004
      %1006 = vmatmul.bf16.gmra.mxu0 %v969
      %v1007 = vpop.f32.mrf.mxu0
      %v1008 = vadd.f32 0.0, %v1007
      %v1009 = vpop.f32.mrf.mxu0
      %v1010 = vadd.f32 0.0, %v1009
      %1011 = vdwg.mxu0
      %v1012 = vmul.f32 %v993, 0.25
      %v1013 = vmul.f32 %v995, 0.25
      %v1014 = vmul.f32 %v998, 0.25
      %v1015 = vmul.f32 %v1000, 0.25
      %v1016 = vmul.f32 %v1003, 0.25
      %v1017 = vmul.f32 %v1005, 0.25
      %v1018 = vmul.f32 %v1008, 0.25
      %v1019 = vmul.f32 %v1010, 0.25
      %v1020 = vld [vmem:[%s5] sm:$0xff]
      %v1021 = vld [vmem:[%s5 + $0x8] sm:$0xff]
      %v1022 = vld [vmem:[%s5 + $0x10] sm:$0xff]
      %v1023 = vld [vmem:[%s5 + $0x18] sm:$0xff]
      %v1024 = vld [vmem:[%s5 + $0x20] sm:$0xff]
      %v1025 = vld [vmem:[%s5 + $0x28] sm:$0xff]
      %v1026 = vld [vmem:[%s5 + $0x30] sm:$0xff]
      %v1027 = vld [vmem:[%s5 + $0x38] sm:$0xff]
      %v1028 = vadd.f32 %v1012, %v1020
      %v1029 = vadd.f32 %v1013, %v1021
      %v1030 = vadd.f32 %v1014, %v1022
      %v1031 = vadd.f32 %v1015, %v1023
      %v1032 = vadd.f32 %v1016, %v1024
      %v1033 = vadd.f32 %v1017, %v1025
      %v1034 = vadd.f32 %v1018, %v1026
      %v1035 = vadd.f32 %v1019, %v1027
      %vm1036 = vcmask 523264
      %v1037 = vsel %vm1036, %v1028, -inf
      %1038 = vmax.xlane.f32.xlu0 %v1037
      %v1039 = vpop.xlane.xlu0 %1038
      %v1040 = vsel %vm1036, %v1029, -inf
      %1041 = vmax.xlane.f32.xlu0 %v1040
      %v1042 = vpop.xlane.xlu0 %1041
      %v1043 = vsel %vm1036, %v1030, -inf
      %1044 = vmax.xlane.f32.xlu0 %v1043
      %v1045 = vpop.xlane.xlu0 %1044
      %v1046 = vsel %vm1036, %v1031, -inf
      %1047 = vmax.xlane.f32.xlu0 %v1046
      %v1048 = vpop.xlane.xlu0 %1047
      %v1049 = vsel %vm1036, %v1032, -inf
      %1050 = vmax.xlane.f32.xlu0 %v1049
      %v1051 = vpop.xlane.xlu0 %1050
      %v1052 = vsel %vm1036, %v1033, -inf
      %1053 = vmax.xlane.f32.xlu0 %v1052
      %v1054 = vpop.xlane.xlu0 %1053
      %v1055 = vsel %vm1036, %v1034, -inf
      %1056 = vmax.xlane.f32.xlu0 %v1055
      %v1057 = vpop.xlane.xlu0 %1056
      %v1058 = vsel %vm1036, %v1035, -inf
      %1059 = vmax.xlane.f32.xlu0 %v1058
      %v1060 = vpop.xlane.xlu0 %1059
      %v1061 = vsub.f32 %v1028, %v1039
      %v1062 = vsub.f32 %v1029, %v1042
      %v1063 = vsub.f32 %v1030, %v1045
      %v1064 = vsub.f32 %v1031, %v1048
      %v1065 = vsub.f32 %v1032, %v1051
      %v1066 = vsub.f32 %v1033, %v1054
      %v1067 = vsub.f32 %v1034, %v1057
      %v1068 = vsub.f32 %v1035, %v1060
      %v1069 = vmul.f32 %v1061, 1.442695
      %v1070 = vpow.pop %v1069
      %v1071 = vmul.f32 %v1062, 1.442695
      %v1072 = vpow.pop %v1071
      %v1073 = vmul.f32 %v1063, 1.442695
      %v1074 = vpow.pop %v1073
      %v1075 = vmul.f32 %v1064, 1.442695
      %v1076 = vpow.pop %v1075
      %v1077 = vmul.f32 %v1065, 1.442695
      %v1078 = vpow.pop %v1077
      %v1079 = vmul.f32 %v1066, 1.442695
      %v1080 = vpow.pop %v1079
      %v1081 = vmul.f32 %v1067, 1.442695
      %v1082 = vpow.pop %v1081
      %v1083 = vmul.f32 %v1068, 1.442695
      %v1084 = vpow.pop %v1083
      %v1085 = vsel %vm1036, %v1070, 0.0
      %1086 = vadd.xlane.f32.xlu0 %v1085
      %v1087 = vpop.xlane.xlu0 %1086
      %v1088 = vsel %vm1036, %v1072, 0.0
      %1089 = vadd.xlane.f32.xlu0 %v1088
      %v1090 = vpop.xlane.xlu0 %1089
      %v1091 = vsel %vm1036, %v1074, 0.0
      %1092 = vadd.xlane.f32.xlu0 %v1091
      %v1093 = vpop.xlane.xlu0 %1092
      %v1094 = vsel %vm1036, %v1076, 0.0
      %1095 = vadd.xlane.f32.xlu0 %v1094
      %v1096 = vpop.xlane.xlu0 %1095
      %v1097 = vsel %vm1036, %v1078, 0.0
      %1098 = vadd.xlane.f32.xlu0 %v1097
      %v1099 = vpop.xlane.xlu0 %1098
      %v1100 = vsel %vm1036, %v1080, 0.0
      %1101 = vadd.xlane.f32.xlu0 %v1100
      %v1102 = vpop.xlane.xlu0 %1101
      %v1103 = vsel %vm1036, %v1082, 0.0
      %1104 = vadd.xlane.f32.xlu0 %v1103
      %v1105 = vpop.xlane.xlu0 %1104
      %v1106 = vsel %vm1036, %v1084, 0.0
      %1107 = vadd.xlane.f32.xlu0 %v1106
      %v1108 = vpop.xlane.xlu0 %1107
      %v1109 = vrcp.pop %v1087
      %v1110 = vmul.f32 %v1087, %v1109
      %v1111 = vsub.f32 1.0, %v1110
      %v1112 = vmul.f32 %v1109, %v1111
      %v1113 = vadd.f32 %v1109, %v1112
      %vm1114 = vweird.f32 %v1087
      %vm1115 = vweird.f32 %v1109
      %vm1116 = vmor %vm1114, %vm1115
      %v1117 = vsel %vm1116, %v1109, %v1113
      %v1118 = vand.u32 2147483647, %v1087
      %vm1119 = vcmp.eq.f32.partialorder %v1118, 8.507059e+37
      %v1120 = vand.u32 %v1087, 2147483648
      %v1121 = vor.u32 1.1754944e-38, %v1120
      %v1122 = vsel %vm1119, %v1121, %v1117
      %v1123 = vmul.f32 %v1070, %v1122
      %v1124 = vrcp.pop %v1090
      %v1125 = vmul.f32 %v1090, %v1124
      %v1126 = vsub.f32 1.0, %v1125
      %v1127 = vmul.f32 %v1124, %v1126
      %v1128 = vadd.f32 %v1124, %v1127
      %vm1129 = vweird.f32 %v1090
      %vm1130 = vweird.f32 %v1124
      %vm1131 = vmor %vm1129, %vm1130
      %v1132 = vsel %vm1131, %v1124, %v1128
      %v1133 = vand.u32 2147483647, %v1090
      %vm1134 = vcmp.eq.f32.partialorder %v1133, 8.507059e+37
      %v1135 = vand.u32 %v1090, 2147483648
      %v1136 = vor.u32 1.1754944e-38, %v1135
      %v1137 = vsel %vm1134, %v1136, %v1132
      %v1138 = vmul.f32 %v1072, %v1137
      %v1139 = vrcp.pop %v1093
      %v1140 = vmul.f32 %v1093, %v1139
      %v1141 = vsub.f32 1.0, %v1140
      %v1142 = vmul.f32 %v1139, %v1141
      %v1143 = vadd.f32 %v1139, %v1142
      %vm1144 = vweird.f32 %v1093
      %vm1145 = vweird.f32 %v1139
      %vm1146 = vmor %vm1144, %vm1145
      %v1147 = vsel %vm1146, %v1139, %v1143
      %v1148 = vand.u32 2147483647, %v1093
      %vm1149 = vcmp.eq.f32.partialorder %v1148, 8.507059e+37
      %v1150 = vand.u32 %v1093, 2147483648
      %v1151 = vor.u32 1.1754944e-38, %v1150
      %v1152 = vsel %vm1149, %v1151, %v1147
      %v1153 = vmul.f32 %v1074, %v1152
      %v1154 = vrcp.pop %v1096
      %v1155 = vmul.f32 %v1096, %v1154
      %v1156 = vsub.f32 1.0, %v1155
      %v1157 = vmul.f32 %v1154, %v1156
      %v1158 = vadd.f32 %v1154, %v1157
      %vm1159 = vweird.f32 %v1096
      %vm1160 = vweird.f32 %v1154
      %vm1161 = vmor %vm1159, %vm1160
      %v1162 = vsel %vm1161, %v1154, %v1158
      %v1163 = vand.u32 2147483647, %v1096
      %vm1164 = vcmp.eq.f32.partialorder %v1163, 8.507059e+37
      %v1165 = vand.u32 %v1096, 2147483648
      %v1166 = vor.u32 1.1754944e-38, %v1165
      %v1167 = vsel %vm1164, %v1166, %v1162
      %v1168 = vmul.f32 %v1076, %v1167
      %v1169 = vrcp.pop %v1099
      %v1170 = vmul.f32 %v1099, %v1169
      %v1171 = vsub.f32 1.0, %v1170
      %v1172 = vmul.f32 %v1169, %v1171
      %v1173 = vadd.f32 %v1169, %v1172
      %vm1174 = vweird.f32 %v1099
      %vm1175 = vweird.f32 %v1169
      %vm1176 = vmor %vm1174, %vm1175
      %v1177 = vsel %vm1176, %v1169, %v1173
      %v1178 = vand.u32 2147483647, %v1099
      %vm1179 = vcmp.eq.f32.partialorder %v1178, 8.507059e+37
      %v1180 = vand.u32 %v1099, 2147483648
      %v1181 = vor.u32 1.1754944e-38, %v1180
      %v1182 = vsel %vm1179, %v1181, %v1177
      %v1183 = vmul.f32 %v1078, %v1182
      %v1184 = vrcp.pop %v1102
      %v1185 = vmul.f32 %v1102, %v1184
      %v1186 = vsub.f32 1.0, %v1185
      %v1187 = vmul.f32 %v1184, %v1186
      %v1188 = vadd.f32 %v1184, %v1187
      %vm1189 = vweird.f32 %v1102
      %vm1190 = vweird.f32 %v1184
      %vm1191 = vmor %vm1189, %vm1190
      %v1192 = vsel %vm1191, %v1184, %v1188
      %v1193 = vand.u32 2147483647, %v1102
      %vm1194 = vcmp.eq.f32.partialorder %v1193, 8.507059e+37
      %v1195 = vand.u32 %v1102, 2147483648
      %v1196 = vor.u32 1.1754944e-38, %v1195
      %v1197 = vsel %vm1194, %v1196, %v1192
      %v1198 = vmul.f32 %v1080, %v1197
      %v1199 = vrcp.pop %v1105
      %v1200 = vmul.f32 %v1105, %v1199
      %v1201 = vsub.f32 1.0, %v1200
      %v1202 = vmul.f32 %v1199, %v1201
      %v1203 = vadd.f32 %v1199, %v1202
      %vm1204 = vweird.f32 %v1105
      %vm1205 = vweird.f32 %v1199
      %vm1206 = vmor %vm1204, %vm1205
      %v1207 = vsel %vm1206, %v1199, %v1203
      %v1208 = vand.u32 2147483647, %v1105
      %vm1209 = vcmp.eq.f32.partialorder %v1208, 8.507059e+37
      %v1210 = vand.u32 %v1105, 2147483648
      %v1211 = vor.u32 1.1754944e-38, %v1210
      %v1212 = vsel %vm1209, %v1211, %v1207
      %v1213 = vmul.f32 %v1082, %v1212
      %v1214 = vrcp.pop %v1108
      %v1215 = vmul.f32 %v1108, %v1214
      %v1216 = vsub.f32 1.0, %v1215
      %v1217 = vmul.f32 %v1214, %v1216
      %v1218 = vadd.f32 %v1214, %v1217
      %vm1219 = vweird.f32 %v1108
      %vm1220 = vweird.f32 %v1214
      %vm1221 = vmor %vm1219, %vm1220
      %v1222 = vsel %vm1221, %v1214, %v1218
      %v1223 = vand.u32 2147483647, %v1108
      %vm1224 = vcmp.eq.f32.partialorder %v1223, 8.507059e+37
      %v1225 = vand.u32 %v1108, 2147483648
      %v1226 = vor.u32 1.1754944e-38, %v1225
      %v1227 = vsel %vm1224, %v1226, %v1222
      %v1228 = vmul.f32 %v1084, %v1227
      %v1229 = vpack.c.bf16 %v1138, %v1123
      %v1230 = vpack.c.bf16 %v1168, %v1153
      %v1231 = vpack.c.bf16 %v1198, %v1183
      %v1232 = vpack.c.bf16 %v1228, %v1213
      %v1234 = vsel %vm1036, %v1229, 0
      %v1237 = vsel %vm1036, %v1230, 0
      %v1240 = vsel %vm1036, %v1231, 0
      %v1243 = vsel %vm1036, %v1232, 0
      %1245 = vmatpush.bf16.msra.mxu0 0
      %1246 = vmatpush.bf16.msra.mxu0 0
      %1247 = vmatpush.bf16.msra.mxu0 0
      %1248 = vmatpush.bf16.msra.mxu0 0
      %1249 = vmatpush.bf16.msra.mxu0 %v957
      %1250 = vmatpush.bf16.msra.mxu0 %v956
      %1251 = vmatpush.bf16.msra.mxu0 %v955
      %1252 = vmatpush.bf16.msra.mxu0 %v954
      %1253 = vmatmul.bf16.gmra.mxu0 %v1234
      %v1254 = vpop.f32.mrf.mxu0
      %v1255 = vadd.f32 0.0, %v1254
      %v1256 = vpop.f32.mrf.mxu0
      %v1257 = vadd.f32 0.0, %v1256
      %1258 = vmatmul.bf16.gmra.mxu0 %v1237
      %v1259 = vpop.f32.mrf.mxu0
      %v1260 = vadd.f32 0.0, %v1259
      %v1261 = vpop.f32.mrf.mxu0
      %v1262 = vadd.f32 0.0, %v1261
      %1263 = vmatmul.bf16.gmra.mxu0 %v1240
      %v1264 = vpop.f32.mrf.mxu0
      %v1265 = vadd.f32 0.0, %v1264
      %v1266 = vpop.f32.mrf.mxu0
      %v1267 = vadd.f32 0.0, %v1266
      %1268 = vmatmul.bf16.gmra.mxu0 %v1243
      %v1269 = vpop.f32.mrf.mxu0
      %v1270 = vadd.f32 0.0, %v1269
      %v1271 = vpop.f32.mrf.mxu0
      %v1272 = vadd.f32 0.0, %v1271
      %1273 = vdwg.mxu0
      %1278 = vrot.lane.b32.xlu0 %v946, 112
      %v1279 = vpop.permute.xlu0 %1278
      %1280 = vrot.lane.b32.xlu0 %v947, 112
      %v1281 = vpop.permute.xlu0 %1280
      %1282 = vrot.lane.b32.xlu0 %v948, 112
      %v1283 = vpop.permute.xlu0 %1282
      %1284 = vrot.lane.b32.xlu0 %v949, 112
      %v1285 = vpop.permute.xlu0 %1284
      %1290 = vrot.lane.b32.xlu0 %v950, 112
      %v1291 = vpop.permute.xlu0 %1290
      %1292 = vrot.lane.b32.xlu0 %v951, 112
      %v1293 = vpop.permute.xlu0 %1292
      %1294 = vrot.lane.b32.xlu0 %v952, 112
      %v1295 = vpop.permute.xlu0 %1294
      %1296 = vrot.lane.b32.xlu0 %v953, 112
      %v1297 = vpop.permute.xlu0 %1296
      %v1299 = vsel %vm958, %v1279, 0
      %v1302 = vsel %vm958, %v1281, 0
      %v1305 = vsel %vm958, %v1283, 0
      %v1308 = vsel %vm958, %v1285, 0
      %v1311 = vsel %vm958, %v1291, 0
      %v1314 = vsel %vm958, %v1293, 0
      %v1317 = vsel %vm958, %v1295, 0
      %v1320 = vsel %vm958, %v1297, 0
      %1322 = vmatpush.bf16.xpose.msra.mxu0 0
      %1323 = vmatpush.bf16.xpose.msra.mxu0 0
      %1324 = vmatpush.bf16.xpose.msra.mxu0 0
      %1325 = vmatpush.bf16.xpose.msra.mxu0 0
      %1326 = vmatpush.bf16.xpose.msra.mxu0 %v1320
      %1327 = vmatpush.bf16.xpose.msra.mxu0 %v1317
      %1328 = vmatpush.bf16.xpose.msra.mxu0 %v1314
      %1329 = vmatpush.bf16.xpose.msra.mxu0 %v1311
      %1330 = vmatmul.bf16.gmra.mxu0 %v1299
      %v1331 = vpop.f32.mrf.mxu0
      %v1332 = vadd.f32 0.0, %v1331
      %v1333 = vpop.f32.mrf.mxu0
      %v1334 = vadd.f32 0.0, %v1333
      %1335 = vmatmul.bf16.gmra.mxu0 %v1302
      %v1336 = vpop.f32.mrf.mxu0
      %v1337 = vadd.f32 0.0, %v1336
      %v1338 = vpop.f32.mrf.mxu0
      %v1339 = vadd.f32 0.0, %v1338
      %1340 = vmatmul.bf16.gmra.mxu0 %v1305
      %v1341 = vpop.f32.mrf.mxu0
      %v1342 = vadd.f32 0.0, %v1341
      %v1343 = vpop.f32.mrf.mxu0
      %v1344 = vadd.f32 0.0, %v1343
      %1345 = vmatmul.bf16.gmra.mxu0 %v1308
      %v1346 = vpop.f32.mrf.mxu0
      %v1347 = vadd.f32 0.0, %v1346
      %v1348 = vpop.f32.mrf.mxu0
      %v1349 = vadd.f32 0.0, %v1348
      %1350 = vdwg.mxu0
      %v1351 = vmul.f32 %v1332, 0.25
      %v1352 = vmul.f32 %v1334, 0.25
      %v1353 = vmul.f32 %v1337, 0.25
      %v1354 = vmul.f32 %v1339, 0.25
      %v1355 = vmul.f32 %v1342, 0.25
      %v1356 = vmul.f32 %v1344, 0.25
      %v1357 = vmul.f32 %v1347, 0.25
      %v1358 = vmul.f32 %v1349, 0.25
      %s1359 = scalar_lea.vmem %s5, 64
      %v1360 = vld [vmem:[%s1359] sm:$0xff]
      %v1361 = vld [vmem:[%s1359 + $0x8] sm:$0xff]
      %v1362 = vld [vmem:[%s1359 + $0x10] sm:$0xff]
      %v1363 = vld [vmem:[%s1359 + $0x18] sm:$0xff]
      %v1364 = vld [vmem:[%s1359 + $0x20] sm:$0xff]
      %v1365 = vld [vmem:[%s1359 + $0x28] sm:$0xff]
      %v1366 = vld [vmem:[%s1359 + $0x30] sm:$0xff]
      %v1367 = vld [vmem:[%s1359 + $0x38] sm:$0xff]
      %v1368 = vadd.f32 %v1351, %v1360
      %v1369 = vadd.f32 %v1352, %v1361
      %v1370 = vadd.f32 %v1353, %v1362
      %v1371 = vadd.f32 %v1354, %v1363
      %v1372 = vadd.f32 %v1355, %v1364
      %v1373 = vadd.f32 %v1356, %v1365
      %v1374 = vadd.f32 %v1357, %v1366
      %v1375 = vadd.f32 %v1358, %v1367
      %v1376 = vsel %vm1036, %v1368, -inf
      %1377 = vmax.xlane.f32.xlu0 %v1376
      %v1378 = vpop.xlane.xlu0 %1377
      %v1379 = vsel %vm1036, %v1369, -inf
      %1380 = vmax.xlane.f32.xlu0 %v1379
      %v1381 = vpop.xlane.xlu0 %1380
      %v1382 = vsel %vm1036, %v1370, -inf
      %1383 = vmax.xlane.f32.xlu0 %v1382
      %v1384 = vpop.xlane.xlu0 %1383
      %v1385 = vsel %vm1036, %v1371, -inf
      %1386 = vmax.xlane.f32.xlu0 %v1385
      %v1387 = vpop.xlane.xlu0 %1386
      %v1388 = vsel %vm1036, %v1372, -inf
      %1389 = vmax.xlane.f32.xlu0 %v1388
      %v1390 = vpop.xlane.xlu0 %1389
      %v1391 = vsel %vm1036, %v1373, -inf
      %1392 = vmax.xlane.f32.xlu0 %v1391
      %v1393 = vpop.xlane.xlu0 %1392
      %v1394 = vsel %vm1036, %v1374, -inf
      %1395 = vmax.xlane.f32.xlu0 %v1394
      %v1396 = vpop.xlane.xlu0 %1395
      %v1397 = vsel %vm1036, %v1375, -inf
      %1398 = vmax.xlane.f32.xlu0 %v1397
      %v1399 = vpop.xlane.xlu0 %1398
      %v1400 = vsub.f32 %v1368, %v1378
      %v1401 = vsub.f32 %v1369, %v1381
      %v1402 = vsub.f32 %v1370, %v1384
      %v1403 = vsub.f32 %v1371, %v1387
      %v1404 = vsub.f32 %v1372, %v1390
      %v1405 = vsub.f32 %v1373, %v1393
      %v1406 = vsub.f32 %v1374, %v1396
      %v1407 = vsub.f32 %v1375, %v1399
      %v1408 = vmul.f32 %v1400, 1.442695
      %v1409 = vpow.pop %v1408
      %v1410 = vmul.f32 %v1401, 1.442695
      %v1411 = vpow.pop %v1410
      %v1412 = vmul.f32 %v1402, 1.442695
      %v1413 = vpow.pop %v1412
      %v1414 = vmul.f32 %v1403, 1.442695
      %v1415 = vpow.pop %v1414
      %v1416 = vmul.f32 %v1404, 1.442695
      %v1417 = vpow.pop %v1416
      %v1418 = vmul.f32 %v1405, 1.442695
      %v1419 = vpow.pop %v1418
      %v1420 = vmul.f32 %v1406, 1.442695
      %v1421 = vpow.pop %v1420
      %v1422 = vmul.f32 %v1407, 1.442695
      %v1423 = vpow.pop %v1422
      %v1424 = vsel %vm1036, %v1409, 0.0
      %1425 = vadd.xlane.f32.xlu0 %v1424
      %v1426 = vpop.xlane.xlu0 %1425
      %v1427 = vsel %vm1036, %v1411, 0.0
      %1428 = vadd.xlane.f32.xlu0 %v1427
      %v1429 = vpop.xlane.xlu0 %1428
      %v1430 = vsel %vm1036, %v1413, 0.0
      %1431 = vadd.xlane.f32.xlu0 %v1430
      %v1432 = vpop.xlane.xlu0 %1431
      %v1433 = vsel %vm1036, %v1415, 0.0
      %1434 = vadd.xlane.f32.xlu0 %v1433
      %v1435 = vpop.xlane.xlu0 %1434
      %v1436 = vsel %vm1036, %v1417, 0.0
      %1437 = vadd.xlane.f32.xlu0 %v1436
      %v1438 = vpop.xlane.xlu0 %1437
      %v1439 = vsel %vm1036, %v1419, 0.0
      %1440 = vadd.xlane.f32.xlu0 %v1439
      %v1441 = vpop.xlane.xlu0 %1440
      %v1442 = vsel %vm1036, %v1421, 0.0
      %1443 = vadd.xlane.f32.xlu0 %v1442
      %v1444 = vpop.xlane.xlu0 %1443
      %v1445 = vsel %vm1036, %v1423, 0.0
      %1446 = vadd.xlane.f32.xlu0 %v1445
      %v1447 = vpop.xlane.xlu0 %1446
      %v1448 = vrcp.pop %v1426
      %v1449 = vmul.f32 %v1426, %v1448
      %v1450 = vsub.f32 1.0, %v1449
      %v1451 = vmul.f32 %v1448, %v1450
      %v1452 = vadd.f32 %v1448, %v1451
      %vm1453 = vweird.f32 %v1426
      %vm1454 = vweird.f32 %v1448
      %vm1455 = vmor %vm1453, %vm1454
      %v1456 = vsel %vm1455, %v1448, %v1452
      %v1457 = vand.u32 2147483647, %v1426
      %vm1458 = vcmp.eq.f32.partialorder %v1457, 8.507059e+37
      %v1459 = vand.u32 %v1426, 2147483648
      %v1460 = vor.u32 1.1754944e-38, %v1459
      %v1461 = vsel %vm1458, %v1460, %v1456
      %v1462 = vmul.f32 %v1409, %v1461
      %v1463 = vrcp.pop %v1429
      %v1464 = vmul.f32 %v1429, %v1463
      %v1465 = vsub.f32 1.0, %v1464
      %v1466 = vmul.f32 %v1463, %v1465
      %v1467 = vadd.f32 %v1463, %v1466
      %vm1468 = vweird.f32 %v1429
      %vm1469 = vweird.f32 %v1463
      %vm1470 = vmor %vm1468, %vm1469
      %v1471 = vsel %vm1470, %v1463, %v1467
      %v1472 = vand.u32 2147483647, %v1429
      %vm1473 = vcmp.eq.f32.partialorder %v1472, 8.507059e+37
      %v1474 = vand.u32 %v1429, 2147483648
      %v1475 = vor.u32 1.1754944e-38, %v1474
      %v1476 = vsel %vm1473, %v1475, %v1471
      %v1477 = vmul.f32 %v1411, %v1476
      %v1478 = vrcp.pop %v1432
      %v1479 = vmul.f32 %v1432, %v1478
      %v1480 = vsub.f32 1.0, %v1479
      %v1481 = vmul.f32 %v1478, %v1480
      %v1482 = vadd.f32 %v1478, %v1481
      %vm1483 = vweird.f32 %v1432
      %vm1484 = vweird.f32 %v1478
      %vm1485 = vmor %vm1483, %vm1484
      %v1486 = vsel %vm1485, %v1478, %v1482
      %v1487 = vand.u32 2147483647, %v1432
      %vm1488 = vcmp.eq.f32.partialorder %v1487, 8.507059e+37
      %v1489 = vand.u32 %v1432, 2147483648
      %v1490 = vor.u32 1.1754944e-38, %v1489
      %v1491 = vsel %vm1488, %v1490, %v1486
      %v1492 = vmul.f32 %v1413, %v1491
      %v1493 = vrcp.pop %v1435
      %v1494 = vmul.f32 %v1435, %v1493
      %v1495 = vsub.f32 1.0, %v1494
      %v1496 = vmul.f32 %v1493, %v1495
      %v1497 = vadd.f32 %v1493, %v1496
      %vm1498 = vweird.f32 %v1435
      %vm1499 = vweird.f32 %v1493
      %vm1500 = vmor %vm1498, %vm1499
      %v1501 = vsel %vm1500, %v1493, %v1497
      %v1502 = vand.u32 2147483647, %v1435
      %vm1503 = vcmp.eq.f32.partialorder %v1502, 8.507059e+37
      %v1504 = vand.u32 %v1435, 2147483648
      %v1505 = vor.u32 1.1754944e-38, %v1504
      %v1506 = vsel %vm1503, %v1505, %v1501
      %v1507 = vmul.f32 %v1415, %v1506
      %v1508 = vrcp.pop %v1438
      %v1509 = vmul.f32 %v1438, %v1508
      %v1510 = vsub.f32 1.0, %v1509
      %v1511 = vmul.f32 %v1508, %v1510
      %v1512 = vadd.f32 %v1508, %v1511
      %vm1513 = vweird.f32 %v1438
      %vm1514 = vweird.f32 %v1508
      %vm1515 = vmor %vm1513, %vm1514
      %v1516 = vsel %vm1515, %v1508, %v1512
      %v1517 = vand.u32 2147483647, %v1438
      %vm1518 = vcmp.eq.f32.partialorder %v1517, 8.507059e+37
      %v1519 = vand.u32 %v1438, 2147483648
      %v1520 = vor.u32 1.1754944e-38, %v1519
      %v1521 = vsel %vm1518, %v1520, %v1516
      %v1522 = vmul.f32 %v1417, %v1521
      %v1523 = vrcp.pop %v1441
      %v1524 = vmul.f32 %v1441, %v1523
      %v1525 = vsub.f32 1.0, %v1524
      %v1526 = vmul.f32 %v1523, %v1525
      %v1527 = vadd.f32 %v1523, %v1526
      %vm1528 = vweird.f32 %v1441
      %vm1529 = vweird.f32 %v1523
      %vm1530 = vmor %vm1528, %vm1529
      %v1531 = vsel %vm1530, %v1523, %v1527
      %v1532 = vand.u32 2147483647, %v1441
      %vm1533 = vcmp.eq.f32.partialorder %v1532, 8.507059e+37
      %v1534 = vand.u32 %v1441, 2147483648
      %v1535 = vor.u32 1.1754944e-38, %v1534
      %v1536 = vsel %vm1533, %v1535, %v1531
      %v1537 = vmul.f32 %v1419, %v1536
      %v1538 = vrcp.pop %v1444
      %v1539 = vmul.f32 %v1444, %v1538
      %v1540 = vsub.f32 1.0, %v1539
      %v1541 = vmul.f32 %v1538, %v1540
      %v1542 = vadd.f32 %v1538, %v1541
      %vm1543 = vweird.f32 %v1444
      %vm1544 = vweird.f32 %v1538
      %vm1545 = vmor %vm1543, %vm1544
      %v1546 = vsel %vm1545, %v1538, %v1542
      %v1547 = vand.u32 2147483647, %v1444
      %vm1548 = vcmp.eq.f32.partialorder %v1547, 8.507059e+37
      %v1549 = vand.u32 %v1444, 2147483648
      %v1550 = vor.u32 1.1754944e-38, %v1549
      %v1551 = vsel %vm1548, %v1550, %v1546
      %v1552 = vmul.f32 %v1421, %v1551
      %v1553 = vrcp.pop %v1447
      %v1554 = vmul.f32 %v1447, %v1553
      %v1555 = vsub.f32 1.0, %v1554
      %v1556 = vmul.f32 %v1553, %v1555
      %v1557 = vadd.f32 %v1553, %v1556
      %vm1558 = vweird.f32 %v1447
      %vm1559 = vweird.f32 %v1553
      %vm1560 = vmor %vm1558, %vm1559
      %v1561 = vsel %vm1560, %v1553, %v1557
      %v1562 = vand.u32 2147483647, %v1447
      %vm1563 = vcmp.eq.f32.partialorder %v1562, 8.507059e+37
      %v1564 = vand.u32 %v1447, 2147483648
      %v1565 = vor.u32 1.1754944e-38, %v1564
      %v1566 = vsel %vm1563, %v1565, %v1561
      %v1567 = vmul.f32 %v1423, %v1566
      %v1568 = vpack.c.bf16 %v1477, %v1462
      %v1569 = vpack.c.bf16 %v1507, %v1492
      %v1570 = vpack.c.bf16 %v1537, %v1522
      %v1571 = vpack.c.bf16 %v1567, %v1552
      %1576 = vrot.lane.b32.xlu0 %v954, 112
      %v1577 = vpop.permute.xlu0 %1576
      %1578 = vrot.lane.b32.xlu0 %v955, 112
      %v1579 = vpop.permute.xlu0 %1578
      %1580 = vrot.lane.b32.xlu0 %v956, 112
      %v1581 = vpop.permute.xlu0 %1580
      %1582 = vrot.lane.b32.xlu0 %v957, 112
      %v1583 = vpop.permute.xlu0 %1582
      %v1589 = vsel %vm1036, %v1568, 0
      %v1592 = vsel %vm1036, %v1569, 0
      %v1595 = vsel %vm1036, %v1570, 0
      %v1598 = vsel %vm1036, %v1571, 0
      %1600 = vmatpush.bf16.msra.mxu0 0
      %1601 = vmatpush.bf16.msra.mxu0 0
      %1602 = vmatpush.bf16.msra.mxu0 0
      %1603 = vmatpush.bf16.msra.mxu0 0
      %1604 = vmatpush.bf16.msra.mxu0 %v1583
      %1605 = vmatpush.bf16.msra.mxu0 %v1581
      %1606 = vmatpush.bf16.msra.mxu0 %v1579
      %1607 = vmatpush.bf16.msra.mxu0 %v1577
      %1608 = vmatmul.bf16.gmra.mxu0 %v1589
      %v1609 = vpop.f32.mrf.mxu0
      %v1610 = vadd.f32 0.0, %v1609
      %v1611 = vpop.f32.mrf.mxu0
      %v1612 = vadd.f32 0.0, %v1611
      %1613 = vmatmul.bf16.gmra.mxu0 %v1592
      %v1614 = vpop.f32.mrf.mxu0
      %v1615 = vadd.f32 0.0, %v1614
      %v1616 = vpop.f32.mrf.mxu0
      %v1617 = vadd.f32 0.0, %v1616
      %1618 = vmatmul.bf16.gmra.mxu0 %v1595
      %v1619 = vpop.f32.mrf.mxu0
      %v1620 = vadd.f32 0.0, %v1619
      %v1621 = vpop.f32.mrf.mxu0
      %v1622 = vadd.f32 0.0, %v1621
      %1623 = vmatmul.bf16.gmra.mxu0 %v1598
      %v1624 = vpop.f32.mrf.mxu0
      %v1625 = vadd.f32 0.0, %v1624
      %v1626 = vpop.f32.mrf.mxu0
      %v1627 = vadd.f32 0.0, %v1626
      %1628 = vdwg.mxu0
      %1637 = vrot.lane.b32.xlu0 %v1610, 16
      %v1638 = vpop.permute.xlu0 %1637
      %1639 = vrot.lane.b32.xlu0 %v1612, 16
      %v1640 = vpop.permute.xlu0 %1639
      %1641 = vrot.lane.b32.xlu0 %v1615, 16
      %v1642 = vpop.permute.xlu0 %1641
      %1643 = vrot.lane.b32.xlu0 %v1617, 16
      %v1644 = vpop.permute.xlu0 %1643
      %1645 = vrot.lane.b32.xlu0 %v1620, 16
      %v1646 = vpop.permute.xlu0 %1645
      %1647 = vrot.lane.b32.xlu0 %v1622, 16
      %v1648 = vpop.permute.xlu0 %1647
      %1649 = vrot.lane.b32.xlu0 %v1625, 16
      %v1650 = vpop.permute.xlu0 %1649
      %1651 = vrot.lane.b32.xlu0 %v1627, 16
      %v1652 = vpop.permute.xlu0 %1651
      %v1661 = vsel %vm958, %v1255, %v1638
      %v1662 = vsel %vm958, %v1257, %v1640
      %v1663 = vsel %vm958, %v1260, %v1642
      %v1664 = vsel %vm958, %v1262, %v1644
      %v1665 = vsel %vm958, %v1265, %v1646
      %v1666 = vsel %vm958, %v1267, %v1648
      %v1667 = vsel %vm958, %v1270, %v1650
      %v1668 = vsel %vm958, %v1272, %v1652
      %v1669 = vpack.c.bf16 %v1662, %v1661
      %v1670 = vpack.c.bf16 %v1664, %v1663
      %v1671 = vpack.c.bf16 %v1666, %v1665
      %v1672 = vpack.c.bf16 %v1668, %v1667
      %v1673 = vld [vmem:[%s6] sm:$0xf]
      %v1674 = vld [vmem:[%s6 + $0x4] sm:$0xf]
      %v1675 = vld [vmem:[%s6 + $0x8] sm:$0xf]
      %v1676 = vld [vmem:[%s6 + $0xc] sm:$0xf]
      %v1677 = vld [vmem:[%s7] sm:$0x1]
      %v1679 = vperm.slane %v1677, 0
      %v1685 = vunpack.c.l.b16 %v1673
      %v1686 = vunpack.c.l.b16 %v1674
      %v1687 = vunpack.c.l.b16 %v1675
      %v1688 = vunpack.c.l.b16 %v1676
      %v1689 = vpack.c.b16 %v1686, %v1685
      %v1690 = vpack.c.b16 %v1688, %v1687
      %vm1693 = vcmask 261120
      %v1695 = vsel %vm1693, %v1669, 0
      %v1698 = vsel %vm1693, %v1670, 0
      %v1701 = vsel %vm1693, %v1671, 0
      %v1704 = vsel %vm1693, %v1672, 0
      %1706 = vmatpush.bf16.msra.mxu0 0
      %1707 = vmatpush.bf16.msra.mxu0 0
      %1708 = vmatpush.bf16.msra.mxu0 0
      %1709 = vmatpush.bf16.msra.mxu0 0
      %1710 = vmatpush.bf16.msra.mxu0 0
      %1711 = vmatpush.bf16.msra.mxu0 0
      %1712 = vmatpush.bf16.msra.mxu0 %v1690
      %1713 = vmatpush.bf16.msra.mxu0 %v1689
      %1714 = vmatmul.bf16.gmra.mxu0 %v1695
      %v1715 = vpop.f32.mrf.mxu0
      %v1716 = vadd.f32 %v1679, %v1715
      %v1717 = vpop.f32.mrf.mxu0
      %v1718 = vadd.f32 %v1679, %v1717
      %1719 = vmatmul.bf16.gmra.mxu0 %v1698
      %v1720 = vpop.f32.mrf.mxu0
      %v1721 = vadd.f32 %v1679, %v1720
      %v1722 = vpop.f32.mrf.mxu0
      %v1723 = vadd.f32 %v1679, %v1722
      %1724 = vmatmul.bf16.gmra.mxu0 %v1701
      %v1725 = vpop.f32.mrf.mxu0
      %v1726 = vadd.f32 %v1679, %v1725
      %v1727 = vpop.f32.mrf.mxu0
      %v1728 = vadd.f32 %v1679, %v1727
      %1729 = vmatmul.bf16.gmra.mxu0 %v1704
      %v1730 = vpop.f32.mrf.mxu0
      %v1731 = vadd.f32 %v1679, %v1730
      %v1732 = vpop.f32.mrf.mxu0
      %v1733 = vadd.f32 %v1679, %v1732
      %1734 = vdwg.mxu0
      %v1735 = vadd.f32 %v477, %v1716
      %v1736 = vadd.f32 %v478, %v1718
      %v1737 = vadd.f32 %v479, %v1721
      %v1738 = vadd.f32 %v480, %v1723
      %v1739 = vadd.f32 %v481, %v1726
      %v1740 = vadd.f32 %v482, %v1728
      %v1741 = vadd.f32 %v483, %v1731
      %v1742 = vadd.f32 %v484, %v1733
      %v1743 = vld [vmem:[%s8] sm:$0x1]
      %v1744 = vld [vmem:[%s9] sm:$0x1]
      %1745 = vadd.xlane.f32.xlu0 %v1735
      %v1746 = vpop.xlane.xlu0 %1745
      %1747 = vadd.xlane.f32.xlu0 %v1736
      %v1748 = vpop.xlane.xlu0 %1747
      %1749 = vadd.xlane.f32.xlu0 %v1737
      %v1750 = vpop.xlane.xlu0 %1749
      %1751 = vadd.xlane.f32.xlu0 %v1738
      %v1752 = vpop.xlane.xlu0 %1751
      %1753 = vadd.xlane.f32.xlu0 %v1739
      %v1754 = vpop.xlane.xlu0 %1753
      %1755 = vadd.xlane.f32.xlu0 %v1740
      %v1756 = vpop.xlane.xlu0 %1755
      %1757 = vadd.xlane.f32.xlu0 %v1741
      %v1758 = vpop.xlane.xlu0 %1757
      %1759 = vadd.xlane.f32.xlu0 %v1742
      %v1760 = vpop.xlane.xlu0 %1759
      %v1761 = vmul.f32 %v1746, %v512
      %v1762 = vmul.f32 %v1748, %v512
      %v1763 = vmul.f32 %v1750, %v512
      %v1764 = vmul.f32 %v1752, %v512
      %v1765 = vmul.f32 %v1754, %v512
      %v1766 = vmul.f32 %v1756, %v512
      %v1767 = vmul.f32 %v1758, %v512
      %v1768 = vmul.f32 %v1760, %v512
      %v1769 = vsub.f32 %v1735, %v1761
      %v1770 = vsub.f32 %v1736, %v1762
      %v1771 = vsub.f32 %v1737, %v1763
      %v1772 = vsub.f32 %v1738, %v1764
      %v1773 = vsub.f32 %v1739, %v1765
      %v1774 = vsub.f32 %v1740, %v1766
      %v1775 = vsub.f32 %v1741, %v1767
      %v1776 = vsub.f32 %v1742, %v1768
      %v1777 = vsel %vm489, %v1769, 0.0
      %v1778 = vsel %vm489, %v1770, 0.0
      %v1779 = vsel %vm489, %v1771, 0.0
      %v1780 = vsel %vm489, %v1772, 0.0
      %v1781 = vsel %vm489, %v1773, 0.0
      %v1782 = vsel %vm489, %v1774, 0.0
      %v1783 = vsel %vm489, %v1775, 0.0
      %v1784 = vsel %vm489, %v1776, 0.0
      %v1785 = vmul.f32 %v1777, %v1777
      %v1786 = vmul.f32 %v1778, %v1778
      %v1787 = vmul.f32 %v1779, %v1779
      %v1788 = vmul.f32 %v1780, %v1780
      %v1789 = vmul.f32 %v1781, %v1781
      %v1790 = vmul.f32 %v1782, %v1782
      %v1791 = vmul.f32 %v1783, %v1783
      %v1792 = vmul.f32 %v1784, %v1784
      %1793 = vadd.xlane.f32.xlu0 %v1785
      %v1794 = vpop.xlane.xlu0 %1793
      %1795 = vadd.xlane.f32.xlu0 %v1786
      %v1796 = vpop.xlane.xlu0 %1795
      %1797 = vadd.xlane.f32.xlu0 %v1787
      %v1798 = vpop.xlane.xlu0 %1797
      %1799 = vadd.xlane.f32.xlu0 %v1788
      %v1800 = vpop.xlane.xlu0 %1799
      %1801 = vadd.xlane.f32.xlu0 %v1789
      %v1802 = vpop.xlane.xlu0 %1801
      %1803 = vadd.xlane.f32.xlu0 %v1790
      %v1804 = vpop.xlane.xlu0 %1803
      %1805 = vadd.xlane.f32.xlu0 %v1791
      %v1806 = vpop.xlane.xlu0 %1805
      %1807 = vadd.xlane.f32.xlu0 %v1792
      %v1808 = vpop.xlane.xlu0 %1807
      %v1809 = vmul.f32 %v1794, %v512
      %v1810 = vmul.f32 %v1796, %v512
      %v1811 = vmul.f32 %v1798, %v512
      %v1812 = vmul.f32 %v1800, %v512
      %v1813 = vmul.f32 %v1802, %v512
      %v1814 = vmul.f32 %v1804, %v512
      %v1815 = vmul.f32 %v1806, %v512
      %v1816 = vmul.f32 %v1808, %v512
      %v1817 = vadd.f32 %v1809, 1e-05
      %v1818 = vadd.f32 %v1810, 1e-05
      %v1819 = vadd.f32 %v1811, 1e-05
      %v1820 = vadd.f32 %v1812, 1e-05
      %v1821 = vadd.f32 %v1813, 1e-05
      %v1822 = vadd.f32 %v1814, 1e-05
      %v1823 = vadd.f32 %v1815, 1e-05
      %v1824 = vadd.f32 %v1816, 1e-05
      %v1825 = vrsqrt.pop %v1817
      %v1826 = vmul.f32 %v1825, %v1817
      %v1827 = vmul.f32 %v1826, %v1825
      %v1828 = vmul.f32 0.5, %v1827
      %v1829 = vsub.f32 1.5, %v1828
      %v1830 = vmul.f32 %v1825, %v1829
      %vm1831 = vweird.f32 %v1817
      %vm1832 = vweird.f32 %v1825
      %vm1833 = vmor %vm1831, %vm1832
      %v1834 = vsel %vm1833, %v1825, %v1830
      %v1835 = vrsqrt.pop %v1818
      %v1836 = vmul.f32 %v1835, %v1818
      %v1837 = vmul.f32 %v1836, %v1835
      %v1838 = vmul.f32 0.5, %v1837
      %v1839 = vsub.f32 1.5, %v1838
      %v1840 = vmul.f32 %v1835, %v1839
      %vm1841 = vweird.f32 %v1818
      %vm1842 = vweird.f32 %v1835
      %vm1843 = vmor %vm1841, %vm1842
      %v1844 = vsel %vm1843, %v1835, %v1840
      %v1845 = vrsqrt.pop %v1819
      %v1846 = vmul.f32 %v1845, %v1819
      %v1847 = vmul.f32 %v1846, %v1845
      %v1848 = vmul.f32 0.5, %v1847
      %v1849 = vsub.f32 1.5, %v1848
      %v1850 = vmul.f32 %v1845, %v1849
      %vm1851 = vweird.f32 %v1819
      %vm1852 = vweird.f32 %v1845
      %vm1853 = vmor %vm1851, %vm1852
      %v1854 = vsel %vm1853, %v1845, %v1850
      %v1855 = vrsqrt.pop %v1820
      %v1856 = vmul.f32 %v1855, %v1820
      %v1857 = vmul.f32 %v1856, %v1855
      %v1858 = vmul.f32 0.5, %v1857
      %v1859 = vsub.f32 1.5, %v1858
      %v1860 = vmul.f32 %v1855, %v1859
      %vm1861 = vweird.f32 %v1820
      %vm1862 = vweird.f32 %v1855
      %vm1863 = vmor %vm1861, %vm1862
      %v1864 = vsel %vm1863, %v1855, %v1860
      %v1865 = vrsqrt.pop %v1821
      %v1866 = vmul.f32 %v1865, %v1821
      %v1867 = vmul.f32 %v1866, %v1865
      %v1868 = vmul.f32 0.5, %v1867
      %v1869 = vsub.f32 1.5, %v1868
      %v1870 = vmul.f32 %v1865, %v1869
      %vm1871 = vweird.f32 %v1821
      %vm1872 = vweird.f32 %v1865
      %vm1873 = vmor %vm1871, %vm1872
      %v1874 = vsel %vm1873, %v1865, %v1870
      %v1875 = vrsqrt.pop %v1822
      %v1876 = vmul.f32 %v1875, %v1822
      %v1877 = vmul.f32 %v1876, %v1875
      %v1878 = vmul.f32 0.5, %v1877
      %v1879 = vsub.f32 1.5, %v1878
      %v1880 = vmul.f32 %v1875, %v1879
      %vm1881 = vweird.f32 %v1822
      %vm1882 = vweird.f32 %v1875
      %vm1883 = vmor %vm1881, %vm1882
      %v1884 = vsel %vm1883, %v1875, %v1880
      %v1885 = vrsqrt.pop %v1823
      %v1886 = vmul.f32 %v1885, %v1823
      %v1887 = vmul.f32 %v1886, %v1885
      %v1888 = vmul.f32 0.5, %v1887
      %v1889 = vsub.f32 1.5, %v1888
      %v1890 = vmul.f32 %v1885, %v1889
      %vm1891 = vweird.f32 %v1823
      %vm1892 = vweird.f32 %v1885
      %vm1893 = vmor %vm1891, %vm1892
      %v1894 = vsel %vm1893, %v1885, %v1890
      %v1895 = vrsqrt.pop %v1824
      %v1896 = vmul.f32 %v1895, %v1824
      %v1897 = vmul.f32 %v1896, %v1895
      %v1898 = vmul.f32 0.5, %v1897
      %v1899 = vsub.f32 1.5, %v1898
      %v1900 = vmul.f32 %v1895, %v1899
      %vm1901 = vweird.f32 %v1824
      %vm1902 = vweird.f32 %v1895
      %vm1903 = vmor %vm1901, %vm1902
      %v1904 = vsel %vm1903, %v1895, %v1900
      %v1905 = vmul.f32 %v1777, %v1834
      %v1906 = vmul.f32 %v1778, %v1844
      %v1907 = vmul.f32 %v1779, %v1854
      %v1908 = vmul.f32 %v1780, %v1864
      %v1909 = vmul.f32 %v1781, %v1874
      %v1910 = vmul.f32 %v1782, %v1884
      %v1911 = vmul.f32 %v1783, %v1894
      %v1912 = vmul.f32 %v1784, %v1904
      %v1914 = vperm.slane %v1743, 0
      %v1916 = vmul.f32 %v1905, %v1914
      %v1917 = vmul.f32 %v1906, %v1914
      %v1918 = vmul.f32 %v1907, %v1914
      %v1919 = vmul.f32 %v1908, %v1914
      %v1920 = vmul.f32 %v1909, %v1914
      %v1921 = vmul.f32 %v1910, %v1914
      %v1922 = vmul.f32 %v1911, %v1914
      %v1923 = vmul.f32 %v1912, %v1914
      %v1925 = vperm.slane %v1744, 0
      %v1927 = vadd.f32 %v1916, %v1925
      %v1928 = vadd.f32 %v1917, %v1925
      %v1929 = vadd.f32 %v1918, %v1925
      %v1930 = vadd.f32 %v1919, %v1925
      %v1931 = vadd.f32 %v1920, %v1925
      %v1932 = vadd.f32 %v1921, %v1925
      %v1933 = vadd.f32 %v1922, %v1925
      %v1934 = vadd.f32 %v1923, %v1925
      %v1935 = vpack.c.bf16 %v1928, %v1927
      %v1936 = vpack.c.bf16 %v1930, %v1929
      %v1937 = vpack.c.bf16 %v1932, %v1931
      %v1938 = vpack.c.bf16 %v1934, %v1933
      %v1939 = vld [vmem:[%s10] sm:$0xf]
      %v1940 = vld [vmem:[%s10 + $0x4] sm:$0xf]
      %v1941 = vld [vmem:[%s10 + $0x8] sm:$0xf]
      %v1942 = vld [vmem:[%s10 + $0xc] sm:$0xf]
      %v1943 = vld [vmem:[%s10 + $0x10] sm:$0xf]
      %v1944 = vld [vmem:[%s10 + $0x14] sm:$0xf]
      %v1945 = vld [vmem:[%s10 + $0x18] sm:$0xf]
      %v1946 = vld [vmem:[%s10 + $0x1c] sm:$0xf]
      %v1947 = vld [vmem:[%s10 + $0x20] sm:$0xf]
      %v1948 = vld [vmem:[%s10 + $0x24] sm:$0xf]
      %v1949 = vld [vmem:[%s10 + $0x28] sm:$0xf]
      %v1950 = vld [vmem:[%s10 + $0x2c] sm:$0xf]
      %v1951 = vld [vmem:[%s10 + $0x30] sm:$0xf]
      %v1952 = vld [vmem:[%s10 + $0x34] sm:$0xf]
      %v1953 = vld [vmem:[%s10 + $0x38] sm:$0xf]
      %v1954 = vld [vmem:[%s10 + $0x3c] sm:$0xf]
      %v1955 = vld [vmem:[%s11] sm:$0x1]
      %v1957 = vperm.slane %v1955, 0
      %v1975 = vunpack.c.l.b16 %v1939
      %v1976 = vunpack.c.l.b16 %v1940
      %v1977 = vunpack.c.l.b16 %v1941
      %v1978 = vunpack.c.l.b16 %v1942
      %v1979 = vunpack.c.l.b16 %v1943
      %v1980 = vunpack.c.l.b16 %v1944
      %v1981 = vunpack.c.l.b16 %v1945
      %v1982 = vunpack.c.l.b16 %v1946
      %v1983 = vunpack.c.l.b16 %v1947
      %v1984 = vunpack.c.l.b16 %v1948
      %v1985 = vunpack.c.l.b16 %v1949
      %v1986 = vunpack.c.l.b16 %v1950
      %v1987 = vunpack.c.l.b16 %v1951
      %v1988 = vunpack.c.l.b16 %v1952
      %v1989 = vunpack.c.l.b16 %v1953
      %v1990 = vunpack.c.l.b16 %v1954
      %v1991 = vpack.c.b16 %v1976, %v1975
      %v1992 = vpack.c.b16 %v1978, %v1977
      %v1993 = vpack.c.b16 %v1980, %v1979
      %v1994 = vpack.c.b16 %v1982, %v1981
      %v1995 = vpack.c.b16 %v1984, %v1983
      %v1996 = vpack.c.b16 %v1986, %v1985
      %v1997 = vpack.c.b16 %v1988, %v1987
      %v1998 = vpack.c.b16 %v1990, %v1989
      %2007 = vmatpush.bf16.msra.mxu0 %v1998
      %2008 = vmatpush.bf16.msra.mxu0 %v1997
      %2009 = vmatpush.bf16.msra.mxu0 %v1996
      %2010 = vmatpush.bf16.msra.mxu0 %v1995
      %2011 = vmatpush.bf16.msra.mxu0 %v1994
      %2012 = vmatpush.bf16.msra.mxu0 %v1993
      %2013 = vmatpush.bf16.msra.mxu0 %v1992
      %2014 = vmatpush.bf16.msra.mxu0 %v1991
      %2015 = vmatmul.bf16.gmra.mxu0 %v1935
      %v2016 = vpop.f32.mrf.mxu0
      %v2017 = vadd.f32 %v1957, %v2016
      %v2018 = vpop.f32.mrf.mxu0
      %v2019 = vadd.f32 %v1957, %v2018
      %2020 = vmatmul.bf16.gmra.mxu0 %v1936
      %v2021 = vpop.f32.mrf.mxu0
      %v2022 = vadd.f32 %v1957, %v2021
      %v2023 = vpop.f32.mrf.mxu0
      %v2024 = vadd.f32 %v1957, %v2023
      %2025 = vmatmul.bf16.gmra.mxu0 %v1937
      %v2026 = vpop.f32.mrf.mxu0
      %v2027 = vadd.f32 %v1957, %v2026
      %v2028 = vpop.f32.mrf.mxu0
      %v2029 = vadd.f32 %v1957, %v2028
      %2030 = vmatmul.bf16.gmra.mxu0 %v1938
      %v2031 = vpop.f32.mrf.mxu0
      %v2032 = vadd.f32 %v1957, %v2031
      %v2033 = vpop.f32.mrf.mxu0
      %v2034 = vadd.f32 %v1957, %v2033
      %2035 = vdwg.mxu0
      %v2036 = vmul.f32 %v2017, %v2017
      %v2037 = vmul.f32 %v2019, %v2019
      %v2038 = vmul.f32 %v2022, %v2022
      %v2039 = vmul.f32 %v2024, %v2024
      %v2040 = vmul.f32 %v2027, %v2027
      %v2041 = vmul.f32 %v2029, %v2029
      %v2042 = vmul.f32 %v2032, %v2032
      %v2043 = vmul.f32 %v2034, %v2034
      %v2044 = vmul.f32 %v2017, %v2036
      %v2045 = vmul.f32 %v2019, %v2037
      %v2046 = vmul.f32 %v2022, %v2038
      %v2047 = vmul.f32 %v2024, %v2039
      %v2048 = vmul.f32 %v2027, %v2040
      %v2049 = vmul.f32 %v2029, %v2041
      %v2050 = vmul.f32 %v2032, %v2042
      %v2051 = vmul.f32 %v2034, %v2043
      %v2052 = vmul.f32 %v2044, 0.044715
      %v2053 = vmul.f32 %v2045, 0.044715
      %v2054 = vmul.f32 %v2046, 0.044715
      %v2055 = vmul.f32 %v2047, 0.044715
      %v2056 = vmul.f32 %v2048, 0.044715
      %v2057 = vmul.f32 %v2049, 0.044715
      %v2058 = vmul.f32 %v2050, 0.044715
      %v2059 = vmul.f32 %v2051, 0.044715
      %v2060 = vadd.f32 %v2017, %v2052
      %v2061 = vadd.f32 %v2019, %v2053
      %v2062 = vadd.f32 %v2022, %v2054
      %v2063 = vadd.f32 %v2024, %v2055
      %v2064 = vadd.f32 %v2027, %v2056
      %v2065 = vadd.f32 %v2029, %v2057
      %v2066 = vadd.f32 %v2032, %v2058
      %v2067 = vadd.f32 %v2034, %v2059
      %v2068 = vmul.f32 %v2060, 0.7978846
      %v2069 = vmul.f32 %v2061, 0.7978846
      %v2070 = vmul.f32 %v2062, 0.7978846
      %v2071 = vmul.f32 %v2063, 0.7978846
      %v2072 = vmul.f32 %v2064, 0.7978846
      %v2073 = vmul.f32 %v2065, 0.7978846
      %v2074 = vmul.f32 %v2066, 0.7978846
      %v2075 = vmul.f32 %v2067, 0.7978846
      %v2076 = vtanh.pop %v2068
      %v2077 = vtanh.pop %v2069
      %v2078 = vtanh.pop %v2070
      %v2079 = vtanh.pop %v2071
      %v2080 = vtanh.pop %v2072
      %v2081 = vtanh.pop %v2073
      %v2082 = vtanh.pop %v2074
      %v2083 = vtanh.pop %v2075
      %v2084 = vadd.f32 %v2076, 1.0
      %v2085 = vadd.f32 %v2077, 1.0
      %v2086 = vadd.f32 %v2078, 1.0
      %v2087 = vadd.f32 %v2079, 1.0
      %v2088 = vadd.f32 %v2080, 1.0
      %v2089 = vadd.f32 %v2081, 1.0
      %v2090 = vadd.f32 %v2082, 1.0
      %v2091 = vadd.f32 %v2083, 1.0
      %v2092 = vmul.f32 %v2084, 0.5
      %v2093 = vmul.f32 %v2085, 0.5
      %v2094 = vmul.f32 %v2086, 0.5
      %v2095 = vmul.f32 %v2087, 0.5
      %v2096 = vmul.f32 %v2088, 0.5
      %v2097 = vmul.f32 %v2089, 0.5
      %v2098 = vmul.f32 %v2090, 0.5
      %v2099 = vmul.f32 %v2091, 0.5
      %v2100 = vmul.f32 %v2017, %v2092
      %v2101 = vmul.f32 %v2019, %v2093
      %v2102 = vmul.f32 %v2022, %v2094
      %v2103 = vmul.f32 %v2024, %v2095
      %v2104 = vmul.f32 %v2027, %v2096
      %v2105 = vmul.f32 %v2029, %v2097
      %v2106 = vmul.f32 %v2032, %v2098
      %v2107 = vmul.f32 %v2034, %v2099
      %v2108 = vpack.c.bf16 %v2101, %v2100
      %v2109 = vpack.c.bf16 %v2103, %v2102
      %v2110 = vpack.c.bf16 %v2105, %v2104
      %v2111 = vpack.c.bf16 %v2107, %v2106
      %v2112 = vld [vmem:[%s12] sm:$0xf]
      %v2113 = vld [vmem:[%s12 + $0x4] sm:$0xf]
      %v2114 = vld [vmem:[%s12 + $0x8] sm:$0xf]
      %v2115 = vld [vmem:[%s12 + $0xc] sm:$0xf]
      %v2116 = vld [vmem:[%s12 + $0x10] sm:$0xf]
      %v2117 = vld [vmem:[%s12 + $0x14] sm:$0xf]
      %v2118 = vld [vmem:[%s12 + $0x18] sm:$0xf]
      %v2119 = vld [vmem:[%s12 + $0x1c] sm:$0xf]
      %v2120 = vld [vmem:[%s12 + $0x20] sm:$0xf]
      %v2121 = vld [vmem:[%s12 + $0x24] sm:$0xf]
      %v2122 = vld [vmem:[%s12 + $0x28] sm:$0xf]
      %v2123 = vld [vmem:[%s12 + $0x2c] sm:$0xf]
      %v2124 = vld [vmem:[%s12 + $0x30] sm:$0xf]
      %v2125 = vld [vmem:[%s12 + $0x34] sm:$0xf]
      %v2126 = vld [vmem:[%s12 + $0x38] sm:$0xf]
      %v2127 = vld [vmem:[%s12 + $0x3c] sm:$0xf]
      %v2128 = vld [vmem:[%s13] sm:$0x1]
      %v2130 = vperm.slane %v2128, 0
      %v2148 = vunpack.c.l.b16 %v2112
      %v2149 = vunpack.c.l.b16 %v2113
      %v2150 = vunpack.c.l.b16 %v2114
      %v2151 = vunpack.c.l.b16 %v2115
      %v2152 = vunpack.c.l.b16 %v2116
      %v2153 = vunpack.c.l.b16 %v2117
      %v2154 = vunpack.c.l.b16 %v2118
      %v2155 = vunpack.c.l.b16 %v2119
      %v2156 = vunpack.c.l.b16 %v2120
      %v2157 = vunpack.c.l.b16 %v2121
      %v2158 = vunpack.c.l.b16 %v2122
      %v2159 = vunpack.c.l.b16 %v2123
      %v2160 = vunpack.c.l.b16 %v2124
      %v2161 = vunpack.c.l.b16 %v2125
      %v2162 = vunpack.c.l.b16 %v2126
      %v2163 = vunpack.c.l.b16 %v2127
      %v2164 = vpack.c.b16 %v2149, %v2148
      %v2165 = vpack.c.b16 %v2151, %v2150
      %v2166 = vpack.c.b16 %v2153, %v2152
      %v2167 = vpack.c.b16 %v2155, %v2154
      %v2168 = vpack.c.b16 %v2157, %v2156
      %v2169 = vpack.c.b16 %v2159, %v2158
      %v2170 = vpack.c.b16 %v2161, %v2160
      %v2171 = vpack.c.b16 %v2163, %v2162
      %2180 = vmatpush.bf16.msra.mxu0 %v2171
      %2181 = vmatpush.bf16.msra.mxu0 %v2170
      %2182 = vmatpush.bf16.msra.mxu0 %v2169
      %2183 = vmatpush.bf16.msra.mxu0 %v2168
      %2184 = vmatpush.bf16.msra.mxu0 %v2167
      %2185 = vmatpush.bf16.msra.mxu0 %v2166
      %2186 = vmatpush.bf16.msra.mxu0 %v2165
      %2187 = vmatpush.bf16.msra.mxu0 %v2164
      %2188 = vmatmul.bf16.gmra.mxu0 %v2108
      %v2189 = vpop.f32.mrf.mxu0
      %v2190 = vadd.f32 %v2130, %v2189
      %v2191 = vpop.f32.mrf.mxu0
      %v2192 = vadd.f32 %v2130, %v2191
      %2193 = vmatmul.bf16.gmra.mxu0 %v2109
      %v2194 = vpop.f32.mrf.mxu0
      %v2195 = vadd.f32 %v2130, %v2194
      %v2196 = vpop.f32.mrf.mxu0
      %v2197 = vadd.f32 %v2130, %v2196
      %2198 = vmatmul.bf16.gmra.mxu0 %v2110
      %v2199 = vpop.f32.mrf.mxu0
      %v2200 = vadd.f32 %v2130, %v2199
      %v2201 = vpop.f32.mrf.mxu0
      %v2202 = vadd.f32 %v2130, %v2201
      %2203 = vmatmul.bf16.gmra.mxu0 %v2111
      %v2204 = vpop.f32.mrf.mxu0
      %v2205 = vadd.f32 %v2130, %v2204
      %v2206 = vpop.f32.mrf.mxu0
      %v2207 = vadd.f32 %v2130, %v2206
      %2208 = vdwg.mxu0
      %v2209 = vadd.f32 %v1735, %v2190
      %v2210 = vadd.f32 %v1736, %v2192
      %v2211 = vadd.f32 %v1737, %v2195
      %v2212 = vadd.f32 %v1738, %v2197
      %v2213 = vadd.f32 %v1739, %v2200
      %v2214 = vadd.f32 %v1740, %v2202
      %v2215 = vadd.f32 %v1741, %v2205
      %v2216 = vadd.f32 %v1742, %v2207
      %v2217 = vpack.c.bf16 %v2209, %v2209
      %v2218 = vpack.c.bf16 %v2210, %v2210
      %v2219 = vpack.c.bf16 %v2211, %v2211
      %v2220 = vpack.c.bf16 %v2212, %v2212
      %v2221 = vpack.c.bf16 %v2213, %v2213
      %v2222 = vpack.c.bf16 %v2214, %v2214
      %v2223 = vpack.c.bf16 %v2215, %v2215
      %v2224 = vpack.c.bf16 %v2216, %v2216
      %2225 = vst [vmem:[%s467] sm:$0xf] %v2217
      %2226 = vst [vmem:[%s467 + $0x4] sm:$0xf] %v2218
      %2227 = vst [vmem:[%s467 + $0x8] sm:$0xf] %v2219
      %2228 = vst [vmem:[%s467 + $0xc] sm:$0xf] %v2220
      %2229 = vst [vmem:[%s467 + $0x10] sm:$0xf] %v2221
      %2230 = vst [vmem:[%s467 + $0x14] sm:$0xf] %v2222
      %2231 = vst [vmem:[%s467 + $0x18] sm:$0xf] %v2223
      %2232 = vst [vmem:[%s467 + $0x1c] sm:$0xf] %v2224
      %p2233 = scmp.lt.s32.totalorder %s25, 1
      %s2234 = scalar_select %p2233, %s25, 1
      %s2235 = smul.addr %s2234, 8
      %s2236 = smul.addr %s2235, 4
      %s2237 = scalar_lea.vmem %s14, %s2236
      // Predicated region
      $region77: #{coatnet_forward.6} parent=75 // pred_check
        %p2238 = pneg %p342
      $region78: #{coatnet_forward.6} parent=75 // pred_check_branch
        %2240 = sbr.rel (%p2238) target = $region80
      $region79: #{coatnet_forward.6} parent=75 // pred_region
        _
      $region80: #{coatnet_forward.6} parent=75 // pred_fallthru
        _
    $region76: #{coatnet_forward.6} parent=5 // pred_fallthru
      _
    %p2241 = scmp.le.s32.totalorder 2, %s20
    // Predicated region
    $region81: #{coatnet_forward.6} parent=5 // pred_check
      %p2242 = pneg %p2241
    $region82: #{coatnet_forward.6} parent=5 // pred_check_branch
      %2244 = sbr.rel (%p2242) target = $region84
    $region83: #{coatnet_forward.6} parent=5 // pred_region
      %s2245 = ssub.s32 %s20, 2
      // Predicated region
      $region85: #{coatnet_forward.6} parent=83 // pred_check
        %p2246 = pneg %p348
      $region86: #{coatnet_forward.6} parent=83 // pred_check_branch
        %2248 = sbr.rel (%p2246) target = $region88
      $region87: #{coatnet_forward.6} parent=83 // pred_region
        %p2249 = scmp.lt.s32.totalorder %s26, 1
        %s2250 = scalar_select %p2249, %s26, 1
        %s2251 = smul.addr %s2250, 8
        %s2252 = smul.addr %s2251, 4
        %s2253 = scalar_lea.vmem %s14, %s2252
      $region88: #{coatnet_forward.6} parent=83 // pred_fallthru
        _
    $region84: #{coatnet_forward.6} parent=5 // pred_fallthru
      _
  $region6: #{coatnet_forward.6} parent=0 // loop_footer
    %s24 = sadd.s32 1, %s20
  $region7: #{coatnet_forward.6} parent=0 // loop_footer_branch
    %19 = sbr.rel target = $region3
  $region8: #{coatnet_forward.6} parent=0 // loop_exit
    _

</llo_original>
